<compile_context>
chip_gen: v7x
topology: tpu7x:2x2x1
jax: 0.10.0
libtpu: 0.0.40
codegen_flags: <defaults>
</compile_context>

<pallas_src>
from functools import partial

import jax
import jax.numpy as jnp
from jax.experimental import pallas as pl
from jax.experimental.pallas import tpu as pltpu


# ------------------------------- Pallas kernel -------------------------------

def _recursive_block_kernel(x_ref, mask_ref, w1_ref, b1_ref, w2_ref, b2_ref,
                            wc_ref, bc_ref, o_ref, ext_ref, cat_ref,
                            *, Cp, Wp, Lpad, margin, num_blocks):
    """Fused RecursiveBlock forward for one image.

    Layout: activations are (Cp, Lpad) -- channels-first, spatially flattened
    with a zero 1-pixel "ring" plus zero lane padding up to Lpad (lane axis).

    x_ref   : (1, Cp, Lpad) f32   padded input image (zero ring / lane / chan pad)
    mask_ref: (1, Lpad)     f32   1 at interior pixels, 0 on ring + lane pad
    w1_ref  : (9, Cp, Cp)   bf16  residual conv #1 per-tap weights [t, cout, cin]
    b1_ref  : (Cp, 1)       f32
    w2_ref  : (9, Cp, Cp)   bf16  residual conv #2 per-tap weights
    b2_ref  : (Cp, 1)       f32
    wc_ref  : (nb, Cp, Cp*(nb+1)) bf16  1x1 cascade weights, zero padded on Cin
    bc_ref  : (nb, Cp, 1)   f32
    o_ref   : (1, Cp, Lpad) f32   final cascade output
    ext_ref : (Cp, Lpad + 2*margin) bf16 VMEM scratch -- halo'd conv input
    cat_ref : (Cp*(nb+1), Lpad)     bf16 VMEM scratch -- running torch.cat buffer
    """
    x = x_ref[0]                                        # (Cp, Lpad) f32
    maskb = jnp.broadcast_to(mask_ref[...], (Cp, Lpad))  # hoisted broadcasts
    b1b = jnp.broadcast_to(b1_ref[...], (Cp, Lpad))
    b2b = jnp.broadcast_to(b2_ref[...], (Cp, Lpad))

    # flat-layout tap shifts relative to the output pixel: (ky-1)*Wp + (kx-1)
    shifts = [(ky - 1) * Wp + (kx - 1) for ky in range(3) for kx in range(3)]

    # Zero the halo scratch once per grid step: stale VMEM in the margins would
    # otherwise leak (NaN * 0 == NaN) into the pad ring and then the interior.
    ext_ref[...] = jnp.zeros_like(ext_ref)

    def conv3x3(src_bf, w_ref, bias_b):
        # src_bf: (Cp, Lpad) bf16 with zero pad-ring.  Write the interior of
        # the halo'd scratch once, then 9 statically lane-shifted slices feed
        # 9 accumulated MXU matmuls (no (9*Cp, Lpad) tap buffer, no concat).
        ext_ref[:, margin:margin + Lpad] = src_bf
        acc = bias_b
        for t, d in enumerate(shifts):
            tap = ext_ref[:, margin + d:margin + d + Lpad]      # (Cp, Lpad) bf16
            acc = acc + jnp.dot(w_ref[t], tap,
                                preferred_element_type=jnp.float32)
        return acc                                              # (Cp, Lpad) f32

    def residual(src_f32, src_bf):
        h = jnp.maximum(conv3x3(src_bf, w1_ref, b1b), 0.0) * maskb   # re-zero ring
        h = conv3x3(h.astype(jnp.bfloat16), w2_ref, b2b) + src_f32
        return jnp.maximum(h, 0.0) * maskb

    x_bf = x.astype(jnp.bfloat16)
    cat_ref[0:Cp, :] = x_bf                         # torch.cat([...]) lives here
    cur_f32, cur_bf = x, x_bf
    for i in range(num_blocks):                      # static unroll (shared weights)
        x_ = residual(cur_f32, cur_bf)               # (Cp, Lpad) f32
        cat_ref[Cp * (i + 1):Cp * (i + 2), :] = x_.astype(jnp.bfloat16)
        cin = Cp * (i + 2)
        wci = wc_ref[i][:, :cin]                     # (Cp, cin) bf16
        cur_f32 = (jnp.dot(wci, cat_ref[0:cin, :],
                           preferred_element_type=jnp.float32)
                   + bc_ref[i]) * maskb              # keep zero-ring invariant
        cur_bf = cur_f32.astype(jnp.bfloat16)

    o_ref[0] = cur_f32


# ------------------------------ parameters -----------------------------------

def init_params(key, c, num_blocks):
    """Deterministic PyTorch-style (OIHW) init, stored in HWIO for both paths."""
    keys = iter(jax.random.split(key, 4 + 2 * num_blocks))

    def conv_w(k, cout, cin, kh, kw):
        scale = 1.0 / float(cin * kh * kw) ** 0.5
        return jax.random.uniform(k, (cout, cin, kh, kw), jnp.float32, -scale, scale)

    def conv_b(k, cout, fan_in):
        scale = 1.0 / float(fan_in) ** 0.5
        return jax.random.uniform(k, (cout,), jnp.float32, -scale, scale)

    p = {}
    rw1 = conv_w(next(keys), c, c, 3, 3)
    rb1 = conv_b(next(keys), c, c * 9)
    rw2 = conv_w(next(keys), c, c, 3, 3)
    rb2 = conv_b(next(keys), c, c * 9)
    p['rw1_hwio'] = jnp.transpose(rw1, (2, 3, 1, 0))
    p['rw2_hwio'] = jnp.transpose(rw2, (2, 3, 1, 0))
    p['rb1'] = rb1
    p['rb2'] = rb2
    cw, cb = [], []
    for i in range(num_blocks):
        cin = c * (i + 2)
        w = conv_w(next(keys), c, cin, 1, 1)
        b = conv_b(next(keys), c, cin)
        cw.append(jnp.transpose(w, (2, 3, 1, 0)))   # (1, 1, cin, c) HWIO
        cb.append(b)
    p['cw_hwio'] = cw
    p['cb'] = cb
    return p


# ------------------------------ forward passes --------------------------------

def recursive_block_pallas(x_nchw, params, num_blocks):
    x = x_nchw.astype(jnp.float32)
    n, c, h, w = x.shape
    cp = -(-c // 8) * 8                      # sublane-dense channel count
    hp, wp = h + 2, w + 2
    lp = hp * wp
    lpad = -(-lp // 128) * 128               # lane-dense spatial length
    margin = -(-(wp + 1) // 128) * 128       # halo width, 128-aligned interior
    cmax_p = cp * (num_blocks + 1)

    # zero-ring padded, spatially flattened, channels-first, zero pad to (cp, lpad)
    xpf = jnp.pad(x, ((0, 0), (0, 0), (1, 1), (1, 1))).reshape(n, c, lp)
    xpf = jnp.pad(xpf, ((0, 0), (0, cp - c), (0, lpad - lp)))
    mask = jnp.pad(jnp.ones((h, w), jnp.float32), ((1, 1), (1, 1))).reshape(1, lp)
    mask = jnp.pad(mask, ((0, 0), (0, lpad - lp)))

    # per-tap residual conv weights (9, cp, cp): [t=ky*3+kx, cout, cin], bf16
    def tapify(w_hwio):                      # (3, 3, c, c) = [kh, kw, cin, cout]
        wt = jnp.transpose(w_hwio, (0, 1, 3, 2)).reshape(9, c, c)
        return jnp.pad(wt, ((0, 0), (0, cp - c), (0, cp - c))).astype(jnp.bfloat16)

    w1t = tapify(params['rw1_hwio'])
    w2t = tapify(params['rw2_hwio'])
    b1 = jnp.pad(params['rb1'], (0, cp - c)).reshape(cp, 1)
    b2 = jnp.pad(params['rb2'], (0, cp - c)).reshape(cp, 1)

    # 1x1 cascade weights: (nb, cp, cmax_p); input channels regrouped into
    # blocks of cp matching the cat-buffer row layout, zero padded elsewhere.
    wc = jnp.zeros((num_blocks, cp, cmax_p), jnp.float32)
    for i in range(num_blocks):
        wi = jnp.transpose(params['cw_hwio'][i][0, 0])        # (c, (i+2)*c)
        wi = wi.reshape(c, i + 2, c)                          # [cout, block, ci]
        wi = jnp.pad(wi, ((0, cp - c), (0, 0), (0, cp - c)))  # (cp, i+2, cp)
        wc = wc.at[i, :, :(i + 2) * cp].set(wi.reshape(cp, (i + 2) * cp))
    wc = wc.astype(jnp.bfloat16)
    bc = jnp.stack([jnp.pad(b, (0, cp - c)) for b in params['cb']],
                   axis=0).reshape(num_blocks, cp, 1)

    kernel = partial(_recursive_block_kernel, Cp=cp, Wp=wp, Lpad=lpad,
                     margin=margin, num_blocks=num_blocks)

    out_flat = pl.pallas_call(
        kernel,
        out_shape=jax.ShapeDtypeStruct((n, cp, lpad), jnp.float32),
        grid=(n,),
        in_specs=[
            pl.BlockSpec((1, cp, lpad), lambda i: (i, 0, 0)),              # image
            pl.BlockSpec((1, lpad), lambda i: (0, 0)),                     # mask (resident)
            pl.BlockSpec((9, cp, cp), lambda i: (0, 0, 0)),                # conv1 W
            pl.BlockSpec((cp, 1), lambda i: (0, 0)),
            pl.BlockSpec((9, cp, cp), lambda i: (0, 0, 0)),                # conv2 W
            pl.BlockSpec((cp, 1), lambda i: (0, 0)),
            pl.BlockSpec((num_blocks, cp, cmax_p), lambda i: (0, 0, 0)),   # 1x1 cascade W
            pl.BlockSpec((num_blocks, cp, 1), lambda i: (0, 0, 0)),
        ],
        out_specs=pl.BlockSpec((1, cp, lpad), lambda i: (i, 0, 0)),
        scratch_shapes=[
            pltpu.VMEM((cp, lpad + 2 * margin), jnp.bfloat16),       # halo'd conv input
            pltpu.VMEM((cmax_p, lpad), jnp.bfloat16),                # running cat buffer
        ],
        compiler_params=pltpu.CompilerParams(
            dimension_semantics=("parallel",),
            vmem_limit_bytes=32 * 1024 * 1024),
    )(xpf, mask, w1t, b1, w2t, b2, wc, bc)

    # output is already NCHW (channels-first); drop channel/lane pad + ring
    return out_flat[:, :c, :lp].reshape(n, c, hp, wp)[:, :, 1:1 + h, 1:1 + w]


def recursive_block_reference(x_nchw, params, num_blocks):
    """Pure-JAX f32 reference (lax.conv) used to validate the Pallas path."""
    x = jnp.transpose(x_nchw, (0, 2, 3, 1)).astype(jnp.float32)

    def conv(xx, w_hwio, b):
        y = jax.lax.conv_general_dilated(
            xx, w_hwio, window_strides=(1, 1), padding='SAME',
            dimension_numbers=('NHWC', 'HWIO', 'NHWC'))
        return y + b

    def residual(xx):
        hm = jax.nn.relu(conv(xx, params['rw1_hwio'], params['rb1']))
        return jax.nn.relu(conv(hm, params['rw2_hwio'], params['rb2']) + xx)

    cur = r = x
    for i in range(num_blocks):
        x_ = residual(cur)
        r = jnp.concatenate([r, x_], axis=-1)
        cur = conv(r, params['cw_hwio'][i], params['cb'][i])
    return jnp.transpose(cur, (0, 3, 1, 2))


# ---------------------------------- main --------------------------------------

if __name__ == "__main__":
    N, C, H, W = 2, 4, 16, 16
    NUM_BLOCKS = 3

    x = jax.random.normal(jax.random.PRNGKey(0), (N, C, H, W), jnp.float32)
    params = init_params(jax.random.PRNGKey(42), C, NUM_BLOCKS)

    fwd = jax.jit(partial(recursive_block_pallas, num_blocks=NUM_BLOCKS))
    out = jax.block_until_ready(fwd(x, params))

    ref = recursive_block_reference(x, params, NUM_BLOCKS)
    assert out.shape == (N, C, H, W), out.shape
    max_err = float(jnp.max(jnp.abs(out - ref)))
    # bf16 MXU operands (f32 accumulate/epilogue) vs pure-f32 reference.
    if max_err > 5e-2:
        raise AssertionError(f"mismatch vs reference: max abs err = {max_err}")
    print("KERNEL_OK")
</pallas_src>

<mosaic_0001>
module attributes {stable_mosaic.version = 11 : i64} {
  func.func @_recursive_block_kernel(%arg0: i32, %arg1: memref<1x8x384xf32, #tpu.memory_space<vmem>>, %arg2: memref<1x384xf32, #tpu.memory_space<vmem>>, %arg3: memref<9x8x8xbf16, #tpu.memory_space<vmem>>, %arg4: memref<8x1xf32, #tpu.memory_space<vmem>>, %arg5: memref<9x8x8xbf16, #tpu.memory_space<vmem>>, %arg6: memref<8x1xf32, #tpu.memory_space<vmem>>, %arg7: memref<3x8x32xbf16, #tpu.memory_space<vmem>>, %arg8: memref<3x8x1xf32, #tpu.memory_space<vmem>>, %arg9: memref<1x8x384xf32, #tpu.memory_space<vmem>>, %arg10: memref<8x640xbf16, #tpu.memory_space<vmem>>, %arg11: memref<32x384xbf16, #tpu.memory_space<vmem>>) attributes {dimension_semantics = [#tpu.dimension_semantics<parallel>], iteration_bounds = array<i64: 2>, scalar_prefetch = 0 : i64, scratch_operands = 2 : i64, tpu.core_type = #tpu.core_type<tc>, window_params = [{transform_indices = @transform_0, window_bounds = array<i64: 1, 8, 384>}, {pipeline_mode = #tpu.pipeline_mode<synchronous>, transform_indices = @transform_1, window_bounds = array<i64: 1, 384>}, {pipeline_mode = #tpu.pipeline_mode<synchronous>, transform_indices = @transform_2, window_bounds = array<i64: 9, 8, 8>}, {pipeline_mode = #tpu.pipeline_mode<synchronous>, transform_indices = @transform_3, window_bounds = array<i64: 8, 1>}, {pipeline_mode = #tpu.pipeline_mode<synchronous>, transform_indices = @transform_4, window_bounds = array<i64: 9, 8, 8>}, {pipeline_mode = #tpu.pipeline_mode<synchronous>, transform_indices = @transform_5, window_bounds = array<i64: 8, 1>}, {pipeline_mode = #tpu.pipeline_mode<synchronous>, transform_indices = @transform_6, window_bounds = array<i64: 3, 8, 32>}, {pipeline_mode = #tpu.pipeline_mode<synchronous>, transform_indices = @transform_7, window_bounds = array<i64: 3, 8, 1>}, {transform_indices = @transform_8, window_bounds = array<i64: 1, 8, 384>}]} {
    %c0 = arith.constant 0 : index
    %c0_0 = arith.constant 0 : index
    %c0_1 = arith.constant 0 : index
    %0 = vector.load %arg1[%c0, %c0_0, %c0_1] : memref<1x8x384xf32, #tpu.memory_space<vmem>>, vector<1x8x384xf32>
    %1 = vector.shape_cast %0 : vector<1x8x384xf32> to vector<8x384xf32>
    %c0_2 = arith.constant 0 : index
    %c0_3 = arith.constant 0 : index
    %2 = vector.load %arg2[%c0_2, %c0_3] : memref<1x384xf32, #tpu.memory_space<vmem>>, vector<1x384xf32>
    %3 = vector.shape_cast %2 : vector<1x384xf32> to vector<1x384xf32>
    %4 = vector.broadcast %3 : vector<1x384xf32> to vector<8x384xf32>
    %c0_4 = arith.constant 0 : index
    %c0_5 = arith.constant 0 : index
    %5 = vector.load %arg4[%c0_4, %c0_5] : memref<8x1xf32, #tpu.memory_space<vmem>>, vector<8x1xf32>
    %6 = vector.shape_cast %5 : vector<8x1xf32> to vector<8x1xf32>
    %7 = vector.broadcast %6 : vector<8x1xf32> to vector<8x384xf32>
    %c0_6 = arith.constant 0 : index
    %c0_7 = arith.constant 0 : index
    %8 = vector.load %arg6[%c0_6, %c0_7] : memref<8x1xf32, #tpu.memory_space<vmem>>, vector<8x1xf32>
    %9 = vector.shape_cast %8 : vector<8x1xf32> to vector<8x1xf32>
    %10 = vector.broadcast %9 : vector<8x1xf32> to vector<8x384xf32>
    %cst = arith.constant 0.000000e+00 : bf16
    %11 = vector.broadcast %cst : bf16 to vector<8x640xbf16>
    %c0_8 = arith.constant 0 : index
    %c0_9 = arith.constant 0 : index
    %12 = vector.load %arg10[%c0_8, %c0_9] : memref<8x640xbf16, #tpu.memory_space<vmem>>, vector<8x640xbf16>
    tpu.vector_store %arg10[%c0_8, %c0_9], %11 {strides = array<i32>} : memref<8x640xbf16, #tpu.memory_space<vmem>>, vector<8x640xbf16>,
    %13 = arith.truncf %1 : vector<8x384xf32> to vector<8x384xbf16>
    %c0_10 = arith.constant 0 : index
    %c0_11 = arith.constant 0 : index
    %14 = vector.load %arg11[%c0_10, %c0_11] : memref<32x384xbf16, #tpu.memory_space<vmem>>, vector<8x384xbf16>
    tpu.vector_store %arg11[%c0_10, %c0_11], %13 {strides = array<i32>} : memref<32x384xbf16, #tpu.memory_space<vmem>>, vector<8x384xbf16>,
    %c0_12 = arith.constant 0 : index
    %c128 = arith.constant 128 : index
    %15 = vector.load %arg10[%c0_12, %c128] : memref<8x640xbf16, #tpu.memory_space<vmem>>, vector<8x384xbf16>
    tpu.vector_store %arg10[%c0_12, %c128], %13 {strides = array<i32>} : memref<8x640xbf16, #tpu.memory_space<vmem>>, vector<8x384xbf16>,
    %c0_13 = arith.constant 0 : index
    %c109 = arith.constant 109 : index
    %16 = vector.load %arg10[%c0_13, %c109] : memref<8x640xbf16, #tpu.memory_space<vmem>>, vector<8x384xbf16>
    %c0_14 = arith.constant 0 : index
    %c0_15 = arith.constant 0 : index
    %c0_16 = arith.constant 0 : index
    %17 = vector.load %arg3[%c0_14, %c0_15, %c0_16] : memref<9x8x8xbf16, #tpu.memory_space<vmem>>, vector<1x8x8xbf16>
    %18 = vector.shape_cast %17 : vector<1x8x8xbf16> to vector<8x8xbf16>
    %cst_17 = arith.constant dense<0.000000e+00> : vector<8x384xf32>
    %19 = tpu.matmul %18, %16, %cst_17 {dimension_numbers = #tpu.dot_dimension_numbers<[1], [0], [0], [1], [0, 0, 1, 1], [], []>} : vector<8x8xbf16>, vector<8x384xbf16>, vector<8x384xf32> -> vector<8x384xf32>
    %20 = arith.addf %7, %19 : vector<8x384xf32>
    %c0_18 = arith.constant 0 : index
    %c110 = arith.constant 110 : index
    %21 = vector.load %arg10[%c0_18, %c110] : memref<8x640xbf16, #tpu.memory_space<vmem>>, vector<8x384xbf16>
    %c1 = arith.constant 1 : index
    %c0_19 = arith.constant 0 : index
    %c0_20 = arith.constant 0 : index
    %22 = vector.load %arg3[%c1, %c0_19, %c0_20] : memref<9x8x8xbf16, #tpu.memory_space<vmem>>, vector<1x8x8xbf16>
    %23 = vector.shape_cast %22 : vector<1x8x8xbf16> to vector<8x8xbf16>
    %cst_21 = arith.constant dense<0.000000e+00> : vector<8x384xf32>
    %24 = tpu.matmul %23, %21, %cst_21 {dimension_numbers = #tpu.dot_dimension_numbers<[1], [0], [0], [1], [0, 0, 1, 1], [], []>} : vector<8x8xbf16>, vector<8x384xbf16>, vector<8x384xf32> -> vector<8x384xf32>
    %25 = arith.addf %20, %24 : vector<8x384xf32>
    %c0_22 = arith.constant 0 : index
    %c111 = arith.constant 111 : index
    %26 = vector.load %arg10[%c0_22, %c111] : memref<8x640xbf16, #tpu.memory_space<vmem>>, vector<8x384xbf16>
    %c2 = arith.constant 2 : index
    %c0_23 = arith.constant 0 : index
    %c0_24 = arith.constant 0 : index
    %27 = vector.load %arg3[%c2, %c0_23, %c0_24] : memref<9x8x8xbf16, #tpu.memory_space<vmem>>, vector<1x8x8xbf16>
    %28 = vector.shape_cast %27 : vector<1x8x8xbf16> to vector<8x8xbf16>
    %cst_25 = arith.constant dense<0.000000e+00> : vector<8x384xf32>
    %29 = tpu.matmul %28, %26, %cst_25 {dimension_numbers = #tpu.dot_dimension_numbers<[1], [0], [0], [1], [0, 0, 1, 1], [], []>} : vector<8x8xbf16>, vector<8x384xbf16>, vector<8x384xf32> -> vector<8x384xf32>
    %30 = arith.addf %25, %29 : vector<8x384xf32>
    %c0_26 = arith.constant 0 : index
    %c127 = arith.constant 127 : index
    %31 = vector.load %arg10[%c0_26, %c127] : memref<8x640xbf16, #tpu.memory_space<vmem>>, vector<8x384xbf16>
    %c3 = arith.constant 3 : index
    %c0_27 = arith.constant 0 : index
    %c0_28 = arith.constant 0 : index
    %32 = vector.load %arg3[%c3, %c0_27, %c0_28] : memref<9x8x8xbf16, #tpu.memory_space<vmem>>, vector<1x8x8xbf16>
    %33 = vector.shape_cast %32 : vector<1x8x8xbf16> to vector<8x8xbf16>
    %cst_29 = arith.constant dense<0.000000e+00> : vector<8x384xf32>
    %34 = tpu.matmul %33, %31, %cst_29 {dimension_numbers = #tpu.dot_dimension_numbers<[1], [0], [0], [1], [0, 0, 1, 1], [], []>} : vector<8x8xbf16>, vector<8x384xbf16>, vector<8x384xf32> -> vector<8x384xf32>
    %35 = arith.addf %30, %34 : vector<8x384xf32>
    %c0_30 = arith.constant 0 : index
    %c128_31 = arith.constant 128 : index
    %36 = vector.load %arg10[%c0_30, %c128_31] : memref<8x640xbf16, #tpu.memory_space<vmem>>, vector<8x384xbf16>
    %c4 = arith.constant 4 : index
    %c0_32 = arith.constant 0 : index
    %c0_33 = arith.constant 0 : index
    %37 = vector.load %arg3[%c4, %c0_32, %c0_33] : memref<9x8x8xbf16, #tpu.memory_space<vmem>>, vector<1x8x8xbf16>
    %38 = vector.shape_cast %37 : vector<1x8x8xbf16> to vector<8x8xbf16>
    %cst_34 = arith.constant dense<0.000000e+00> : vector<8x384xf32>
    %39 = tpu.matmul %38, %36, %cst_34 {dimension_numbers = #tpu.dot_dimension_numbers<[1], [0], [0], [1], [0, 0, 1, 1], [], []>} : vector<8x8xbf16>, vector<8x384xbf16>, vector<8x384xf32> -> vector<8x384xf32>
    %40 = arith.addf %35, %39 : vector<8x384xf32>
    %c0_35 = arith.constant 0 : index
    %c129 = arith.constant 129 : index
    %41 = vector.load %arg10[%c0_35, %c129] : memref<8x640xbf16, #tpu.memory_space<vmem>>, vector<8x384xbf16>
    %c5 = arith.constant 5 : index
    %c0_36 = arith.constant 0 : index
    %c0_37 = arith.constant 0 : index
    %42 = vector.load %arg3[%c5, %c0_36, %c0_37] : memref<9x8x8xbf16, #tpu.memory_space<vmem>>, vector<1x8x8xbf16>
    %43 = vector.shape_cast %42 : vector<1x8x8xbf16> to vector<8x8xbf16>
    %cst_38 = arith.constant dense<0.000000e+00> : vector<8x384xf32>
    %44 = tpu.matmul %43, %41, %cst_38 {dimension_numbers = #tpu.dot_dimension_numbers<[1], [0], [0], [1], [0, 0, 1, 1], [], []>} : vector<8x8xbf16>, vector<8x384xbf16>, vector<8x384xf32> -> vector<8x384xf32>
    %45 = arith.addf %40, %44 : vector<8x384xf32>
    %c0_39 = arith.constant 0 : index
    %c145 = arith.constant 145 : index
    %46 = vector.load %arg10[%c0_39, %c145] : memref<8x640xbf16, #tpu.memory_space<vmem>>, vector<8x384xbf16>
    %c6 = arith.constant 6 : index
    %c0_40 = arith.constant 0 : index
    %c0_41 = arith.constant 0 : index
    %47 = vector.load %arg3[%c6, %c0_40, %c0_41] : memref<9x8x8xbf16, #tpu.memory_space<vmem>>, vector<1x8x8xbf16>
    %48 = vector.shape_cast %47 : vector<1x8x8xbf16> to vector<8x8xbf16>
    %cst_42 = arith.constant dense<0.000000e+00> : vector<8x384xf32>
    %49 = tpu.matmul %48, %46, %cst_42 {dimension_numbers = #tpu.dot_dimension_numbers<[1], [0], [0], [1], [0, 0, 1, 1], [], []>} : vector<8x8xbf16>, vector<8x384xbf16>, vector<8x384xf32> -> vector<8x384xf32>
    %50 = arith.addf %45, %49 : vector<8x384xf32>
    %c0_43 = arith.constant 0 : index
    %c146 = arith.constant 146 : index
    %51 = vector.load %arg10[%c0_43, %c146] : memref<8x640xbf16, #tpu.memory_space<vmem>>, vector<8x384xbf16>
    %c7 = arith.constant 7 : index
    %c0_44 = arith.constant 0 : index
    %c0_45 = arith.constant 0 : index
    %52 = vector.load %arg3[%c7, %c0_44, %c0_45] : memref<9x8x8xbf16, #tpu.memory_space<vmem>>, vector<1x8x8xbf16>
    %53 = vector.shape_cast %52 : vector<1x8x8xbf16> to vector<8x8xbf16>
    %cst_46 = arith.constant dense<0.000000e+00> : vector<8x384xf32>
    %54 = tpu.matmul %53, %51, %cst_46 {dimension_numbers = #tpu.dot_dimension_numbers<[1], [0], [0], [1], [0, 0, 1, 1], [], []>} : vector<8x8xbf16>, vector<8x384xbf16>, vector<8x384xf32> -> vector<8x384xf32>
    %55 = arith.addf %50, %54 : vector<8x384xf32>
    %c0_47 = arith.constant 0 : index
    %c147 = arith.constant 147 : index
    %56 = vector.load %arg10[%c0_47, %c147] : memref<8x640xbf16, #tpu.memory_space<vmem>>, vector<8x384xbf16>
    %c8 = arith.constant 8 : index
    %c0_48 = arith.constant 0 : index
    %c0_49 = arith.constant 0 : index
    %57 = vector.load %arg3[%c8, %c0_48, %c0_49] : memref<9x8x8xbf16, #tpu.memory_space<vmem>>, vector<1x8x8xbf16>
    %58 = vector.shape_cast %57 : vector<1x8x8xbf16> to vector<8x8xbf16>
    %cst_50 = arith.constant dense<0.000000e+00> : vector<8x384xf32>
    %59 = tpu.matmul %58, %56, %cst_50 {dimension_numbers = #tpu.dot_dimension_numbers<[1], [0], [0], [1], [0, 0, 1, 1], [], []>} : vector<8x8xbf16>, vector<8x384xbf16>, vector<8x384xf32> -> vector<8x384xf32>
    %60 = arith.addf %55, %59 : vector<8x384xf32>
    %cst_51 = arith.constant 0.000000e+00 : f32
    %61 = vector.broadcast %cst_51 : f32 to vector<8x384xf32>
    %62 = arith.maximumf %60, %61 : vector<8x384xf32>
    %63 = arith.mulf %62, %4 : vector<8x384xf32>
    %64 = arith.truncf %63 : vector<8x384xf32> to vector<8x384xbf16>
    %c0_52 = arith.constant 0 : index
    %c128_53 = arith.constant 128 : index
    %65 = vector.load %arg10[%c0_52, %c128_53] : memref<8x640xbf16, #tpu.memory_space<vmem>>, vector<8x384xbf16>
    tpu.vector_store %arg10[%c0_52, %c128_53], %64 {strides = array<i32>} : memref<8x640xbf16, #tpu.memory_space<vmem>>, vector<8x384xbf16>,
    %c0_54 = arith.constant 0 : index
    %c109_55 = arith.constant 109 : index
    %66 = vector.load %arg10[%c0_54, %c109_55] : memref<8x640xbf16, #tpu.memory_space<vmem>>, vector<8x384xbf16>
    %c0_56 = arith.constant 0 : index
    %c0_57 = arith.constant 0 : index
    %c0_58 = arith.constant 0 : index
    %67 = vector.load %arg5[%c0_56, %c0_57, %c0_58] : memref<9x8x8xbf16, #tpu.memory_space<vmem>>, vector<1x8x8xbf16>
    %68 = vector.shape_cast %67 : vector<1x8x8xbf16> to vector<8x8xbf16>
    %cst_59 = arith.constant dense<0.000000e+00> : vector<8x384xf32>
    %69 = tpu.matmul %68, %66, %cst_59 {dimension_numbers = #tpu.dot_dimension_numbers<[1], [0], [0], [1], [0, 0, 1, 1], [], []>} : vector<8x8xbf16>, vector<8x384xbf16>, vector<8x384xf32> -> vector<8x384xf32>
    %70 = arith.addf %10, %69 : vector<8x384xf32>
    %c0_60 = arith.constant 0 : index
    %c110_61 = arith.constant 110 : index
    %71 = vector.load %arg10[%c0_60, %c110_61] : memref<8x640xbf16, #tpu.memory_space<vmem>>, vector<8x384xbf16>
    %c1_62 = arith.constant 1 : index
    %c0_63 = arith.constant 0 : index
    %c0_64 = arith.constant 0 : index
    %72 = vector.load %arg5[%c1_62, %c0_63, %c0_64] : memref<9x8x8xbf16, #tpu.memory_space<vmem>>, vector<1x8x8xbf16>
    %73 = vector.shape_cast %72 : vector<1x8x8xbf16> to vector<8x8xbf16>
    %cst_65 = arith.constant dense<0.000000e+00> : vector<8x384xf32>
    %74 = tpu.matmul %73, %71, %cst_65 {dimension_numbers = #tpu.dot_dimension_numbers<[1], [0], [0], [1], [0, 0, 1, 1], [], []>} : vector<8x8xbf16>, vector<8x384xbf16>, vector<8x384xf32> -> vector<8x384xf32>
    %75 = arith.addf %70, %74 : vector<8x384xf32>
    %c0_66 = arith.constant 0 : index
    %c111_67 = arith.constant 111 : index
    %76 = vector.load %arg10[%c0_66, %c111_67] : memref<8x640xbf16, #tpu.memory_space<vmem>>, vector<8x384xbf16>
    %c2_68 = arith.constant 2 : index
    %c0_69 = arith.constant 0 : index
    %c0_70 = arith.constant 0 : index
    %77 = vector.load %arg5[%c2_68, %c0_69, %c0_70] : memref<9x8x8xbf16, #tpu.memory_space<vmem>>, vector<1x8x8xbf16>
    %78 = vector.shape_cast %77 : vector<1x8x8xbf16> to vector<8x8xbf16>
    %cst_71 = arith.constant dense<0.000000e+00> : vector<8x384xf32>
    %79 = tpu.matmul %78, %76, %cst_71 {dimension_numbers = #tpu.dot_dimension_numbers<[1], [0], [0], [1], [0, 0, 1, 1], [], []>} : vector<8x8xbf16>, vector<8x384xbf16>, vector<8x384xf32> -> vector<8x384xf32>
    %80 = arith.addf %75, %79 : vector<8x384xf32>
    %c0_72 = arith.constant 0 : index
    %c127_73 = arith.constant 127 : index
    %81 = vector.load %arg10[%c0_72, %c127_73] : memref<8x640xbf16, #tpu.memory_space<vmem>>, vector<8x384xbf16>
    %c3_74 = arith.constant 3 : index
    %c0_75 = arith.constant 0 : index
    %c0_76 = arith.constant 0 : index
    %82 = vector.load %arg5[%c3_74, %c0_75, %c0_76] : memref<9x8x8xbf16, #tpu.memory_space<vmem>>, vector<1x8x8xbf16>
    %83 = vector.shape_cast %82 : vector<1x8x8xbf16> to vector<8x8xbf16>
    %cst_77 = arith.constant dense<0.000000e+00> : vector<8x384xf32>
    %84 = tpu.matmul %83, %81, %cst_77 {dimension_numbers = #tpu.dot_dimension_numbers<[1], [0], [0], [1], [0, 0, 1, 1], [], []>} : vector<8x8xbf16>, vector<8x384xbf16>, vector<8x384xf32> -> vector<8x384xf32>
    %85 = arith.addf %80, %84 : vector<8x384xf32>
    %c0_78 = arith.constant 0 : index
    %c128_79 = arith.constant 128 : index
    %86 = vector.load %arg10[%c0_78, %c128_79] : memref<8x640xbf16, #tpu.memory_space<vmem>>, vector<8x384xbf16>
    %c4_80 = arith.constant 4 : index
    %c0_81 = arith.constant 0 : index
    %c0_82 = arith.constant 0 : index
    %87 = vector.load %arg5[%c4_80, %c0_81, %c0_82] : memref<9x8x8xbf16, #tpu.memory_space<vmem>>, vector<1x8x8xbf16>
    %88 = vector.shape_cast %87 : vector<1x8x8xbf16> to vector<8x8xbf16>
    %cst_83 = arith.constant dense<0.000000e+00> : vector<8x384xf32>
    %89 = tpu.matmul %88, %86, %cst_83 {dimension_numbers = #tpu.dot_dimension_numbers<[1], [0], [0], [1], [0, 0, 1, 1], [], []>} : vector<8x8xbf16>, vector<8x384xbf16>, vector<8x384xf32> -> vector<8x384xf32>
    %90 = arith.addf %85, %89 : vector<8x384xf32>
    %c0_84 = arith.constant 0 : index
    %c129_85 = arith.constant 129 : index
    %91 = vector.load %arg10[%c0_84, %c129_85] : memref<8x640xbf16, #tpu.memory_space<vmem>>, vector<8x384xbf16>
    %c5_86 = arith.constant 5 : index
    %c0_87 = arith.constant 0 : index
    %c0_88 = arith.constant 0 : index
    %92 = vector.load %arg5[%c5_86, %c0_87, %c0_88] : memref<9x8x8xbf16, #tpu.memory_space<vmem>>, vector<1x8x8xbf16>
    %93 = vector.shape_cast %92 : vector<1x8x8xbf16> to vector<8x8xbf16>
    %cst_89 = arith.constant dense<0.000000e+00> : vector<8x384xf32>
    %94 = tpu.matmul %93, %91, %cst_89 {dimension_numbers = #tpu.dot_dimension_numbers<[1], [0], [0], [1], [0, 0, 1, 1], [], []>} : vector<8x8xbf16>, vector<8x384xbf16>, vector<8x384xf32> -> vector<8x384xf32>
    %95 = arith.addf %90, %94 : vector<8x384xf32>
    %c0_90 = arith.constant 0 : index
    %c145_91 = arith.constant 145 : index
    %96 = vector.load %arg10[%c0_90, %c145_91] : memref<8x640xbf16, #tpu.memory_space<vmem>>, vector<8x384xbf16>
    %c6_92 = arith.constant 6 : index
    %c0_93 = arith.constant 0 : index
    %c0_94 = arith.constant 0 : index
    %97 = vector.load %arg5[%c6_92, %c0_93, %c0_94] : memref<9x8x8xbf16, #tpu.memory_space<vmem>>, vector<1x8x8xbf16>
    %98 = vector.shape_cast %97 : vector<1x8x8xbf16> to vector<8x8xbf16>
    %cst_95 = arith.constant dense<0.000000e+00> : vector<8x384xf32>
    %99 = tpu.matmul %98, %96, %cst_95 {dimension_numbers = #tpu.dot_dimension_numbers<[1], [0], [0], [1], [0, 0, 1, 1], [], []>} : vector<8x8xbf16>, vector<8x384xbf16>, vector<8x384xf32> -> vector<8x384xf32>
    %100 = arith.addf %95, %99 : vector<8x384xf32>
    %c0_96 = arith.constant 0 : index
    %c146_97 = arith.constant 146 : index
    %101 = vector.load %arg10[%c0_96, %c146_97] : memref<8x640xbf16, #tpu.memory_space<vmem>>, vector<8x384xbf16>
    %c7_98 = arith.constant 7 : index
    %c0_99 = arith.constant 0 : index
    %c0_100 = arith.constant 0 : index
    %102 = vector.load %arg5[%c7_98, %c0_99, %c0_100] : memref<9x8x8xbf16, #tpu.memory_space<vmem>>, vector<1x8x8xbf16>
    %103 = vector.shape_cast %102 : vector<1x8x8xbf16> to vector<8x8xbf16>
    %cst_101 = arith.constant dense<0.000000e+00> : vector<8x384xf32>
    %104 = tpu.matmul %103, %101, %cst_101 {dimension_numbers = #tpu.dot_dimension_numbers<[1], [0], [0], [1], [0, 0, 1, 1], [], []>} : vector<8x8xbf16>, vector<8x384xbf16>, vector<8x384xf32> -> vector<8x384xf32>
    %105 = arith.addf %100, %104 : vector<8x384xf32>
    %c0_102 = arith.constant 0 : index
    %c147_103 = arith.constant 147 : index
    %106 = vector.load %arg10[%c0_102, %c147_103] : memref<8x640xbf16, #tpu.memory_space<vmem>>, vector<8x384xbf16>
    %c8_104 = arith.constant 8 : index
    %c0_105 = arith.constant 0 : index
    %c0_106 = arith.constant 0 : index
    %107 = vector.load %arg5[%c8_104, %c0_105, %c0_106] : memref<9x8x8xbf16, #tpu.memory_space<vmem>>, vector<1x8x8xbf16>
    %108 = vector.shape_cast %107 : vector<1x8x8xbf16> to vector<8x8xbf16>
    %cst_107 = arith.constant dense<0.000000e+00> : vector<8x384xf32>
    %109 = tpu.matmul %108, %106, %cst_107 {dimension_numbers = #tpu.dot_dimension_numbers<[1], [0], [0], [1], [0, 0, 1, 1], [], []>} : vector<8x8xbf16>, vector<8x384xbf16>, vector<8x384xf32> -> vector<8x384xf32>
    %110 = arith.addf %105, %109 : vector<8x384xf32>
    %111 = arith.addf %110, %1 : vector<8x384xf32>
    %cst_108 = arith.constant 0.000000e+00 : f32
    %112 = vector.broadcast %cst_108 : f32 to vector<8x384xf32>
    %113 = arith.maximumf %111, %112 : vector<8x384xf32>
    %114 = arith.mulf %113, %4 : vector<8x384xf32>
    %115 = arith.truncf %114 : vector<8x384xf32> to vector<8x384xbf16>
    %c8_109 = arith.constant 8 : index
    %c0_110 = arith.constant 0 : index
    %116 = vector.load %arg11[%c8_109, %c0_110] : memref<32x384xbf16, #tpu.memory_space<vmem>>, vector<8x384xbf16>
    tpu.vector_store %arg11[%c8_109, %c0_110], %115 {strides = array<i32>} : memref<32x384xbf16, #tpu.memory_space<vmem>>, vector<8x384xbf16>,
    %c0_111 = arith.constant 0 : index
    %c0_112 = arith.constant 0 : index
    %c0_113 = arith.constant 0 : index
    %117 = vector.load %arg7[%c0_111, %c0_112, %c0_113] : memref<3x8x32xbf16, #tpu.memory_space<vmem>>, vector<1x8x32xbf16>
    %118 = vector.shape_cast %117 : vector<1x8x32xbf16> to vector<8x32xbf16>
    %119 = vector.extract_strided_slice %118 {offsets = [0, 0], sizes = [8, 16], strides = [1, 1]} : vector<8x32xbf16> to vector<8x16xbf16>
    %c0_114 = arith.constant 0 : index
    %c0_115 = arith.constant 0 : index
    %120 = vector.load %arg11[%c0_114, %c0_115] : memref<32x384xbf16, #tpu.memory_space<vmem>>, vector<16x384xbf16>
    %cst_116 = arith.constant dense<0.000000e+00> : vector<8x384xf32>
    %121 = tpu.matmul %119, %120, %cst_116 {dimension_numbers = #tpu.dot_dimension_numbers<[1], [0], [0], [1], [0, 0, 1, 1], [], []>} : vector<8x16xbf16>, vector<16x384xbf16>, vector<8x384xf32> -> vector<8x384xf32>
    %c0_117 = arith.constant 0 : index
    %c0_118 = arith.constant 0 : index
    %c0_119 = arith.constant 0 : index
    %122 = vector.load %arg8[%c0_117, %c0_118, %c0_119] : memref<3x8x1xf32, #tpu.memory_space<vmem>>, vector<1x8x1xf32>
    %123 = vector.shape_cast %122 : vector<1x8x1xf32> to vector<8x1xf32>
    %124 = vector.broadcast %123 : vector<8x1xf32> to vector<8x384xf32>
    %125 = arith.addf %121, %124 : vector<8x384xf32>
    %126 = arith.mulf %125, %4 : vector<8x384xf32>
    %127 = arith.truncf %126 : vector<8x384xf32> to vector<8x384xbf16>
    %c0_120 = arith.constant 0 : index
    %c128_121 = arith.constant 128 : index
    %128 = vector.load %arg10[%c0_120, %c128_121] : memref<8x640xbf16, #tpu.memory_space<vmem>>, vector<8x384xbf16>
    tpu.vector_store %arg10[%c0_120, %c128_121], %127 {strides = array<i32>} : memref<8x640xbf16, #tpu.memory_space<vmem>>, vector<8x384xbf16>,
    %c0_122 = arith.constant 0 : index
    %c109_123 = arith.constant 109 : index
    %129 = vector.load %arg10[%c0_122, %c109_123] : memref<8x640xbf16, #tpu.memory_space<vmem>>, vector<8x384xbf16>
    %c0_124 = arith.constant 0 : index
    %c0_125 = arith.constant 0 : index
    %c0_126 = arith.constant 0 : index
    %130 = vector.load %arg3[%c0_124, %c0_125, %c0_126] : memref<9x8x8xbf16, #tpu.memory_space<vmem>>, vector<1x8x8xbf16>
    %131 = vector.shape_cast %130 : vector<1x8x8xbf16> to vector<8x8xbf16>
    %cst_127 = arith.constant dense<0.000000e+00> : vector<8x384xf32>
    %132 = tpu.matmul %131, %129, %cst_127 {dimension_numbers = #tpu.dot_dimension_numbers<[1], [0], [0], [1], [0, 0, 1, 1], [], []>} : vector<8x8xbf16>, vector<8x384xbf16>, vector<8x384xf32> -> vector<8x384xf32>
    %133 = arith.addf %7, %132 : vector<8x384xf32>
    %c0_128 = arith.constant 0 : index
    %c110_129 = arith.constant 110 : index
    %134 = vector.load %arg10[%c0_128, %c110_129] : memref<8x640xbf16, #tpu.memory_space<vmem>>, vector<8x384xbf16>
    %c1_130 = arith.constant 1 : index
    %c0_131 = arith.constant 0 : index
    %c0_132 = arith.constant 0 : index
    %135 = vector.load %arg3[%c1_130, %c0_131, %c0_132] : memref<9x8x8xbf16, #tpu.memory_space<vmem>>, vector<1x8x8xbf16>
    %136 = vector.shape_cast %135 : vector<1x8x8xbf16> to vector<8x8xbf16>
    %cst_133 = arith.constant dense<0.000000e+00> : vector<8x384xf32>
    %137 = tpu.matmul %136, %134, %cst_133 {dimension_numbers = #tpu.dot_dimension_numbers<[1], [0], [0], [1], [0, 0, 1, 1], [], []>} : vector<8x8xbf16>, vector<8x384xbf16>, vector<8x384xf32> -> vector<8x384xf32>
    %138 = arith.addf %133, %137 : vector<8x384xf32>
    %c0_134 = arith.constant 0 : index
    %c111_135 = arith.constant 111 : index
    %139 = vector.load %arg10[%c0_134, %c111_135] : memref<8x640xbf16, #tpu.memory_space<vmem>>, vector<8x384xbf16>
    %c2_136 = arith.constant 2 : index
    %c0_137 = arith.constant 0 : index
    %c0_138 = arith.constant 0 : index
    %140 = vector.load %arg3[%c2_136, %c0_137, %c0_138] : memref<9x8x8xbf16, #tpu.memory_space<vmem>>, vector<1x8x8xbf16>
    %141 = vector.shape_cast %140 : vector<1x8x8xbf16> to vector<8x8xbf16>
    %cst_139 = arith.constant dense<0.000000e+00> : vector<8x384xf32>
    %142 = tpu.matmul %141, %139, %cst_139 {dimension_numbers = #tpu.dot_dimension_numbers<[1], [0], [0], [1], [0, 0, 1, 1], [], []>} : vector<8x8xbf16>, vector<8x384xbf16>, vector<8x384xf32> -> vector<8x384xf32>
    %143 = arith.addf %138, %142 : vector<8x384xf32>
    %c0_140 = arith.constant 0 : index
    %c127_141 = arith.constant 127 : index
    %144 = vector.load %arg10[%c0_140, %c127_141] : memref<8x640xbf16, #tpu.memory_space<vmem>>, vector<8x384xbf16>
    %c3_142 = arith.constant 3 : index
    %c0_143 = arith.constant 0 : index
    %c0_144 = arith.constant 0 : index
    %145 = vector.load %arg3[%c3_142, %c0_143, %c0_144] : memref<9x8x8xbf16, #tpu.memory_space<vmem>>, vector<1x8x8xbf16>
    %146 = vector.shape_cast %145 : vector<1x8x8xbf16> to vector<8x8xbf16>
    %cst_145 = arith.constant dense<0.000000e+00> : vector<8x384xf32>
    %147 = tpu.matmul %146, %144, %cst_145 {dimension_numbers = #tpu.dot_dimension_numbers<[1], [0], [0], [1], [0, 0, 1, 1], [], []>} : vector<8x8xbf16>, vector<8x384xbf16>, vector<8x384xf32> -> vector<8x384xf32>
    %148 = arith.addf %143, %147 : vector<8x384xf32>
    %c0_146 = arith.constant 0 : index
    %c128_147 = arith.constant 128 : index
    %149 = vector.load %arg10[%c0_146, %c128_147] : memref<8x640xbf16, #tpu.memory_space<vmem>>, vector<8x384xbf16>
    %c4_148 = arith.constant 4 : index
    %c0_149 = arith.constant 0 : index
    %c0_150 = arith.constant 0 : index
    %150 = vector.load %arg3[%c4_148, %c0_149, %c0_150] : memref<9x8x8xbf16, #tpu.memory_space<vmem>>, vector<1x8x8xbf16>
    %151 = vector.shape_cast %150 : vector<1x8x8xbf16> to vector<8x8xbf16>
    %cst_151 = arith.constant dense<0.000000e+00> : vector<8x384xf32>
    %152 = tpu.matmul %151, %149, %cst_151 {dimension_numbers = #tpu.dot_dimension_numbers<[1], [0], [0], [1], [0, 0, 1, 1], [], []>} : vector<8x8xbf16>, vector<8x384xbf16>, vector<8x384xf32> -> vector<8x384xf32>
    %153 = arith.addf %148, %152 : vector<8x384xf32>
    %c0_152 = arith.constant 0 : index
    %c129_153 = arith.constant 129 : index
    %154 = vector.load %arg10[%c0_152, %c129_153] : memref<8x640xbf16, #tpu.memory_space<vmem>>, vector<8x384xbf16>
    %c5_154 = arith.constant 5 : index
    %c0_155 = arith.constant 0 : index
    %c0_156 = arith.constant 0 : index
    %155 = vector.load %arg3[%c5_154, %c0_155, %c0_156] : memref<9x8x8xbf16, #tpu.memory_space<vmem>>, vector<1x8x8xbf16>
    %156 = vector.shape_cast %155 : vector<1x8x8xbf16> to vector<8x8xbf16>
    %cst_157 = arith.constant dense<0.000000e+00> : vector<8x384xf32>
    %157 = tpu.matmul %156, %154, %cst_157 {dimension_numbers = #tpu.dot_dimension_numbers<[1], [0], [0], [1], [0, 0, 1, 1], [], []>} : vector<8x8xbf16>, vector<8x384xbf16>, vector<8x384xf32> -> vector<8x384xf32>
    %158 = arith.addf %153, %157 : vector<8x384xf32>
    %c0_158 = arith.constant 0 : index
    %c145_159 = arith.constant 145 : index
    %159 = vector.load %arg10[%c0_158, %c145_159] : memref<8x640xbf16, #tpu.memory_space<vmem>>, vector<8x384xbf16>
    %c6_160 = arith.constant 6 : index
    %c0_161 = arith.constant 0 : index
    %c0_162 = arith.constant 0 : index
    %160 = vector.load %arg3[%c6_160, %c0_161, %c0_162] : memref<9x8x8xbf16, #tpu.memory_space<vmem>>, vector<1x8x8xbf16>
    %161 = vector.shape_cast %160 : vector<1x8x8xbf16> to vector<8x8xbf16>
    %cst_163 = arith.constant dense<0.000000e+00> : vector<8x384xf32>
    %162 = tpu.matmul %161, %159, %cst_163 {dimension_numbers = #tpu.dot_dimension_numbers<[1], [0], [0], [1], [0, 0, 1, 1], [], []>} : vector<8x8xbf16>, vector<8x384xbf16>, vector<8x384xf32> -> vector<8x384xf32>
    %163 = arith.addf %158, %162 : vector<8x384xf32>
    %c0_164 = arith.constant 0 : index
    %c146_165 = arith.constant 146 : index
    %164 = vector.load %arg10[%c0_164, %c146_165] : memref<8x640xbf16, #tpu.memory_space<vmem>>, vector<8x384xbf16>
    %c7_166 = arith.constant 7 : index
    %c0_167 = arith.constant 0 : index
    %c0_168 = arith.constant 0 : index
    %165 = vector.load %arg3[%c7_166, %c0_167, %c0_168] : memref<9x8x8xbf16, #tpu.memory_space<vmem>>, vector<1x8x8xbf16>
    %166 = vector.shape_cast %165 : vector<1x8x8xbf16> to vector<8x8xbf16>
    %cst_169 = arith.constant dense<0.000000e+00> : vector<8x384xf32>
    %167 = tpu.matmul %166, %164, %cst_169 {dimension_numbers = #tpu.dot_dimension_numbers<[1], [0], [0], [1], [0, 0, 1, 1], [], []>} : vector<8x8xbf16>, vector<8x384xbf16>, vector<8x384xf32> -> vector<8x384xf32>
    %168 = arith.addf %163, %167 : vector<8x384xf32>
    %c0_170 = arith.constant 0 : index
    %c147_171 = arith.constant 147 : index
    %169 = vector.load %arg10[%c0_170, %c147_171] : memref<8x640xbf16, #tpu.memory_space<vmem>>, vector<8x384xbf16>
    %c8_172 = arith.constant 8 : index
    %c0_173 = arith.constant 0 : index
    %c0_174 = arith.constant 0 : index
    %170 = vector.load %arg3[%c8_172, %c0_173, %c0_174] : memref<9x8x8xbf16, #tpu.memory_space<vmem>>, vector<1x8x8xbf16>
    %171 = vector.shape_cast %170 : vector<1x8x8xbf16> to vector<8x8xbf16>
    %cst_175 = arith.constant dense<0.000000e+00> : vector<8x384xf32>
    %172 = tpu.matmul %171, %169, %cst_175 {dimension_numbers = #tpu.dot_dimension_numbers<[1], [0], [0], [1], [0, 0, 1, 1], [], []>} : vector<8x8xbf16>, vector<8x384xbf16>, vector<8x384xf32> -> vector<8x384xf32>
    %173 = arith.addf %168, %172 : vector<8x384xf32>
    %cst_176 = arith.constant 0.000000e+00 : f32
    %174 = vector.broadcast %cst_176 : f32 to vector<8x384xf32>
    %175 = arith.maximumf %173, %174 : vector<8x384xf32>
    %176 = arith.mulf %175, %4 : vector<8x384xf32>
    %177 = arith.truncf %176 : vector<8x384xf32> to vector<8x384xbf16>
    %c0_177 = arith.constant 0 : index
    %c128_178 = arith.constant 128 : index
    %178 = vector.load %arg10[%c0_177, %c128_178] : memref<8x640xbf16, #tpu.memory_space<vmem>>, vector<8x384xbf16>
    tpu.vector_store %arg10[%c0_177, %c128_178], %177 {strides = array<i32>} : memref<8x640xbf16, #tpu.memory_space<vmem>>, vector<8x384xbf16>,
    %c0_179 = arith.constant 0 : index
    %c109_180 = arith.constant 109 : index
    %179 = vector.load %arg10[%c0_179, %c109_180] : memref<8x640xbf16, #tpu.memory_space<vmem>>, vector<8x384xbf16>
    %c0_181 = arith.constant 0 : index
    %c0_182 = arith.constant 0 : index
    %c0_183 = arith.constant 0 : index
    %180 = vector.load %arg5[%c0_181, %c0_182, %c0_183] : memref<9x8x8xbf16, #tpu.memory_space<vmem>>, vector<1x8x8xbf16>
    %181 = vector.shape_cast %180 : vector<1x8x8xbf16> to vector<8x8xbf16>
    %cst_184 = arith.constant dense<0.000000e+00> : vector<8x384xf32>
    %182 = tpu.matmul %181, %179, %cst_184 {dimension_numbers = #tpu.dot_dimension_numbers<[1], [0], [0], [1], [0, 0, 1, 1], [], []>} : vector<8x8xbf16>, vector<8x384xbf16>, vector<8x384xf32> -> vector<8x384xf32>
    %183 = arith.addf %10, %182 : vector<8x384xf32>
    %c0_185 = arith.constant 0 : index
    %c110_186 = arith.constant 110 : index
    %184 = vector.load %arg10[%c0_185, %c110_186] : memref<8x640xbf16, #tpu.memory_space<vmem>>, vector<8x384xbf16>
    %c1_187 = arith.constant 1 : index
    %c0_188 = arith.constant 0 : index
    %c0_189 = arith.constant 0 : index
    %185 = vector.load %arg5[%c1_187, %c0_188, %c0_189] : memref<9x8x8xbf16, #tpu.memory_space<vmem>>, vector<1x8x8xbf16>
    %186 = vector.shape_cast %185 : vector<1x8x8xbf16> to vector<8x8xbf16>
    %cst_190 = arith.constant dense<0.000000e+00> : vector<8x384xf32>
    %187 = tpu.matmul %186, %184, %cst_190 {dimension_numbers = #tpu.dot_dimension_numbers<[1], [0], [0], [1], [0, 0, 1, 1], [], []>} : vector<8x8xbf16>, vector<8x384xbf16>, vector<8x384xf32> -> vector<8x384xf32>
    %188 = arith.addf %183, %187 : vector<8x384xf32>
    %c0_191 = arith.constant 0 : index
    %c111_192 = arith.constant 111 : index
    %189 = vector.load %arg10[%c0_191, %c111_192] : memref<8x640xbf16, #tpu.memory_space<vmem>>, vector<8x384xbf16>
    %c2_193 = arith.constant 2 : index
    %c0_194 = arith.constant 0 : index
    %c0_195 = arith.constant 0 : index
    %190 = vector.load %arg5[%c2_193, %c0_194, %c0_195] : memref<9x8x8xbf16, #tpu.memory_space<vmem>>, vector<1x8x8xbf16>
    %191 = vector.shape_cast %190 : vector<1x8x8xbf16> to vector<8x8xbf16>
    %cst_196 = arith.constant dense<0.000000e+00> : vector<8x384xf32>
    %192 = tpu.matmul %191, %189, %cst_196 {dimension_numbers = #tpu.dot_dimension_numbers<[1], [0], [0], [1], [0, 0, 1, 1], [], []>} : vector<8x8xbf16>, vector<8x384xbf16>, vector<8x384xf32> -> vector<8x384xf32>
    %193 = arith.addf %188, %192 : vector<8x384xf32>
    %c0_197 = arith.constant 0 : index
    %c127_198 = arith.constant 127 : index
    %194 = vector.load %arg10[%c0_197, %c127_198] : memref<8x640xbf16, #tpu.memory_space<vmem>>, vector<8x384xbf16>
    %c3_199 = arith.constant 3 : index
    %c0_200 = arith.constant 0 : index
    %c0_201 = arith.constant 0 : index
    %195 = vector.load %arg5[%c3_199, %c0_200, %c0_201] : memref<9x8x8xbf16, #tpu.memory_space<vmem>>, vector<1x8x8xbf16>
    %196 = vector.shape_cast %195 : vector<1x8x8xbf16> to vector<8x8xbf16>
    %cst_202 = arith.constant dense<0.000000e+00> : vector<8x384xf32>
    %197 = tpu.matmul %196, %194, %cst_202 {dimension_numbers = #tpu.dot_dimension_numbers<[1], [0], [0], [1], [0, 0, 1, 1], [], []>} : vector<8x8xbf16>, vector<8x384xbf16>, vector<8x384xf32> -> vector<8x384xf32>
    %198 = arith.addf %193, %197 : vector<8x384xf32>
    %c0_203 = arith.constant 0 : index
    %c128_204 = arith.constant 128 : index
    %199 = vector.load %arg10[%c0_203, %c128_204] : memref<8x640xbf16, #tpu.memory_space<vmem>>, vector<8x384xbf16>
    %c4_205 = arith.constant 4 : index
    %c0_206 = arith.constant 0 : index
    %c0_207 = arith.constant 0 : index
    %200 = vector.load %arg5[%c4_205, %c0_206, %c0_207] : memref<9x8x8xbf16, #tpu.memory_space<vmem>>, vector<1x8x8xbf16>
    %201 = vector.shape_cast %200 : vector<1x8x8xbf16> to vector<8x8xbf16>
    %cst_208 = arith.constant dense<0.000000e+00> : vector<8x384xf32>
    %202 = tpu.matmul %201, %199, %cst_208 {dimension_numbers = #tpu.dot_dimension_numbers<[1], [0], [0], [1], [0, 0, 1, 1], [], []>} : vector<8x8xbf16>, vector<8x384xbf16>, vector<8x384xf32> -> vector<8x384xf32>
    %203 = arith.addf %198, %202 : vector<8x384xf32>
    %c0_209 = arith.constant 0 : index
    %c129_210 = arith.constant 129 : index
    %204 = vector.load %arg10[%c0_209, %c129_210] : memref<8x640xbf16, #tpu.memory_space<vmem>>, vector<8x384xbf16>
    %c5_211 = arith.constant 5 : index
    %c0_212 = arith.constant 0 : index
    %c0_213 = arith.constant 0 : index
    %205 = vector.load %arg5[%c5_211, %c0_212, %c0_213] : memref<9x8x8xbf16, #tpu.memory_space<vmem>>, vector<1x8x8xbf16>
    %206 = vector.shape_cast %205 : vector<1x8x8xbf16> to vector<8x8xbf16>
    %cst_214 = arith.constant dense<0.000000e+00> : vector<8x384xf32>
    %207 = tpu.matmul %206, %204, %cst_214 {dimension_numbers = #tpu.dot_dimension_numbers<[1], [0], [0], [1], [0, 0, 1, 1], [], []>} : vector<8x8xbf16>, vector<8x384xbf16>, vector<8x384xf32> -> vector<8x384xf32>
    %208 = arith.addf %203, %207 : vector<8x384xf32>
    %c0_215 = arith.constant 0 : index
    %c145_216 = arith.constant 145 : index
    %209 = vector.load %arg10[%c0_215, %c145_216] : memref<8x640xbf16, #tpu.memory_space<vmem>>, vector<8x384xbf16>
    %c6_217 = arith.constant 6 : index
    %c0_218 = arith.constant 0 : index
    %c0_219 = arith.constant 0 : index
    %210 = vector.load %arg5[%c6_217, %c0_218, %c0_219] : memref<9x8x8xbf16, #tpu.memory_space<vmem>>, vector<1x8x8xbf16>
    %211 = vector.shape_cast %210 : vector<1x8x8xbf16> to vector<8x8xbf16>
    %cst_220 = arith.constant dense<0.000000e+00> : vector<8x384xf32>
    %212 = tpu.matmul %211, %209, %cst_220 {dimension_numbers = #tpu.dot_dimension_numbers<[1], [0], [0], [1], [0, 0, 1, 1], [], []>} : vector<8x8xbf16>, vector<8x384xbf16>, vector<8x384xf32> -> vector<8x384xf32>
    %213 = arith.addf %208, %212 : vector<8x384xf32>
    %c0_221 = arith.constant 0 : index
    %c146_222 = arith.constant 146 : index
    %214 = vector.load %arg10[%c0_221, %c146_222] : memref<8x640xbf16, #tpu.memory_space<vmem>>, vector<8x384xbf16>
    %c7_223 = arith.constant 7 : index
    %c0_224 = arith.constant 0 : index
    %c0_225 = arith.constant 0 : index
    %215 = vector.load %arg5[%c7_223, %c0_224, %c0_225] : memref<9x8x8xbf16, #tpu.memory_space<vmem>>, vector<1x8x8xbf16>
    %216 = vector.shape_cast %215 : vector<1x8x8xbf16> to vector<8x8xbf16>
    %cst_226 = arith.constant dense<0.000000e+00> : vector<8x384xf32>
    %217 = tpu.matmul %216, %214, %cst_226 {dimension_numbers = #tpu.dot_dimension_numbers<[1], [0], [0], [1], [0, 0, 1, 1], [], []>} : vector<8x8xbf16>, vector<8x384xbf16>, vector<8x384xf32> -> vector<8x384xf32>
    %218 = arith.addf %213, %217 : vector<8x384xf32>
    %c0_227 = arith.constant 0 : index
    %c147_228 = arith.constant 147 : index
    %219 = vector.load %arg10[%c0_227, %c147_228] : memref<8x640xbf16, #tpu.memory_space<vmem>>, vector<8x384xbf16>
    %c8_229 = arith.constant 8 : index
    %c0_230 = arith.constant 0 : index
    %c0_231 = arith.constant 0 : index
    %220 = vector.load %arg5[%c8_229, %c0_230, %c0_231] : memref<9x8x8xbf16, #tpu.memory_space<vmem>>, vector<1x8x8xbf16>
    %221 = vector.shape_cast %220 : vector<1x8x8xbf16> to vector<8x8xbf16>
    %cst_232 = arith.constant dense<0.000000e+00> : vector<8x384xf32>
    %222 = tpu.matmul %221, %219, %cst_232 {dimension_numbers = #tpu.dot_dimension_numbers<[1], [0], [0], [1], [0, 0, 1, 1], [], []>} : vector<8x8xbf16>, vector<8x384xbf16>, vector<8x384xf32> -> vector<8x384xf32>
    %223 = arith.addf %218, %222 : vector<8x384xf32>
    %224 = arith.addf %223, %126 : vector<8x384xf32>
    %cst_233 = arith.constant 0.000000e+00 : f32
    %225 = vector.broadcast %cst_233 : f32 to vector<8x384xf32>
    %226 = arith.maximumf %224, %225 : vector<8x384xf32>
    %227 = arith.mulf %226, %4 : vector<8x384xf32>
    %228 = arith.truncf %227 : vector<8x384xf32> to vector<8x384xbf16>
    %c16 = arith.constant 16 : index
    %c0_234 = arith.constant 0 : index
    %229 = vector.load %arg11[%c16, %c0_234] : memref<32x384xbf16, #tpu.memory_space<vmem>>, vector<8x384xbf16>
    tpu.vector_store %arg11[%c16, %c0_234], %228 {strides = array<i32>} : memref<32x384xbf16, #tpu.memory_space<vmem>>, vector<8x384xbf16>,
    %c1_235 = arith.constant 1 : index
    %c0_236 = arith.constant 0 : index
    %c0_237 = arith.constant 0 : index
    %230 = vector.load %arg7[%c1_235, %c0_236, %c0_237] : memref<3x8x32xbf16, #tpu.memory_space<vmem>>, vector<1x8x32xbf16>
    %231 = vector.shape_cast %230 : vector<1x8x32xbf16> to vector<8x32xbf16>
    %232 = vector.extract_strided_slice %231 {offsets = [0, 0], sizes = [8, 24], strides = [1, 1]} : vector<8x32xbf16> to vector<8x24xbf16>
    %c0_238 = arith.constant 0 : index
    %c0_239 = arith.constant 0 : index
    %233 = vector.load %arg11[%c0_238, %c0_239] : memref<32x384xbf16, #tpu.memory_space<vmem>>, vector<24x384xbf16>
    %cst_240 = arith.constant dense<0.000000e+00> : vector<8x384xf32>
    %234 = tpu.matmul %232, %233, %cst_240 {dimension_numbers = #tpu.dot_dimension_numbers<[1], [0], [0], [1], [0, 0, 1, 1], [], []>} : vector<8x24xbf16>, vector<24x384xbf16>, vector<8x384xf32> -> vector<8x384xf32>
    %c1_241 = arith.constant 1 : index
    %c0_242 = arith.constant 0 : index
    %c0_243 = arith.constant 0 : index
    %235 = vector.load %arg8[%c1_241, %c0_242, %c0_243] : memref<3x8x1xf32, #tpu.memory_space<vmem>>, vector<1x8x1xf32>
    %236 = vector.shape_cast %235 : vector<1x8x1xf32> to vector<8x1xf32>
    %237 = vector.broadcast %236 : vector<8x1xf32> to vector<8x384xf32>
    %238 = arith.addf %234, %237 : vector<8x384xf32>
    %239 = arith.mulf %238, %4 : vector<8x384xf32>
    %240 = arith.truncf %239 : vector<8x384xf32> to vector<8x384xbf16>
    %c0_244 = arith.constant 0 : index
    %c128_245 = arith.constant 128 : index
    %241 = vector.load %arg10[%c0_244, %c128_245] : memref<8x640xbf16, #tpu.memory_space<vmem>>, vector<8x384xbf16>
    tpu.vector_store %arg10[%c0_244, %c128_245], %240 {strides = array<i32>} : memref<8x640xbf16, #tpu.memory_space<vmem>>, vector<8x384xbf16>,
    %c0_246 = arith.constant 0 : index
    %c109_247 = arith.constant 109 : index
    %242 = vector.load %arg10[%c0_246, %c109_247] : memref<8x640xbf16, #tpu.memory_space<vmem>>, vector<8x384xbf16>
    %c0_248 = arith.constant 0 : index
    %c0_249 = arith.constant 0 : index
    %c0_250 = arith.constant 0 : index
    %243 = vector.load %arg3[%c0_248, %c0_249, %c0_250] : memref<9x8x8xbf16, #tpu.memory_space<vmem>>, vector<1x8x8xbf16>
    %244 = vector.shape_cast %243 : vector<1x8x8xbf16> to vector<8x8xbf16>
    %cst_251 = arith.constant dense<0.000000e+00> : vector<8x384xf32>
    %245 = tpu.matmul %244, %242, %cst_251 {dimension_numbers = #tpu.dot_dimension_numbers<[1], [0], [0], [1], [0, 0, 1, 1], [], []>} : vector<8x8xbf16>, vector<8x384xbf16>, vector<8x384xf32> -> vector<8x384xf32>
    %246 = arith.addf %7, %245 : vector<8x384xf32>
    %c0_252 = arith.constant 0 : index
    %c110_253 = arith.constant 110 : index
    %247 = vector.load %arg10[%c0_252, %c110_253] : memref<8x640xbf16, #tpu.memory_space<vmem>>, vector<8x384xbf16>
    %c1_254 = arith.constant 1 : index
    %c0_255 = arith.constant 0 : index
    %c0_256 = arith.constant 0 : index
    %248 = vector.load %arg3[%c1_254, %c0_255, %c0_256] : memref<9x8x8xbf16, #tpu.memory_space<vmem>>, vector<1x8x8xbf16>
    %249 = vector.shape_cast %248 : vector<1x8x8xbf16> to vector<8x8xbf16>
    %cst_257 = arith.constant dense<0.000000e+00> : vector<8x384xf32>
    %250 = tpu.matmul %249, %247, %cst_257 {dimension_numbers = #tpu.dot_dimension_numbers<[1], [0], [0], [1], [0, 0, 1, 1], [], []>} : vector<8x8xbf16>, vector<8x384xbf16>, vector<8x384xf32> -> vector<8x384xf32>
    %251 = arith.addf %246, %250 : vector<8x384xf32>
    %c0_258 = arith.constant 0 : index
    %c111_259 = arith.constant 111 : index
    %252 = vector.load %arg10[%c0_258, %c111_259] : memref<8x640xbf16, #tpu.memory_space<vmem>>, vector<8x384xbf16>
    %c2_260 = arith.constant 2 : index
    %c0_261 = arith.constant 0 : index
    %c0_262 = arith.constant 0 : index
    %253 = vector.load %arg3[%c2_260, %c0_261, %c0_262] : memref<9x8x8xbf16, #tpu.memory_space<vmem>>, vector<1x8x8xbf16>
    %254 = vector.shape_cast %253 : vector<1x8x8xbf16> to vector<8x8xbf16>
    %cst_263 = arith.constant dense<0.000000e+00> : vector<8x384xf32>
    %255 = tpu.matmul %254, %252, %cst_263 {dimension_numbers = #tpu.dot_dimension_numbers<[1], [0], [0], [1], [0, 0, 1, 1], [], []>} : vector<8x8xbf16>, vector<8x384xbf16>, vector<8x384xf32> -> vector<8x384xf32>
    %256 = arith.addf %251, %255 : vector<8x384xf32>
    %c0_264 = arith.constant 0 : index
    %c127_265 = arith.constant 127 : index
    %257 = vector.load %arg10[%c0_264, %c127_265] : memref<8x640xbf16, #tpu.memory_space<vmem>>, vector<8x384xbf16>
    %c3_266 = arith.constant 3 : index
    %c0_267 = arith.constant 0 : index
    %c0_268 = arith.constant 0 : index
    %258 = vector.load %arg3[%c3_266, %c0_267, %c0_268] : memref<9x8x8xbf16, #tpu.memory_space<vmem>>, vector<1x8x8xbf16>
    %259 = vector.shape_cast %258 : vector<1x8x8xbf16> to vector<8x8xbf16>
    %cst_269 = arith.constant dense<0.000000e+00> : vector<8x384xf32>
    %260 = tpu.matmul %259, %257, %cst_269 {dimension_numbers = #tpu.dot_dimension_numbers<[1], [0], [0], [1], [0, 0, 1, 1], [], []>} : vector<8x8xbf16>, vector<8x384xbf16>, vector<8x384xf32> -> vector<8x384xf32>
    %261 = arith.addf %256, %260 : vector<8x384xf32>
    %c0_270 = arith.constant 0 : index
    %c128_271 = arith.constant 128 : index
    %262 = vector.load %arg10[%c0_270, %c128_271] : memref<8x640xbf16, #tpu.memory_space<vmem>>, vector<8x384xbf16>
    %c4_272 = arith.constant 4 : index
    %c0_273 = arith.constant 0 : index
    %c0_274 = arith.constant 0 : index
    %263 = vector.load %arg3[%c4_272, %c0_273, %c0_274] : memref<9x8x8xbf16, #tpu.memory_space<vmem>>, vector<1x8x8xbf16>
    %264 = vector.shape_cast %263 : vector<1x8x8xbf16> to vector<8x8xbf16>
    %cst_275 = arith.constant dense<0.000000e+00> : vector<8x384xf32>
    %265 = tpu.matmul %264, %262, %cst_275 {dimension_numbers = #tpu.dot_dimension_numbers<[1], [0], [0], [1], [0, 0, 1, 1], [], []>} : vector<8x8xbf16>, vector<8x384xbf16>, vector<8x384xf32> -> vector<8x384xf32>
    %266 = arith.addf %261, %265 : vector<8x384xf32>
    %c0_276 = arith.constant 0 : index
    %c129_277 = arith.constant 129 : index
    %267 = vector.load %arg10[%c0_276, %c129_277] : memref<8x640xbf16, #tpu.memory_space<vmem>>, vector<8x384xbf16>
    %c5_278 = arith.constant 5 : index
    %c0_279 = arith.constant 0 : index
    %c0_280 = arith.constant 0 : index
    %268 = vector.load %arg3[%c5_278, %c0_279, %c0_280] : memref<9x8x8xbf16, #tpu.memory_space<vmem>>, vector<1x8x8xbf16>
    %269 = vector.shape_cast %268 : vector<1x8x8xbf16> to vector<8x8xbf16>
    %cst_281 = arith.constant dense<0.000000e+00> : vector<8x384xf32>
    %270 = tpu.matmul %269, %267, %cst_281 {dimension_numbers = #tpu.dot_dimension_numbers<[1], [0], [0], [1], [0, 0, 1, 1], [], []>} : vector<8x8xbf16>, vector<8x384xbf16>, vector<8x384xf32> -> vector<8x384xf32>
    %271 = arith.addf %266, %270 : vector<8x384xf32>
    %c0_282 = arith.constant 0 : index
    %c145_283 = arith.constant 145 : index
    %272 = vector.load %arg10[%c0_282, %c145_283] : memref<8x640xbf16, #tpu.memory_space<vmem>>, vector<8x384xbf16>
    %c6_284 = arith.constant 6 : index
    %c0_285 = arith.constant 0 : index
    %c0_286 = arith.constant 0 : index
    %273 = vector.load %arg3[%c6_284, %c0_285, %c0_286] : memref<9x8x8xbf16, #tpu.memory_space<vmem>>, vector<1x8x8xbf16>
    %274 = vector.shape_cast %273 : vector<1x8x8xbf16> to vector<8x8xbf16>
    %cst_287 = arith.constant dense<0.000000e+00> : vector<8x384xf32>
    %275 = tpu.matmul %274, %272, %cst_287 {dimension_numbers = #tpu.dot_dimension_numbers<[1], [0], [0], [1], [0, 0, 1, 1], [], []>} : vector<8x8xbf16>, vector<8x384xbf16>, vector<8x384xf32> -> vector<8x384xf32>
    %276 = arith.addf %271, %275 : vector<8x384xf32>
    %c0_288 = arith.constant 0 : index
    %c146_289 = arith.constant 146 : index
    %277 = vector.load %arg10[%c0_288, %c146_289] : memref<8x640xbf16, #tpu.memory_space<vmem>>, vector<8x384xbf16>
    %c7_290 = arith.constant 7 : index
    %c0_291 = arith.constant 0 : index
    %c0_292 = arith.constant 0 : index
    %278 = vector.load %arg3[%c7_290, %c0_291, %c0_292] : memref<9x8x8xbf16, #tpu.memory_space<vmem>>, vector<1x8x8xbf16>
    %279 = vector.shape_cast %278 : vector<1x8x8xbf16> to vector<8x8xbf16>
    %cst_293 = arith.constant dense<0.000000e+00> : vector<8x384xf32>
    %280 = tpu.matmul %279, %277, %cst_293 {dimension_numbers = #tpu.dot_dimension_numbers<[1], [0], [0], [1], [0, 0, 1, 1], [], []>} : vector<8x8xbf16>, vector<8x384xbf16>, vector<8x384xf32> -> vector<8x384xf32>
    %281 = arith.addf %276, %280 : vector<8x384xf32>
    %c0_294 = arith.constant 0 : index
    %c147_295 = arith.constant 147 : index
    %282 = vector.load %arg10[%c0_294, %c147_295] : memref<8x640xbf16, #tpu.memory_space<vmem>>, vector<8x384xbf16>
    %c8_296 = arith.constant 8 : index
    %c0_297 = arith.constant 0 : index
    %c0_298 = arith.constant 0 : index
    %283 = vector.load %arg3[%c8_296, %c0_297, %c0_298] : memref<9x8x8xbf16, #tpu.memory_space<vmem>>, vector<1x8x8xbf16>
    %284 = vector.shape_cast %283 : vector<1x8x8xbf16> to vector<8x8xbf16>
    %cst_299 = arith.constant dense<0.000000e+00> : vector<8x384xf32>
    %285 = tpu.matmul %284, %282, %cst_299 {dimension_numbers = #tpu.dot_dimension_numbers<[1], [0], [0], [1], [0, 0, 1, 1], [], []>} : vector<8x8xbf16>, vector<8x384xbf16>, vector<8x384xf32> -> vector<8x384xf32>
    %286 = arith.addf %281, %285 : vector<8x384xf32>
    %cst_300 = arith.constant 0.000000e+00 : f32
    %287 = vector.broadcast %cst_300 : f32 to vector<8x384xf32>
    %288 = arith.maximumf %286, %287 : vector<8x384xf32>
    %289 = arith.mulf %288, %4 : vector<8x384xf32>
    %290 = arith.truncf %289 : vector<8x384xf32> to vector<8x384xbf16>
    %c0_301 = arith.constant 0 : index
    %c128_302 = arith.constant 128 : index
    %291 = vector.load %arg10[%c0_301, %c128_302] : memref<8x640xbf16, #tpu.memory_space<vmem>>, vector<8x384xbf16>
    tpu.vector_store %arg10[%c0_301, %c128_302], %290 {strides = array<i32>} : memref<8x640xbf16, #tpu.memory_space<vmem>>, vector<8x384xbf16>,
    %c0_303 = arith.constant 0 : index
    %c109_304 = arith.constant 109 : index
    %292 = vector.load %arg10[%c0_303, %c109_304] : memref<8x640xbf16, #tpu.memory_space<vmem>>, vector<8x384xbf16>
    %c0_305 = arith.constant 0 : index
    %c0_306 = arith.constant 0 : index
    %c0_307 = arith.constant 0 : index
    %293 = vector.load %arg5[%c0_305, %c0_306, %c0_307] : memref<9x8x8xbf16, #tpu.memory_space<vmem>>, vector<1x8x8xbf16>
    %294 = vector.shape_cast %293 : vector<1x8x8xbf16> to vector<8x8xbf16>
    %cst_308 = arith.constant dense<0.000000e+00> : vector<8x384xf32>
    %295 = tpu.matmul %294, %292, %cst_308 {dimension_numbers = #tpu.dot_dimension_numbers<[1], [0], [0], [1], [0, 0, 1, 1], [], []>} : vector<8x8xbf16>, vector<8x384xbf16>, vector<8x384xf32> -> vector<8x384xf32>
    %296 = arith.addf %10, %295 : vector<8x384xf32>
    %c0_309 = arith.constant 0 : index
    %c110_310 = arith.constant 110 : index
    %297 = vector.load %arg10[%c0_309, %c110_310] : memref<8x640xbf16, #tpu.memory_space<vmem>>, vector<8x384xbf16>
    %c1_311 = arith.constant 1 : index
    %c0_312 = arith.constant 0 : index
    %c0_313 = arith.constant 0 : index
    %298 = vector.load %arg5[%c1_311, %c0_312, %c0_313] : memref<9x8x8xbf16, #tpu.memory_space<vmem>>, vector<1x8x8xbf16>
    %299 = vector.shape_cast %298 : vector<1x8x8xbf16> to vector<8x8xbf16>
    %cst_314 = arith.constant dense<0.000000e+00> : vector<8x384xf32>
    %300 = tpu.matmul %299, %297, %cst_314 {dimension_numbers = #tpu.dot_dimension_numbers<[1], [0], [0], [1], [0, 0, 1, 1], [], []>} : vector<8x8xbf16>, vector<8x384xbf16>, vector<8x384xf32> -> vector<8x384xf32>
    %301 = arith.addf %296, %300 : vector<8x384xf32>
    %c0_315 = arith.constant 0 : index
    %c111_316 = arith.constant 111 : index
    %302 = vector.load %arg10[%c0_315, %c111_316] : memref<8x640xbf16, #tpu.memory_space<vmem>>, vector<8x384xbf16>
    %c2_317 = arith.constant 2 : index
    %c0_318 = arith.constant 0 : index
    %c0_319 = arith.constant 0 : index
    %303 = vector.load %arg5[%c2_317, %c0_318, %c0_319] : memref<9x8x8xbf16, #tpu.memory_space<vmem>>, vector<1x8x8xbf16>
    %304 = vector.shape_cast %303 : vector<1x8x8xbf16> to vector<8x8xbf16>
    %cst_320 = arith.constant dense<0.000000e+00> : vector<8x384xf32>
    %305 = tpu.matmul %304, %302, %cst_320 {dimension_numbers = #tpu.dot_dimension_numbers<[1], [0], [0], [1], [0, 0, 1, 1], [], []>} : vector<8x8xbf16>, vector<8x384xbf16>, vector<8x384xf32> -> vector<8x384xf32>
    %306 = arith.addf %301, %305 : vector<8x384xf32>
    %c0_321 = arith.constant 0 : index
    %c127_322 = arith.constant 127 : index
    %307 = vector.load %arg10[%c0_321, %c127_322] : memref<8x640xbf16, #tpu.memory_space<vmem>>, vector<8x384xbf16>
    %c3_323 = arith.constant 3 : index
    %c0_324 = arith.constant 0 : index
    %c0_325 = arith.constant 0 : index
    %308 = vector.load %arg5[%c3_323, %c0_324, %c0_325] : memref<9x8x8xbf16, #tpu.memory_space<vmem>>, vector<1x8x8xbf16>
    %309 = vector.shape_cast %308 : vector<1x8x8xbf16> to vector<8x8xbf16>
    %cst_326 = arith.constant dense<0.000000e+00> : vector<8x384xf32>
    %310 = tpu.matmul %309, %307, %cst_326 {dimension_numbers = #tpu.dot_dimension_numbers<[1], [0], [0], [1], [0, 0, 1, 1], [], []>} : vector<8x8xbf16>, vector<8x384xbf16>, vector<8x384xf32> -> vector<8x384xf32>
    %311 = arith.addf %306, %310 : vector<8x384xf32>
    %c0_327 = arith.constant 0 : index
    %c128_328 = arith.constant 128 : index
    %312 = vector.load %arg10[%c0_327, %c128_328] : memref<8x640xbf16, #tpu.memory_space<vmem>>, vector<8x384xbf16>
    %c4_329 = arith.constant 4 : index
    %c0_330 = arith.constant 0 : index
    %c0_331 = arith.constant 0 : index
    %313 = vector.load %arg5[%c4_329, %c0_330, %c0_331] : memref<9x8x8xbf16, #tpu.memory_space<vmem>>, vector<1x8x8xbf16>
    %314 = vector.shape_cast %313 : vector<1x8x8xbf16> to vector<8x8xbf16>
    %cst_332 = arith.constant dense<0.000000e+00> : vector<8x384xf32>
    %315 = tpu.matmul %314, %312, %cst_332 {dimension_numbers = #tpu.dot_dimension_numbers<[1], [0], [0], [1], [0, 0, 1, 1], [], []>} : vector<8x8xbf16>, vector<8x384xbf16>, vector<8x384xf32> -> vector<8x384xf32>
    %316 = arith.addf %311, %315 : vector<8x384xf32>
    %c0_333 = arith.constant 0 : index
    %c129_334 = arith.constant 129 : index
    %317 = vector.load %arg10[%c0_333, %c129_334] : memref<8x640xbf16, #tpu.memory_space<vmem>>, vector<8x384xbf16>
    %c5_335 = arith.constant 5 : index
    %c0_336 = arith.constant 0 : index
    %c0_337 = arith.constant 0 : index
    %318 = vector.load %arg5[%c5_335, %c0_336, %c0_337] : memref<9x8x8xbf16, #tpu.memory_space<vmem>>, vector<1x8x8xbf16>
    %319 = vector.shape_cast %318 : vector<1x8x8xbf16> to vector<8x8xbf16>
    %cst_338 = arith.constant dense<0.000000e+00> : vector<8x384xf32>
    %320 = tpu.matmul %319, %317, %cst_338 {dimension_numbers = #tpu.dot_dimension_numbers<[1], [0], [0], [1], [0, 0, 1, 1], [], []>} : vector<8x8xbf16>, vector<8x384xbf16>, vector<8x384xf32> -> vector<8x384xf32>
    %321 = arith.addf %316, %320 : vector<8x384xf32>
    %c0_339 = arith.constant 0 : index
    %c145_340 = arith.constant 145 : index
    %322 = vector.load %arg10[%c0_339, %c145_340] : memref<8x640xbf16, #tpu.memory_space<vmem>>, vector<8x384xbf16>
    %c6_341 = arith.constant 6 : index
    %c0_342 = arith.constant 0 : index
    %c0_343 = arith.constant 0 : index
    %323 = vector.load %arg5[%c6_341, %c0_342, %c0_343] : memref<9x8x8xbf16, #tpu.memory_space<vmem>>, vector<1x8x8xbf16>
    %324 = vector.shape_cast %323 : vector<1x8x8xbf16> to vector<8x8xbf16>
    %cst_344 = arith.constant dense<0.000000e+00> : vector<8x384xf32>
    %325 = tpu.matmul %324, %322, %cst_344 {dimension_numbers = #tpu.dot_dimension_numbers<[1], [0], [0], [1], [0, 0, 1, 1], [], []>} : vector<8x8xbf16>, vector<8x384xbf16>, vector<8x384xf32> -> vector<8x384xf32>
    %326 = arith.addf %321, %325 : vector<8x384xf32>
    %c0_345 = arith.constant 0 : index
    %c146_346 = arith.constant 146 : index
    %327 = vector.load %arg10[%c0_345, %c146_346] : memref<8x640xbf16, #tpu.memory_space<vmem>>, vector<8x384xbf16>
    %c7_347 = arith.constant 7 : index
    %c0_348 = arith.constant 0 : index
    %c0_349 = arith.constant 0 : index
    %328 = vector.load %arg5[%c7_347, %c0_348, %c0_349] : memref<9x8x8xbf16, #tpu.memory_space<vmem>>, vector<1x8x8xbf16>
    %329 = vector.shape_cast %328 : vector<1x8x8xbf16> to vector<8x8xbf16>
    %cst_350 = arith.constant dense<0.000000e+00> : vector<8x384xf32>
    %330 = tpu.matmul %329, %327, %cst_350 {dimension_numbers = #tpu.dot_dimension_numbers<[1], [0], [0], [1], [0, 0, 1, 1], [], []>} : vector<8x8xbf16>, vector<8x384xbf16>, vector<8x384xf32> -> vector<8x384xf32>
    %331 = arith.addf %326, %330 : vector<8x384xf32>
    %c0_351 = arith.constant 0 : index
    %c147_352 = arith.constant 147 : index
    %332 = vector.load %arg10[%c0_351, %c147_352] : memref<8x640xbf16, #tpu.memory_space<vmem>>, vector<8x384xbf16>
    %c8_353 = arith.constant 8 : index
    %c0_354 = arith.constant 0 : index
    %c0_355 = arith.constant 0 : index
    %333 = vector.load %arg5[%c8_353, %c0_354, %c0_355] : memref<9x8x8xbf16, #tpu.memory_space<vmem>>, vector<1x8x8xbf16>
    %334 = vector.shape_cast %333 : vector<1x8x8xbf16> to vector<8x8xbf16>
    %cst_356 = arith.constant dense<0.000000e+00> : vector<8x384xf32>
    %335 = tpu.matmul %334, %332, %cst_356 {dimension_numbers = #tpu.dot_dimension_numbers<[1], [0], [0], [1], [0, 0, 1, 1], [], []>} : vector<8x8xbf16>, vector<8x384xbf16>, vector<8x384xf32> -> vector<8x384xf32>
    %336 = arith.addf %331, %335 : vector<8x384xf32>
    %337 = arith.addf %336, %239 : vector<8x384xf32>
    %cst_357 = arith.constant 0.000000e+00 : f32
    %338 = vector.broadcast %cst_357 : f32 to vector<8x384xf32>
    %339 = arith.maximumf %337, %338 : vector<8x384xf32>
    %340 = arith.mulf %339, %4 : vector<8x384xf32>
    %341 = arith.truncf %340 : vector<8x384xf32> to vector<8x384xbf16>
    %c24 = arith.constant 24 : index
    %c0_358 = arith.constant 0 : index
    %342 = vector.load %arg11[%c24, %c0_358] : memref<32x384xbf16, #tpu.memory_space<vmem>>, vector<8x384xbf16>
    tpu.vector_store %arg11[%c24, %c0_358], %341 {strides = array<i32>} : memref<32x384xbf16, #tpu.memory_space<vmem>>, vector<8x384xbf16>,
    %c2_359 = arith.constant 2 : index
    %c0_360 = arith.constant 0 : index
    %c0_361 = arith.constant 0 : index
    %343 = vector.load %arg7[%c2_359, %c0_360, %c0_361] : memref<3x8x32xbf16, #tpu.memory_space<vmem>>, vector<1x8x32xbf16>
    %344 = vector.shape_cast %343 : vector<1x8x32xbf16> to vector<8x32xbf16>
    %c0_362 = arith.constant 0 : index
    %c0_363 = arith.constant 0 : index
    %345 = vector.load %arg11[%c0_362, %c0_363] : memref<32x384xbf16, #tpu.memory_space<vmem>>, vector<32x384xbf16>
    %cst_364 = arith.constant dense<0.000000e+00> : vector<8x384xf32>
    %346 = tpu.matmul %344, %345, %cst_364 {dimension_numbers = #tpu.dot_dimension_numbers<[1], [0], [0], [1], [0, 0, 1, 1], [], []>} : vector<8x32xbf16>, vector<32x384xbf16>, vector<8x384xf32> -> vector<8x384xf32>
    %c2_365 = arith.constant 2 : index
    %c0_366 = arith.constant 0 : index
    %c0_367 = arith.constant 0 : index
    %347 = vector.load %arg8[%c2_365, %c0_366, %c0_367] : memref<3x8x1xf32, #tpu.memory_space<vmem>>, vector<1x8x1xf32>
    %348 = vector.shape_cast %347 : vector<1x8x1xf32> to vector<8x1xf32>
    %349 = vector.broadcast %348 : vector<8x1xf32> to vector<8x384xf32>
    %350 = arith.addf %346, %349 : vector<8x384xf32>
    %351 = arith.mulf %350, %4 : vector<8x384xf32>
    %c0_368 = arith.constant 0 : index
    %c0_369 = arith.constant 0 : index
    %c0_370 = arith.constant 0 : index
    %352 = vector.load %arg9[%c0_368, %c0_369, %c0_370] : memref<1x8x384xf32, #tpu.memory_space<vmem>>, vector<1x8x384xf32>
    %353 = vector.shape_cast %352 : vector<1x8x384xf32> to vector<8x384xf32>
    %354 = vector.shape_cast %351 : vector<8x384xf32> to vector<1x8x384xf32>
    tpu.vector_store %arg9[%c0_368, %c0_369, %c0_370], %354 {strides = array<i32>} : memref<1x8x384xf32, #tpu.memory_space<vmem>>, vector<1x8x384xf32>,
    return
  }
  func.func @transform_0(%arg0: i32) -> (i32, i32, i32) {
    %c0_i32 = arith.constant 0 : i32
    %c0_i32_0 = arith.constant 0 : i32
    %c0_i32_1 = arith.constant 0 : i32
    return %arg0, %c0_i32, %c0_i32_0 : i32, i32, i32
  }
  func.func @transform_1(%arg0: i32) -> (i32, i32) {
    %c0_i32 = arith.constant 0 : i32
    %c0_i32_0 = arith.constant 0 : i32
    %c0_i32_1 = arith.constant 0 : i32
    return %c0_i32, %c0_i32_0 : i32, i32
  }
  func.func @transform_2(%arg0: i32) -> (i32, i32, i32) {
    %c0_i32 = arith.constant 0 : i32
    %c0_i32_0 = arith.constant 0 : i32
    %c0_i32_1 = arith.constant 0 : i32
    %c0_i32_2 = arith.constant 0 : i32
    return %c0_i32, %c0_i32_0, %c0_i32_1 : i32, i32, i32
  }
  func.func @transform_3(%arg0: i32) -> (i32, i32) {
    %c0_i32 = arith.constant 0 : i32
    %c0_i32_0 = arith.constant 0 : i32
    %c0_i32_1 = arith.constant 0 : i32
    return %c0_i32, %c0_i32_0 : i32, i32
  }
  func.func @transform_4(%arg0: i32) -> (i32, i32, i32) {
    %c0_i32 = arith.constant 0 : i32
    %c0_i32_0 = arith.constant 0 : i32
    %c0_i32_1 = arith.constant 0 : i32
    %c0_i32_2 = arith.constant 0 : i32
    return %c0_i32, %c0_i32_0, %c0_i32_1 : i32, i32, i32
  }
  func.func @transform_5(%arg0: i32) -> (i32, i32) {
    %c0_i32 = arith.constant 0 : i32
    %c0_i32_0 = arith.constant 0 : i32
    %c0_i32_1 = arith.constant 0 : i32
    return %c0_i32, %c0_i32_0 : i32, i32
  }
  func.func @transform_6(%arg0: i32) -> (i32, i32, i32) {
    %c0_i32 = arith.constant 0 : i32
    %c0_i32_0 = arith.constant 0 : i32
    %c0_i32_1 = arith.constant 0 : i32
    %c0_i32_2 = arith.constant 0 : i32
    return %c0_i32, %c0_i32_0, %c0_i32_1 : i32, i32, i32
  }
  func.func @transform_7(%arg0: i32) -> (i32, i32, i32) {
    %c0_i32 = arith.constant 0 : i32
    %c0_i32_0 = arith.constant 0 : i32
    %c0_i32_1 = arith.constant 0 : i32
    %c0_i32_2 = arith.constant 0 : i32
    return %c0_i32, %c0_i32_0, %c0_i32_1 : i32, i32, i32
  }
  func.func @transform_8(%arg0: i32) -> (i32, i32, i32) {
    %c0_i32 = arith.constant 0 : i32
    %c0_i32_0 = arith.constant 0 : i32
    %c0_i32_1 = arith.constant 0 : i32
    return %arg0, %c0_i32, %c0_i32_0 : i32, i32, i32
  }
}

</mosaic_0001>

<llo_original>
// kernel: recursive_block_pallas.1
$region0: #{recursive_block_pallas.1}
  #allocation0 [shape = 'u32[]', space=smem, size = 0x4, offset = 0x4, fixed_abs, tag = 'smem constant byte address 0x4 - core index']
  #allocation1 [shape = 'u32[144,128]{1,0:T(1,128)}', space=vmem, size = 0x12000, scoped, tag = 'internal scratch']
  #allocation2 [shape = 'bf16[8,640]{1,0:T(8,128)(2,1)}', space=vmem, size = 0x2800, scoped, tag = 'scratch operand']
  #allocation3 [shape = 'bf16[32,384]{1,0:T(16,128)(2,1)}', space=vmem, size = 0x6000, scoped, tag = 'scratch operand']
  %s0 = inlined_call_operand.vmem [shape: f32[2,8,384], index: 0, kind: input, shape index: {}]
  %s1 = inlined_call_operand.vmem [shape: f32[1,384], index: 1, kind: input, shape index: {}]
  %s2 = inlined_call_operand.vmem [shape: bf16[9,8,8], index: 2, kind: input, shape index: {}]
  %s3 = inlined_call_operand.vmem [shape: f32[8,1], index: 3, kind: input, shape index: {}]
  %s4 = inlined_call_operand.vmem [shape: bf16[9,8,8], index: 4, kind: input, shape index: {}]
  %s5 = inlined_call_operand.vmem [shape: f32[8,1], index: 5, kind: input, shape index: {}]
  %s6 = inlined_call_operand.vmem [shape: bf16[3,8,32], index: 6, kind: input, shape index: {}]
  %s7 = inlined_call_operand.vmem [shape: f32[3,8,1], index: 7, kind: input, shape index: {}]
  %s8 = inlined_call_operand.vmem [shape: f32[2,8,384], index: 8, kind: output, shape index: {}]
  %s9 = sld [smem:[#allocation0]]
  $region65: #{recursive_block_pallas.1} parent=0
    _
  %s11 = ssub.s32 1, %s9
  %s12 = scalar_select 0, %s11, %s9
  loop: start=0, step=1, limit=4
  $region2: #{recursive_block_pallas.1} parent=0 // loop_pre_header
    _
  $region3: #{recursive_block_pallas.1} parent=0 // loop_header
    %s14 = sphi 0, %s18
    %p15 = scmp.ge.s32.totalorder %s14, 4
    %s24 = sphi 0, %s26
    %s27 = sphi 0, %s24
    %s28 = sphi 0, %s27
    %s44 = sphi 0, %s28
    %s48 = sphi 0, %s48
    %s50 = sphi 0, %s48
    %s51 = sphi 0, %s50
    %s65 = sphi 0, %s51
    %s69 = sphi 0, %s69
    %s71 = sphi 0, %s69
    %s72 = sphi 0, %s71
    %s86 = sphi 0, %s72
    %s90 = sphi 0, %s90
    %s92 = sphi 0, %s90
    %s93 = sphi 0, %s92
    %s107 = sphi 0, %s93
    %s111 = sphi 0, %s111
    %s113 = sphi 0, %s111
    %s114 = sphi 0, %s113
    %s128 = sphi 0, %s114
    %s132 = sphi 0, %s132
    %s134 = sphi 0, %s132
    %s135 = sphi 0, %s134
    %s149 = sphi 0, %s135
    %s153 = sphi 0, %s153
    %s155 = sphi 0, %s153
    %s156 = sphi 0, %s155
    %s170 = sphi 0, %s156
    %s174 = sphi 0, %s174
    %s176 = sphi 0, %s174
    %s177 = sphi 0, %s176
    %s191 = sphi 0, %s177
    %s197 = sphi 0, %s199
    %s200 = sphi 0, %s197
    %s201 = sphi 0, %s200
    %s217 = sphi 0, %s201
  $region4: #{recursive_block_pallas.1} parent=0 // loop_header_branch
    %17 = sbr.rel (%p15) target = $region8
  $region5: #{recursive_block_pallas.1} parent=0 // loop_body
    %s19 = ssub.s32 %s14, 1
    %s20 = ssub.s32 %s14, 2
    %s21 = sadd.s32 %s14, 1
    %s22 = ssub.s32 %s14, %s21
    %p23 = scmp.eq.s32.totalorder %s22, 0
    %s25 = sadd.s32 %s24, 1
    %s26 = scalar_select %p23, %s24, %s25
    %p29 = pneg %p23
    %p30 = scmp.eq.s32.totalorder %s14, 1
    %p31 = por %p29, %p30
    %p32 = scmp.ne.s32.totalorder %s24, %s27
    %p33 = scmp.eq.s32.totalorder %s14, 0
    %p34 = por %p32, %p33
    %p35 = scmp.ne.s32.totalorder %s24, %s27
    %p36 = scmp.eq.s32.totalorder %s19, 1
    %p37 = por %p35, %p36
    %p38 = scmp.ne.s32.totalorder %s27, %s28
    %p39 = scmp.eq.s32.totalorder %s19, 0
    %p40 = por %p38, %p39
    %p41 = scmp.ne.s32.totalorder %s27, %s28
    %p42 = scmp.eq.s32.totalorder %s20, 1
    %p43 = por %p41, %p42
    %p45 = scmp.ne.s32.totalorder %s28, %s44
    %p46 = scmp.eq.s32.totalorder %s20, 0
    %p47 = por %p45, %p46
    %s49 = sadd.s32 %s48, 1
    %p52 = scmp.eq.s32.totalorder %s14, 1
    %p53 = scmp.ne.s32.totalorder %s48, %s50
    %p54 = scmp.eq.s32.totalorder %s14, 0
    %p55 = por %p53, %p54
    %p56 = scmp.ne.s32.totalorder %s48, %s50
    %p57 = scmp.eq.s32.totalorder %s19, 1
    %p58 = por %p56, %p57
    %p59 = scmp.ne.s32.totalorder %s50, %s51
    %p60 = scmp.eq.s32.totalorder %s19, 0
    %p61 = por %p59, %p60
    %p62 = scmp.ne.s32.totalorder %s50, %s51
    %p63 = scmp.eq.s32.totalorder %s20, 1
    %p64 = por %p62, %p63
    %p66 = scmp.ne.s32.totalorder %s51, %s65
    %p67 = scmp.eq.s32.totalorder %s20, 0
    %p68 = por %p66, %p67
    %s70 = sadd.s32 %s69, 1
    %p73 = scmp.eq.s32.totalorder %s14, 1
    %p74 = scmp.ne.s32.totalorder %s69, %s71
    %p75 = scmp.eq.s32.totalorder %s14, 0
    %p76 = por %p74, %p75
    %p77 = scmp.ne.s32.totalorder %s69, %s71
    %p78 = scmp.eq.s32.totalorder %s19, 1
    %p79 = por %p77, %p78
    %p80 = scmp.ne.s32.totalorder %s71, %s72
    %p81 = scmp.eq.s32.totalorder %s19, 0
    %p82 = por %p80, %p81
    %p83 = scmp.ne.s32.totalorder %s71, %s72
    %p84 = scmp.eq.s32.totalorder %s20, 1
    %p85 = por %p83, %p84
    %p87 = scmp.ne.s32.totalorder %s72, %s86
    %p88 = scmp.eq.s32.totalorder %s20, 0
    %p89 = por %p87, %p88
    %s91 = sadd.s32 %s90, 1
    %p94 = scmp.eq.s32.totalorder %s14, 1
    %p95 = scmp.ne.s32.totalorder %s90, %s92
    %p96 = scmp.eq.s32.totalorder %s14, 0
    %p97 = por %p95, %p96
    %p98 = scmp.ne.s32.totalorder %s90, %s92
    %p99 = scmp.eq.s32.totalorder %s19, 1
    %p100 = por %p98, %p99
    %p101 = scmp.ne.s32.totalorder %s92, %s93
    %p102 = scmp.eq.s32.totalorder %s19, 0
    %p103 = por %p101, %p102
    %p104 = scmp.ne.s32.totalorder %s92, %s93
    %p105 = scmp.eq.s32.totalorder %s20, 1
    %p106 = por %p104, %p105
    %p108 = scmp.ne.s32.totalorder %s93, %s107
    %p109 = scmp.eq.s32.totalorder %s20, 0
    %p110 = por %p108, %p109
    %s112 = sadd.s32 %s111, 1
    %p115 = scmp.eq.s32.totalorder %s14, 1
    %p116 = scmp.ne.s32.totalorder %s111, %s113
    %p117 = scmp.eq.s32.totalorder %s14, 0
    %p118 = por %p116, %p117
    %p119 = scmp.ne.s32.totalorder %s111, %s113
    %p120 = scmp.eq.s32.totalorder %s19, 1
    %p121 = por %p119, %p120
    %p122 = scmp.ne.s32.totalorder %s113, %s114
    %p123 = scmp.eq.s32.totalorder %s19, 0
    %p124 = por %p122, %p123
    %p125 = scmp.ne.s32.totalorder %s113, %s114
    %p126 = scmp.eq.s32.totalorder %s20, 1
    %p127 = por %p125, %p126
    %p129 = scmp.ne.s32.totalorder %s114, %s128
    %p130 = scmp.eq.s32.totalorder %s20, 0
    %p131 = por %p129, %p130
    %s133 = sadd.s32 %s132, 1
    %p136 = scmp.eq.s32.totalorder %s14, 1
    %p137 = scmp.ne.s32.totalorder %s132, %s134
    %p138 = scmp.eq.s32.totalorder %s14, 0
    %p139 = por %p137, %p138
    %p140 = scmp.ne.s32.totalorder %s132, %s134
    %p141 = scmp.eq.s32.totalorder %s19, 1
    %p142 = por %p140, %p141
    %p143 = scmp.ne.s32.totalorder %s134, %s135
    %p144 = scmp.eq.s32.totalorder %s19, 0
    %p145 = por %p143, %p144
    %p146 = scmp.ne.s32.totalorder %s134, %s135
    %p147 = scmp.eq.s32.totalorder %s20, 1
    %p148 = por %p146, %p147
    %p150 = scmp.ne.s32.totalorder %s135, %s149
    %p151 = scmp.eq.s32.totalorder %s20, 0
    %p152 = por %p150, %p151
    %s154 = sadd.s32 %s153, 1
    %p157 = scmp.eq.s32.totalorder %s14, 1
    %p158 = scmp.ne.s32.totalorder %s153, %s155
    %p159 = scmp.eq.s32.totalorder %s14, 0
    %p160 = por %p158, %p159
    %p161 = scmp.ne.s32.totalorder %s153, %s155
    %p162 = scmp.eq.s32.totalorder %s19, 1
    %p163 = por %p161, %p162
    %p164 = scmp.ne.s32.totalorder %s155, %s156
    %p165 = scmp.eq.s32.totalorder %s19, 0
    %p166 = por %p164, %p165
    %p167 = scmp.ne.s32.totalorder %s155, %s156
    %p168 = scmp.eq.s32.totalorder %s20, 1
    %p169 = por %p167, %p168
    %p171 = scmp.ne.s32.totalorder %s156, %s170
    %p172 = scmp.eq.s32.totalorder %s20, 0
    %p173 = por %p171, %p172
    %s175 = sadd.s32 %s174, 1
    %p178 = scmp.eq.s32.totalorder %s14, 1
    %p179 = scmp.ne.s32.totalorder %s174, %s176
    %p180 = scmp.eq.s32.totalorder %s14, 0
    %p181 = por %p179, %p180
    %p182 = scmp.ne.s32.totalorder %s174, %s176
    %p183 = scmp.eq.s32.totalorder %s19, 1
    %p184 = por %p182, %p183
    %p185 = scmp.ne.s32.totalorder %s176, %s177
    %p186 = scmp.eq.s32.totalorder %s19, 0
    %p187 = por %p185, %p186
    %p188 = scmp.ne.s32.totalorder %s176, %s177
    %p189 = scmp.eq.s32.totalorder %s20, 1
    %p190 = por %p188, %p189
    %p192 = scmp.ne.s32.totalorder %s177, %s191
    %p193 = scmp.eq.s32.totalorder %s20, 0
    %p194 = por %p192, %p193
    %s195 = ssub.s32 %s14, %s21
    %p196 = scmp.eq.s32.totalorder %s195, 0
    %s198 = sadd.s32 %s197, 1
    %s199 = scalar_select %p196, %s197, %s198
    %p202 = pneg %p196
    %p203 = scmp.eq.s32.totalorder %s14, 1
    %p204 = por %p202, %p203
    %p205 = scmp.ne.s32.totalorder %s197, %s200
    %p206 = scmp.eq.s32.totalorder %s14, 0
    %p207 = por %p205, %p206
    %p208 = scmp.ne.s32.totalorder %s197, %s200
    %p209 = scmp.eq.s32.totalorder %s19, 1
    %p210 = por %p208, %p209
    %p211 = scmp.ne.s32.totalorder %s200, %s201
    %p212 = scmp.eq.s32.totalorder %s19, 0
    %p213 = por %p211, %p212
    %p214 = scmp.ne.s32.totalorder %s200, %s201
    %p215 = scmp.eq.s32.totalorder %s20, 1
    %p216 = por %p214, %p215
    %p218 = scmp.ne.s32.totalorder %s201, %s217
    %p219 = scmp.eq.s32.totalorder %s20, 0
    %p220 = por %p218, %p219
    %p221 = scmp.le.s32.totalorder 1, %s14
    %p222 = scmp.lt.s32.totalorder %s14, 3
    %p223 = pnand %p221, %p222
    %p224 = pneg %p223
    // Predicated region
    $region9: #{recursive_block_pallas.1} parent=5 // pred_check
      _
    $region10: #{recursive_block_pallas.1} parent=5 // pred_check_branch
      %226 = sbr.rel (%p223) target = $region12
    $region11: #{recursive_block_pallas.1} parent=5 // pred_region
      %s227 = ssub.s32 %s14, 1
      // Predicated region
      $region13: #{recursive_block_pallas.1} parent=11 // pred_check
        %p228 = pneg %p61
      $region14: #{recursive_block_pallas.1} parent=11 // pred_check_branch
        %230 = sbr.rel (%p228) target = $region16
      $region15: #{recursive_block_pallas.1} parent=11 // pred_region
        _
      $region16: #{recursive_block_pallas.1} parent=11 // pred_fallthru
        _
      // Predicated region
      $region17: #{recursive_block_pallas.1} parent=11 // pred_check
        %p231 = pneg %p82
      $region18: #{recursive_block_pallas.1} parent=11 // pred_check_branch
        %233 = sbr.rel (%p231) target = $region20
      $region19: #{recursive_block_pallas.1} parent=11 // pred_region
        _
      $region20: #{recursive_block_pallas.1} parent=11 // pred_fallthru
        _
      // Predicated region
      $region21: #{recursive_block_pallas.1} parent=11 // pred_check
        %p234 = pneg %p103
      $region22: #{recursive_block_pallas.1} parent=11 // pred_check_branch
        %236 = sbr.rel (%p234) target = $region24
      $region23: #{recursive_block_pallas.1} parent=11 // pred_region
        _
      $region24: #{recursive_block_pallas.1} parent=11 // pred_fallthru
        _
      // Predicated region
      $region25: #{recursive_block_pallas.1} parent=11 // pred_check
        %p237 = pneg %p124
      $region26: #{recursive_block_pallas.1} parent=11 // pred_check_branch
        %239 = sbr.rel (%p237) target = $region28
      $region27: #{recursive_block_pallas.1} parent=11 // pred_region
        _
      $region28: #{recursive_block_pallas.1} parent=11 // pred_fallthru
        _
      // Predicated region
      $region29: #{recursive_block_pallas.1} parent=11 // pred_check
        %p240 = pneg %p145
      $region30: #{recursive_block_pallas.1} parent=11 // pred_check_branch
        %242 = sbr.rel (%p240) target = $region32
      $region31: #{recursive_block_pallas.1} parent=11 // pred_region
        _
      $region32: #{recursive_block_pallas.1} parent=11 // pred_fallthru
        _
      // Predicated region
      $region33: #{recursive_block_pallas.1} parent=11 // pred_check
        %p243 = pneg %p166
      $region34: #{recursive_block_pallas.1} parent=11 // pred_check_branch
        %245 = sbr.rel (%p243) target = $region36
      $region35: #{recursive_block_pallas.1} parent=11 // pred_region
        _
      $region36: #{recursive_block_pallas.1} parent=11 // pred_fallthru
        _
      // Predicated region
      $region37: #{recursive_block_pallas.1} parent=11 // pred_check
        %p246 = pneg %p187
      $region38: #{recursive_block_pallas.1} parent=11 // pred_check_branch
        %248 = sbr.rel (%p246) target = $region40
      $region39: #{recursive_block_pallas.1} parent=11 // pred_region
        _
      $region40: #{recursive_block_pallas.1} parent=11 // pred_fallthru
        _
    $region12: #{recursive_block_pallas.1} parent=5 // pred_fallthru
      _
    %p249 = scmp.lt.s32.totalorder %s14, 2
    // Predicated region
    $region41: #{recursive_block_pallas.1} parent=5 // pred_check
      %p250 = pneg %p249
    $region42: #{recursive_block_pallas.1} parent=5 // pred_check_branch
      %252 = sbr.rel (%p250) target = $region44
    $region43: #{recursive_block_pallas.1} parent=5 // pred_region
      // Predicated region
      $region45: #{recursive_block_pallas.1} parent=43 // pred_check
        %p253 = pneg %p34
      $region46: #{recursive_block_pallas.1} parent=43 // pred_check_branch
        %255 = sbr.rel (%p253) target = $region48
      $region47: #{recursive_block_pallas.1} parent=43 // pred_region
        %p256 = scmp.lt.s32.totalorder %s14, 1
        %s257 = scalar_select %p256, %s14, 1
        %s258 = smul.addr %s257, 3
        %s259 = smul.addr %s258, 8
        %s260 = scalar_lea.vmem %s0, %s259
      $region48: #{recursive_block_pallas.1} parent=43 // pred_fallthru
        _
    $region44: #{recursive_block_pallas.1} parent=5 // pred_fallthru
      _
    %p261 = scmp.le.s32.totalorder 1, %s14
    %p262 = scmp.lt.s32.totalorder %s14, 3
    %p263 = pnand %p261, %p262
    %p264 = pneg %p263
    // Predicated region
    $region49: #{recursive_block_pallas.1} parent=5 // pred_check
      _
    $region50: #{recursive_block_pallas.1} parent=5 // pred_check_branch
      %266 = sbr.rel (%p263) target = $region52
    $region51: #{recursive_block_pallas.1} parent=5 // pred_region
      %s267 = ssub.s32 %s14, 1
      %p268 = scmp.lt.s32.totalorder %s19, 1
      %s269 = scalar_select %p268, %s19, 1
      %s270 = smul.addr %s269, 3
      %s271 = smul.addr %s270, 8
      %s272 = scalar_lea.vmem %s0, %s271
      %p273 = pneg %p40
      %p274 = pneg %p37
      %p275 = pneg %p61
      %p276 = pneg %p58
      %p277 = pneg %p82
      %p278 = pneg %p79
      %p279 = pneg %p103
      %p280 = pneg %p100
      %p281 = pneg %p124
      %p282 = pneg %p121
      %p283 = pneg %p145
      %p284 = pneg %p142
      %p285 = pneg %p166
      %p286 = pneg %p163
      %p287 = pneg %p187
      %p288 = pneg %p184
      %p289 = pneg %p213
      %p290 = pneg %p210
      %p291 = scmp.lt.s32.totalorder %s19, 1
      %s292 = scalar_select %p291, %s19, 1
      %s293 = smul.addr %s292, 3
      %s294 = smul.addr %s293, 8
      %s295 = scalar_lea.vmem %s8, %s294
      %p296 = scmp.lt.s32.totalorder %s19, 1
      %s297 = scalar_select %p296, %s19, 1
      %s298 = smul.addr %s297, 3
      %s299 = smul.addr %s298, 8
      %s300 = scalar_lea.vmem %s0, %s299
      %p301 = scmp.lt.s32.totalorder %s19, 1
      %s302 = scalar_select %p301, %s19, 1
      %s303 = smul.addr %s302, 3
      %s304 = smul.addr %s303, 8
      %s305 = scalar_lea.vmem %s8, %s304
      %v307 = vld [vmem:[%s300] sm:$0xff]
      %v308 = vld [vmem:[%s300 + $0x8] sm:$0xff]
      %v309 = vld [vmem:[%s300 + $0x10] sm:$0xff]
      %v310 = vld [vmem:[%s1] sm:$0x7]
      %v312 = vlaneseq
      %v313 = vshrl.u32 %v312, 7
      %v314 = vsub.s32 0, %v313
      %v315 = vrot.slane %v310, %v314
      %v316 = vlaneseq
      %v317 = vshrl.u32 %v316, 7
      %v318 = vsub.s32 1, %v317
      %v319 = vrot.slane %v310, %v318
      %v320 = vlaneseq
      %v321 = vshrl.u32 %v320, 7
      %v322 = vsub.s32 2, %v321
      %v323 = vrot.slane %v310, %v322
      %v327 = vld [vmem:[%s3] sm:$0xff]
      %329 = vset.pattern.permute.xlu0 0
      %330 = vperm.xlu0 %329, %v327
      %v331 = vpop.permute.xlu0 %330
      %v333 = vld [vmem:[%s5] sm:$0xff]
      %335 = vset.pattern.permute.xlu0 0
      %336 = vperm.xlu0 %335, %v333
      %v337 = vpop.permute.xlu0 %336
      %339 = vst [vmem:[#allocation2] sm:$0xff] 0
      %340 = vst [vmem:[#allocation2 + $0x8] sm:$0xff] 0
      %341 = vst [vmem:[#allocation2 + $0x10] sm:$0xf] 0
      %v342 = vpack.c.bf16 %v307, %v307
      %v343 = vpack.c.bf16 %v308, %v308
      %v344 = vpack.c.bf16 %v309, %v309
      %345 = vst [vmem:[#allocation3] sm:$0xf] %v342
      %346 = vst [vmem:[#allocation3 + $0x8] sm:$0xf] %v343
      %347 = vst [vmem:[#allocation3 + $0x10] sm:$0xf] %v344
      %v351 = vunpack.c.l.b16 %v342
      %v352 = vunpack.c.l.b16 %v343
      %v353 = vunpack.c.l.b16 %v344
      %v354 = vpack.c.b16 %v352, %v351
      %v355 = vpack.c.b16 %v353, %v353
      %358 = vst [vmem:[#allocation2 + $0x4] sm:$0xff] %v354
      %359 = vst [vmem:[#allocation2 + $0xc] sm:$0xf] %v355
      %v360 = vld [vmem:[#allocation2] sm:$0xff]
      %v361 = vld [vmem:[#allocation2 + $0x8] sm:$0xff]
      %v362 = vld [vmem:[%s2] sm:$0xf]
      %v365 = vunpack.c.l.b16 %v360
      %v366 = vunpack.c.h.b16 %v360
      %v367 = vunpack.c.l.b16 %v361
      %v368 = vunpack.c.h.b16 %v361
      %v369 = vpack.c.b16 %v365, %v365
      %v370 = vpack.c.b16 %v366, %v366
      %v371 = vpack.c.b16 %v367, %v367
      %v372 = vpack.c.b16 %v368, %v368
      %373 = vrot.lane.b32.xlu0 %v369, 19
      %v374 = vpop.permute.xlu0 %373
      %375 = vrot.lane.b32.xlu0 %v370, 19
      %v376 = vpop.permute.xlu0 %375
      %377 = vrot.lane.b32.xlu0 %v371, 19
      %v378 = vpop.permute.xlu0 %377
      %379 = vrot.lane.b32.xlu0 %v372, 19
      %v380 = vpop.permute.xlu0 %379
      %vm381 = vcmask 154624
      %v382 = vsel %vm381, %v374, %v376
      %v383 = vsel %vm381, %v376, %v378
      %v384 = vsel %vm381, %v378, %v380
      %vm385 = vcmask 64512
      %v387 = vsel %vm385, %v362, 0
      %vm389 = vcmask 1043456
      %v391 = vsel %vm389, %v382, 0
      %v394 = vsel %vm389, %v383, 0
      %v397 = vsel %vm389, %v384, 0
      %399 = vmatprep.subr.bf16.mxu0 %v394
      %400 = vmatpush1.bf16.msra.mxu0 %v391
      %401 = vmatprep.subr.bf16.mxu0 0
      %402 = vmatpush1.bf16.msra.mxu0 0
      %403 = vmatprep.subr.bf16.mxu0 0
      %404 = vmatpush1.bf16.msra.mxu0 0
      %405 = vmatprep.subr.bf16.mxu0 0
      %406 = vmatpush1.bf16.msra.mxu0 0
      %407 = vmatprep.subr.bf16.mxu0 0
      %408 = vmatpush1.bf16.msra.mxu0 0
      %409 = vmatprep.subr.bf16.mxu0 0
      %410 = vmatpush1.bf16.msra.mxu0 0
      %411 = vmatprep.subr.bf16.mxu0 0
      %412 = vmatpush1.bf16.msra.mxu0 0
      %413 = vmatprep.subr.bf16.mxu0 0
      %414 = vmatpush1.bf16.msra.mxu0 0
      %415 = vmatprep.subr.bf16.mxu0 0
      %416 = vmatpush1.bf16.msra.mxu0 0
      %417 = vmatprep.subr.bf16.mxu0 0
      %418 = vmatpush1.bf16.msra.mxu0 0
      %419 = vmatprep.subr.bf16.mxu0 0
      %420 = vmatpush1.bf16.msra.mxu0 0
      %421 = vmatprep.subr.bf16.mxu0 0
      %422 = vmatpush1.bf16.msra.mxu0 0
      %423 = vmatprep.subr.bf16.mxu0 0
      %424 = vmatpush1.bf16.msra.mxu0 0
      %425 = vmatprep.subr.bf16.mxu0 0
      %426 = vmatpush1.bf16.msra.mxu0 0
      %427 = vmatprep.subr.bf16.mxu0 0
      %428 = vmatpush1.bf16.msra.mxu0 0
      %429 = vmatprep.subr.bf16.mxu0 0
      %430 = vmatpush1.bf16.msra.mxu0 0
      %431 = vmatprep.mubr.bf16.mxu0 0
      %432 = vmatmul.mubr.bf16.gmra.mrb[0].mxu0 %v387
      %v433 = vpop.f32.mrb[0].mxu0
      %v434 = vadd.f32 0.0, %v433
      %v435 = vpop.f32.mrb[0].mxu0
      %v436 = vadd.f32 0.0, %v435
      %v437 = vpop.f32.mrb[0].mxu0
      %v438 = vpop.f32.mrb[0].mxu0
      %439 = vdwg.mxu0
      %440 = vmatprep.subr.bf16.mxu0 0
      %441 = vmatpush1.bf16.msra.mxu0 %v397
      %442 = vmatprep.subr.bf16.mxu0 0
      %443 = vmatpush1.bf16.msra.mxu0 0
      %444 = vmatprep.subr.bf16.mxu0 0
      %445 = vmatpush1.bf16.msra.mxu0 0
      %446 = vmatprep.subr.bf16.mxu0 0
      %447 = vmatpush1.bf16.msra.mxu0 0
      %448 = vmatprep.subr.bf16.mxu0 0
      %449 = vmatpush1.bf16.msra.mxu0 0
      %450 = vmatprep.subr.bf16.mxu0 0
      %451 = vmatpush1.bf16.msra.mxu0 0
      %452 = vmatprep.subr.bf16.mxu0 0
      %453 = vmatpush1.bf16.msra.mxu0 0
      %454 = vmatprep.subr.bf16.mxu0 0
      %455 = vmatpush1.bf16.msra.mxu0 0
      %456 = vmatprep.subr.bf16.mxu0 0
      %457 = vmatpush1.bf16.msra.mxu0 0
      %458 = vmatprep.subr.bf16.mxu0 0
      %459 = vmatpush1.bf16.msra.mxu0 0
      %460 = vmatprep.subr.bf16.mxu0 0
      %461 = vmatpush1.bf16.msra.mxu0 0
      %462 = vmatprep.subr.bf16.mxu0 0
      %463 = vmatpush1.bf16.msra.mxu0 0
      %464 = vmatprep.subr.bf16.mxu0 0
      %465 = vmatpush1.bf16.msra.mxu0 0
      %466 = vmatprep.subr.bf16.mxu0 0
      %467 = vmatpush1.bf16.msra.mxu0 0
      %468 = vmatprep.subr.bf16.mxu0 0
      %469 = vmatpush1.bf16.msra.mxu0 0
      %470 = vmatprep.subr.bf16.mxu0 0
      %471 = vmatpush1.bf16.msra.mxu0 0
      %472 = vmatprep.mubr.bf16.mxu0 0
      %473 = vmatmul.mubr.bf16.gmra.mrb[0].mxu0 %v387
      %v474 = vpop.f32.mrb[0].mxu0
      %v475 = vadd.f32 0.0, %v474
      %v476 = vpop.f32.mrb[0].mxu0
      %v477 = vpop.f32.mrb[0].mxu0
      %v478 = vpop.f32.mrb[0].mxu0
      %479 = vdwg.mxu0
      %v480 = vadd.f32 %v331, %v434
      %v481 = vadd.f32 %v331, %v436
      %v482 = vadd.f32 %v331, %v475
      %s483 = scalar_lea.vmem %s2, 4
      %v484 = vld [vmem:[%s483] sm:$0xf]
      %485 = vrot.lane.b32.xlu0 %v369, 18
      %v486 = vpop.permute.xlu0 %485
      %487 = vrot.lane.b32.xlu0 %v370, 18
      %v488 = vpop.permute.xlu0 %487
      %489 = vrot.lane.b32.xlu0 %v371, 18
      %v490 = vpop.permute.xlu0 %489
      %491 = vrot.lane.b32.xlu0 %v372, 18
      %v492 = vpop.permute.xlu0 %491
      %vm493 = vcmask 146432
      %v494 = vsel %vm493, %v486, %v488
      %v495 = vsel %vm493, %v488, %v490
      %v496 = vsel %vm493, %v490, %v492
      %v498 = vsel %vm385, %v484, 0
      %v501 = vsel %vm389, %v494, 0
      %v504 = vsel %vm389, %v495, 0
      %v507 = vsel %vm389, %v496, 0
      %509 = vmatprep.subr.bf16.mxu0 %v504
      %510 = vmatpush1.bf16.msra.mxu0 %v501
      %511 = vmatprep.subr.bf16.mxu0 0
      %512 = vmatpush1.bf16.msra.mxu0 0
      %513 = vmatprep.subr.bf16.mxu0 0
      %514 = vmatpush1.bf16.msra.mxu0 0
      %515 = vmatprep.subr.bf16.mxu0 0
      %516 = vmatpush1.bf16.msra.mxu0 0
      %517 = vmatprep.subr.bf16.mxu0 0
      %518 = vmatpush1.bf16.msra.mxu0 0
      %519 = vmatprep.subr.bf16.mxu0 0
      %520 = vmatpush1.bf16.msra.mxu0 0
      %521 = vmatprep.subr.bf16.mxu0 0
      %522 = vmatpush1.bf16.msra.mxu0 0
      %523 = vmatprep.subr.bf16.mxu0 0
      %524 = vmatpush1.bf16.msra.mxu0 0
      %525 = vmatprep.subr.bf16.mxu0 0
      %526 = vmatpush1.bf16.msra.mxu0 0
      %527 = vmatprep.subr.bf16.mxu0 0
      %528 = vmatpush1.bf16.msra.mxu0 0
      %529 = vmatprep.subr.bf16.mxu0 0
      %530 = vmatpush1.bf16.msra.mxu0 0
      %531 = vmatprep.subr.bf16.mxu0 0
      %532 = vmatpush1.bf16.msra.mxu0 0
      %533 = vmatprep.subr.bf16.mxu0 0
      %534 = vmatpush1.bf16.msra.mxu0 0
      %535 = vmatprep.subr.bf16.mxu0 0
      %536 = vmatpush1.bf16.msra.mxu0 0
      %537 = vmatprep.subr.bf16.mxu0 0
      %538 = vmatpush1.bf16.msra.mxu0 0
      %539 = vmatprep.subr.bf16.mxu0 0
      %540 = vmatpush1.bf16.msra.mxu0 0
      %541 = vmatprep.mubr.bf16.mxu0 0
      %542 = vmatmul.mubr.bf16.gmra.mrb[0].mxu0 %v498
      %v543 = vpop.f32.mrb[0].mxu0
      %v544 = vadd.f32 0.0, %v543
      %v545 = vpop.f32.mrb[0].mxu0
      %v546 = vadd.f32 0.0, %v545
      %v547 = vpop.f32.mrb[0].mxu0
      %v548 = vpop.f32.mrb[0].mxu0
      %549 = vdwg.mxu0
      %550 = vmatprep.subr.bf16.mxu0 0
      %551 = vmatpush1.bf16.msra.mxu0 %v507
      %552 = vmatprep.subr.bf16.mxu0 0
      %553 = vmatpush1.bf16.msra.mxu0 0
      %554 = vmatprep.subr.bf16.mxu0 0
      %555 = vmatpush1.bf16.msra.mxu0 0
      %556 = vmatprep.subr.bf16.mxu0 0
      %557 = vmatpush1.bf16.msra.mxu0 0
      %558 = vmatprep.subr.bf16.mxu0 0
      %559 = vmatpush1.bf16.msra.mxu0 0
      %560 = vmatprep.subr.bf16.mxu0 0
      %561 = vmatpush1.bf16.msra.mxu0 0
      %562 = vmatprep.subr.bf16.mxu0 0
      %563 = vmatpush1.bf16.msra.mxu0 0
      %564 = vmatprep.subr.bf16.mxu0 0
      %565 = vmatpush1.bf16.msra.mxu0 0
      %566 = vmatprep.subr.bf16.mxu0 0
      %567 = vmatpush1.bf16.msra.mxu0 0
      %568 = vmatprep.subr.bf16.mxu0 0
      %569 = vmatpush1.bf16.msra.mxu0 0
      %570 = vmatprep.subr.bf16.mxu0 0
      %571 = vmatpush1.bf16.msra.mxu0 0
      %572 = vmatprep.subr.bf16.mxu0 0
      %573 = vmatpush1.bf16.msra.mxu0 0
      %574 = vmatprep.subr.bf16.mxu0 0
      %575 = vmatpush1.bf16.msra.mxu0 0
      %576 = vmatprep.subr.bf16.mxu0 0
      %577 = vmatpush1.bf16.msra.mxu0 0
      %578 = vmatprep.subr.bf16.mxu0 0
      %579 = vmatpush1.bf16.msra.mxu0 0
      %580 = vmatprep.subr.bf16.mxu0 0
      %581 = vmatpush1.bf16.msra.mxu0 0
      %582 = vmatprep.mubr.bf16.mxu0 0
      %583 = vmatmul.mubr.bf16.gmra.mrb[0].mxu0 %v498
      %v584 = vpop.f32.mrb[0].mxu0
      %v585 = vadd.f32 0.0, %v584
      %v586 = vpop.f32.mrb[0].mxu0
      %v587 = vpop.f32.mrb[0].mxu0
      %v588 = vpop.f32.mrb[0].mxu0
      %589 = vdwg.mxu0
      %v590 = vadd.f32 %v480, %v544
      %v591 = vadd.f32 %v481, %v546
      %v592 = vadd.f32 %v482, %v585
      %s593 = scalar_lea.vmem %s2, 8
      %v594 = vld [vmem:[%s593] sm:$0xf]
      %595 = vrot.lane.b32.xlu0 %v369, 17
      %v596 = vpop.permute.xlu0 %595
      %597 = vrot.lane.b32.xlu0 %v370, 17
      %v598 = vpop.permute.xlu0 %597
      %599 = vrot.lane.b32.xlu0 %v371, 17
      %v600 = vpop.permute.xlu0 %599
      %601 = vrot.lane.b32.xlu0 %v372, 17
      %v602 = vpop.permute.xlu0 %601
      %vm603 = vcmask 138240
      %v604 = vsel %vm603, %v596, %v598
      %v605 = vsel %vm603, %v598, %v600
      %v606 = vsel %vm603, %v600, %v602
      %v608 = vsel %vm385, %v594, 0
      %v611 = vsel %vm389, %v604, 0
      %v614 = vsel %vm389, %v605, 0
      %v617 = vsel %vm389, %v606, 0
      %619 = vmatprep.subr.bf16.mxu0 %v614
      %620 = vmatpush1.bf16.msra.mxu0 %v611
      %621 = vmatprep.subr.bf16.mxu0 0
      %622 = vmatpush1.bf16.msra.mxu0 0
      %623 = vmatprep.subr.bf16.mxu0 0
      %624 = vmatpush1.bf16.msra.mxu0 0
      %625 = vmatprep.subr.bf16.mxu0 0
      %626 = vmatpush1.bf16.msra.mxu0 0
      %627 = vmatprep.subr.bf16.mxu0 0
      %628 = vmatpush1.bf16.msra.mxu0 0
      %629 = vmatprep.subr.bf16.mxu0 0
      %630 = vmatpush1.bf16.msra.mxu0 0
      %631 = vmatprep.subr.bf16.mxu0 0
      %632 = vmatpush1.bf16.msra.mxu0 0
      %633 = vmatprep.subr.bf16.mxu0 0
      %634 = vmatpush1.bf16.msra.mxu0 0
      %635 = vmatprep.subr.bf16.mxu0 0
      %636 = vmatpush1.bf16.msra.mxu0 0
      %637 = vmatprep.subr.bf16.mxu0 0
      %638 = vmatpush1.bf16.msra.mxu0 0
      %639 = vmatprep.subr.bf16.mxu0 0
      %640 = vmatpush1.bf16.msra.mxu0 0
      %641 = vmatprep.subr.bf16.mxu0 0
      %642 = vmatpush1.bf16.msra.mxu0 0
      %643 = vmatprep.subr.bf16.mxu0 0
      %644 = vmatpush1.bf16.msra.mxu0 0
      %645 = vmatprep.subr.bf16.mxu0 0
      %646 = vmatpush1.bf16.msra.mxu0 0
      %647 = vmatprep.subr.bf16.mxu0 0
      %648 = vmatpush1.bf16.msra.mxu0 0
      %649 = vmatprep.subr.bf16.mxu0 0
      %650 = vmatpush1.bf16.msra.mxu0 0
      %651 = vmatprep.mubr.bf16.mxu0 0
      %652 = vmatmul.mubr.bf16.gmra.mrb[0].mxu0 %v608
      %v653 = vpop.f32.mrb[0].mxu0
      %v654 = vadd.f32 0.0, %v653
      %v655 = vpop.f32.mrb[0].mxu0
      %v656 = vadd.f32 0.0, %v655
      %v657 = vpop.f32.mrb[0].mxu0
      %v658 = vpop.f32.mrb[0].mxu0
      %659 = vdwg.mxu0
      %660 = vmatprep.subr.bf16.mxu0 0
      %661 = vmatpush1.bf16.msra.mxu0 %v617
      %662 = vmatprep.subr.bf16.mxu0 0
      %663 = vmatpush1.bf16.msra.mxu0 0
      %664 = vmatprep.subr.bf16.mxu0 0
      %665 = vmatpush1.bf16.msra.mxu0 0
      %666 = vmatprep.subr.bf16.mxu0 0
      %667 = vmatpush1.bf16.msra.mxu0 0
      %668 = vmatprep.subr.bf16.mxu0 0
      %669 = vmatpush1.bf16.msra.mxu0 0
      %670 = vmatprep.subr.bf16.mxu0 0
      %671 = vmatpush1.bf16.msra.mxu0 0
      %672 = vmatprep.subr.bf16.mxu0 0
      %673 = vmatpush1.bf16.msra.mxu0 0
      %674 = vmatprep.subr.bf16.mxu0 0
      %675 = vmatpush1.bf16.msra.mxu0 0
      %676 = vmatprep.subr.bf16.mxu0 0
      %677 = vmatpush1.bf16.msra.mxu0 0
      %678 = vmatprep.subr.bf16.mxu0 0
      %679 = vmatpush1.bf16.msra.mxu0 0
      %680 = vmatprep.subr.bf16.mxu0 0
      %681 = vmatpush1.bf16.msra.mxu0 0
      %682 = vmatprep.subr.bf16.mxu0 0
      %683 = vmatpush1.bf16.msra.mxu0 0
      %684 = vmatprep.subr.bf16.mxu0 0
      %685 = vmatpush1.bf16.msra.mxu0 0
      %686 = vmatprep.subr.bf16.mxu0 0
      %687 = vmatpush1.bf16.msra.mxu0 0
      %688 = vmatprep.subr.bf16.mxu0 0
      %689 = vmatpush1.bf16.msra.mxu0 0
      %690 = vmatprep.subr.bf16.mxu0 0
      %691 = vmatpush1.bf16.msra.mxu0 0
      %692 = vmatprep.mubr.bf16.mxu0 0
      %693 = vmatmul.mubr.bf16.gmra.mrb[0].mxu0 %v608
      %v694 = vpop.f32.mrb[0].mxu0
      %v695 = vadd.f32 0.0, %v694
      %v696 = vpop.f32.mrb[0].mxu0
      %v697 = vpop.f32.mrb[0].mxu0
      %v698 = vpop.f32.mrb[0].mxu0
      %699 = vdwg.mxu0
      %v700 = vadd.f32 %v590, %v654
      %v701 = vadd.f32 %v591, %v656
      %v702 = vadd.f32 %v592, %v695
      %s703 = scalar_lea.vmem %s2, 12
      %v704 = vld [vmem:[%s703] sm:$0xf]
      %705 = vrot.lane.b32.xlu0 %v369, 1
      %v706 = vpop.permute.xlu0 %705
      %707 = vrot.lane.b32.xlu0 %v370, 1
      %v708 = vpop.permute.xlu0 %707
      %709 = vrot.lane.b32.xlu0 %v371, 1
      %v710 = vpop.permute.xlu0 %709
      %711 = vrot.lane.b32.xlu0 %v372, 1
      %v712 = vpop.permute.xlu0 %711
      %vm713 = vcmask 7168
      %v714 = vsel %vm713, %v706, %v708
      %v715 = vsel %vm713, %v708, %v710
      %v716 = vsel %vm713, %v710, %v712
      %v718 = vsel %vm385, %v704, 0
      %v721 = vsel %vm389, %v714, 0
      %v724 = vsel %vm389, %v715, 0
      %v727 = vsel %vm389, %v716, 0
      %729 = vmatprep.subr.bf16.mxu0 %v724
      %730 = vmatpush1.bf16.msra.mxu0 %v721
      %731 = vmatprep.subr.bf16.mxu0 0
      %732 = vmatpush1.bf16.msra.mxu0 0
      %733 = vmatprep.subr.bf16.mxu0 0
      %734 = vmatpush1.bf16.msra.mxu0 0
      %735 = vmatprep.subr.bf16.mxu0 0
      %736 = vmatpush1.bf16.msra.mxu0 0
      %737 = vmatprep.subr.bf16.mxu0 0
      %738 = vmatpush1.bf16.msra.mxu0 0
      %739 = vmatprep.subr.bf16.mxu0 0
      %740 = vmatpush1.bf16.msra.mxu0 0
      %741 = vmatprep.subr.bf16.mxu0 0
      %742 = vmatpush1.bf16.msra.mxu0 0
      %743 = vmatprep.subr.bf16.mxu0 0
      %744 = vmatpush1.bf16.msra.mxu0 0
      %745 = vmatprep.subr.bf16.mxu0 0
      %746 = vmatpush1.bf16.msra.mxu0 0
      %747 = vmatprep.subr.bf16.mxu0 0
      %748 = vmatpush1.bf16.msra.mxu0 0
      %749 = vmatprep.subr.bf16.mxu0 0
      %750 = vmatpush1.bf16.msra.mxu0 0
      %751 = vmatprep.subr.bf16.mxu0 0
      %752 = vmatpush1.bf16.msra.mxu0 0
      %753 = vmatprep.subr.bf16.mxu0 0
      %754 = vmatpush1.bf16.msra.mxu0 0
      %755 = vmatprep.subr.bf16.mxu0 0
      %756 = vmatpush1.bf16.msra.mxu0 0
      %757 = vmatprep.subr.bf16.mxu0 0
      %758 = vmatpush1.bf16.msra.mxu0 0
      %759 = vmatprep.subr.bf16.mxu0 0
      %760 = vmatpush1.bf16.msra.mxu0 0
      %761 = vmatprep.mubr.bf16.mxu0 0
      %762 = vmatmul.mubr.bf16.gmra.mrb[0].mxu0 %v718
      %v763 = vpop.f32.mrb[0].mxu0
      %v764 = vadd.f32 0.0, %v763
      %v765 = vpop.f32.mrb[0].mxu0
      %v766 = vadd.f32 0.0, %v765
      %v767 = vpop.f32.mrb[0].mxu0
      %v768 = vpop.f32.mrb[0].mxu0
      %769 = vdwg.mxu0
      %770 = vmatprep.subr.bf16.mxu0 0
      %771 = vmatpush1.bf16.msra.mxu0 %v727
      %772 = vmatprep.subr.bf16.mxu0 0
      %773 = vmatpush1.bf16.msra.mxu0 0
      %774 = vmatprep.subr.bf16.mxu0 0
      %775 = vmatpush1.bf16.msra.mxu0 0
      %776 = vmatprep.subr.bf16.mxu0 0
      %777 = vmatpush1.bf16.msra.mxu0 0
      %778 = vmatprep.subr.bf16.mxu0 0
      %779 = vmatpush1.bf16.msra.mxu0 0
      %780 = vmatprep.subr.bf16.mxu0 0
      %781 = vmatpush1.bf16.msra.mxu0 0
      %782 = vmatprep.subr.bf16.mxu0 0
      %783 = vmatpush1.bf16.msra.mxu0 0
      %784 = vmatprep.subr.bf16.mxu0 0
      %785 = vmatpush1.bf16.msra.mxu0 0
      %786 = vmatprep.subr.bf16.mxu0 0
      %787 = vmatpush1.bf16.msra.mxu0 0
      %788 = vmatprep.subr.bf16.mxu0 0
      %789 = vmatpush1.bf16.msra.mxu0 0
      %790 = vmatprep.subr.bf16.mxu0 0
      %791 = vmatpush1.bf16.msra.mxu0 0
      %792 = vmatprep.subr.bf16.mxu0 0
      %793 = vmatpush1.bf16.msra.mxu0 0
      %794 = vmatprep.subr.bf16.mxu0 0
      %795 = vmatpush1.bf16.msra.mxu0 0
      %796 = vmatprep.subr.bf16.mxu0 0
      %797 = vmatpush1.bf16.msra.mxu0 0
      %798 = vmatprep.subr.bf16.mxu0 0
      %799 = vmatpush1.bf16.msra.mxu0 0
      %800 = vmatprep.subr.bf16.mxu0 0
      %801 = vmatpush1.bf16.msra.mxu0 0
      %802 = vmatprep.mubr.bf16.mxu0 0
      %803 = vmatmul.mubr.bf16.gmra.mrb[0].mxu0 %v718
      %v804 = vpop.f32.mrb[0].mxu0
      %v805 = vadd.f32 0.0, %v804
      %v806 = vpop.f32.mrb[0].mxu0
      %v807 = vpop.f32.mrb[0].mxu0
      %v808 = vpop.f32.mrb[0].mxu0
      %809 = vdwg.mxu0
      %v810 = vadd.f32 %v700, %v764
      %v811 = vadd.f32 %v701, %v766
      %v812 = vadd.f32 %v702, %v805
      %v813 = vld [vmem:[#allocation2 + $0x4] sm:$0xff]
      %v814 = vld [vmem:[#allocation2 + $0xc] sm:$0xf]
      %s815 = scalar_lea.vmem %s2, 16
      %v816 = vld [vmem:[%s815] sm:$0xf]
      %v819 = vunpack.c.l.b16 %v813
      %v820 = vunpack.c.h.b16 %v813
      %v821 = vunpack.c.l.b16 %v814
      %v822 = vpack.c.b16 %v819, %v819
      %v823 = vpack.c.b16 %v820, %v820
      %v824 = vpack.c.b16 %v821, %v821
      %v826 = vsel %vm385, %v816, 0
      %v829 = vsel %vm389, %v822, 0
      %v832 = vsel %vm389, %v823, 0
      %v835 = vsel %vm389, %v824, 0
      %837 = vmatprep.subr.bf16.mxu0 %v832
      %838 = vmatpush1.bf16.msra.mxu0 %v829
      %839 = vmatprep.subr.bf16.mxu0 0
      %840 = vmatpush1.bf16.msra.mxu0 0
      %841 = vmatprep.subr.bf16.mxu0 0
      %842 = vmatpush1.bf16.msra.mxu0 0
      %843 = vmatprep.subr.bf16.mxu0 0
      %844 = vmatpush1.bf16.msra.mxu0 0
      %845 = vmatprep.subr.bf16.mxu0 0
      %846 = vmatpush1.bf16.msra.mxu0 0
      %847 = vmatprep.subr.bf16.mxu0 0
      %848 = vmatpush1.bf16.msra.mxu0 0
      %849 = vmatprep.subr.bf16.mxu0 0
      %850 = vmatpush1.bf16.msra.mxu0 0
      %851 = vmatprep.subr.bf16.mxu0 0
      %852 = vmatpush1.bf16.msra.mxu0 0
      %853 = vmatprep.subr.bf16.mxu0 0
      %854 = vmatpush1.bf16.msra.mxu0 0
      %855 = vmatprep.subr.bf16.mxu0 0
      %856 = vmatpush1.bf16.msra.mxu0 0
      %857 = vmatprep.subr.bf16.mxu0 0
      %858 = vmatpush1.bf16.msra.mxu0 0
      %859 = vmatprep.subr.bf16.mxu0 0
      %860 = vmatpush1.bf16.msra.mxu0 0
      %861 = vmatprep.subr.bf16.mxu0 0
      %862 = vmatpush1.bf16.msra.mxu0 0
      %863 = vmatprep.subr.bf16.mxu0 0
      %864 = vmatpush1.bf16.msra.mxu0 0
      %865 = vmatprep.subr.bf16.mxu0 0
      %866 = vmatpush1.bf16.msra.mxu0 0
      %867 = vmatprep.subr.bf16.mxu0 0
      %868 = vmatpush1.bf16.msra.mxu0 0
      %869 = vmatprep.mubr.bf16.mxu0 0
      %870 = vmatmul.mubr.bf16.gmra.mrb[0].mxu0 %v826
      %v871 = vpop.f32.mrb[0].mxu0
      %v872 = vadd.f32 0.0, %v871
      %v873 = vpop.f32.mrb[0].mxu0
      %v874 = vadd.f32 0.0, %v873
      %v875 = vpop.f32.mrb[0].mxu0
      %v876 = vpop.f32.mrb[0].mxu0
      %877 = vdwg.mxu0
      %878 = vmatprep.subr.bf16.mxu0 0
      %879 = vmatpush1.bf16.msra.mxu0 %v835
      %880 = vmatprep.subr.bf16.mxu0 0
      %881 = vmatpush1.bf16.msra.mxu0 0
      %882 = vmatprep.subr.bf16.mxu0 0
      %883 = vmatpush1.bf16.msra.mxu0 0
      %884 = vmatprep.subr.bf16.mxu0 0
      %885 = vmatpush1.bf16.msra.mxu0 0
      %886 = vmatprep.subr.bf16.mxu0 0
      %887 = vmatpush1.bf16.msra.mxu0 0
      %888 = vmatprep.subr.bf16.mxu0 0
      %889 = vmatpush1.bf16.msra.mxu0 0
      %890 = vmatprep.subr.bf16.mxu0 0
      %891 = vmatpush1.bf16.msra.mxu0 0
      %892 = vmatprep.subr.bf16.mxu0 0
      %893 = vmatpush1.bf16.msra.mxu0 0
      %894 = vmatprep.subr.bf16.mxu0 0
      %895 = vmatpush1.bf16.msra.mxu0 0
      %896 = vmatprep.subr.bf16.mxu0 0
      %897 = vmatpush1.bf16.msra.mxu0 0
      %898 = vmatprep.subr.bf16.mxu0 0
      %899 = vmatpush1.bf16.msra.mxu0 0
      %900 = vmatprep.subr.bf16.mxu0 0
      %901 = vmatpush1.bf16.msra.mxu0 0
      %902 = vmatprep.subr.bf16.mxu0 0
      %903 = vmatpush1.bf16.msra.mxu0 0
      %904 = vmatprep.subr.bf16.mxu0 0
      %905 = vmatpush1.bf16.msra.mxu0 0
      %906 = vmatprep.subr.bf16.mxu0 0
      %907 = vmatpush1.bf16.msra.mxu0 0
      %908 = vmatprep.subr.bf16.mxu0 0
      %909 = vmatpush1.bf16.msra.mxu0 0
      %910 = vmatprep.mubr.bf16.mxu0 0
      %911 = vmatmul.mubr.bf16.gmra.mrb[0].mxu0 %v826
      %v912 = vpop.f32.mrb[0].mxu0
      %v913 = vadd.f32 0.0, %v912
      %v914 = vpop.f32.mrb[0].mxu0
      %v915 = vpop.f32.mrb[0].mxu0
      %v916 = vpop.f32.mrb[0].mxu0
      %917 = vdwg.mxu0
      %v918 = vadd.f32 %v810, %v872
      %v919 = vadd.f32 %v811, %v874
      %v920 = vadd.f32 %v812, %v913
      %v921 = vld [vmem:[#allocation2 + $0x4] sm:$0xff]
      %v922 = vld [vmem:[#allocation2 + $0xc] sm:$0xff]
      %s923 = scalar_lea.vmem %s2, 20
      %v924 = vld [vmem:[%s923] sm:$0xf]
      %v927 = vunpack.c.l.b16 %v921
      %v928 = vunpack.c.h.b16 %v921
      %v929 = vunpack.c.l.b16 %v922
      %v930 = vunpack.c.h.b16 %v922
      %v931 = vpack.c.b16 %v927, %v927
      %v932 = vpack.c.b16 %v928, %v928
      %v933 = vpack.c.b16 %v929, %v929
      %v934 = vpack.c.b16 %v930, %v930
      %935 = vrot.lane.b32.xlu0 %v931, 127
      %v936 = vpop.permute.xlu0 %935
      %937 = vrot.lane.b32.xlu0 %v932, 127
      %v938 = vpop.permute.xlu0 %937
      %939 = vrot.lane.b32.xlu0 %v933, 127
      %v940 = vpop.permute.xlu0 %939
      %941 = vrot.lane.b32.xlu0 %v934, 127
      %v942 = vpop.permute.xlu0 %941
      %vm943 = vcmask 1039360
      %v944 = vsel %vm943, %v936, %v938
      %v945 = vsel %vm943, %v938, %v940
      %v946 = vsel %vm943, %v940, %v942
      %v948 = vsel %vm385, %v924, 0
      %v951 = vsel %vm389, %v944, 0
      %v954 = vsel %vm389, %v945, 0
      %v957 = vsel %vm389, %v946, 0
      %959 = vmatprep.subr.bf16.mxu0 %v954
      %960 = vmatpush1.bf16.msra.mxu0 %v951
      %961 = vmatprep.subr.bf16.mxu0 0
      %962 = vmatpush1.bf16.msra.mxu0 0
      %963 = vmatprep.subr.bf16.mxu0 0
      %964 = vmatpush1.bf16.msra.mxu0 0
      %965 = vmatprep.subr.bf16.mxu0 0
      %966 = vmatpush1.bf16.msra.mxu0 0
      %967 = vmatprep.subr.bf16.mxu0 0
      %968 = vmatpush1.bf16.msra.mxu0 0
      %969 = vmatprep.subr.bf16.mxu0 0
      %970 = vmatpush1.bf16.msra.mxu0 0
      %971 = vmatprep.subr.bf16.mxu0 0
      %972 = vmatpush1.bf16.msra.mxu0 0
      %973 = vmatprep.subr.bf16.mxu0 0
      %974 = vmatpush1.bf16.msra.mxu0 0
      %975 = vmatprep.subr.bf16.mxu0 0
      %976 = vmatpush1.bf16.msra.mxu0 0
      %977 = vmatprep.subr.bf16.mxu0 0
      %978 = vmatpush1.bf16.msra.mxu0 0
      %979 = vmatprep.subr.bf16.mxu0 0
      %980 = vmatpush1.bf16.msra.mxu0 0
      %981 = vmatprep.subr.bf16.mxu0 0
      %982 = vmatpush1.bf16.msra.mxu0 0
      %983 = vmatprep.subr.bf16.mxu0 0
      %984 = vmatpush1.bf16.msra.mxu0 0
      %985 = vmatprep.subr.bf16.mxu0 0
      %986 = vmatpush1.bf16.msra.mxu0 0
      %987 = vmatprep.subr.bf16.mxu0 0
      %988 = vmatpush1.bf16.msra.mxu0 0
      %989 = vmatprep.subr.bf16.mxu0 0
      %990 = vmatpush1.bf16.msra.mxu0 0
      %991 = vmatprep.mubr.bf16.mxu0 0
      %992 = vmatmul.mubr.bf16.gmra.mrb[0].mxu0 %v948
      %v993 = vpop.f32.mrb[0].mxu0
      %v994 = vadd.f32 0.0, %v993
      %v995 = vpop.f32.mrb[0].mxu0
      %v996 = vadd.f32 0.0, %v995
      %v997 = vpop.f32.mrb[0].mxu0
      %v998 = vpop.f32.mrb[0].mxu0
      %999 = vdwg.mxu0
      %1000 = vmatprep.subr.bf16.mxu0 0
      %1001 = vmatpush1.bf16.msra.mxu0 %v957
      %1002 = vmatprep.subr.bf16.mxu0 0
      %1003 = vmatpush1.bf16.msra.mxu0 0
      %1004 = vmatprep.subr.bf16.mxu0 0
      %1005 = vmatpush1.bf16.msra.mxu0 0
      %1006 = vmatprep.subr.bf16.mxu0 0
      %1007 = vmatpush1.bf16.msra.mxu0 0
      %1008 = vmatprep.subr.bf16.mxu0 0
      %1009 = vmatpush1.bf16.msra.mxu0 0
      %1010 = vmatprep.subr.bf16.mxu0 0
      %1011 = vmatpush1.bf16.msra.mxu0 0
      %1012 = vmatprep.subr.bf16.mxu0 0
      %1013 = vmatpush1.bf16.msra.mxu0 0
      %1014 = vmatprep.subr.bf16.mxu0 0
      %1015 = vmatpush1.bf16.msra.mxu0 0
      %1016 = vmatprep.subr.bf16.mxu0 0
      %1017 = vmatpush1.bf16.msra.mxu0 0
      %1018 = vmatprep.subr.bf16.mxu0 0
      %1019 = vmatpush1.bf16.msra.mxu0 0
      %1020 = vmatprep.subr.bf16.mxu0 0
      %1021 = vmatpush1.bf16.msra.mxu0 0
      %1022 = vmatprep.subr.bf16.mxu0 0
      %1023 = vmatpush1.bf16.msra.mxu0 0
      %1024 = vmatprep.subr.bf16.mxu0 0
      %1025 = vmatpush1.bf16.msra.mxu0 0
      %1026 = vmatprep.subr.bf16.mxu0 0
      %1027 = vmatpush1.bf16.msra.mxu0 0
      %1028 = vmatprep.subr.bf16.mxu0 0
      %1029 = vmatpush1.bf16.msra.mxu0 0
      %1030 = vmatprep.subr.bf16.mxu0 0
      %1031 = vmatpush1.bf16.msra.mxu0 0
      %1032 = vmatprep.mubr.bf16.mxu0 0
      %1033 = vmatmul.mubr.bf16.gmra.mrb[0].mxu0 %v948
      %v1034 = vpop.f32.mrb[0].mxu0
      %v1035 = vadd.f32 0.0, %v1034
      %v1036 = vpop.f32.mrb[0].mxu0
      %v1037 = vpop.f32.mrb[0].mxu0
      %v1038 = vpop.f32.mrb[0].mxu0
      %1039 = vdwg.mxu0
      %v1040 = vadd.f32 %v918, %v994
      %v1041 = vadd.f32 %v919, %v996
      %v1042 = vadd.f32 %v920, %v1035
      %s1043 = scalar_lea.vmem %s2, 24
      %v1044 = vld [vmem:[%s1043] sm:$0xf]
      %1045 = vrot.lane.b32.xlu0 %v931, 111
      %v1046 = vpop.permute.xlu0 %1045
      %1047 = vrot.lane.b32.xlu0 %v932, 111
      %v1048 = vpop.permute.xlu0 %1047
      %1049 = vrot.lane.b32.xlu0 %v933, 111
      %v1050 = vpop.permute.xlu0 %1049
      %1051 = vrot.lane.b32.xlu0 %v934, 111
      %v1052 = vpop.permute.xlu0 %1051
      %vm1053 = vcmask 908288
      %v1054 = vsel %vm1053, %v1046, %v1048
      %v1055 = vsel %vm1053, %v1048, %v1050
      %v1056 = vsel %vm1053, %v1050, %v1052
      %v1058 = vsel %vm385, %v1044, 0
      %v1061 = vsel %vm389, %v1054, 0
      %v1064 = vsel %vm389, %v1055, 0
      %v1067 = vsel %vm389, %v1056, 0
      %1069 = vmatprep.subr.bf16.mxu0 %v1064
      %1070 = vmatpush1.bf16.msra.mxu0 %v1061
      %1071 = vmatprep.subr.bf16.mxu0 0
      %1072 = vmatpush1.bf16.msra.mxu0 0
      %1073 = vmatprep.subr.bf16.mxu0 0
      %1074 = vmatpush1.bf16.msra.mxu0 0
      %1075 = vmatprep.subr.bf16.mxu0 0
      %1076 = vmatpush1.bf16.msra.mxu0 0
      %1077 = vmatprep.subr.bf16.mxu0 0
      %1078 = vmatpush1.bf16.msra.mxu0 0
      %1079 = vmatprep.subr.bf16.mxu0 0
      %1080 = vmatpush1.bf16.msra.mxu0 0
      %1081 = vmatprep.subr.bf16.mxu0 0
      %1082 = vmatpush1.bf16.msra.mxu0 0
      %1083 = vmatprep.subr.bf16.mxu0 0
      %1084 = vmatpush1.bf16.msra.mxu0 0
      %1085 = vmatprep.subr.bf16.mxu0 0
      %1086 = vmatpush1.bf16.msra.mxu0 0
      %1087 = vmatprep.subr.bf16.mxu0 0
      %1088 = vmatpush1.bf16.msra.mxu0 0
      %1089 = vmatprep.subr.bf16.mxu0 0
      %1090 = vmatpush1.bf16.msra.mxu0 0
      %1091 = vmatprep.subr.bf16.mxu0 0
      %1092 = vmatpush1.bf16.msra.mxu0 0
      %1093 = vmatprep.subr.bf16.mxu0 0
      %1094 = vmatpush1.bf16.msra.mxu0 0
      %1095 = vmatprep.subr.bf16.mxu0 0
      %1096 = vmatpush1.bf16.msra.mxu0 0
      %1097 = vmatprep.subr.bf16.mxu0 0
      %1098 = vmatpush1.bf16.msra.mxu0 0
      %1099 = vmatprep.subr.bf16.mxu0 0
      %1100 = vmatpush1.bf16.msra.mxu0 0
      %1101 = vmatprep.mubr.bf16.mxu0 0
      %1102 = vmatmul.mubr.bf16.gmra.mrb[0].mxu0 %v1058
      %v1103 = vpop.f32.mrb[0].mxu0
      %v1104 = vadd.f32 0.0, %v1103
      %v1105 = vpop.f32.mrb[0].mxu0
      %v1106 = vadd.f32 0.0, %v1105
      %v1107 = vpop.f32.mrb[0].mxu0
      %v1108 = vpop.f32.mrb[0].mxu0
      %1109 = vdwg.mxu0
      %1110 = vmatprep.subr.bf16.mxu0 0
      %1111 = vmatpush1.bf16.msra.mxu0 %v1067
      %1112 = vmatprep.subr.bf16.mxu0 0
      %1113 = vmatpush1.bf16.msra.mxu0 0
      %1114 = vmatprep.subr.bf16.mxu0 0
      %1115 = vmatpush1.bf16.msra.mxu0 0
      %1116 = vmatprep.subr.bf16.mxu0 0
      %1117 = vmatpush1.bf16.msra.mxu0 0
      %1118 = vmatprep.subr.bf16.mxu0 0
      %1119 = vmatpush1.bf16.msra.mxu0 0
      %1120 = vmatprep.subr.bf16.mxu0 0
      %1121 = vmatpush1.bf16.msra.mxu0 0
      %1122 = vmatprep.subr.bf16.mxu0 0
      %1123 = vmatpush1.bf16.msra.mxu0 0
      %1124 = vmatprep.subr.bf16.mxu0 0
      %1125 = vmatpush1.bf16.msra.mxu0 0
      %1126 = vmatprep.subr.bf16.mxu0 0
      %1127 = vmatpush1.bf16.msra.mxu0 0
      %1128 = vmatprep.subr.bf16.mxu0 0
      %1129 = vmatpush1.bf16.msra.mxu0 0
      %1130 = vmatprep.subr.bf16.mxu0 0
      %1131 = vmatpush1.bf16.msra.mxu0 0
      %1132 = vmatprep.subr.bf16.mxu0 0
      %1133 = vmatpush1.bf16.msra.mxu0 0
      %1134 = vmatprep.subr.bf16.mxu0 0
      %1135 = vmatpush1.bf16.msra.mxu0 0
      %1136 = vmatprep.subr.bf16.mxu0 0
      %1137 = vmatpush1.bf16.msra.mxu0 0
      %1138 = vmatprep.subr.bf16.mxu0 0
      %1139 = vmatpush1.bf16.msra.mxu0 0
      %1140 = vmatprep.subr.bf16.mxu0 0
      %1141 = vmatpush1.bf16.msra.mxu0 0
      %1142 = vmatprep.mubr.bf16.mxu0 0
      %1143 = vmatmul.mubr.bf16.gmra.mrb[0].mxu0 %v1058
      %v1144 = vpop.f32.mrb[0].mxu0
      %v1145 = vadd.f32 0.0, %v1144
      %v1146 = vpop.f32.mrb[0].mxu0
      %v1147 = vpop.f32.mrb[0].mxu0
      %v1148 = vpop.f32.mrb[0].mxu0
      %1149 = vdwg.mxu0
      %v1150 = vadd.f32 %v1040, %v1104
      %v1151 = vadd.f32 %v1041, %v1106
      %v1152 = vadd.f32 %v1042, %v1145
      %s1153 = scalar_lea.vmem %s2, 28
      %v1154 = vld [vmem:[%s1153] sm:$0xf]
      %1155 = vrot.lane.b32.xlu0 %v931, 110
      %v1156 = vpop.permute.xlu0 %1155
      %1157 = vrot.lane.b32.xlu0 %v932, 110
      %v1158 = vpop.permute.xlu0 %1157
      %1159 = vrot.lane.b32.xlu0 %v933, 110
      %v1160 = vpop.permute.xlu0 %1159
      %1161 = vrot.lane.b32.xlu0 %v934, 110
      %v1162 = vpop.permute.xlu0 %1161
      %vm1163 = vcmask 900096
      %v1164 = vsel %vm1163, %v1156, %v1158
      %v1165 = vsel %vm1163, %v1158, %v1160
      %v1166 = vsel %vm1163, %v1160, %v1162
      %v1168 = vsel %vm385, %v1154, 0
      %v1171 = vsel %vm389, %v1164, 0
      %v1174 = vsel %vm389, %v1165, 0
      %v1177 = vsel %vm389, %v1166, 0
      %1179 = vmatprep.subr.bf16.mxu0 %v1174
      %1180 = vmatpush1.bf16.msra.mxu0 %v1171
      %1181 = vmatprep.subr.bf16.mxu0 0
      %1182 = vmatpush1.bf16.msra.mxu0 0
      %1183 = vmatprep.subr.bf16.mxu0 0
      %1184 = vmatpush1.bf16.msra.mxu0 0
      %1185 = vmatprep.subr.bf16.mxu0 0
      %1186 = vmatpush1.bf16.msra.mxu0 0
      %1187 = vmatprep.subr.bf16.mxu0 0
      %1188 = vmatpush1.bf16.msra.mxu0 0
      %1189 = vmatprep.subr.bf16.mxu0 0
      %1190 = vmatpush1.bf16.msra.mxu0 0
      %1191 = vmatprep.subr.bf16.mxu0 0
      %1192 = vmatpush1.bf16.msra.mxu0 0
      %1193 = vmatprep.subr.bf16.mxu0 0
      %1194 = vmatpush1.bf16.msra.mxu0 0
      %1195 = vmatprep.subr.bf16.mxu0 0
      %1196 = vmatpush1.bf16.msra.mxu0 0
      %1197 = vmatprep.subr.bf16.mxu0 0
      %1198 = vmatpush1.bf16.msra.mxu0 0
      %1199 = vmatprep.subr.bf16.mxu0 0
      %1200 = vmatpush1.bf16.msra.mxu0 0
      %1201 = vmatprep.subr.bf16.mxu0 0
      %1202 = vmatpush1.bf16.msra.mxu0 0
      %1203 = vmatprep.subr.bf16.mxu0 0
      %1204 = vmatpush1.bf16.msra.mxu0 0
      %1205 = vmatprep.subr.bf16.mxu0 0
      %1206 = vmatpush1.bf16.msra.mxu0 0
      %1207 = vmatprep.subr.bf16.mxu0 0
      %1208 = vmatpush1.bf16.msra.mxu0 0
      %1209 = vmatprep.subr.bf16.mxu0 0
      %1210 = vmatpush1.bf16.msra.mxu0 0
      %1211 = vmatprep.mubr.bf16.mxu0 0
      %1212 = vmatmul.mubr.bf16.gmra.mrb[0].mxu0 %v1168
      %v1213 = vpop.f32.mrb[0].mxu0
      %v1214 = vadd.f32 0.0, %v1213
      %v1215 = vpop.f32.mrb[0].mxu0
      %v1216 = vadd.f32 0.0, %v1215
      %v1217 = vpop.f32.mrb[0].mxu0
      %v1218 = vpop.f32.mrb[0].mxu0
      %1219 = vdwg.mxu0
      %1220 = vmatprep.subr.bf16.mxu0 0
      %1221 = vmatpush1.bf16.msra.mxu0 %v1177
      %1222 = vmatprep.subr.bf16.mxu0 0
      %1223 = vmatpush1.bf16.msra.mxu0 0
      %1224 = vmatprep.subr.bf16.mxu0 0
      %1225 = vmatpush1.bf16.msra.mxu0 0
      %1226 = vmatprep.subr.bf16.mxu0 0
      %1227 = vmatpush1.bf16.msra.mxu0 0
      %1228 = vmatprep.subr.bf16.mxu0 0
      %1229 = vmatpush1.bf16.msra.mxu0 0
      %1230 = vmatprep.subr.bf16.mxu0 0
      %1231 = vmatpush1.bf16.msra.mxu0 0
      %1232 = vmatprep.subr.bf16.mxu0 0
      %1233 = vmatpush1.bf16.msra.mxu0 0
      %1234 = vmatprep.subr.bf16.mxu0 0
      %1235 = vmatpush1.bf16.msra.mxu0 0
      %1236 = vmatprep.subr.bf16.mxu0 0
      %1237 = vmatpush1.bf16.msra.mxu0 0
      %1238 = vmatprep.subr.bf16.mxu0 0
      %1239 = vmatpush1.bf16.msra.mxu0 0
      %1240 = vmatprep.subr.bf16.mxu0 0
      %1241 = vmatpush1.bf16.msra.mxu0 0
      %1242 = vmatprep.subr.bf16.mxu0 0
      %1243 = vmatpush1.bf16.msra.mxu0 0
      %1244 = vmatprep.subr.bf16.mxu0 0
      %1245 = vmatpush1.bf16.msra.mxu0 0
      %1246 = vmatprep.subr.bf16.mxu0 0
      %1247 = vmatpush1.bf16.msra.mxu0 0
      %1248 = vmatprep.subr.bf16.mxu0 0
      %1249 = vmatpush1.bf16.msra.mxu0 0
      %1250 = vmatprep.subr.bf16.mxu0 0
      %1251 = vmatpush1.bf16.msra.mxu0 0
      %1252 = vmatprep.mubr.bf16.mxu0 0
      %1253 = vmatmul.mubr.bf16.gmra.mrb[0].mxu0 %v1168
      %v1254 = vpop.f32.mrb[0].mxu0
      %v1255 = vadd.f32 0.0, %v1254
      %v1256 = vpop.f32.mrb[0].mxu0
      %v1257 = vpop.f32.mrb[0].mxu0
      %v1258 = vpop.f32.mrb[0].mxu0
      %1259 = vdwg.mxu0
      %v1260 = vadd.f32 %v1150, %v1214
      %v1261 = vadd.f32 %v1151, %v1216
      %v1262 = vadd.f32 %v1152, %v1255
      %s1263 = scalar_lea.vmem %s2, 32
      %v1264 = vld [vmem:[%s1263] sm:$0xf]
      %1265 = vrot.lane.b32.xlu0 %v931, 109
      %v1266 = vpop.permute.xlu0 %1265
      %1267 = vrot.lane.b32.xlu0 %v932, 109
      %v1268 = vpop.permute.xlu0 %1267
      %1269 = vrot.lane.b32.xlu0 %v933, 109
      %v1270 = vpop.permute.xlu0 %1269
      %1271 = vrot.lane.b32.xlu0 %v934, 109
      %v1272 = vpop.permute.xlu0 %1271
      %vm1273 = vcmask 891904
      %v1274 = vsel %vm1273, %v1266, %v1268
      %v1275 = vsel %vm1273, %v1268, %v1270
      %v1276 = vsel %vm1273, %v1270, %v1272
      %v1278 = vsel %vm385, %v1264, 0
      %v1281 = vsel %vm389, %v1274, 0
      %v1284 = vsel %vm389, %v1275, 0
      %v1287 = vsel %vm389, %v1276, 0
      %1289 = vmatprep.subr.bf16.mxu0 %v1284
      %1290 = vmatpush1.bf16.msra.mxu0 %v1281
      %1291 = vmatprep.subr.bf16.mxu0 0
      %1292 = vmatpush1.bf16.msra.mxu0 0
      %1293 = vmatprep.subr.bf16.mxu0 0
      %1294 = vmatpush1.bf16.msra.mxu0 0
      %1295 = vmatprep.subr.bf16.mxu0 0
      %1296 = vmatpush1.bf16.msra.mxu0 0
      %1297 = vmatprep.subr.bf16.mxu0 0
      %1298 = vmatpush1.bf16.msra.mxu0 0
      %1299 = vmatprep.subr.bf16.mxu0 0
      %1300 = vmatpush1.bf16.msra.mxu0 0
      %1301 = vmatprep.subr.bf16.mxu0 0
      %1302 = vmatpush1.bf16.msra.mxu0 0
      %1303 = vmatprep.subr.bf16.mxu0 0
      %1304 = vmatpush1.bf16.msra.mxu0 0
      %1305 = vmatprep.subr.bf16.mxu0 0
      %1306 = vmatpush1.bf16.msra.mxu0 0
      %1307 = vmatprep.subr.bf16.mxu0 0
      %1308 = vmatpush1.bf16.msra.mxu0 0
      %1309 = vmatprep.subr.bf16.mxu0 0
      %1310 = vmatpush1.bf16.msra.mxu0 0
      %1311 = vmatprep.subr.bf16.mxu0 0
      %1312 = vmatpush1.bf16.msra.mxu0 0
      %1313 = vmatprep.subr.bf16.mxu0 0
      %1314 = vmatpush1.bf16.msra.mxu0 0
      %1315 = vmatprep.subr.bf16.mxu0 0
      %1316 = vmatpush1.bf16.msra.mxu0 0
      %1317 = vmatprep.subr.bf16.mxu0 0
      %1318 = vmatpush1.bf16.msra.mxu0 0
      %1319 = vmatprep.subr.bf16.mxu0 0
      %1320 = vmatpush1.bf16.msra.mxu0 0
      %1321 = vmatprep.mubr.bf16.mxu0 0
      %1322 = vmatmul.mubr.bf16.gmra.mrb[0].mxu0 %v1278
      %v1323 = vpop.f32.mrb[0].mxu0
      %v1324 = vadd.f32 0.0, %v1323
      %v1325 = vpop.f32.mrb[0].mxu0
      %v1326 = vadd.f32 0.0, %v1325
      %v1327 = vpop.f32.mrb[0].mxu0
      %v1328 = vpop.f32.mrb[0].mxu0
      %1329 = vdwg.mxu0
      %1330 = vmatprep.subr.bf16.mxu0 0
      %1331 = vmatpush1.bf16.msra.mxu0 %v1287
      %1332 = vmatprep.subr.bf16.mxu0 0
      %1333 = vmatpush1.bf16.msra.mxu0 0
      %1334 = vmatprep.subr.bf16.mxu0 0
      %1335 = vmatpush1.bf16.msra.mxu0 0
      %1336 = vmatprep.subr.bf16.mxu0 0
      %1337 = vmatpush1.bf16.msra.mxu0 0
      %1338 = vmatprep.subr.bf16.mxu0 0
      %1339 = vmatpush1.bf16.msra.mxu0 0
      %1340 = vmatprep.subr.bf16.mxu0 0
      %1341 = vmatpush1.bf16.msra.mxu0 0
      %1342 = vmatprep.subr.bf16.mxu0 0
      %1343 = vmatpush1.bf16.msra.mxu0 0
      %1344 = vmatprep.subr.bf16.mxu0 0
      %1345 = vmatpush1.bf16.msra.mxu0 0
      %1346 = vmatprep.subr.bf16.mxu0 0
      %1347 = vmatpush1.bf16.msra.mxu0 0
      %1348 = vmatprep.subr.bf16.mxu0 0
      %1349 = vmatpush1.bf16.msra.mxu0 0
      %1350 = vmatprep.subr.bf16.mxu0 0
      %1351 = vmatpush1.bf16.msra.mxu0 0
      %1352 = vmatprep.subr.bf16.mxu0 0
      %1353 = vmatpush1.bf16.msra.mxu0 0
      %1354 = vmatprep.subr.bf16.mxu0 0
      %1355 = vmatpush1.bf16.msra.mxu0 0
      %1356 = vmatprep.subr.bf16.mxu0 0
      %1357 = vmatpush1.bf16.msra.mxu0 0
      %1358 = vmatprep.subr.bf16.mxu0 0
      %1359 = vmatpush1.bf16.msra.mxu0 0
      %1360 = vmatprep.subr.bf16.mxu0 0
      %1361 = vmatpush1.bf16.msra.mxu0 0
      %1362 = vmatprep.mubr.bf16.mxu0 0
      %1363 = vmatmul.mubr.bf16.gmra.mrb[0].mxu0 %v1278
      %v1364 = vpop.f32.mrb[0].mxu0
      %v1365 = vadd.f32 0.0, %v1364
      %v1366 = vpop.f32.mrb[0].mxu0
      %v1367 = vpop.f32.mrb[0].mxu0
      %v1368 = vpop.f32.mrb[0].mxu0
      %1369 = vdwg.mxu0
      %v1370 = vadd.f32 %v1260, %v1324
      %v1371 = vadd.f32 %v1261, %v1326
      %v1372 = vadd.f32 %v1262, %v1365
      %v1373 = vmax.f32 %v1370, 0.0
      %v1374 = vmax.f32 %v1371, 0.0
      %v1375 = vmax.f32 %v1372, 0.0
      %v1376 = vmul.f32 %v1373, %v315
      %v1377 = vmul.f32 %v1374, %v319
      %v1378 = vmul.f32 %v1375, %v323
      %v1379 = vpack.c.bf16 %v1376, %v1376
      %v1380 = vpack.c.bf16 %v1377, %v1377
      %v1381 = vpack.c.bf16 %v1378, %v1378
      %v1385 = vunpack.c.l.b16 %v1379
      %v1386 = vunpack.c.l.b16 %v1380
      %v1387 = vunpack.c.l.b16 %v1381
      %v1388 = vpack.c.b16 %v1386, %v1385
      %v1389 = vpack.c.b16 %v1387, %v1387
      %1392 = vst [vmem:[#allocation2 + $0x4] sm:$0xff] %v1388
      %1393 = vst [vmem:[#allocation2 + $0xc] sm:$0xf] %v1389
      %v1394 = vld [vmem:[#allocation2] sm:$0xff]
      %v1395 = vld [vmem:[#allocation2 + $0x8] sm:$0xff]
      %v1396 = vld [vmem:[%s4] sm:$0xf]
      %v1399 = vunpack.c.l.b16 %v1394
      %v1400 = vunpack.c.h.b16 %v1394
      %v1401 = vunpack.c.l.b16 %v1395
      %v1402 = vunpack.c.h.b16 %v1395
      %v1403 = vpack.c.b16 %v1399, %v1399
      %v1404 = vpack.c.b16 %v1400, %v1400
      %v1405 = vpack.c.b16 %v1401, %v1401
      %v1406 = vpack.c.b16 %v1402, %v1402
      %1407 = vrot.lane.b32.xlu0 %v1403, 19
      %v1408 = vpop.permute.xlu0 %1407
      %1409 = vrot.lane.b32.xlu0 %v1404, 19
      %v1410 = vpop.permute.xlu0 %1409
      %1411 = vrot.lane.b32.xlu0 %v1405, 19
      %v1412 = vpop.permute.xlu0 %1411
      %1413 = vrot.lane.b32.xlu0 %v1406, 19
      %v1414 = vpop.permute.xlu0 %1413
      %v1415 = vsel %vm381, %v1408, %v1410
      %v1416 = vsel %vm381, %v1410, %v1412
      %v1417 = vsel %vm381, %v1412, %v1414
      %v1419 = vsel %vm385, %v1396, 0
      %v1422 = vsel %vm389, %v1415, 0
      %v1425 = vsel %vm389, %v1416, 0
      %v1428 = vsel %vm389, %v1417, 0
      %1430 = vmatprep.subr.bf16.mxu0 %v1425
      %1431 = vmatpush1.bf16.msra.mxu0 %v1422
      %1432 = vmatprep.subr.bf16.mxu0 0
      %1433 = vmatpush1.bf16.msra.mxu0 0
      %1434 = vmatprep.subr.bf16.mxu0 0
      %1435 = vmatpush1.bf16.msra.mxu0 0
      %1436 = vmatprep.subr.bf16.mxu0 0
      %1437 = vmatpush1.bf16.msra.mxu0 0
      %1438 = vmatprep.subr.bf16.mxu0 0
      %1439 = vmatpush1.bf16.msra.mxu0 0
      %1440 = vmatprep.subr.bf16.mxu0 0
      %1441 = vmatpush1.bf16.msra.mxu0 0
      %1442 = vmatprep.subr.bf16.mxu0 0
      %1443 = vmatpush1.bf16.msra.mxu0 0
      %1444 = vmatprep.subr.bf16.mxu0 0
      %1445 = vmatpush1.bf16.msra.mxu0 0
      %1446 = vmatprep.subr.bf16.mxu0 0
      %1447 = vmatpush1.bf16.msra.mxu0 0
      %1448 = vmatprep.subr.bf16.mxu0 0
      %1449 = vmatpush1.bf16.msra.mxu0 0
      %1450 = vmatprep.subr.bf16.mxu0 0
      %1451 = vmatpush1.bf16.msra.mxu0 0
      %1452 = vmatprep.subr.bf16.mxu0 0
      %1453 = vmatpush1.bf16.msra.mxu0 0
      %1454 = vmatprep.subr.bf16.mxu0 0
      %1455 = vmatpush1.bf16.msra.mxu0 0
      %1456 = vmatprep.subr.bf16.mxu0 0
      %1457 = vmatpush1.bf16.msra.mxu0 0
      %1458 = vmatprep.subr.bf16.mxu0 0
      %1459 = vmatpush1.bf16.msra.mxu0 0
      %1460 = vmatprep.subr.bf16.mxu0 0
      %1461 = vmatpush1.bf16.msra.mxu0 0
      %1462 = vmatprep.mubr.bf16.mxu0 0
      %1463 = vmatmul.mubr.bf16.gmra.mrb[0].mxu0 %v1419
      %v1464 = vpop.f32.mrb[0].mxu0
      %v1465 = vadd.f32 0.0, %v1464
      %v1466 = vpop.f32.mrb[0].mxu0
      %v1467 = vadd.f32 0.0, %v1466
      %v1468 = vpop.f32.mrb[0].mxu0
      %v1469 = vpop.f32.mrb[0].mxu0
      %1470 = vdwg.mxu0
      %1471 = vmatprep.subr.bf16.mxu0 0
      %1472 = vmatpush1.bf16.msra.mxu0 %v1428
      %1473 = vmatprep.subr.bf16.mxu0 0
      %1474 = vmatpush1.bf16.msra.mxu0 0
      %1475 = vmatprep.subr.bf16.mxu0 0
      %1476 = vmatpush1.bf16.msra.mxu0 0
      %1477 = vmatprep.subr.bf16.mxu0 0
      %1478 = vmatpush1.bf16.msra.mxu0 0
      %1479 = vmatprep.subr.bf16.mxu0 0
      %1480 = vmatpush1.bf16.msra.mxu0 0
      %1481 = vmatprep.subr.bf16.mxu0 0
      %1482 = vmatpush1.bf16.msra.mxu0 0
      %1483 = vmatprep.subr.bf16.mxu0 0
      %1484 = vmatpush1.bf16.msra.mxu0 0
      %1485 = vmatprep.subr.bf16.mxu0 0
      %1486 = vmatpush1.bf16.msra.mxu0 0
      %1487 = vmatprep.subr.bf16.mxu0 0
      %1488 = vmatpush1.bf16.msra.mxu0 0
      %1489 = vmatprep.subr.bf16.mxu0 0
      %1490 = vmatpush1.bf16.msra.mxu0 0
      %1491 = vmatprep.subr.bf16.mxu0 0
      %1492 = vmatpush1.bf16.msra.mxu0 0
      %1493 = vmatprep.subr.bf16.mxu0 0
      %1494 = vmatpush1.bf16.msra.mxu0 0
      %1495 = vmatprep.subr.bf16.mxu0 0
      %1496 = vmatpush1.bf16.msra.mxu0 0
      %1497 = vmatprep.subr.bf16.mxu0 0
      %1498 = vmatpush1.bf16.msra.mxu0 0
      %1499 = vmatprep.subr.bf16.mxu0 0
      %1500 = vmatpush1.bf16.msra.mxu0 0
      %1501 = vmatprep.subr.bf16.mxu0 0
      %1502 = vmatpush1.bf16.msra.mxu0 0
      %1503 = vmatprep.mubr.bf16.mxu0 0
      %1504 = vmatmul.mubr.bf16.gmra.mrb[0].mxu0 %v1419
      %v1505 = vpop.f32.mrb[0].mxu0
      %v1506 = vadd.f32 0.0, %v1505
      %v1507 = vpop.f32.mrb[0].mxu0
      %v1508 = vpop.f32.mrb[0].mxu0
      %v1509 = vpop.f32.mrb[0].mxu0
      %1510 = vdwg.mxu0
      %v1511 = vadd.f32 %v337, %v1465
      %v1512 = vadd.f32 %v337, %v1467
      %v1513 = vadd.f32 %v337, %v1506
      %s1514 = scalar_lea.vmem %s4, 4
      %v1515 = vld [vmem:[%s1514] sm:$0xf]
      %1516 = vrot.lane.b32.xlu0 %v1403, 18
      %v1517 = vpop.permute.xlu0 %1516
      %1518 = vrot.lane.b32.xlu0 %v1404, 18
      %v1519 = vpop.permute.xlu0 %1518
      %1520 = vrot.lane.b32.xlu0 %v1405, 18
      %v1521 = vpop.permute.xlu0 %1520
      %1522 = vrot.lane.b32.xlu0 %v1406, 18
      %v1523 = vpop.permute.xlu0 %1522
      %v1524 = vsel %vm493, %v1517, %v1519
      %v1525 = vsel %vm493, %v1519, %v1521
      %v1526 = vsel %vm493, %v1521, %v1523
      %v1528 = vsel %vm385, %v1515, 0
      %v1531 = vsel %vm389, %v1524, 0
      %v1534 = vsel %vm389, %v1525, 0
      %v1537 = vsel %vm389, %v1526, 0
      %1539 = vmatprep.subr.bf16.mxu0 %v1534
      %1540 = vmatpush1.bf16.msra.mxu0 %v1531
      %1541 = vmatprep.subr.bf16.mxu0 0
      %1542 = vmatpush1.bf16.msra.mxu0 0
      %1543 = vmatprep.subr.bf16.mxu0 0
      %1544 = vmatpush1.bf16.msra.mxu0 0
      %1545 = vmatprep.subr.bf16.mxu0 0
      %1546 = vmatpush1.bf16.msra.mxu0 0
      %1547 = vmatprep.subr.bf16.mxu0 0
      %1548 = vmatpush1.bf16.msra.mxu0 0
      %1549 = vmatprep.subr.bf16.mxu0 0
      %1550 = vmatpush1.bf16.msra.mxu0 0
      %1551 = vmatprep.subr.bf16.mxu0 0
      %1552 = vmatpush1.bf16.msra.mxu0 0
      %1553 = vmatprep.subr.bf16.mxu0 0
      %1554 = vmatpush1.bf16.msra.mxu0 0
      %1555 = vmatprep.subr.bf16.mxu0 0
      %1556 = vmatpush1.bf16.msra.mxu0 0
      %1557 = vmatprep.subr.bf16.mxu0 0
      %1558 = vmatpush1.bf16.msra.mxu0 0
      %1559 = vmatprep.subr.bf16.mxu0 0
      %1560 = vmatpush1.bf16.msra.mxu0 0
      %1561 = vmatprep.subr.bf16.mxu0 0
      %1562 = vmatpush1.bf16.msra.mxu0 0
      %1563 = vmatprep.subr.bf16.mxu0 0
      %1564 = vmatpush1.bf16.msra.mxu0 0
      %1565 = vmatprep.subr.bf16.mxu0 0
      %1566 = vmatpush1.bf16.msra.mxu0 0
      %1567 = vmatprep.subr.bf16.mxu0 0
      %1568 = vmatpush1.bf16.msra.mxu0 0
      %1569 = vmatprep.subr.bf16.mxu0 0
      %1570 = vmatpush1.bf16.msra.mxu0 0
      %1571 = vmatprep.mubr.bf16.mxu0 0
      %1572 = vmatmul.mubr.bf16.gmra.mrb[0].mxu0 %v1528
      %v1573 = vpop.f32.mrb[0].mxu0
      %v1574 = vadd.f32 0.0, %v1573
      %v1575 = vpop.f32.mrb[0].mxu0
      %v1576 = vadd.f32 0.0, %v1575
      %v1577 = vpop.f32.mrb[0].mxu0
      %v1578 = vpop.f32.mrb[0].mxu0
      %1579 = vdwg.mxu0
      %1580 = vmatprep.subr.bf16.mxu0 0
      %1581 = vmatpush1.bf16.msra.mxu0 %v1537
      %1582 = vmatprep.subr.bf16.mxu0 0
      %1583 = vmatpush1.bf16.msra.mxu0 0
      %1584 = vmatprep.subr.bf16.mxu0 0
      %1585 = vmatpush1.bf16.msra.mxu0 0
      %1586 = vmatprep.subr.bf16.mxu0 0
      %1587 = vmatpush1.bf16.msra.mxu0 0
      %1588 = vmatprep.subr.bf16.mxu0 0
      %1589 = vmatpush1.bf16.msra.mxu0 0
      %1590 = vmatprep.subr.bf16.mxu0 0
      %1591 = vmatpush1.bf16.msra.mxu0 0
      %1592 = vmatprep.subr.bf16.mxu0 0
      %1593 = vmatpush1.bf16.msra.mxu0 0
      %1594 = vmatprep.subr.bf16.mxu0 0
      %1595 = vmatpush1.bf16.msra.mxu0 0
      %1596 = vmatprep.subr.bf16.mxu0 0
      %1597 = vmatpush1.bf16.msra.mxu0 0
      %1598 = vmatprep.subr.bf16.mxu0 0
      %1599 = vmatpush1.bf16.msra.mxu0 0
      %1600 = vmatprep.subr.bf16.mxu0 0
      %1601 = vmatpush1.bf16.msra.mxu0 0
      %1602 = vmatprep.subr.bf16.mxu0 0
      %1603 = vmatpush1.bf16.msra.mxu0 0
      %1604 = vmatprep.subr.bf16.mxu0 0
      %1605 = vmatpush1.bf16.msra.mxu0 0
      %1606 = vmatprep.subr.bf16.mxu0 0
      %1607 = vmatpush1.bf16.msra.mxu0 0
      %1608 = vmatprep.subr.bf16.mxu0 0
      %1609 = vmatpush1.bf16.msra.mxu0 0
      %1610 = vmatprep.subr.bf16.mxu0 0
      %1611 = vmatpush1.bf16.msra.mxu0 0
      %1612 = vmatprep.mubr.bf16.mxu0 0
      %1613 = vmatmul.mubr.bf16.gmra.mrb[0].mxu0 %v1528
      %v1614 = vpop.f32.mrb[0].mxu0
      %v1615 = vadd.f32 0.0, %v1614
      %v1616 = vpop.f32.mrb[0].mxu0
      %v1617 = vpop.f32.mrb[0].mxu0
      %v1618 = vpop.f32.mrb[0].mxu0
      %1619 = vdwg.mxu0
      %v1620 = vadd.f32 %v1511, %v1574
      %v1621 = vadd.f32 %v1512, %v1576
      %v1622 = vadd.f32 %v1513, %v1615
      %s1623 = scalar_lea.vmem %s4, 8
      %v1624 = vld [vmem:[%s1623] sm:$0xf]
      %1625 = vrot.lane.b32.xlu0 %v1403, 17
      %v1626 = vpop.permute.xlu0 %1625
      %1627 = vrot.lane.b32.xlu0 %v1404, 17
      %v1628 = vpop.permute.xlu0 %1627
      %1629 = vrot.lane.b32.xlu0 %v1405, 17
      %v1630 = vpop.permute.xlu0 %1629
      %1631 = vrot.lane.b32.xlu0 %v1406, 17
      %v1632 = vpop.permute.xlu0 %1631
      %v1633 = vsel %vm603, %v1626, %v1628
      %v1634 = vsel %vm603, %v1628, %v1630
      %v1635 = vsel %vm603, %v1630, %v1632
      %v1637 = vsel %vm385, %v1624, 0
      %v1640 = vsel %vm389, %v1633, 0
      %v1643 = vsel %vm389, %v1634, 0
      %v1646 = vsel %vm389, %v1635, 0
      %1648 = vmatprep.subr.bf16.mxu0 %v1643
      %1649 = vmatpush1.bf16.msra.mxu0 %v1640
      %1650 = vmatprep.subr.bf16.mxu0 0
      %1651 = vmatpush1.bf16.msra.mxu0 0
      %1652 = vmatprep.subr.bf16.mxu0 0
      %1653 = vmatpush1.bf16.msra.mxu0 0
      %1654 = vmatprep.subr.bf16.mxu0 0
      %1655 = vmatpush1.bf16.msra.mxu0 0
      %1656 = vmatprep.subr.bf16.mxu0 0
      %1657 = vmatpush1.bf16.msra.mxu0 0
      %1658 = vmatprep.subr.bf16.mxu0 0
      %1659 = vmatpush1.bf16.msra.mxu0 0
      %1660 = vmatprep.subr.bf16.mxu0 0
      %1661 = vmatpush1.bf16.msra.mxu0 0
      %1662 = vmatprep.subr.bf16.mxu0 0
      %1663 = vmatpush1.bf16.msra.mxu0 0
      %1664 = vmatprep.subr.bf16.mxu0 0
      %1665 = vmatpush1.bf16.msra.mxu0 0
      %1666 = vmatprep.subr.bf16.mxu0 0
      %1667 = vmatpush1.bf16.msra.mxu0 0
      %1668 = vmatprep.subr.bf16.mxu0 0
      %1669 = vmatpush1.bf16.msra.mxu0 0
      %1670 = vmatprep.subr.bf16.mxu0 0
      %1671 = vmatpush1.bf16.msra.mxu0 0
      %1672 = vmatprep.subr.bf16.mxu0 0
      %1673 = vmatpush1.bf16.msra.mxu0 0
      %1674 = vmatprep.subr.bf16.mxu0 0
      %1675 = vmatpush1.bf16.msra.mxu0 0
      %1676 = vmatprep.subr.bf16.mxu0 0
      %1677 = vmatpush1.bf16.msra.mxu0 0
      %1678 = vmatprep.subr.bf16.mxu0 0
      %1679 = vmatpush1.bf16.msra.mxu0 0
      %1680 = vmatprep.mubr.bf16.mxu0 0
      %1681 = vmatmul.mubr.bf16.gmra.mrb[0].mxu0 %v1637
      %v1682 = vpop.f32.mrb[0].mxu0
      %v1683 = vadd.f32 0.0, %v1682
      %v1684 = vpop.f32.mrb[0].mxu0
      %v1685 = vadd.f32 0.0, %v1684
      %v1686 = vpop.f32.mrb[0].mxu0
      %v1687 = vpop.f32.mrb[0].mxu0
      %1688 = vdwg.mxu0
      %1689 = vmatprep.subr.bf16.mxu0 0
      %1690 = vmatpush1.bf16.msra.mxu0 %v1646
      %1691 = vmatprep.subr.bf16.mxu0 0
      %1692 = vmatpush1.bf16.msra.mxu0 0
      %1693 = vmatprep.subr.bf16.mxu0 0
      %1694 = vmatpush1.bf16.msra.mxu0 0
      %1695 = vmatprep.subr.bf16.mxu0 0
      %1696 = vmatpush1.bf16.msra.mxu0 0
      %1697 = vmatprep.subr.bf16.mxu0 0
      %1698 = vmatpush1.bf16.msra.mxu0 0
      %1699 = vmatprep.subr.bf16.mxu0 0
      %1700 = vmatpush1.bf16.msra.mxu0 0
      %1701 = vmatprep.subr.bf16.mxu0 0
      %1702 = vmatpush1.bf16.msra.mxu0 0
      %1703 = vmatprep.subr.bf16.mxu0 0
      %1704 = vmatpush1.bf16.msra.mxu0 0
      %1705 = vmatprep.subr.bf16.mxu0 0
      %1706 = vmatpush1.bf16.msra.mxu0 0
      %1707 = vmatprep.subr.bf16.mxu0 0
      %1708 = vmatpush1.bf16.msra.mxu0 0
      %1709 = vmatprep.subr.bf16.mxu0 0
      %1710 = vmatpush1.bf16.msra.mxu0 0
      %1711 = vmatprep.subr.bf16.mxu0 0
      %1712 = vmatpush1.bf16.msra.mxu0 0
      %1713 = vmatprep.subr.bf16.mxu0 0
      %1714 = vmatpush1.bf16.msra.mxu0 0
      %1715 = vmatprep.subr.bf16.mxu0 0
      %1716 = vmatpush1.bf16.msra.mxu0 0
      %1717 = vmatprep.subr.bf16.mxu0 0
      %1718 = vmatpush1.bf16.msra.mxu0 0
      %1719 = vmatprep.subr.bf16.mxu0 0
      %1720 = vmatpush1.bf16.msra.mxu0 0
      %1721 = vmatprep.mubr.bf16.mxu0 0
      %1722 = vmatmul.mubr.bf16.gmra.mrb[0].mxu0 %v1637
      %v1723 = vpop.f32.mrb[0].mxu0
      %v1724 = vadd.f32 0.0, %v1723
      %v1725 = vpop.f32.mrb[0].mxu0
      %v1726 = vpop.f32.mrb[0].mxu0
      %v1727 = vpop.f32.mrb[0].mxu0
      %1728 = vdwg.mxu0
      %v1729 = vadd.f32 %v1620, %v1683
      %v1730 = vadd.f32 %v1621, %v1685
      %v1731 = vadd.f32 %v1622, %v1724
      %s1732 = scalar_lea.vmem %s4, 12
      %v1733 = vld [vmem:[%s1732] sm:$0xf]
      %1734 = vrot.lane.b32.xlu0 %v1403, 1
      %v1735 = vpop.permute.xlu0 %1734
      %1736 = vrot.lane.b32.xlu0 %v1404, 1
      %v1737 = vpop.permute.xlu0 %1736
      %1738 = vrot.lane.b32.xlu0 %v1405, 1
      %v1739 = vpop.permute.xlu0 %1738
      %1740 = vrot.lane.b32.xlu0 %v1406, 1
      %v1741 = vpop.permute.xlu0 %1740
      %v1742 = vsel %vm713, %v1735, %v1737
      %v1743 = vsel %vm713, %v1737, %v1739
      %v1744 = vsel %vm713, %v1739, %v1741
      %v1746 = vsel %vm385, %v1733, 0
      %v1749 = vsel %vm389, %v1742, 0
      %v1752 = vsel %vm389, %v1743, 0
      %v1755 = vsel %vm389, %v1744, 0
      %1757 = vmatprep.subr.bf16.mxu0 %v1752
      %1758 = vmatpush1.bf16.msra.mxu0 %v1749
      %1759 = vmatprep.subr.bf16.mxu0 0
      %1760 = vmatpush1.bf16.msra.mxu0 0
      %1761 = vmatprep.subr.bf16.mxu0 0
      %1762 = vmatpush1.bf16.msra.mxu0 0
      %1763 = vmatprep.subr.bf16.mxu0 0
      %1764 = vmatpush1.bf16.msra.mxu0 0
      %1765 = vmatprep.subr.bf16.mxu0 0
      %1766 = vmatpush1.bf16.msra.mxu0 0
      %1767 = vmatprep.subr.bf16.mxu0 0
      %1768 = vmatpush1.bf16.msra.mxu0 0
      %1769 = vmatprep.subr.bf16.mxu0 0
      %1770 = vmatpush1.bf16.msra.mxu0 0
      %1771 = vmatprep.subr.bf16.mxu0 0
      %1772 = vmatpush1.bf16.msra.mxu0 0
      %1773 = vmatprep.subr.bf16.mxu0 0
      %1774 = vmatpush1.bf16.msra.mxu0 0
      %1775 = vmatprep.subr.bf16.mxu0 0
      %1776 = vmatpush1.bf16.msra.mxu0 0
      %1777 = vmatprep.subr.bf16.mxu0 0
      %1778 = vmatpush1.bf16.msra.mxu0 0
      %1779 = vmatprep.subr.bf16.mxu0 0
      %1780 = vmatpush1.bf16.msra.mxu0 0
      %1781 = vmatprep.subr.bf16.mxu0 0
      %1782 = vmatpush1.bf16.msra.mxu0 0
      %1783 = vmatprep.subr.bf16.mxu0 0
      %1784 = vmatpush1.bf16.msra.mxu0 0
      %1785 = vmatprep.subr.bf16.mxu0 0
      %1786 = vmatpush1.bf16.msra.mxu0 0
      %1787 = vmatprep.subr.bf16.mxu0 0
      %1788 = vmatpush1.bf16.msra.mxu0 0
      %1789 = vmatprep.mubr.bf16.mxu0 0
      %1790 = vmatmul.mubr.bf16.gmra.mrb[0].mxu0 %v1746
      %v1791 = vpop.f32.mrb[0].mxu0
      %v1792 = vadd.f32 0.0, %v1791
      %v1793 = vpop.f32.mrb[0].mxu0
      %v1794 = vadd.f32 0.0, %v1793
      %v1795 = vpop.f32.mrb[0].mxu0
      %v1796 = vpop.f32.mrb[0].mxu0
      %1797 = vdwg.mxu0
      %1798 = vmatprep.subr.bf16.mxu0 0
      %1799 = vmatpush1.bf16.msra.mxu0 %v1755
      %1800 = vmatprep.subr.bf16.mxu0 0
      %1801 = vmatpush1.bf16.msra.mxu0 0
      %1802 = vmatprep.subr.bf16.mxu0 0
      %1803 = vmatpush1.bf16.msra.mxu0 0
      %1804 = vmatprep.subr.bf16.mxu0 0
      %1805 = vmatpush1.bf16.msra.mxu0 0
      %1806 = vmatprep.subr.bf16.mxu0 0
      %1807 = vmatpush1.bf16.msra.mxu0 0
      %1808 = vmatprep.subr.bf16.mxu0 0
      %1809 = vmatpush1.bf16.msra.mxu0 0
      %1810 = vmatprep.subr.bf16.mxu0 0
      %1811 = vmatpush1.bf16.msra.mxu0 0
      %1812 = vmatprep.subr.bf16.mxu0 0
      %1813 = vmatpush1.bf16.msra.mxu0 0
      %1814 = vmatprep.subr.bf16.mxu0 0
      %1815 = vmatpush1.bf16.msra.mxu0 0
      %1816 = vmatprep.subr.bf16.mxu0 0
      %1817 = vmatpush1.bf16.msra.mxu0 0
      %1818 = vmatprep.subr.bf16.mxu0 0
      %1819 = vmatpush1.bf16.msra.mxu0 0
      %1820 = vmatprep.subr.bf16.mxu0 0
      %1821 = vmatpush1.bf16.msra.mxu0 0
      %1822 = vmatprep.subr.bf16.mxu0 0
      %1823 = vmatpush1.bf16.msra.mxu0 0
      %1824 = vmatprep.subr.bf16.mxu0 0
      %1825 = vmatpush1.bf16.msra.mxu0 0
      %1826 = vmatprep.subr.bf16.mxu0 0
      %1827 = vmatpush1.bf16.msra.mxu0 0
      %1828 = vmatprep.subr.bf16.mxu0 0
      %1829 = vmatpush1.bf16.msra.mxu0 0
      %1830 = vmatprep.mubr.bf16.mxu0 0
      %1831 = vmatmul.mubr.bf16.gmra.mrb[0].mxu0 %v1746
      %v1832 = vpop.f32.mrb[0].mxu0
      %v1833 = vadd.f32 0.0, %v1832
      %v1834 = vpop.f32.mrb[0].mxu0
      %v1835 = vpop.f32.mrb[0].mxu0
      %v1836 = vpop.f32.mrb[0].mxu0
      %1837 = vdwg.mxu0
      %v1838 = vadd.f32 %v1729, %v1792
      %v1839 = vadd.f32 %v1730, %v1794
      %v1840 = vadd.f32 %v1731, %v1833
      %v1841 = vld [vmem:[#allocation2 + $0x4] sm:$0xff]
      %v1842 = vld [vmem:[#allocation2 + $0xc] sm:$0xf]
      %s1843 = scalar_lea.vmem %s4, 16
      %v1844 = vld [vmem:[%s1843] sm:$0xf]
      %v1847 = vunpack.c.l.b16 %v1841
      %v1848 = vunpack.c.h.b16 %v1841
      %v1849 = vunpack.c.l.b16 %v1842
      %v1850 = vpack.c.b16 %v1847, %v1847
      %v1851 = vpack.c.b16 %v1848, %v1848
      %v1852 = vpack.c.b16 %v1849, %v1849
      %v1854 = vsel %vm385, %v1844, 0
      %v1857 = vsel %vm389, %v1850, 0
      %v1860 = vsel %vm389, %v1851, 0
      %v1863 = vsel %vm389, %v1852, 0
      %1865 = vmatprep.subr.bf16.mxu0 %v1860
      %1866 = vmatpush1.bf16.msra.mxu0 %v1857
      %1867 = vmatprep.subr.bf16.mxu0 0
      %1868 = vmatpush1.bf16.msra.mxu0 0
      %1869 = vmatprep.subr.bf16.mxu0 0
      %1870 = vmatpush1.bf16.msra.mxu0 0
      %1871 = vmatprep.subr.bf16.mxu0 0
      %1872 = vmatpush1.bf16.msra.mxu0 0
      %1873 = vmatprep.subr.bf16.mxu0 0
      %1874 = vmatpush1.bf16.msra.mxu0 0
      %1875 = vmatprep.subr.bf16.mxu0 0
      %1876 = vmatpush1.bf16.msra.mxu0 0
      %1877 = vmatprep.subr.bf16.mxu0 0
      %1878 = vmatpush1.bf16.msra.mxu0 0
      %1879 = vmatprep.subr.bf16.mxu0 0
      %1880 = vmatpush1.bf16.msra.mxu0 0
      %1881 = vmatprep.subr.bf16.mxu0 0
      %1882 = vmatpush1.bf16.msra.mxu0 0
      %1883 = vmatprep.subr.bf16.mxu0 0
      %1884 = vmatpush1.bf16.msra.mxu0 0
      %1885 = vmatprep.subr.bf16.mxu0 0
      %1886 = vmatpush1.bf16.msra.mxu0 0
      %1887 = vmatprep.subr.bf16.mxu0 0
      %1888 = vmatpush1.bf16.msra.mxu0 0
      %1889 = vmatprep.subr.bf16.mxu0 0
      %1890 = vmatpush1.bf16.msra.mxu0 0
      %1891 = vmatprep.subr.bf16.mxu0 0
      %1892 = vmatpush1.bf16.msra.mxu0 0
      %1893 = vmatprep.subr.bf16.mxu0 0
      %1894 = vmatpush1.bf16.msra.mxu0 0
      %1895 = vmatprep.subr.bf16.mxu0 0
      %1896 = vmatpush1.bf16.msra.mxu0 0
      %1897 = vmatprep.mubr.bf16.mxu0 0
      %1898 = vmatmul.mubr.bf16.gmra.mrb[0].mxu0 %v1854
      %v1899 = vpop.f32.mrb[0].mxu0
      %v1900 = vadd.f32 0.0, %v1899
      %v1901 = vpop.f32.mrb[0].mxu0
      %v1902 = vadd.f32 0.0, %v1901
      %v1903 = vpop.f32.mrb[0].mxu0
      %v1904 = vpop.f32.mrb[0].mxu0
      %1905 = vdwg.mxu0
      %1906 = vmatprep.subr.bf16.mxu0 0
      %1907 = vmatpush1.bf16.msra.mxu0 %v1863
      %1908 = vmatprep.subr.bf16.mxu0 0
      %1909 = vmatpush1.bf16.msra.mxu0 0
      %1910 = vmatprep.subr.bf16.mxu0 0
      %1911 = vmatpush1.bf16.msra.mxu0 0
      %1912 = vmatprep.subr.bf16.mxu0 0
      %1913 = vmatpush1.bf16.msra.mxu0 0
      %1914 = vmatprep.subr.bf16.mxu0 0
      %1915 = vmatpush1.bf16.msra.mxu0 0
      %1916 = vmatprep.subr.bf16.mxu0 0
      %1917 = vmatpush1.bf16.msra.mxu0 0
      %1918 = vmatprep.subr.bf16.mxu0 0
      %1919 = vmatpush1.bf16.msra.mxu0 0
      %1920 = vmatprep.subr.bf16.mxu0 0
      %1921 = vmatpush1.bf16.msra.mxu0 0
      %1922 = vmatprep.subr.bf16.mxu0 0
      %1923 = vmatpush1.bf16.msra.mxu0 0
      %1924 = vmatprep.subr.bf16.mxu0 0
      %1925 = vmatpush1.bf16.msra.mxu0 0
      %1926 = vmatprep.subr.bf16.mxu0 0
      %1927 = vmatpush1.bf16.msra.mxu0 0
      %1928 = vmatprep.subr.bf16.mxu0 0
      %1929 = vmatpush1.bf16.msra.mxu0 0
      %1930 = vmatprep.subr.bf16.mxu0 0
      %1931 = vmatpush1.bf16.msra.mxu0 0
      %1932 = vmatprep.subr.bf16.mxu0 0
      %1933 = vmatpush1.bf16.msra.mxu0 0
      %1934 = vmatprep.subr.bf16.mxu0 0
      %1935 = vmatpush1.bf16.msra.mxu0 0
      %1936 = vmatprep.subr.bf16.mxu0 0
      %1937 = vmatpush1.bf16.msra.mxu0 0
      %1938 = vmatprep.mubr.bf16.mxu0 0
      %1939 = vmatmul.mubr.bf16.gmra.mrb[0].mxu0 %v1854
      %v1940 = vpop.f32.mrb[0].mxu0
      %v1941 = vadd.f32 0.0, %v1940
      %v1942 = vpop.f32.mrb[0].mxu0
      %v1943 = vpop.f32.mrb[0].mxu0
      %v1944 = vpop.f32.mrb[0].mxu0
      %1945 = vdwg.mxu0
      %v1946 = vadd.f32 %v1838, %v1900
      %v1947 = vadd.f32 %v1839, %v1902
      %v1948 = vadd.f32 %v1840, %v1941
      %v1949 = vld [vmem:[#allocation2 + $0x4] sm:$0xff]
      %v1950 = vld [vmem:[#allocation2 + $0xc] sm:$0xff]
      %s1951 = scalar_lea.vmem %s4, 20
      %v1952 = vld [vmem:[%s1951] sm:$0xf]
      %v1955 = vunpack.c.l.b16 %v1949
      %v1956 = vunpack.c.h.b16 %v1949
      %v1957 = vunpack.c.l.b16 %v1950
      %v1958 = vunpack.c.h.b16 %v1950
      %v1959 = vpack.c.b16 %v1955, %v1955
      %v1960 = vpack.c.b16 %v1956, %v1956
      %v1961 = vpack.c.b16 %v1957, %v1957
      %v1962 = vpack.c.b16 %v1958, %v1958
      %1963 = vrot.lane.b32.xlu0 %v1959, 127
      %v1964 = vpop.permute.xlu0 %1963
      %1965 = vrot.lane.b32.xlu0 %v1960, 127
      %v1966 = vpop.permute.xlu0 %1965
      %1967 = vrot.lane.b32.xlu0 %v1961, 127
      %v1968 = vpop.permute.xlu0 %1967
      %1969 = vrot.lane.b32.xlu0 %v1962, 127
      %v1970 = vpop.permute.xlu0 %1969
      %v1971 = vsel %vm943, %v1964, %v1966
      %v1972 = vsel %vm943, %v1966, %v1968
      %v1973 = vsel %vm943, %v1968, %v1970
      %v1975 = vsel %vm385, %v1952, 0
      %v1978 = vsel %vm389, %v1971, 0
      %v1981 = vsel %vm389, %v1972, 0
      %v1984 = vsel %vm389, %v1973, 0
      %1986 = vmatprep.subr.bf16.mxu0 %v1981
      %1987 = vmatpush1.bf16.msra.mxu0 %v1978
      %1988 = vmatprep.subr.bf16.mxu0 0
      %1989 = vmatpush1.bf16.msra.mxu0 0
      %1990 = vmatprep.subr.bf16.mxu0 0
      %1991 = vmatpush1.bf16.msra.mxu0 0
      %1992 = vmatprep.subr.bf16.mxu0 0
      %1993 = vmatpush1.bf16.msra.mxu0 0
      %1994 = vmatprep.subr.bf16.mxu0 0
      %1995 = vmatpush1.bf16.msra.mxu0 0
      %1996 = vmatprep.subr.bf16.mxu0 0
      %1997 = vmatpush1.bf16.msra.mxu0 0
      %1998 = vmatprep.subr.bf16.mxu0 0
      %1999 = vmatpush1.bf16.msra.mxu0 0
      %2000 = vmatprep.subr.bf16.mxu0 0
      %2001 = vmatpush1.bf16.msra.mxu0 0
      %2002 = vmatprep.subr.bf16.mxu0 0
      %2003 = vmatpush1.bf16.msra.mxu0 0
      %2004 = vmatprep.subr.bf16.mxu0 0
      %2005 = vmatpush1.bf16.msra.mxu0 0
      %2006 = vmatprep.subr.bf16.mxu0 0
      %2007 = vmatpush1.bf16.msra.mxu0 0
      %2008 = vmatprep.subr.bf16.mxu0 0
      %2009 = vmatpush1.bf16.msra.mxu0 0
      %2010 = vmatprep.subr.bf16.mxu0 0
      %2011 = vmatpush1.bf16.msra.mxu0 0
      %2012 = vmatprep.subr.bf16.mxu0 0
      %2013 = vmatpush1.bf16.msra.mxu0 0
      %2014 = vmatprep.subr.bf16.mxu0 0
      %2015 = vmatpush1.bf16.msra.mxu0 0
      %2016 = vmatprep.subr.bf16.mxu0 0
      %2017 = vmatpush1.bf16.msra.mxu0 0
      %2018 = vmatprep.mubr.bf16.mxu0 0
      %2019 = vmatmul.mubr.bf16.gmra.mrb[0].mxu0 %v1975
      %v2020 = vpop.f32.mrb[0].mxu0
      %v2021 = vadd.f32 0.0, %v2020
      %v2022 = vpop.f32.mrb[0].mxu0
      %v2023 = vadd.f32 0.0, %v2022
      %v2024 = vpop.f32.mrb[0].mxu0
      %v2025 = vpop.f32.mrb[0].mxu0
      %2026 = vdwg.mxu0
      %2027 = vmatprep.subr.bf16.mxu0 0
      %2028 = vmatpush1.bf16.msra.mxu0 %v1984
      %2029 = vmatprep.subr.bf16.mxu0 0
      %2030 = vmatpush1.bf16.msra.mxu0 0
      %2031 = vmatprep.subr.bf16.mxu0 0
      %2032 = vmatpush1.bf16.msra.mxu0 0
      %2033 = vmatprep.subr.bf16.mxu0 0
      %2034 = vmatpush1.bf16.msra.mxu0 0
      %2035 = vmatprep.subr.bf16.mxu0 0
      %2036 = vmatpush1.bf16.msra.mxu0 0
      %2037 = vmatprep.subr.bf16.mxu0 0
      %2038 = vmatpush1.bf16.msra.mxu0 0
      %2039 = vmatprep.subr.bf16.mxu0 0
      %2040 = vmatpush1.bf16.msra.mxu0 0
      %2041 = vmatprep.subr.bf16.mxu0 0
      %2042 = vmatpush1.bf16.msra.mxu0 0
      %2043 = vmatprep.subr.bf16.mxu0 0
      %2044 = vmatpush1.bf16.msra.mxu0 0
      %2045 = vmatprep.subr.bf16.mxu0 0
      %2046 = vmatpush1.bf16.msra.mxu0 0
      %2047 = vmatprep.subr.bf16.mxu0 0
      %2048 = vmatpush1.bf16.msra.mxu0 0
      %2049 = vmatprep.subr.bf16.mxu0 0
      %2050 = vmatpush1.bf16.msra.mxu0 0
      %2051 = vmatprep.subr.bf16.mxu0 0
      %2052 = vmatpush1.bf16.msra.mxu0 0
      %2053 = vmatprep.subr.bf16.mxu0 0
      %2054 = vmatpush1.bf16.msra.mxu0 0
      %2055 = vmatprep.subr.bf16.mxu0 0
      %2056 = vmatpush1.bf16.msra.mxu0 0
      %2057 = vmatprep.subr.bf16.mxu0 0
      %2058 = vmatpush1.bf16.msra.mxu0 0
      %2059 = vmatprep.mubr.bf16.mxu0 0
      %2060 = vmatmul.mubr.bf16.gmra.mrb[0].mxu0 %v1975
      %v2061 = vpop.f32.mrb[0].mxu0
      %v2062 = vadd.f32 0.0, %v2061
      %v2063 = vpop.f32.mrb[0].mxu0
      %v2064 = vpop.f32.mrb[0].mxu0
      %v2065 = vpop.f32.mrb[0].mxu0
      %2066 = vdwg.mxu0
      %v2067 = vadd.f32 %v1946, %v2021
      %v2068 = vadd.f32 %v1947, %v2023
      %v2069 = vadd.f32 %v1948, %v2062
      %s2070 = scalar_lea.vmem %s4, 24
      %v2071 = vld [vmem:[%s2070] sm:$0xf]
      %2072 = vrot.lane.b32.xlu0 %v1959, 111
      %v2073 = vpop.permute.xlu0 %2072
      %2074 = vrot.lane.b32.xlu0 %v1960, 111
      %v2075 = vpop.permute.xlu0 %2074
      %2076 = vrot.lane.b32.xlu0 %v1961, 111
      %v2077 = vpop.permute.xlu0 %2076
      %2078 = vrot.lane.b32.xlu0 %v1962, 111
      %v2079 = vpop.permute.xlu0 %2078
      %v2080 = vsel %vm1053, %v2073, %v2075
      %v2081 = vsel %vm1053, %v2075, %v2077
      %v2082 = vsel %vm1053, %v2077, %v2079
      %v2084 = vsel %vm385, %v2071, 0
      %v2087 = vsel %vm389, %v2080, 0
      %v2090 = vsel %vm389, %v2081, 0
      %v2093 = vsel %vm389, %v2082, 0
      %2095 = vmatprep.subr.bf16.mxu0 %v2090
      %2096 = vmatpush1.bf16.msra.mxu0 %v2087
      %2097 = vmatprep.subr.bf16.mxu0 0
      %2098 = vmatpush1.bf16.msra.mxu0 0
      %2099 = vmatprep.subr.bf16.mxu0 0
      %2100 = vmatpush1.bf16.msra.mxu0 0
      %2101 = vmatprep.subr.bf16.mxu0 0
      %2102 = vmatpush1.bf16.msra.mxu0 0
      %2103 = vmatprep.subr.bf16.mxu0 0
      %2104 = vmatpush1.bf16.msra.mxu0 0
      %2105 = vmatprep.subr.bf16.mxu0 0
      %2106 = vmatpush1.bf16.msra.mxu0 0
      %2107 = vmatprep.subr.bf16.mxu0 0
      %2108 = vmatpush1.bf16.msra.mxu0 0
      %2109 = vmatprep.subr.bf16.mxu0 0
      %2110 = vmatpush1.bf16.msra.mxu0 0
      %2111 = vmatprep.subr.bf16.mxu0 0
      %2112 = vmatpush1.bf16.msra.mxu0 0
      %2113 = vmatprep.subr.bf16.mxu0 0
      %2114 = vmatpush1.bf16.msra.mxu0 0
      %2115 = vmatprep.subr.bf16.mxu0 0
      %2116 = vmatpush1.bf16.msra.mxu0 0
      %2117 = vmatprep.subr.bf16.mxu0 0
      %2118 = vmatpush1.bf16.msra.mxu0 0
      %2119 = vmatprep.subr.bf16.mxu0 0
      %2120 = vmatpush1.bf16.msra.mxu0 0
      %2121 = vmatprep.subr.bf16.mxu0 0
      %2122 = vmatpush1.bf16.msra.mxu0 0
      %2123 = vmatprep.subr.bf16.mxu0 0
      %2124 = vmatpush1.bf16.msra.mxu0 0
      %2125 = vmatprep.subr.bf16.mxu0 0
      %2126 = vmatpush1.bf16.msra.mxu0 0
      %2127 = vmatprep.mubr.bf16.mxu0 0
      %2128 = vmatmul.mubr.bf16.gmra.mrb[0].mxu0 %v2084
      %v2129 = vpop.f32.mrb[0].mxu0
      %v2130 = vadd.f32 0.0, %v2129
      %v2131 = vpop.f32.mrb[0].mxu0
      %v2132 = vadd.f32 0.0, %v2131
      %v2133 = vpop.f32.mrb[0].mxu0
      %v2134 = vpop.f32.mrb[0].mxu0
      %2135 = vdwg.mxu0
      %2136 = vmatprep.subr.bf16.mxu0 0
      %2137 = vmatpush1.bf16.msra.mxu0 %v2093
      %2138 = vmatprep.subr.bf16.mxu0 0
      %2139 = vmatpush1.bf16.msra.mxu0 0
      %2140 = vmatprep.subr.bf16.mxu0 0
      %2141 = vmatpush1.bf16.msra.mxu0 0
      %2142 = vmatprep.subr.bf16.mxu0 0
      %2143 = vmatpush1.bf16.msra.mxu0 0
      %2144 = vmatprep.subr.bf16.mxu0 0
      %2145 = vmatpush1.bf16.msra.mxu0 0
      %2146 = vmatprep.subr.bf16.mxu0 0
      %2147 = vmatpush1.bf16.msra.mxu0 0
      %2148 = vmatprep.subr.bf16.mxu0 0
      %2149 = vmatpush1.bf16.msra.mxu0 0
      %2150 = vmatprep.subr.bf16.mxu0 0
      %2151 = vmatpush1.bf16.msra.mxu0 0
      %2152 = vmatprep.subr.bf16.mxu0 0
      %2153 = vmatpush1.bf16.msra.mxu0 0
      %2154 = vmatprep.subr.bf16.mxu0 0
      %2155 = vmatpush1.bf16.msra.mxu0 0
      %2156 = vmatprep.subr.bf16.mxu0 0
      %2157 = vmatpush1.bf16.msra.mxu0 0
      %2158 = vmatprep.subr.bf16.mxu0 0
      %2159 = vmatpush1.bf16.msra.mxu0 0
      %2160 = vmatprep.subr.bf16.mxu0 0
      %2161 = vmatpush1.bf16.msra.mxu0 0
      %2162 = vmatprep.subr.bf16.mxu0 0
      %2163 = vmatpush1.bf16.msra.mxu0 0
      %2164 = vmatprep.subr.bf16.mxu0 0
      %2165 = vmatpush1.bf16.msra.mxu0 0
      %2166 = vmatprep.subr.bf16.mxu0 0
      %2167 = vmatpush1.bf16.msra.mxu0 0
      %2168 = vmatprep.mubr.bf16.mxu0 0
      %2169 = vmatmul.mubr.bf16.gmra.mrb[0].mxu0 %v2084
      %v2170 = vpop.f32.mrb[0].mxu0
      %v2171 = vadd.f32 0.0, %v2170
      %v2172 = vpop.f32.mrb[0].mxu0
      %v2173 = vpop.f32.mrb[0].mxu0
      %v2174 = vpop.f32.mrb[0].mxu0
      %2175 = vdwg.mxu0
      %v2176 = vadd.f32 %v2067, %v2130
      %v2177 = vadd.f32 %v2068, %v2132
      %v2178 = vadd.f32 %v2069, %v2171
      %s2179 = scalar_lea.vmem %s4, 28
      %v2180 = vld [vmem:[%s2179] sm:$0xf]
      %2181 = vrot.lane.b32.xlu0 %v1959, 110
      %v2182 = vpop.permute.xlu0 %2181
      %2183 = vrot.lane.b32.xlu0 %v1960, 110
      %v2184 = vpop.permute.xlu0 %2183
      %2185 = vrot.lane.b32.xlu0 %v1961, 110
      %v2186 = vpop.permute.xlu0 %2185
      %2187 = vrot.lane.b32.xlu0 %v1962, 110
      %v2188 = vpop.permute.xlu0 %2187
      %v2189 = vsel %vm1163, %v2182, %v2184
      %v2190 = vsel %vm1163, %v2184, %v2186
      %v2191 = vsel %vm1163, %v2186, %v2188
      %v2193 = vsel %vm385, %v2180, 0
      %v2196 = vsel %vm389, %v2189, 0
      %v2199 = vsel %vm389, %v2190, 0
      %v2202 = vsel %vm389, %v2191, 0
      %2204 = vmatprep.subr.bf16.mxu0 %v2199
      %2205 = vmatpush1.bf16.msra.mxu0 %v2196
      %2206 = vmatprep.subr.bf16.mxu0 0
      %2207 = vmatpush1.bf16.msra.mxu0 0
      %2208 = vmatprep.subr.bf16.mxu0 0
      %2209 = vmatpush1.bf16.msra.mxu0 0
      %2210 = vmatprep.subr.bf16.mxu0 0
      %2211 = vmatpush1.bf16.msra.mxu0 0
      %2212 = vmatprep.subr.bf16.mxu0 0
      %2213 = vmatpush1.bf16.msra.mxu0 0
      %2214 = vmatprep.subr.bf16.mxu0 0
      %2215 = vmatpush1.bf16.msra.mxu0 0
      %2216 = vmatprep.subr.bf16.mxu0 0
      %2217 = vmatpush1.bf16.msra.mxu0 0
      %2218 = vmatprep.subr.bf16.mxu0 0
      %2219 = vmatpush1.bf16.msra.mxu0 0
      %2220 = vmatprep.subr.bf16.mxu0 0
      %2221 = vmatpush1.bf16.msra.mxu0 0
      %2222 = vmatprep.subr.bf16.mxu0 0
      %2223 = vmatpush1.bf16.msra.mxu0 0
      %2224 = vmatprep.subr.bf16.mxu0 0
      %2225 = vmatpush1.bf16.msra.mxu0 0
      %2226 = vmatprep.subr.bf16.mxu0 0
      %2227 = vmatpush1.bf16.msra.mxu0 0
      %2228 = vmatprep.subr.bf16.mxu0 0
      %2229 = vmatpush1.bf16.msra.mxu0 0
      %2230 = vmatprep.subr.bf16.mxu0 0
      %2231 = vmatpush1.bf16.msra.mxu0 0
      %2232 = vmatprep.subr.bf16.mxu0 0
      %2233 = vmatpush1.bf16.msra.mxu0 0
      %2234 = vmatprep.subr.bf16.mxu0 0
      %2235 = vmatpush1.bf16.msra.mxu0 0
      %2236 = vmatprep.mubr.bf16.mxu0 0
      %2237 = vmatmul.mubr.bf16.gmra.mrb[0].mxu0 %v2193
      %v2238 = vpop.f32.mrb[0].mxu0
      %v2239 = vadd.f32 0.0, %v2238
      %v2240 = vpop.f32.mrb[0].mxu0
      %v2241 = vadd.f32 0.0, %v2240
      %v2242 = vpop.f32.mrb[0].mxu0
      %v2243 = vpop.f32.mrb[0].mxu0
      %2244 = vdwg.mxu0
      %2245 = vmatprep.subr.bf16.mxu0 0
      %2246 = vmatpush1.bf16.msra.mxu0 %v2202
      %2247 = vmatprep.subr.bf16.mxu0 0
      %2248 = vmatpush1.bf16.msra.mxu0 0
      %2249 = vmatprep.subr.bf16.mxu0 0
      %2250 = vmatpush1.bf16.msra.mxu0 0
      %2251 = vmatprep.subr.bf16.mxu0 0
      %2252 = vmatpush1.bf16.msra.mxu0 0
      %2253 = vmatprep.subr.bf16.mxu0 0
      %2254 = vmatpush1.bf16.msra.mxu0 0
      %2255 = vmatprep.subr.bf16.mxu0 0
      %2256 = vmatpush1.bf16.msra.mxu0 0
      %2257 = vmatprep.subr.bf16.mxu0 0
      %2258 = vmatpush1.bf16.msra.mxu0 0
      %2259 = vmatprep.subr.bf16.mxu0 0
      %2260 = vmatpush1.bf16.msra.mxu0 0
      %2261 = vmatprep.subr.bf16.mxu0 0
      %2262 = vmatpush1.bf16.msra.mxu0 0
      %2263 = vmatprep.subr.bf16.mxu0 0
      %2264 = vmatpush1.bf16.msra.mxu0 0
      %2265 = vmatprep.subr.bf16.mxu0 0
      %2266 = vmatpush1.bf16.msra.mxu0 0
      %2267 = vmatprep.subr.bf16.mxu0 0
      %2268 = vmatpush1.bf16.msra.mxu0 0
      %2269 = vmatprep.subr.bf16.mxu0 0
      %2270 = vmatpush1.bf16.msra.mxu0 0
      %2271 = vmatprep.subr.bf16.mxu0 0
      %2272 = vmatpush1.bf16.msra.mxu0 0
      %2273 = vmatprep.subr.bf16.mxu0 0
      %2274 = vmatpush1.bf16.msra.mxu0 0
      %2275 = vmatprep.subr.bf16.mxu0 0
      %2276 = vmatpush1.bf16.msra.mxu0 0
      %2277 = vmatprep.mubr.bf16.mxu0 0
      %2278 = vmatmul.mubr.bf16.gmra.mrb[0].mxu0 %v2193
      %v2279 = vpop.f32.mrb[0].mxu0
      %v2280 = vadd.f32 0.0, %v2279
      %v2281 = vpop.f32.mrb[0].mxu0
      %v2282 = vpop.f32.mrb[0].mxu0
      %v2283 = vpop.f32.mrb[0].mxu0
      %2284 = vdwg.mxu0
      %v2285 = vadd.f32 %v2176, %v2239
      %v2286 = vadd.f32 %v2177, %v2241
      %v2287 = vadd.f32 %v2178, %v2280
      %s2288 = scalar_lea.vmem %s4, 32
      %v2289 = vld [vmem:[%s2288] sm:$0xf]
      %2290 = vrot.lane.b32.xlu0 %v1959, 109
      %v2291 = vpop.permute.xlu0 %2290
      %2292 = vrot.lane.b32.xlu0 %v1960, 109
      %v2293 = vpop.permute.xlu0 %2292
      %2294 = vrot.lane.b32.xlu0 %v1961, 109
      %v2295 = vpop.permute.xlu0 %2294
      %2296 = vrot.lane.b32.xlu0 %v1962, 109
      %v2297 = vpop.permute.xlu0 %2296
      %v2298 = vsel %vm1273, %v2291, %v2293
      %v2299 = vsel %vm1273, %v2293, %v2295
      %v2300 = vsel %vm1273, %v2295, %v2297
      %v2302 = vsel %vm385, %v2289, 0
      %v2305 = vsel %vm389, %v2298, 0
      %v2308 = vsel %vm389, %v2299, 0
      %v2311 = vsel %vm389, %v2300, 0
      %2313 = vmatprep.subr.bf16.mxu0 %v2308
      %2314 = vmatpush1.bf16.msra.mxu0 %v2305
      %2315 = vmatprep.subr.bf16.mxu0 0
      %2316 = vmatpush1.bf16.msra.mxu0 0
      %2317 = vmatprep.subr.bf16.mxu0 0
      %2318 = vmatpush1.bf16.msra.mxu0 0
      %2319 = vmatprep.subr.bf16.mxu0 0
      %2320 = vmatpush1.bf16.msra.mxu0 0
      %2321 = vmatprep.subr.bf16.mxu0 0
      %2322 = vmatpush1.bf16.msra.mxu0 0
      %2323 = vmatprep.subr.bf16.mxu0 0
      %2324 = vmatpush1.bf16.msra.mxu0 0
      %2325 = vmatprep.subr.bf16.mxu0 0
      %2326 = vmatpush1.bf16.msra.mxu0 0
      %2327 = vmatprep.subr.bf16.mxu0 0
      %2328 = vmatpush1.bf16.msra.mxu0 0
      %2329 = vmatprep.subr.bf16.mxu0 0
      %2330 = vmatpush1.bf16.msra.mxu0 0
      %2331 = vmatprep.subr.bf16.mxu0 0
      %2332 = vmatpush1.bf16.msra.mxu0 0
      %2333 = vmatprep.subr.bf16.mxu0 0
      %2334 = vmatpush1.bf16.msra.mxu0 0
      %2335 = vmatprep.subr.bf16.mxu0 0
      %2336 = vmatpush1.bf16.msra.mxu0 0
      %2337 = vmatprep.subr.bf16.mxu0 0
      %2338 = vmatpush1.bf16.msra.mxu0 0
      %2339 = vmatprep.subr.bf16.mxu0 0
      %2340 = vmatpush1.bf16.msra.mxu0 0
      %2341 = vmatprep.subr.bf16.mxu0 0
      %2342 = vmatpush1.bf16.msra.mxu0 0
      %2343 = vmatprep.subr.bf16.mxu0 0
      %2344 = vmatpush1.bf16.msra.mxu0 0
      %2345 = vmatprep.mubr.bf16.mxu0 0
      %2346 = vmatmul.mubr.bf16.gmra.mrb[0].mxu0 %v2302
      %v2347 = vpop.f32.mrb[0].mxu0
      %v2348 = vadd.f32 0.0, %v2347
      %v2349 = vpop.f32.mrb[0].mxu0
      %v2350 = vadd.f32 0.0, %v2349
      %v2351 = vpop.f32.mrb[0].mxu0
      %v2352 = vpop.f32.mrb[0].mxu0
      %2353 = vdwg.mxu0
      %2354 = vmatprep.subr.bf16.mxu0 0
      %2355 = vmatpush1.bf16.msra.mxu0 %v2311
      %2356 = vmatprep.subr.bf16.mxu0 0
      %2357 = vmatpush1.bf16.msra.mxu0 0
      %2358 = vmatprep.subr.bf16.mxu0 0
      %2359 = vmatpush1.bf16.msra.mxu0 0
      %2360 = vmatprep.subr.bf16.mxu0 0
      %2361 = vmatpush1.bf16.msra.mxu0 0
      %2362 = vmatprep.subr.bf16.mxu0 0
      %2363 = vmatpush1.bf16.msra.mxu0 0
      %2364 = vmatprep.subr.bf16.mxu0 0
      %2365 = vmatpush1.bf16.msra.mxu0 0
      %2366 = vmatprep.subr.bf16.mxu0 0
      %2367 = vmatpush1.bf16.msra.mxu0 0
      %2368 = vmatprep.subr.bf16.mxu0 0
      %2369 = vmatpush1.bf16.msra.mxu0 0
      %2370 = vmatprep.subr.bf16.mxu0 0
      %2371 = vmatpush1.bf16.msra.mxu0 0
      %2372 = vmatprep.subr.bf16.mxu0 0
      %2373 = vmatpush1.bf16.msra.mxu0 0
      %2374 = vmatprep.subr.bf16.mxu0 0
      %2375 = vmatpush1.bf16.msra.mxu0 0
      %2376 = vmatprep.subr.bf16.mxu0 0
      %2377 = vmatpush1.bf16.msra.mxu0 0
      %2378 = vmatprep.subr.bf16.mxu0 0
      %2379 = vmatpush1.bf16.msra.mxu0 0
      %2380 = vmatprep.subr.bf16.mxu0 0
      %2381 = vmatpush1.bf16.msra.mxu0 0
      %2382 = vmatprep.subr.bf16.mxu0 0
      %2383 = vmatpush1.bf16.msra.mxu0 0
      %2384 = vmatprep.subr.bf16.mxu0 0
      %2385 = vmatpush1.bf16.msra.mxu0 0
      %2386 = vmatprep.mubr.bf16.mxu0 0
      %2387 = vmatmul.mubr.bf16.gmra.mrb[0].mxu0 %v2302
      %v2388 = vpop.f32.mrb[0].mxu0
      %v2389 = vadd.f32 0.0, %v2388
      %v2390 = vpop.f32.mrb[0].mxu0
      %v2391 = vpop.f32.mrb[0].mxu0
      %v2392 = vpop.f32.mrb[0].mxu0
      %2393 = vdwg.mxu0
      %v2394 = vadd.f32 %v2285, %v2348
      %v2395 = vadd.f32 %v2286, %v2350
      %v2396 = vadd.f32 %v2287, %v2389
      %v2397 = vadd.f32 %v2394, %v307
      %v2398 = vadd.f32 %v2395, %v308
      %v2399 = vadd.f32 %v2396, %v309
      %v2400 = vmax.f32 %v2397, 0.0
      %v2401 = vmax.f32 %v2398, 0.0
      %v2402 = vmax.f32 %v2399, 0.0
      %v2403 = vmul.f32 %v2400, %v315
      %v2404 = vmul.f32 %v2401, %v319
      %v2405 = vmul.f32 %v2402, %v323
      %v2406 = vpack.c.bf16 %v2403, %v2403
      %v2407 = vpack.c.bf16 %v2404, %v2404
      %v2408 = vpack.c.bf16 %v2405, %v2405
      %v2412 = vrot.slane %v2406, 4
      %v2413 = vrot.slane %v2407, 4
      %v2414 = vrot.slane %v2408, 4
      %2418 = vst [vmem:[#allocation3] sm:$0xf0] %v2412
      %2419 = vst [vmem:[#allocation3 + $0x8] sm:$0xf0] %v2413
      %2420 = vst [vmem:[#allocation3 + $0x10] sm:$0xf0] %v2414
      %v2421 = vld [vmem:[%s6] sm:$0xf]
      %v2422 = vld [vmem:[#allocation3] sm:$0xff]
      %v2423 = vld [vmem:[#allocation3 + $0x8] sm:$0xff]
      %v2424 = vld [vmem:[#allocation3 + $0x10] sm:$0xff]
      %v2425 = vld [vmem:[%s7] sm:$0xff]
      %2427 = vset.pattern.permute.xlu0 0
      %2428 = vperm.xlu0 %2427, %v2425
      %v2429 = vpop.permute.xlu0 %2428
      %vm2431 = vcmask 130048
      %v2433 = vsel %vm2431, %v2421, 0
      %2435 = vmatprep.subr.bf16.mxu0 %v2423
      %2436 = vmatpush1.bf16.msra.mxu0 %v2422
      %2437 = vmatprep.subr.bf16.mxu0 0
      %2438 = vmatpush1.bf16.msra.mxu0 0
      %2439 = vmatprep.subr.bf16.mxu0 0
      %2440 = vmatpush1.bf16.msra.mxu0 0
      %2441 = vmatprep.subr.bf16.mxu0 0
      %2442 = vmatpush1.bf16.msra.mxu0 0
      %2443 = vmatprep.subr.bf16.mxu0 0
      %2444 = vmatpush1.bf16.msra.mxu0 0
      %2445 = vmatprep.subr.bf16.mxu0 0
      %2446 = vmatpush1.bf16.msra.mxu0 0
      %2447 = vmatprep.subr.bf16.mxu0 0
      %2448 = vmatpush1.bf16.msra.mxu0 0
      %2449 = vmatprep.subr.bf16.mxu0 0
      %2450 = vmatpush1.bf16.msra.mxu0 0
      %2451 = vmatprep.subr.bf16.mxu0 0
      %2452 = vmatpush1.bf16.msra.mxu0 0
      %2453 = vmatprep.subr.bf16.mxu0 0
      %2454 = vmatpush1.bf16.msra.mxu0 0
      %2455 = vmatprep.subr.bf16.mxu0 0
      %2456 = vmatpush1.bf16.msra.mxu0 0
      %2457 = vmatprep.subr.bf16.mxu0 0
      %2458 = vmatpush1.bf16.msra.mxu0 0
      %2459 = vmatprep.subr.bf16.mxu0 0
      %2460 = vmatpush1.bf16.msra.mxu0 0
      %2461 = vmatprep.subr.bf16.mxu0 0
      %2462 = vmatpush1.bf16.msra.mxu0 0
      %2463 = vmatprep.subr.bf16.mxu0 0
      %2464 = vmatpush1.bf16.msra.mxu0 0
      %2465 = vmatprep.subr.bf16.mxu0 0
      %2466 = vmatpush1.bf16.msra.mxu0 0
      %2467 = vmatprep.mubr.bf16.mxu0 0
      %2468 = vmatmul.mubr.bf16.gmra.mrb[0].mxu0 %v2433
      %v2469 = vpop.f32.mrb[0].mxu0
      %v2470 = vadd.f32 %v2429, %v2469
      %v2471 = vpop.f32.mrb[0].mxu0
      %v2472 = vadd.f32 %v2429, %v2471
      %v2473 = vpop.f32.mrb[0].mxu0
      %v2474 = vpop.f32.mrb[0].mxu0
      %2475 = vdwg.mxu0
      %2476 = vmatprep.subr.bf16.mxu0 0
      %2477 = vmatpush1.bf16.msra.mxu0 %v2424
      %2478 = vmatprep.subr.bf16.mxu0 0
      %2479 = vmatpush1.bf16.msra.mxu0 0
      %2480 = vmatprep.subr.bf16.mxu0 0
      %2481 = vmatpush1.bf16.msra.mxu0 0
      %2482 = vmatprep.subr.bf16.mxu0 0
      %2483 = vmatpush1.bf16.msra.mxu0 0
      %2484 = vmatprep.subr.bf16.mxu0 0
      %2485 = vmatpush1.bf16.msra.mxu0 0
      %2486 = vmatprep.subr.bf16.mxu0 0
      %2487 = vmatpush1.bf16.msra.mxu0 0
      %2488 = vmatprep.subr.bf16.mxu0 0
      %2489 = vmatpush1.bf16.msra.mxu0 0
      %2490 = vmatprep.subr.bf16.mxu0 0
      %2491 = vmatpush1.bf16.msra.mxu0 0
      %2492 = vmatprep.subr.bf16.mxu0 0
      %2493 = vmatpush1.bf16.msra.mxu0 0
      %2494 = vmatprep.subr.bf16.mxu0 0
      %2495 = vmatpush1.bf16.msra.mxu0 0
      %2496 = vmatprep.subr.bf16.mxu0 0
      %2497 = vmatpush1.bf16.msra.mxu0 0
      %2498 = vmatprep.subr.bf16.mxu0 0
      %2499 = vmatpush1.bf16.msra.mxu0 0
      %2500 = vmatprep.subr.bf16.mxu0 0
      %2501 = vmatpush1.bf16.msra.mxu0 0
      %2502 = vmatprep.subr.bf16.mxu0 0
      %2503 = vmatpush1.bf16.msra.mxu0 0
      %2504 = vmatprep.subr.bf16.mxu0 0
      %2505 = vmatpush1.bf16.msra.mxu0 0
      %2506 = vmatprep.subr.bf16.mxu0 0
      %2507 = vmatpush1.bf16.msra.mxu0 0
      %2508 = vmatprep.mubr.bf16.mxu0 0
      %2509 = vmatmul.mubr.bf16.gmra.mrb[0].mxu0 %v2433
      %v2510 = vpop.f32.mrb[0].mxu0
      %v2511 = vadd.f32 %v2429, %v2510
      %v2512 = vpop.f32.mrb[0].mxu0
      %v2513 = vpop.f32.mrb[0].mxu0
      %v2514 = vpop.f32.mrb[0].mxu0
      %2515 = vdwg.mxu0
      %v2516 = vmul.f32 %v2470, %v315
      %v2517 = vmul.f32 %v2472, %v319
      %v2518 = vmul.f32 %v2511, %v323
      %v2519 = vpack.c.bf16 %v2516, %v2516
      %v2520 = vpack.c.bf16 %v2517, %v2517
      %v2521 = vpack.c.bf16 %v2518, %v2518
      %v2525 = vunpack.c.l.b16 %v2519
      %v2526 = vunpack.c.l.b16 %v2520
      %v2527 = vunpack.c.l.b16 %v2521
      %v2528 = vpack.c.b16 %v2526, %v2525
      %v2529 = vpack.c.b16 %v2527, %v2527
      %2532 = vst [vmem:[#allocation2 + $0x4] sm:$0xff] %v2528
      %2533 = vst [vmem:[#allocation2 + $0xc] sm:$0xf] %v2529
      %v2534 = vld [vmem:[#allocation2] sm:$0xff]
      %v2535 = vld [vmem:[#allocation2 + $0x8] sm:$0xff]
      %v2536 = vld [vmem:[%s2] sm:$0xf]
      %v2539 = vunpack.c.l.b16 %v2534
      %v2540 = vunpack.c.h.b16 %v2534
      %v2541 = vunpack.c.l.b16 %v2535
      %v2542 = vunpack.c.h.b16 %v2535
      %v2543 = vpack.c.b16 %v2539, %v2539
      %v2544 = vpack.c.b16 %v2540, %v2540
      %v2545 = vpack.c.b16 %v2541, %v2541
      %v2546 = vpack.c.b16 %v2542, %v2542
      %2547 = vrot.lane.b32.xlu0 %v2543, 19
      %v2548 = vpop.permute.xlu0 %2547
      %2549 = vrot.lane.b32.xlu0 %v2544, 19
      %v2550 = vpop.permute.xlu0 %2549
      %2551 = vrot.lane.b32.xlu0 %v2545, 19
      %v2552 = vpop.permute.xlu0 %2551
      %2553 = vrot.lane.b32.xlu0 %v2546, 19
      %v2554 = vpop.permute.xlu0 %2553
      %v2555 = vsel %vm381, %v2548, %v2550
      %v2556 = vsel %vm381, %v2550, %v2552
      %v2557 = vsel %vm381, %v2552, %v2554
      %v2559 = vsel %vm385, %v2536, 0
      %v2562 = vsel %vm389, %v2555, 0
      %v2565 = vsel %vm389, %v2556, 0
      %v2568 = vsel %vm389, %v2557, 0
      %2570 = vmatprep.subr.bf16.mxu0 %v2565
      %2571 = vmatpush1.bf16.msra.mxu0 %v2562
      %2572 = vmatprep.subr.bf16.mxu0 0
      %2573 = vmatpush1.bf16.msra.mxu0 0
      %2574 = vmatprep.subr.bf16.mxu0 0
      %2575 = vmatpush1.bf16.msra.mxu0 0
      %2576 = vmatprep.subr.bf16.mxu0 0
      %2577 = vmatpush1.bf16.msra.mxu0 0
      %2578 = vmatprep.subr.bf16.mxu0 0
      %2579 = vmatpush1.bf16.msra.mxu0 0
      %2580 = vmatprep.subr.bf16.mxu0 0
      %2581 = vmatpush1.bf16.msra.mxu0 0
      %2582 = vmatprep.subr.bf16.mxu0 0
      %2583 = vmatpush1.bf16.msra.mxu0 0
      %2584 = vmatprep.subr.bf16.mxu0 0
      %2585 = vmatpush1.bf16.msra.mxu0 0
      %2586 = vmatprep.subr.bf16.mxu0 0
      %2587 = vmatpush1.bf16.msra.mxu0 0
      %2588 = vmatprep.subr.bf16.mxu0 0
      %2589 = vmatpush1.bf16.msra.mxu0 0
      %2590 = vmatprep.subr.bf16.mxu0 0
      %2591 = vmatpush1.bf16.msra.mxu0 0
      %2592 = vmatprep.subr.bf16.mxu0 0
      %2593 = vmatpush1.bf16.msra.mxu0 0
      %2594 = vmatprep.subr.bf16.mxu0 0
      %2595 = vmatpush1.bf16.msra.mxu0 0
      %2596 = vmatprep.subr.bf16.mxu0 0
      %2597 = vmatpush1.bf16.msra.mxu0 0
      %2598 = vmatprep.subr.bf16.mxu0 0
      %2599 = vmatpush1.bf16.msra.mxu0 0
      %2600 = vmatprep.subr.bf16.mxu0 0
      %2601 = vmatpush1.bf16.msra.mxu0 0
      %2602 = vmatprep.mubr.bf16.mxu0 0
      %2603 = vmatmul.mubr.bf16.gmra.mrb[0].mxu0 %v2559
      %v2604 = vpop.f32.mrb[0].mxu0
      %v2605 = vadd.f32 0.0, %v2604
      %v2606 = vpop.f32.mrb[0].mxu0
      %v2607 = vadd.f32 0.0, %v2606
      %v2608 = vpop.f32.mrb[0].mxu0
      %v2609 = vpop.f32.mrb[0].mxu0
      %2610 = vdwg.mxu0
      %2611 = vmatprep.subr.bf16.mxu0 0
      %2612 = vmatpush1.bf16.msra.mxu0 %v2568
      %2613 = vmatprep.subr.bf16.mxu0 0
      %2614 = vmatpush1.bf16.msra.mxu0 0
      %2615 = vmatprep.subr.bf16.mxu0 0
      %2616 = vmatpush1.bf16.msra.mxu0 0
      %2617 = vmatprep.subr.bf16.mxu0 0
      %2618 = vmatpush1.bf16.msra.mxu0 0
      %2619 = vmatprep.subr.bf16.mxu0 0
      %2620 = vmatpush1.bf16.msra.mxu0 0
      %2621 = vmatprep.subr.bf16.mxu0 0
      %2622 = vmatpush1.bf16.msra.mxu0 0
      %2623 = vmatprep.subr.bf16.mxu0 0
      %2624 = vmatpush1.bf16.msra.mxu0 0
      %2625 = vmatprep.subr.bf16.mxu0 0
      %2626 = vmatpush1.bf16.msra.mxu0 0
      %2627 = vmatprep.subr.bf16.mxu0 0
      %2628 = vmatpush1.bf16.msra.mxu0 0
      %2629 = vmatprep.subr.bf16.mxu0 0
      %2630 = vmatpush1.bf16.msra.mxu0 0
      %2631 = vmatprep.subr.bf16.mxu0 0
      %2632 = vmatpush1.bf16.msra.mxu0 0
      %2633 = vmatprep.subr.bf16.mxu0 0
      %2634 = vmatpush1.bf16.msra.mxu0 0
      %2635 = vmatprep.subr.bf16.mxu0 0
      %2636 = vmatpush1.bf16.msra.mxu0 0
      %2637 = vmatprep.subr.bf16.mxu0 0
      %2638 = vmatpush1.bf16.msra.mxu0 0
      %2639 = vmatprep.subr.bf16.mxu0 0
      %2640 = vmatpush1.bf16.msra.mxu0 0
      %2641 = vmatprep.subr.bf16.mxu0 0
      %2642 = vmatpush1.bf16.msra.mxu0 0
      %2643 = vmatprep.mubr.bf16.mxu0 0
      %2644 = vmatmul.mubr.bf16.gmra.mrb[0].mxu0 %v2559
      %v2645 = vpop.f32.mrb[0].mxu0
      %v2646 = vadd.f32 0.0, %v2645
      %v2647 = vpop.f32.mrb[0].mxu0
      %v2648 = vpop.f32.mrb[0].mxu0
      %v2649 = vpop.f32.mrb[0].mxu0
      %2650 = vdwg.mxu0
      %v2651 = vadd.f32 %v331, %v2605
      %v2652 = vadd.f32 %v331, %v2607
      %v2653 = vadd.f32 %v331, %v2646
      %v2654 = vld [vmem:[%s483] sm:$0xf]
      %2655 = vrot.lane.b32.xlu0 %v2543, 18
      %v2656 = vpop.permute.xlu0 %2655
      %2657 = vrot.lane.b32.xlu0 %v2544, 18
      %v2658 = vpop.permute.xlu0 %2657
      %2659 = vrot.lane.b32.xlu0 %v2545, 18
      %v2660 = vpop.permute.xlu0 %2659
      %2661 = vrot.lane.b32.xlu0 %v2546, 18
      %v2662 = vpop.permute.xlu0 %2661
      %v2663 = vsel %vm493, %v2656, %v2658
      %v2664 = vsel %vm493, %v2658, %v2660
      %v2665 = vsel %vm493, %v2660, %v2662
      %v2667 = vsel %vm385, %v2654, 0
      %v2670 = vsel %vm389, %v2663, 0
      %v2673 = vsel %vm389, %v2664, 0
      %v2676 = vsel %vm389, %v2665, 0
      %2678 = vmatprep.subr.bf16.mxu0 %v2673
      %2679 = vmatpush1.bf16.msra.mxu0 %v2670
      %2680 = vmatprep.subr.bf16.mxu0 0
      %2681 = vmatpush1.bf16.msra.mxu0 0
      %2682 = vmatprep.subr.bf16.mxu0 0
      %2683 = vmatpush1.bf16.msra.mxu0 0
      %2684 = vmatprep.subr.bf16.mxu0 0
      %2685 = vmatpush1.bf16.msra.mxu0 0
      %2686 = vmatprep.subr.bf16.mxu0 0
      %2687 = vmatpush1.bf16.msra.mxu0 0
      %2688 = vmatprep.subr.bf16.mxu0 0
      %2689 = vmatpush1.bf16.msra.mxu0 0
      %2690 = vmatprep.subr.bf16.mxu0 0
      %2691 = vmatpush1.bf16.msra.mxu0 0
      %2692 = vmatprep.subr.bf16.mxu0 0
      %2693 = vmatpush1.bf16.msra.mxu0 0
      %2694 = vmatprep.subr.bf16.mxu0 0
      %2695 = vmatpush1.bf16.msra.mxu0 0
      %2696 = vmatprep.subr.bf16.mxu0 0
      %2697 = vmatpush1.bf16.msra.mxu0 0
      %2698 = vmatprep.subr.bf16.mxu0 0
      %2699 = vmatpush1.bf16.msra.mxu0 0
      %2700 = vmatprep.subr.bf16.mxu0 0
      %2701 = vmatpush1.bf16.msra.mxu0 0
      %2702 = vmatprep.subr.bf16.mxu0 0
      %2703 = vmatpush1.bf16.msra.mxu0 0
      %2704 = vmatprep.subr.bf16.mxu0 0
      %2705 = vmatpush1.bf16.msra.mxu0 0
      %2706 = vmatprep.subr.bf16.mxu0 0
      %2707 = vmatpush1.bf16.msra.mxu0 0
      %2708 = vmatprep.subr.bf16.mxu0 0
      %2709 = vmatpush1.bf16.msra.mxu0 0
      %2710 = vmatprep.mubr.bf16.mxu0 0
      %2711 = vmatmul.mubr.bf16.gmra.mrb[0].mxu0 %v2667
      %v2712 = vpop.f32.mrb[0].mxu0
      %v2713 = vadd.f32 0.0, %v2712
      %v2714 = vpop.f32.mrb[0].mxu0
      %v2715 = vadd.f32 0.0, %v2714
      %v2716 = vpop.f32.mrb[0].mxu0
      %v2717 = vpop.f32.mrb[0].mxu0
      %2718 = vdwg.mxu0
      %2719 = vmatprep.subr.bf16.mxu0 0
      %2720 = vmatpush1.bf16.msra.mxu0 %v2676
      %2721 = vmatprep.subr.bf16.mxu0 0
      %2722 = vmatpush1.bf16.msra.mxu0 0
      %2723 = vmatprep.subr.bf16.mxu0 0
      %2724 = vmatpush1.bf16.msra.mxu0 0
      %2725 = vmatprep.subr.bf16.mxu0 0
      %2726 = vmatpush1.bf16.msra.mxu0 0
      %2727 = vmatprep.subr.bf16.mxu0 0
      %2728 = vmatpush1.bf16.msra.mxu0 0
      %2729 = vmatprep.subr.bf16.mxu0 0
      %2730 = vmatpush1.bf16.msra.mxu0 0
      %2731 = vmatprep.subr.bf16.mxu0 0
      %2732 = vmatpush1.bf16.msra.mxu0 0
      %2733 = vmatprep.subr.bf16.mxu0 0
      %2734 = vmatpush1.bf16.msra.mxu0 0
      %2735 = vmatprep.subr.bf16.mxu0 0
      %2736 = vmatpush1.bf16.msra.mxu0 0
      %2737 = vmatprep.subr.bf16.mxu0 0
      %2738 = vmatpush1.bf16.msra.mxu0 0
      %2739 = vmatprep.subr.bf16.mxu0 0
      %2740 = vmatpush1.bf16.msra.mxu0 0
      %2741 = vmatprep.subr.bf16.mxu0 0
      %2742 = vmatpush1.bf16.msra.mxu0 0
      %2743 = vmatprep.subr.bf16.mxu0 0
      %2744 = vmatpush1.bf16.msra.mxu0 0
      %2745 = vmatprep.subr.bf16.mxu0 0
      %2746 = vmatpush1.bf16.msra.mxu0 0
      %2747 = vmatprep.subr.bf16.mxu0 0
      %2748 = vmatpush1.bf16.msra.mxu0 0
      %2749 = vmatprep.subr.bf16.mxu0 0
      %2750 = vmatpush1.bf16.msra.mxu0 0
      %2751 = vmatprep.mubr.bf16.mxu0 0
      %2752 = vmatmul.mubr.bf16.gmra.mrb[0].mxu0 %v2667
      %v2753 = vpop.f32.mrb[0].mxu0
      %v2754 = vadd.f32 0.0, %v2753
      %v2755 = vpop.f32.mrb[0].mxu0
      %v2756 = vpop.f32.mrb[0].mxu0
      %v2757 = vpop.f32.mrb[0].mxu0
      %2758 = vdwg.mxu0
      %v2759 = vadd.f32 %v2651, %v2713
      %v2760 = vadd.f32 %v2652, %v2715
      %v2761 = vadd.f32 %v2653, %v2754
      %v2762 = vld [vmem:[%s593] sm:$0xf]
      %2763 = vrot.lane.b32.xlu0 %v2543, 17
      %v2764 = vpop.permute.xlu0 %2763
      %2765 = vrot.lane.b32.xlu0 %v2544, 17
      %v2766 = vpop.permute.xlu0 %2765
      %2767 = vrot.lane.b32.xlu0 %v2545, 17
      %v2768 = vpop.permute.xlu0 %2767
      %2769 = vrot.lane.b32.xlu0 %v2546, 17
      %v2770 = vpop.permute.xlu0 %2769
      %v2771 = vsel %vm603, %v2764, %v2766
      %v2772 = vsel %vm603, %v2766, %v2768
      %v2773 = vsel %vm603, %v2768, %v2770
      %v2775 = vsel %vm385, %v2762, 0
      %v2778 = vsel %vm389, %v2771, 0
      %v2781 = vsel %vm389, %v2772, 0
      %v2784 = vsel %vm389, %v2773, 0
      %2786 = vmatprep.subr.bf16.mxu0 %v2781
      %2787 = vmatpush1.bf16.msra.mxu0 %v2778
      %2788 = vmatprep.subr.bf16.mxu0 0
      %2789 = vmatpush1.bf16.msra.mxu0 0
      %2790 = vmatprep.subr.bf16.mxu0 0
      %2791 = vmatpush1.bf16.msra.mxu0 0
      %2792 = vmatprep.subr.bf16.mxu0 0
      %2793 = vmatpush1.bf16.msra.mxu0 0
      %2794 = vmatprep.subr.bf16.mxu0 0
      %2795 = vmatpush1.bf16.msra.mxu0 0
      %2796 = vmatprep.subr.bf16.mxu0 0
      %2797 = vmatpush1.bf16.msra.mxu0 0
      %2798 = vmatprep.subr.bf16.mxu0 0
      %2799 = vmatpush1.bf16.msra.mxu0 0
      %2800 = vmatprep.subr.bf16.mxu0 0
      %2801 = vmatpush1.bf16.msra.mxu0 0
      %2802 = vmatprep.subr.bf16.mxu0 0
      %2803 = vmatpush1.bf16.msra.mxu0 0
      %2804 = vmatprep.subr.bf16.mxu0 0
      %2805 = vmatpush1.bf16.msra.mxu0 0
      %2806 = vmatprep.subr.bf16.mxu0 0
      %2807 = vmatpush1.bf16.msra.mxu0 0
      %2808 = vmatprep.subr.bf16.mxu0 0
      %2809 = vmatpush1.bf16.msra.mxu0 0
      %2810 = vmatprep.subr.bf16.mxu0 0
      %2811 = vmatpush1.bf16.msra.mxu0 0
      %2812 = vmatprep.subr.bf16.mxu0 0
      %2813 = vmatpush1.bf16.msra.mxu0 0
      %2814 = vmatprep.subr.bf16.mxu0 0
      %2815 = vmatpush1.bf16.msra.mxu0 0
      %2816 = vmatprep.subr.bf16.mxu0 0
      %2817 = vmatpush1.bf16.msra.mxu0 0
      %2818 = vmatprep.mubr.bf16.mxu0 0
      %2819 = vmatmul.mubr.bf16.gmra.mrb[0].mxu0 %v2775
      %v2820 = vpop.f32.mrb[0].mxu0
      %v2821 = vadd.f32 0.0, %v2820
      %v2822 = vpop.f32.mrb[0].mxu0
      %v2823 = vadd.f32 0.0, %v2822
      %v2824 = vpop.f32.mrb[0].mxu0
      %v2825 = vpop.f32.mrb[0].mxu0
      %2826 = vdwg.mxu0
      %2827 = vmatprep.subr.bf16.mxu0 0
      %2828 = vmatpush1.bf16.msra.mxu0 %v2784
      %2829 = vmatprep.subr.bf16.mxu0 0
      %2830 = vmatpush1.bf16.msra.mxu0 0
      %2831 = vmatprep.subr.bf16.mxu0 0
      %2832 = vmatpush1.bf16.msra.mxu0 0
      %2833 = vmatprep.subr.bf16.mxu0 0
      %2834 = vmatpush1.bf16.msra.mxu0 0
      %2835 = vmatprep.subr.bf16.mxu0 0
      %2836 = vmatpush1.bf16.msra.mxu0 0
      %2837 = vmatprep.subr.bf16.mxu0 0
      %2838 = vmatpush1.bf16.msra.mxu0 0
      %2839 = vmatprep.subr.bf16.mxu0 0
      %2840 = vmatpush1.bf16.msra.mxu0 0
      %2841 = vmatprep.subr.bf16.mxu0 0
      %2842 = vmatpush1.bf16.msra.mxu0 0
      %2843 = vmatprep.subr.bf16.mxu0 0
      %2844 = vmatpush1.bf16.msra.mxu0 0
      %2845 = vmatprep.subr.bf16.mxu0 0
      %2846 = vmatpush1.bf16.msra.mxu0 0
      %2847 = vmatprep.subr.bf16.mxu0 0
      %2848 = vmatpush1.bf16.msra.mxu0 0
      %2849 = vmatprep.subr.bf16.mxu0 0
      %2850 = vmatpush1.bf16.msra.mxu0 0
      %2851 = vmatprep.subr.bf16.mxu0 0
      %2852 = vmatpush1.bf16.msra.mxu0 0
      %2853 = vmatprep.subr.bf16.mxu0 0
      %2854 = vmatpush1.bf16.msra.mxu0 0
      %2855 = vmatprep.subr.bf16.mxu0 0
      %2856 = vmatpush1.bf16.msra.mxu0 0
      %2857 = vmatprep.subr.bf16.mxu0 0
      %2858 = vmatpush1.bf16.msra.mxu0 0
      %2859 = vmatprep.mubr.bf16.mxu0 0
      %2860 = vmatmul.mubr.bf16.gmra.mrb[0].mxu0 %v2775
      %v2861 = vpop.f32.mrb[0].mxu0
      %v2862 = vadd.f32 0.0, %v2861
      %v2863 = vpop.f32.mrb[0].mxu0
      %v2864 = vpop.f32.mrb[0].mxu0
      %v2865 = vpop.f32.mrb[0].mxu0
      %2866 = vdwg.mxu0
      %v2867 = vadd.f32 %v2759, %v2821
      %v2868 = vadd.f32 %v2760, %v2823
      %v2869 = vadd.f32 %v2761, %v2862
      %v2870 = vld [vmem:[%s703] sm:$0xf]
      %2871 = vrot.lane.b32.xlu0 %v2543, 1
      %v2872 = vpop.permute.xlu0 %2871
      %2873 = vrot.lane.b32.xlu0 %v2544, 1
      %v2874 = vpop.permute.xlu0 %2873
      %2875 = vrot.lane.b32.xlu0 %v2545, 1
      %v2876 = vpop.permute.xlu0 %2875
      %2877 = vrot.lane.b32.xlu0 %v2546, 1
      %v2878 = vpop.permute.xlu0 %2877
      %v2879 = vsel %vm713, %v2872, %v2874
      %v2880 = vsel %vm713, %v2874, %v2876
      %v2881 = vsel %vm713, %v2876, %v2878
      %v2883 = vsel %vm385, %v2870, 0
      %v2886 = vsel %vm389, %v2879, 0
      %v2889 = vsel %vm389, %v2880, 0
      %v2892 = vsel %vm389, %v2881, 0
      %2894 = vmatprep.subr.bf16.mxu0 %v2889
      %2895 = vmatpush1.bf16.msra.mxu0 %v2886
      %2896 = vmatprep.subr.bf16.mxu0 0
      %2897 = vmatpush1.bf16.msra.mxu0 0
      %2898 = vmatprep.subr.bf16.mxu0 0
      %2899 = vmatpush1.bf16.msra.mxu0 0
      %2900 = vmatprep.subr.bf16.mxu0 0
      %2901 = vmatpush1.bf16.msra.mxu0 0
      %2902 = vmatprep.subr.bf16.mxu0 0
      %2903 = vmatpush1.bf16.msra.mxu0 0
      %2904 = vmatprep.subr.bf16.mxu0 0
      %2905 = vmatpush1.bf16.msra.mxu0 0
      %2906 = vmatprep.subr.bf16.mxu0 0
      %2907 = vmatpush1.bf16.msra.mxu0 0
      %2908 = vmatprep.subr.bf16.mxu0 0
      %2909 = vmatpush1.bf16.msra.mxu0 0
      %2910 = vmatprep.subr.bf16.mxu0 0
      %2911 = vmatpush1.bf16.msra.mxu0 0
      %2912 = vmatprep.subr.bf16.mxu0 0
      %2913 = vmatpush1.bf16.msra.mxu0 0
      %2914 = vmatprep.subr.bf16.mxu0 0
      %2915 = vmatpush1.bf16.msra.mxu0 0
      %2916 = vmatprep.subr.bf16.mxu0 0
      %2917 = vmatpush1.bf16.msra.mxu0 0
      %2918 = vmatprep.subr.bf16.mxu0 0
      %2919 = vmatpush1.bf16.msra.mxu0 0
      %2920 = vmatprep.subr.bf16.mxu0 0
      %2921 = vmatpush1.bf16.msra.mxu0 0
      %2922 = vmatprep.subr.bf16.mxu0 0
      %2923 = vmatpush1.bf16.msra.mxu0 0
      %2924 = vmatprep.subr.bf16.mxu0 0
      %2925 = vmatpush1.bf16.msra.mxu0 0
      %2926 = vmatprep.mubr.bf16.mxu0 0
      %2927 = vmatmul.mubr.bf16.gmra.mrb[0].mxu0 %v2883
      %v2928 = vpop.f32.mrb[0].mxu0
      %v2929 = vadd.f32 0.0, %v2928
      %v2930 = vpop.f32.mrb[0].mxu0
      %v2931 = vadd.f32 0.0, %v2930
      %v2932 = vpop.f32.mrb[0].mxu0
      %v2933 = vpop.f32.mrb[0].mxu0
      %2934 = vdwg.mxu0
      %2935 = vmatprep.subr.bf16.mxu0 0
      %2936 = vmatpush1.bf16.msra.mxu0 %v2892
      %2937 = vmatprep.subr.bf16.mxu0 0
      %2938 = vmatpush1.bf16.msra.mxu0 0
      %2939 = vmatprep.subr.bf16.mxu0 0
      %2940 = vmatpush1.bf16.msra.mxu0 0
      %2941 = vmatprep.subr.bf16.mxu0 0
      %2942 = vmatpush1.bf16.msra.mxu0 0
      %2943 = vmatprep.subr.bf16.mxu0 0
      %2944 = vmatpush1.bf16.msra.mxu0 0
      %2945 = vmatprep.subr.bf16.mxu0 0
      %2946 = vmatpush1.bf16.msra.mxu0 0
      %2947 = vmatprep.subr.bf16.mxu0 0
      %2948 = vmatpush1.bf16.msra.mxu0 0
      %2949 = vmatprep.subr.bf16.mxu0 0
      %2950 = vmatpush1.bf16.msra.mxu0 0
      %2951 = vmatprep.subr.bf16.mxu0 0
      %2952 = vmatpush1.bf16.msra.mxu0 0
      %2953 = vmatprep.subr.bf16.mxu0 0
      %2954 = vmatpush1.bf16.msra.mxu0 0
      %2955 = vmatprep.subr.bf16.mxu0 0
      %2956 = vmatpush1.bf16.msra.mxu0 0
      %2957 = vmatprep.subr.bf16.mxu0 0
      %2958 = vmatpush1.bf16.msra.mxu0 0
      %2959 = vmatprep.subr.bf16.mxu0 0
      %2960 = vmatpush1.bf16.msra.mxu0 0
      %2961 = vmatprep.subr.bf16.mxu0 0
      %2962 = vmatpush1.bf16.msra.mxu0 0
      %2963 = vmatprep.subr.bf16.mxu0 0
      %2964 = vmatpush1.bf16.msra.mxu0 0
      %2965 = vmatprep.subr.bf16.mxu0 0
      %2966 = vmatpush1.bf16.msra.mxu0 0
      %2967 = vmatprep.mubr.bf16.mxu0 0
      %2968 = vmatmul.mubr.bf16.gmra.mrb[0].mxu0 %v2883
      %v2969 = vpop.f32.mrb[0].mxu0
      %v2970 = vadd.f32 0.0, %v2969
      %v2971 = vpop.f32.mrb[0].mxu0
      %v2972 = vpop.f32.mrb[0].mxu0
      %v2973 = vpop.f32.mrb[0].mxu0
      %2974 = vdwg.mxu0
      %v2975 = vadd.f32 %v2867, %v2929
      %v2976 = vadd.f32 %v2868, %v2931
      %v2977 = vadd.f32 %v2869, %v2970
      %v2978 = vld [vmem:[#allocation2 + $0x4] sm:$0xff]
      %v2979 = vld [vmem:[#allocation2 + $0xc] sm:$0xf]
      %v2980 = vld [vmem:[%s815] sm:$0xf]
      %v2983 = vunpack.c.l.b16 %v2978
      %v2984 = vunpack.c.h.b16 %v2978
      %v2985 = vunpack.c.l.b16 %v2979
      %v2986 = vpack.c.b16 %v2983, %v2983
      %v2987 = vpack.c.b16 %v2984, %v2984
      %v2988 = vpack.c.b16 %v2985, %v2985
      %v2990 = vsel %vm385, %v2980, 0
      %v2993 = vsel %vm389, %v2986, 0
      %v2996 = vsel %vm389, %v2987, 0
      %v2999 = vsel %vm389, %v2988, 0
      %3001 = vmatprep.subr.bf16.mxu0 %v2996
      %3002 = vmatpush1.bf16.msra.mxu0 %v2993
      %3003 = vmatprep.subr.bf16.mxu0 0
      %3004 = vmatpush1.bf16.msra.mxu0 0
      %3005 = vmatprep.subr.bf16.mxu0 0
      %3006 = vmatpush1.bf16.msra.mxu0 0
      %3007 = vmatprep.subr.bf16.mxu0 0
      %3008 = vmatpush1.bf16.msra.mxu0 0
      %3009 = vmatprep.subr.bf16.mxu0 0
      %3010 = vmatpush1.bf16.msra.mxu0 0
      %3011 = vmatprep.subr.bf16.mxu0 0
      %3012 = vmatpush1.bf16.msra.mxu0 0
      %3013 = vmatprep.subr.bf16.mxu0 0
      %3014 = vmatpush1.bf16.msra.mxu0 0
      %3015 = vmatprep.subr.bf16.mxu0 0
      %3016 = vmatpush1.bf16.msra.mxu0 0
      %3017 = vmatprep.subr.bf16.mxu0 0
      %3018 = vmatpush1.bf16.msra.mxu0 0
      %3019 = vmatprep.subr.bf16.mxu0 0
      %3020 = vmatpush1.bf16.msra.mxu0 0
      %3021 = vmatprep.subr.bf16.mxu0 0
      %3022 = vmatpush1.bf16.msra.mxu0 0
      %3023 = vmatprep.subr.bf16.mxu0 0
      %3024 = vmatpush1.bf16.msra.mxu0 0
      %3025 = vmatprep.subr.bf16.mxu0 0
      %3026 = vmatpush1.bf16.msra.mxu0 0
      %3027 = vmatprep.subr.bf16.mxu0 0
      %3028 = vmatpush1.bf16.msra.mxu0 0
      %3029 = vmatprep.subr.bf16.mxu0 0
      %3030 = vmatpush1.bf16.msra.mxu0 0
      %3031 = vmatprep.subr.bf16.mxu0 0
      %3032 = vmatpush1.bf16.msra.mxu0 0
      %3033 = vmatprep.mubr.bf16.mxu0 0
      %3034 = vmatmul.mubr.bf16.gmra.mrb[0].mxu0 %v2990
      %v3035 = vpop.f32.mrb[0].mxu0
      %v3036 = vadd.f32 0.0, %v3035
      %v3037 = vpop.f32.mrb[0].mxu0
      %v3038 = vadd.f32 0.0, %v3037
      %v3039 = vpop.f32.mrb[0].mxu0
      %v3040 = vpop.f32.mrb[0].mxu0
      %3041 = vdwg.mxu0
      %3042 = vmatprep.subr.bf16.mxu0 0
      %3043 = vmatpush1.bf16.msra.mxu0 %v2999
      %3044 = vmatprep.subr.bf16.mxu0 0
      %3045 = vmatpush1.bf16.msra.mxu0 0
      %3046 = vmatprep.subr.bf16.mxu0 0
      %3047 = vmatpush1.bf16.msra.mxu0 0
      %3048 = vmatprep.subr.bf16.mxu0 0
      %3049 = vmatpush1.bf16.msra.mxu0 0
      %3050 = vmatprep.subr.bf16.mxu0 0
      %3051 = vmatpush1.bf16.msra.mxu0 0
      %3052 = vmatprep.subr.bf16.mxu0 0
      %3053 = vmatpush1.bf16.msra.mxu0 0
      %3054 = vmatprep.subr.bf16.mxu0 0
      %3055 = vmatpush1.bf16.msra.mxu0 0
      %3056 = vmatprep.subr.bf16.mxu0 0
      %3057 = vmatpush1.bf16.msra.mxu0 0
      %3058 = vmatprep.subr.bf16.mxu0 0
      %3059 = vmatpush1.bf16.msra.mxu0 0
      %3060 = vmatprep.subr.bf16.mxu0 0
      %3061 = vmatpush1.bf16.msra.mxu0 0
      %3062 = vmatprep.subr.bf16.mxu0 0
      %3063 = vmatpush1.bf16.msra.mxu0 0
      %3064 = vmatprep.subr.bf16.mxu0 0
      %3065 = vmatpush1.bf16.msra.mxu0 0
      %3066 = vmatprep.subr.bf16.mxu0 0
      %3067 = vmatpush1.bf16.msra.mxu0 0
      %3068 = vmatprep.subr.bf16.mxu0 0
      %3069 = vmatpush1.bf16.msra.mxu0 0
      %3070 = vmatprep.subr.bf16.mxu0 0
      %3071 = vmatpush1.bf16.msra.mxu0 0
      %3072 = vmatprep.subr.bf16.mxu0 0
      %3073 = vmatpush1.bf16.msra.mxu0 0
      %3074 = vmatprep.mubr.bf16.mxu0 0
      %3075 = vmatmul.mubr.bf16.gmra.mrb[0].mxu0 %v2990
      %v3076 = vpop.f32.mrb[0].mxu0
      %v3077 = vadd.f32 0.0, %v3076
      %v3078 = vpop.f32.mrb[0].mxu0
      %v3079 = vpop.f32.mrb[0].mxu0
      %v3080 = vpop.f32.mrb[0].mxu0
      %3081 = vdwg.mxu0
      %v3082 = vadd.f32 %v2975, %v3036
      %v3083 = vadd.f32 %v2976, %v3038
      %v3084 = vadd.f32 %v2977, %v3077
      %v3085 = vld [vmem:[#allocation2 + $0x4] sm:$0xff]
      %v3086 = vld [vmem:[#allocation2 + $0xc] sm:$0xff]
      %v3087 = vld [vmem:[%s923] sm:$0xf]
      %v3090 = vunpack.c.l.b16 %v3085
      %v3091 = vunpack.c.h.b16 %v3085
      %v3092 = vunpack.c.l.b16 %v3086
      %v3093 = vunpack.c.h.b16 %v3086
      %v3094 = vpack.c.b16 %v3090, %v3090
      %v3095 = vpack.c.b16 %v3091, %v3091
      %v3096 = vpack.c.b16 %v3092, %v3092
      %v3097 = vpack.c.b16 %v3093, %v3093
      %3098 = vrot.lane.b32.xlu0 %v3094, 127
      %v3099 = vpop.permute.xlu0 %3098
      %3100 = vrot.lane.b32.xlu0 %v3095, 127
      %v3101 = vpop.permute.xlu0 %3100
      %3102 = vrot.lane.b32.xlu0 %v3096, 127
      %v3103 = vpop.permute.xlu0 %3102
      %3104 = vrot.lane.b32.xlu0 %v3097, 127
      %v3105 = vpop.permute.xlu0 %3104
      %v3106 = vsel %vm943, %v3099, %v3101
      %v3107 = vsel %vm943, %v3101, %v3103
      %v3108 = vsel %vm943, %v3103, %v3105
      %v3110 = vsel %vm385, %v3087, 0
      %v3113 = vsel %vm389, %v3106, 0
      %v3116 = vsel %vm389, %v3107, 0
      %v3119 = vsel %vm389, %v3108, 0
      %3121 = vmatprep.subr.bf16.mxu0 %v3116
      %3122 = vmatpush1.bf16.msra.mxu0 %v3113
      %3123 = vmatprep.subr.bf16.mxu0 0
      %3124 = vmatpush1.bf16.msra.mxu0 0
      %3125 = vmatprep.subr.bf16.mxu0 0
      %3126 = vmatpush1.bf16.msra.mxu0 0
      %3127 = vmatprep.subr.bf16.mxu0 0
      %3128 = vmatpush1.bf16.msra.mxu0 0
      %3129 = vmatprep.subr.bf16.mxu0 0
      %3130 = vmatpush1.bf16.msra.mxu0 0
      %3131 = vmatprep.subr.bf16.mxu0 0
      %3132 = vmatpush1.bf16.msra.mxu0 0
      %3133 = vmatprep.subr.bf16.mxu0 0
      %3134 = vmatpush1.bf16.msra.mxu0 0
      %3135 = vmatprep.subr.bf16.mxu0 0
      %3136 = vmatpush1.bf16.msra.mxu0 0
      %3137 = vmatprep.subr.bf16.mxu0 0
      %3138 = vmatpush1.bf16.msra.mxu0 0
      %3139 = vmatprep.subr.bf16.mxu0 0
      %3140 = vmatpush1.bf16.msra.mxu0 0
      %3141 = vmatprep.subr.bf16.mxu0 0
      %3142 = vmatpush1.bf16.msra.mxu0 0
      %3143 = vmatprep.subr.bf16.mxu0 0
      %3144 = vmatpush1.bf16.msra.mxu0 0
      %3145 = vmatprep.subr.bf16.mxu0 0
      %3146 = vmatpush1.bf16.msra.mxu0 0
      %3147 = vmatprep.subr.bf16.mxu0 0
      %3148 = vmatpush1.bf16.msra.mxu0 0
      %3149 = vmatprep.subr.bf16.mxu0 0
      %3150 = vmatpush1.bf16.msra.mxu0 0
      %3151 = vmatprep.subr.bf16.mxu0 0
      %3152 = vmatpush1.bf16.msra.mxu0 0
      %3153 = vmatprep.mubr.bf16.mxu0 0
      %3154 = vmatmul.mubr.bf16.gmra.mrb[0].mxu0 %v3110
      %v3155 = vpop.f32.mrb[0].mxu0
      %v3156 = vadd.f32 0.0, %v3155
      %v3157 = vpop.f32.mrb[0].mxu0
      %v3158 = vadd.f32 0.0, %v3157
      %v3159 = vpop.f32.mrb[0].mxu0
      %v3160 = vpop.f32.mrb[0].mxu0
      %3161 = vdwg.mxu0
      %3162 = vmatprep.subr.bf16.mxu0 0
      %3163 = vmatpush1.bf16.msra.mxu0 %v3119
      %3164 = vmatprep.subr.bf16.mxu0 0
      %3165 = vmatpush1.bf16.msra.mxu0 0
      %3166 = vmatprep.subr.bf16.mxu0 0
      %3167 = vmatpush1.bf16.msra.mxu0 0
      %3168 = vmatprep.subr.bf16.mxu0 0
      %3169 = vmatpush1.bf16.msra.mxu0 0
      %3170 = vmatprep.subr.bf16.mxu0 0
      %3171 = vmatpush1.bf16.msra.mxu0 0
      %3172 = vmatprep.subr.bf16.mxu0 0
      %3173 = vmatpush1.bf16.msra.mxu0 0
      %3174 = vmatprep.subr.bf16.mxu0 0
      %3175 = vmatpush1.bf16.msra.mxu0 0
      %3176 = vmatprep.subr.bf16.mxu0 0
      %3177 = vmatpush1.bf16.msra.mxu0 0
      %3178 = vmatprep.subr.bf16.mxu0 0
      %3179 = vmatpush1.bf16.msra.mxu0 0
      %3180 = vmatprep.subr.bf16.mxu0 0
      %3181 = vmatpush1.bf16.msra.mxu0 0
      %3182 = vmatprep.subr.bf16.mxu0 0
      %3183 = vmatpush1.bf16.msra.mxu0 0
      %3184 = vmatprep.subr.bf16.mxu0 0
      %3185 = vmatpush1.bf16.msra.mxu0 0
      %3186 = vmatprep.subr.bf16.mxu0 0
      %3187 = vmatpush1.bf16.msra.mxu0 0
      %3188 = vmatprep.subr.bf16.mxu0 0
      %3189 = vmatpush1.bf16.msra.mxu0 0
      %3190 = vmatprep.subr.bf16.mxu0 0
      %3191 = vmatpush1.bf16.msra.mxu0 0
      %3192 = vmatprep.subr.bf16.mxu0 0
      %3193 = vmatpush1.bf16.msra.mxu0 0
      %3194 = vmatprep.mubr.bf16.mxu0 0
      %3195 = vmatmul.mubr.bf16.gmra.mrb[0].mxu0 %v3110
      %v3196 = vpop.f32.mrb[0].mxu0
      %v3197 = vadd.f32 0.0, %v3196
      %v3198 = vpop.f32.mrb[0].mxu0
      %v3199 = vpop.f32.mrb[0].mxu0
      %v3200 = vpop.f32.mrb[0].mxu0
      %3201 = vdwg.mxu0
      %v3202 = vadd.f32 %v3082, %v3156
      %v3203 = vadd.f32 %v3083, %v3158
      %v3204 = vadd.f32 %v3084, %v3197
      %v3205 = vld [vmem:[%s1043] sm:$0xf]
      %3206 = vrot.lane.b32.xlu0 %v3094, 111
      %v3207 = vpop.permute.xlu0 %3206
      %3208 = vrot.lane.b32.xlu0 %v3095, 111
      %v3209 = vpop.permute.xlu0 %3208
      %3210 = vrot.lane.b32.xlu0 %v3096, 111
      %v3211 = vpop.permute.xlu0 %3210
      %3212 = vrot.lane.b32.xlu0 %v3097, 111
      %v3213 = vpop.permute.xlu0 %3212
      %v3214 = vsel %vm1053, %v3207, %v3209
      %v3215 = vsel %vm1053, %v3209, %v3211
      %v3216 = vsel %vm1053, %v3211, %v3213
      %v3218 = vsel %vm385, %v3205, 0
      %v3221 = vsel %vm389, %v3214, 0
      %v3224 = vsel %vm389, %v3215, 0
      %v3227 = vsel %vm389, %v3216, 0
      %3229 = vmatprep.subr.bf16.mxu0 %v3224
      %3230 = vmatpush1.bf16.msra.mxu0 %v3221
      %3231 = vmatprep.subr.bf16.mxu0 0
      %3232 = vmatpush1.bf16.msra.mxu0 0
      %3233 = vmatprep.subr.bf16.mxu0 0
      %3234 = vmatpush1.bf16.msra.mxu0 0
      %3235 = vmatprep.subr.bf16.mxu0 0
      %3236 = vmatpush1.bf16.msra.mxu0 0
      %3237 = vmatprep.subr.bf16.mxu0 0
      %3238 = vmatpush1.bf16.msra.mxu0 0
      %3239 = vmatprep.subr.bf16.mxu0 0
      %3240 = vmatpush1.bf16.msra.mxu0 0
      %3241 = vmatprep.subr.bf16.mxu0 0
      %3242 = vmatpush1.bf16.msra.mxu0 0
      %3243 = vmatprep.subr.bf16.mxu0 0
      %3244 = vmatpush1.bf16.msra.mxu0 0
      %3245 = vmatprep.subr.bf16.mxu0 0
      %3246 = vmatpush1.bf16.msra.mxu0 0
      %3247 = vmatprep.subr.bf16.mxu0 0
      %3248 = vmatpush1.bf16.msra.mxu0 0
      %3249 = vmatprep.subr.bf16.mxu0 0
      %3250 = vmatpush1.bf16.msra.mxu0 0
      %3251 = vmatprep.subr.bf16.mxu0 0
      %3252 = vmatpush1.bf16.msra.mxu0 0
      %3253 = vmatprep.subr.bf16.mxu0 0
      %3254 = vmatpush1.bf16.msra.mxu0 0
      %3255 = vmatprep.subr.bf16.mxu0 0
      %3256 = vmatpush1.bf16.msra.mxu0 0
      %3257 = vmatprep.subr.bf16.mxu0 0
      %3258 = vmatpush1.bf16.msra.mxu0 0
      %3259 = vmatprep.subr.bf16.mxu0 0
      %3260 = vmatpush1.bf16.msra.mxu0 0
      %3261 = vmatprep.mubr.bf16.mxu0 0
      %3262 = vmatmul.mubr.bf16.gmra.mrb[0].mxu0 %v3218
      %v3263 = vpop.f32.mrb[0].mxu0
      %v3264 = vadd.f32 0.0, %v3263
      %v3265 = vpop.f32.mrb[0].mxu0
      %v3266 = vadd.f32 0.0, %v3265
      %v3267 = vpop.f32.mrb[0].mxu0
      %v3268 = vpop.f32.mrb[0].mxu0
      %3269 = vdwg.mxu0
      %3270 = vmatprep.subr.bf16.mxu0 0
      %3271 = vmatpush1.bf16.msra.mxu0 %v3227
      %3272 = vmatprep.subr.bf16.mxu0 0
      %3273 = vmatpush1.bf16.msra.mxu0 0
      %3274 = vmatprep.subr.bf16.mxu0 0
      %3275 = vmatpush1.bf16.msra.mxu0 0
      %3276 = vmatprep.subr.bf16.mxu0 0
      %3277 = vmatpush1.bf16.msra.mxu0 0
      %3278 = vmatprep.subr.bf16.mxu0 0
      %3279 = vmatpush1.bf16.msra.mxu0 0
      %3280 = vmatprep.subr.bf16.mxu0 0
      %3281 = vmatpush1.bf16.msra.mxu0 0
      %3282 = vmatprep.subr.bf16.mxu0 0
      %3283 = vmatpush1.bf16.msra.mxu0 0
      %3284 = vmatprep.subr.bf16.mxu0 0
      %3285 = vmatpush1.bf16.msra.mxu0 0
      %3286 = vmatprep.subr.bf16.mxu0 0
      %3287 = vmatpush1.bf16.msra.mxu0 0
      %3288 = vmatprep.subr.bf16.mxu0 0
      %3289 = vmatpush1.bf16.msra.mxu0 0
      %3290 = vmatprep.subr.bf16.mxu0 0
      %3291 = vmatpush1.bf16.msra.mxu0 0
      %3292 = vmatprep.subr.bf16.mxu0 0
      %3293 = vmatpush1.bf16.msra.mxu0 0
      %3294 = vmatprep.subr.bf16.mxu0 0
      %3295 = vmatpush1.bf16.msra.mxu0 0
      %3296 = vmatprep.subr.bf16.mxu0 0
      %3297 = vmatpush1.bf16.msra.mxu0 0
      %3298 = vmatprep.subr.bf16.mxu0 0
      %3299 = vmatpush1.bf16.msra.mxu0 0
      %3300 = vmatprep.subr.bf16.mxu0 0
      %3301 = vmatpush1.bf16.msra.mxu0 0
      %3302 = vmatprep.mubr.bf16.mxu0 0
      %3303 = vmatmul.mubr.bf16.gmra.mrb[0].mxu0 %v3218
      %v3304 = vpop.f32.mrb[0].mxu0
      %v3305 = vadd.f32 0.0, %v3304
      %v3306 = vpop.f32.mrb[0].mxu0
      %v3307 = vpop.f32.mrb[0].mxu0
      %v3308 = vpop.f32.mrb[0].mxu0
      %3309 = vdwg.mxu0
      %v3310 = vadd.f32 %v3202, %v3264
      %v3311 = vadd.f32 %v3203, %v3266
      %v3312 = vadd.f32 %v3204, %v3305
      %v3313 = vld [vmem:[%s1153] sm:$0xf]
      %3314 = vrot.lane.b32.xlu0 %v3094, 110
      %v3315 = vpop.permute.xlu0 %3314
      %3316 = vrot.lane.b32.xlu0 %v3095, 110
      %v3317 = vpop.permute.xlu0 %3316
      %3318 = vrot.lane.b32.xlu0 %v3096, 110
      %v3319 = vpop.permute.xlu0 %3318
      %3320 = vrot.lane.b32.xlu0 %v3097, 110
      %v3321 = vpop.permute.xlu0 %3320
      %v3322 = vsel %vm1163, %v3315, %v3317
      %v3323 = vsel %vm1163, %v3317, %v3319
      %v3324 = vsel %vm1163, %v3319, %v3321
      %v3326 = vsel %vm385, %v3313, 0
      %v3329 = vsel %vm389, %v3322, 0
      %v3332 = vsel %vm389, %v3323, 0
      %v3335 = vsel %vm389, %v3324, 0
      %3337 = vmatprep.subr.bf16.mxu0 %v3332
      %3338 = vmatpush1.bf16.msra.mxu0 %v3329
      %3339 = vmatprep.subr.bf16.mxu0 0
      %3340 = vmatpush1.bf16.msra.mxu0 0
      %3341 = vmatprep.subr.bf16.mxu0 0
      %3342 = vmatpush1.bf16.msra.mxu0 0
      %3343 = vmatprep.subr.bf16.mxu0 0
      %3344 = vmatpush1.bf16.msra.mxu0 0
      %3345 = vmatprep.subr.bf16.mxu0 0
      %3346 = vmatpush1.bf16.msra.mxu0 0
      %3347 = vmatprep.subr.bf16.mxu0 0
      %3348 = vmatpush1.bf16.msra.mxu0 0
      %3349 = vmatprep.subr.bf16.mxu0 0
      %3350 = vmatpush1.bf16.msra.mxu0 0
      %3351 = vmatprep.subr.bf16.mxu0 0
      %3352 = vmatpush1.bf16.msra.mxu0 0
      %3353 = vmatprep.subr.bf16.mxu0 0
      %3354 = vmatpush1.bf16.msra.mxu0 0
      %3355 = vmatprep.subr.bf16.mxu0 0
      %3356 = vmatpush1.bf16.msra.mxu0 0
      %3357 = vmatprep.subr.bf16.mxu0 0
      %3358 = vmatpush1.bf16.msra.mxu0 0
      %3359 = vmatprep.subr.bf16.mxu0 0
      %3360 = vmatpush1.bf16.msra.mxu0 0
      %3361 = vmatprep.subr.bf16.mxu0 0
      %3362 = vmatpush1.bf16.msra.mxu0 0
      %3363 = vmatprep.subr.bf16.mxu0 0
      %3364 = vmatpush1.bf16.msra.mxu0 0
      %3365 = vmatprep.subr.bf16.mxu0 0
      %3366 = vmatpush1.bf16.msra.mxu0 0
      %3367 = vmatprep.subr.bf16.mxu0 0
      %3368 = vmatpush1.bf16.msra.mxu0 0
      %3369 = vmatprep.mubr.bf16.mxu0 0
      %3370 = vmatmul.mubr.bf16.gmra.mrb[0].mxu0 %v3326
      %v3371 = vpop.f32.mrb[0].mxu0
      %v3372 = vadd.f32 0.0, %v3371
      %v3373 = vpop.f32.mrb[0].mxu0
      %v3374 = vadd.f32 0.0, %v3373
      %v3375 = vpop.f32.mrb[0].mxu0
      %v3376 = vpop.f32.mrb[0].mxu0
      %3377 = vdwg.mxu0
      %3378 = vmatprep.subr.bf16.mxu0 0
      %3379 = vmatpush1.bf16.msra.mxu0 %v3335
      %3380 = vmatprep.subr.bf16.mxu0 0
      %3381 = vmatpush1.bf16.msra.mxu0 0
      %3382 = vmatprep.subr.bf16.mxu0 0
      %3383 = vmatpush1.bf16.msra.mxu0 0
      %3384 = vmatprep.subr.bf16.mxu0 0
      %3385 = vmatpush1.bf16.msra.mxu0 0
      %3386 = vmatprep.subr.bf16.mxu0 0
      %3387 = vmatpush1.bf16.msra.mxu0 0
      %3388 = vmatprep.subr.bf16.mxu0 0
      %3389 = vmatpush1.bf16.msra.mxu0 0
      %3390 = vmatprep.subr.bf16.mxu0 0
      %3391 = vmatpush1.bf16.msra.mxu0 0
      %3392 = vmatprep.subr.bf16.mxu0 0
      %3393 = vmatpush1.bf16.msra.mxu0 0
      %3394 = vmatprep.subr.bf16.mxu0 0
      %3395 = vmatpush1.bf16.msra.mxu0 0
      %3396 = vmatprep.subr.bf16.mxu0 0
      %3397 = vmatpush1.bf16.msra.mxu0 0
      %3398 = vmatprep.subr.bf16.mxu0 0
      %3399 = vmatpush1.bf16.msra.mxu0 0
      %3400 = vmatprep.subr.bf16.mxu0 0
      %3401 = vmatpush1.bf16.msra.mxu0 0
      %3402 = vmatprep.subr.bf16.mxu0 0
      %3403 = vmatpush1.bf16.msra.mxu0 0
      %3404 = vmatprep.subr.bf16.mxu0 0
      %3405 = vmatpush1.bf16.msra.mxu0 0
      %3406 = vmatprep.subr.bf16.mxu0 0
      %3407 = vmatpush1.bf16.msra.mxu0 0
      %3408 = vmatprep.subr.bf16.mxu0 0
      %3409 = vmatpush1.bf16.msra.mxu0 0
      %3410 = vmatprep.mubr.bf16.mxu0 0
      %3411 = vmatmul.mubr.bf16.gmra.mrb[0].mxu0 %v3326
      %v3412 = vpop.f32.mrb[0].mxu0
      %v3413 = vadd.f32 0.0, %v3412
      %v3414 = vpop.f32.mrb[0].mxu0
      %v3415 = vpop.f32.mrb[0].mxu0
      %v3416 = vpop.f32.mrb[0].mxu0
      %3417 = vdwg.mxu0
      %v3418 = vadd.f32 %v3310, %v3372
      %v3419 = vadd.f32 %v3311, %v3374
      %v3420 = vadd.f32 %v3312, %v3413
      %v3421 = vld [vmem:[%s1263] sm:$0xf]
      %3422 = vrot.lane.b32.xlu0 %v3094, 109
      %v3423 = vpop.permute.xlu0 %3422
      %3424 = vrot.lane.b32.xlu0 %v3095, 109
      %v3425 = vpop.permute.xlu0 %3424
      %3426 = vrot.lane.b32.xlu0 %v3096, 109
      %v3427 = vpop.permute.xlu0 %3426
      %3428 = vrot.lane.b32.xlu0 %v3097, 109
      %v3429 = vpop.permute.xlu0 %3428
      %v3430 = vsel %vm1273, %v3423, %v3425
      %v3431 = vsel %vm1273, %v3425, %v3427
      %v3432 = vsel %vm1273, %v3427, %v3429
      %v3434 = vsel %vm385, %v3421, 0
      %v3437 = vsel %vm389, %v3430, 0
      %v3440 = vsel %vm389, %v3431, 0
      %v3443 = vsel %vm389, %v3432, 0
      %3445 = vmatprep.subr.bf16.mxu0 %v3440
      %3446 = vmatpush1.bf16.msra.mxu0 %v3437
      %3447 = vmatprep.subr.bf16.mxu0 0
      %3448 = vmatpush1.bf16.msra.mxu0 0
      %3449 = vmatprep.subr.bf16.mxu0 0
      %3450 = vmatpush1.bf16.msra.mxu0 0
      %3451 = vmatprep.subr.bf16.mxu0 0
      %3452 = vmatpush1.bf16.msra.mxu0 0
      %3453 = vmatprep.subr.bf16.mxu0 0
      %3454 = vmatpush1.bf16.msra.mxu0 0
      %3455 = vmatprep.subr.bf16.mxu0 0
      %3456 = vmatpush1.bf16.msra.mxu0 0
      %3457 = vmatprep.subr.bf16.mxu0 0
      %3458 = vmatpush1.bf16.msra.mxu0 0
      %3459 = vmatprep.subr.bf16.mxu0 0
      %3460 = vmatpush1.bf16.msra.mxu0 0
      %3461 = vmatprep.subr.bf16.mxu0 0
      %3462 = vmatpush1.bf16.msra.mxu0 0
      %3463 = vmatprep.subr.bf16.mxu0 0
      %3464 = vmatpush1.bf16.msra.mxu0 0
      %3465 = vmatprep.subr.bf16.mxu0 0
      %3466 = vmatpush1.bf16.msra.mxu0 0
      %3467 = vmatprep.subr.bf16.mxu0 0
      %3468 = vmatpush1.bf16.msra.mxu0 0
      %3469 = vmatprep.subr.bf16.mxu0 0
      %3470 = vmatpush1.bf16.msra.mxu0 0
      %3471 = vmatprep.subr.bf16.mxu0 0
      %3472 = vmatpush1.bf16.msra.mxu0 0
      %3473 = vmatprep.subr.bf16.mxu0 0
      %3474 = vmatpush1.bf16.msra.mxu0 0
      %3475 = vmatprep.subr.bf16.mxu0 0
      %3476 = vmatpush1.bf16.msra.mxu0 0
      %3477 = vmatprep.mubr.bf16.mxu0 0
      %3478 = vmatmul.mubr.bf16.gmra.mrb[0].mxu0 %v3434
      %v3479 = vpop.f32.mrb[0].mxu0
      %v3480 = vadd.f32 0.0, %v3479
      %v3481 = vpop.f32.mrb[0].mxu0
      %v3482 = vadd.f32 0.0, %v3481
      %v3483 = vpop.f32.mrb[0].mxu0
      %v3484 = vpop.f32.mrb[0].mxu0
      %3485 = vdwg.mxu0
      %3486 = vmatprep.subr.bf16.mxu0 0
      %3487 = vmatpush1.bf16.msra.mxu0 %v3443
      %3488 = vmatprep.subr.bf16.mxu0 0
      %3489 = vmatpush1.bf16.msra.mxu0 0
      %3490 = vmatprep.subr.bf16.mxu0 0
      %3491 = vmatpush1.bf16.msra.mxu0 0
      %3492 = vmatprep.subr.bf16.mxu0 0
      %3493 = vmatpush1.bf16.msra.mxu0 0
      %3494 = vmatprep.subr.bf16.mxu0 0
      %3495 = vmatpush1.bf16.msra.mxu0 0
      %3496 = vmatprep.subr.bf16.mxu0 0
      %3497 = vmatpush1.bf16.msra.mxu0 0
      %3498 = vmatprep.subr.bf16.mxu0 0
      %3499 = vmatpush1.bf16.msra.mxu0 0
      %3500 = vmatprep.subr.bf16.mxu0 0
      %3501 = vmatpush1.bf16.msra.mxu0 0
      %3502 = vmatprep.subr.bf16.mxu0 0
      %3503 = vmatpush1.bf16.msra.mxu0 0
      %3504 = vmatprep.subr.bf16.mxu0 0
      %3505 = vmatpush1.bf16.msra.mxu0 0
      %3506 = vmatprep.subr.bf16.mxu0 0
      %3507 = vmatpush1.bf16.msra.mxu0 0
      %3508 = vmatprep.subr.bf16.mxu0 0
      %3509 = vmatpush1.bf16.msra.mxu0 0
      %3510 = vmatprep.subr.bf16.mxu0 0
      %3511 = vmatpush1.bf16.msra.mxu0 0
      %3512 = vmatprep.subr.bf16.mxu0 0
      %3513 = vmatpush1.bf16.msra.mxu0 0
      %3514 = vmatprep.subr.bf16.mxu0 0
      %3515 = vmatpush1.bf16.msra.mxu0 0
      %3516 = vmatprep.subr.bf16.mxu0 0
      %3517 = vmatpush1.bf16.msra.mxu0 0
      %3518 = vmatprep.mubr.bf16.mxu0 0
      %3519 = vmatmul.mubr.bf16.gmra.mrb[0].mxu0 %v3434
      %v3520 = vpop.f32.mrb[0].mxu0
      %v3521 = vadd.f32 0.0, %v3520
      %v3522 = vpop.f32.mrb[0].mxu0
      %v3523 = vpop.f32.mrb[0].mxu0
      %v3524 = vpop.f32.mrb[0].mxu0
      %3525 = vdwg.mxu0
      %v3526 = vadd.f32 %v3418, %v3480
      %v3527 = vadd.f32 %v3419, %v3482
      %v3528 = vadd.f32 %v3420, %v3521
      %v3529 = vmax.f32 %v3526, 0.0
      %v3530 = vmax.f32 %v3527, 0.0
      %v3531 = vmax.f32 %v3528, 0.0
      %v3532 = vmul.f32 %v3529, %v315
      %v3533 = vmul.f32 %v3530, %v319
      %v3534 = vmul.f32 %v3531, %v323
      %v3535 = vpack.c.bf16 %v3532, %v3532
      %v3536 = vpack.c.bf16 %v3533, %v3533
      %v3537 = vpack.c.bf16 %v3534, %v3534
      %v3541 = vunpack.c.l.b16 %v3535
      %v3542 = vunpack.c.l.b16 %v3536
      %v3543 = vunpack.c.l.b16 %v3537
      %v3544 = vpack.c.b16 %v3542, %v3541
      %v3545 = vpack.c.b16 %v3543, %v3543
      %3548 = vst [vmem:[#allocation2 + $0x4] sm:$0xff] %v3544
      %3549 = vst [vmem:[#allocation2 + $0xc] sm:$0xf] %v3545
      %v3550 = vld [vmem:[#allocation2] sm:$0xff]
      %v3551 = vld [vmem:[#allocation2 + $0x8] sm:$0xff]
      %v3552 = vld [vmem:[%s4] sm:$0xf]
      %v3555 = vunpack.c.l.b16 %v3550
      %v3556 = vunpack.c.h.b16 %v3550
      %v3557 = vunpack.c.l.b16 %v3551
      %v3558 = vunpack.c.h.b16 %v3551
      %v3559 = vpack.c.b16 %v3555, %v3555
      %v3560 = vpack.c.b16 %v3556, %v3556
      %v3561 = vpack.c.b16 %v3557, %v3557
      %v3562 = vpack.c.b16 %v3558, %v3558
      %3563 = vrot.lane.b32.xlu0 %v3559, 19
      %v3564 = vpop.permute.xlu0 %3563
      %3565 = vrot.lane.b32.xlu0 %v3560, 19
      %v3566 = vpop.permute.xlu0 %3565
      %3567 = vrot.lane.b32.xlu0 %v3561, 19
      %v3568 = vpop.permute.xlu0 %3567
      %3569 = vrot.lane.b32.xlu0 %v3562, 19
      %v3570 = vpop.permute.xlu0 %3569
      %v3571 = vsel %vm381, %v3564, %v3566
      %v3572 = vsel %vm381, %v3566, %v3568
      %v3573 = vsel %vm381, %v3568, %v3570
      %v3575 = vsel %vm385, %v3552, 0
      %v3578 = vsel %vm389, %v3571, 0
      %v3581 = vsel %vm389, %v3572, 0
      %v3584 = vsel %vm389, %v3573, 0
      %3586 = vmatprep.subr.bf16.mxu0 %v3581
      %3587 = vmatpush1.bf16.msra.mxu0 %v3578
      %3588 = vmatprep.subr.bf16.mxu0 0
      %3589 = vmatpush1.bf16.msra.mxu0 0
      %3590 = vmatprep.subr.bf16.mxu0 0
      %3591 = vmatpush1.bf16.msra.mxu0 0
      %3592 = vmatprep.subr.bf16.mxu0 0
      %3593 = vmatpush1.bf16.msra.mxu0 0
      %3594 = vmatprep.subr.bf16.mxu0 0
      %3595 = vmatpush1.bf16.msra.mxu0 0
      %3596 = vmatprep.subr.bf16.mxu0 0
      %3597 = vmatpush1.bf16.msra.mxu0 0
      %3598 = vmatprep.subr.bf16.mxu0 0
      %3599 = vmatpush1.bf16.msra.mxu0 0
      %3600 = vmatprep.subr.bf16.mxu0 0
      %3601 = vmatpush1.bf16.msra.mxu0 0
      %3602 = vmatprep.subr.bf16.mxu0 0
      %3603 = vmatpush1.bf16.msra.mxu0 0
      %3604 = vmatprep.subr.bf16.mxu0 0
      %3605 = vmatpush1.bf16.msra.mxu0 0
      %3606 = vmatprep.subr.bf16.mxu0 0
      %3607 = vmatpush1.bf16.msra.mxu0 0
      %3608 = vmatprep.subr.bf16.mxu0 0
      %3609 = vmatpush1.bf16.msra.mxu0 0
      %3610 = vmatprep.subr.bf16.mxu0 0
      %3611 = vmatpush1.bf16.msra.mxu0 0
      %3612 = vmatprep.subr.bf16.mxu0 0
      %3613 = vmatpush1.bf16.msra.mxu0 0
      %3614 = vmatprep.subr.bf16.mxu0 0
      %3615 = vmatpush1.bf16.msra.mxu0 0
      %3616 = vmatprep.subr.bf16.mxu0 0
      %3617 = vmatpush1.bf16.msra.mxu0 0
      %3618 = vmatprep.mubr.bf16.mxu0 0
      %3619 = vmatmul.mubr.bf16.gmra.mrb[0].mxu0 %v3575
      %v3620 = vpop.f32.mrb[0].mxu0
      %v3621 = vadd.f32 0.0, %v3620
      %v3622 = vpop.f32.mrb[0].mxu0
      %v3623 = vadd.f32 0.0, %v3622
      %v3624 = vpop.f32.mrb[0].mxu0
      %v3625 = vpop.f32.mrb[0].mxu0
      %3626 = vdwg.mxu0
      %3627 = vmatprep.subr.bf16.mxu0 0
      %3628 = vmatpush1.bf16.msra.mxu0 %v3584
      %3629 = vmatprep.subr.bf16.mxu0 0
      %3630 = vmatpush1.bf16.msra.mxu0 0
      %3631 = vmatprep.subr.bf16.mxu0 0
      %3632 = vmatpush1.bf16.msra.mxu0 0
      %3633 = vmatprep.subr.bf16.mxu0 0
      %3634 = vmatpush1.bf16.msra.mxu0 0
      %3635 = vmatprep.subr.bf16.mxu0 0
      %3636 = vmatpush1.bf16.msra.mxu0 0
      %3637 = vmatprep.subr.bf16.mxu0 0
      %3638 = vmatpush1.bf16.msra.mxu0 0
      %3639 = vmatprep.subr.bf16.mxu0 0
      %3640 = vmatpush1.bf16.msra.mxu0 0
      %3641 = vmatprep.subr.bf16.mxu0 0
      %3642 = vmatpush1.bf16.msra.mxu0 0
      %3643 = vmatprep.subr.bf16.mxu0 0
      %3644 = vmatpush1.bf16.msra.mxu0 0
      %3645 = vmatprep.subr.bf16.mxu0 0
      %3646 = vmatpush1.bf16.msra.mxu0 0
      %3647 = vmatprep.subr.bf16.mxu0 0
      %3648 = vmatpush1.bf16.msra.mxu0 0
      %3649 = vmatprep.subr.bf16.mxu0 0
      %3650 = vmatpush1.bf16.msra.mxu0 0
      %3651 = vmatprep.subr.bf16.mxu0 0
      %3652 = vmatpush1.bf16.msra.mxu0 0
      %3653 = vmatprep.subr.bf16.mxu0 0
      %3654 = vmatpush1.bf16.msra.mxu0 0
      %3655 = vmatprep.subr.bf16.mxu0 0
      %3656 = vmatpush1.bf16.msra.mxu0 0
      %3657 = vmatprep.subr.bf16.mxu0 0
      %3658 = vmatpush1.bf16.msra.mxu0 0
      %3659 = vmatprep.mubr.bf16.mxu0 0
      %3660 = vmatmul.mubr.bf16.gmra.mrb[0].mxu0 %v3575
      %v3661 = vpop.f32.mrb[0].mxu0
      %v3662 = vadd.f32 0.0, %v3661
      %v3663 = vpop.f32.mrb[0].mxu0
      %v3664 = vpop.f32.mrb[0].mxu0
      %v3665 = vpop.f32.mrb[0].mxu0
      %3666 = vdwg.mxu0
      %v3667 = vadd.f32 %v337, %v3621
      %v3668 = vadd.f32 %v337, %v3623
      %v3669 = vadd.f32 %v337, %v3662
      %v3670 = vld [vmem:[%s1514] sm:$0xf]
      %3671 = vrot.lane.b32.xlu0 %v3559, 18
      %v3672 = vpop.permute.xlu0 %3671
      %3673 = vrot.lane.b32.xlu0 %v3560, 18
      %v3674 = vpop.permute.xlu0 %3673
      %3675 = vrot.lane.b32.xlu0 %v3561, 18
      %v3676 = vpop.permute.xlu0 %3675
      %3677 = vrot.lane.b32.xlu0 %v3562, 18
      %v3678 = vpop.permute.xlu0 %3677
      %v3679 = vsel %vm493, %v3672, %v3674
      %v3680 = vsel %vm493, %v3674, %v3676
      %v3681 = vsel %vm493, %v3676, %v3678
      %v3683 = vsel %vm385, %v3670, 0
      %v3686 = vsel %vm389, %v3679, 0
      %v3689 = vsel %vm389, %v3680, 0
      %v3692 = vsel %vm389, %v3681, 0
      %3694 = vmatprep.subr.bf16.mxu0 %v3689
      %3695 = vmatpush1.bf16.msra.mxu0 %v3686
      %3696 = vmatprep.subr.bf16.mxu0 0
      %3697 = vmatpush1.bf16.msra.mxu0 0
      %3698 = vmatprep.subr.bf16.mxu0 0
      %3699 = vmatpush1.bf16.msra.mxu0 0
      %3700 = vmatprep.subr.bf16.mxu0 0
      %3701 = vmatpush1.bf16.msra.mxu0 0
      %3702 = vmatprep.subr.bf16.mxu0 0
      %3703 = vmatpush1.bf16.msra.mxu0 0
      %3704 = vmatprep.subr.bf16.mxu0 0
      %3705 = vmatpush1.bf16.msra.mxu0 0
      %3706 = vmatprep.subr.bf16.mxu0 0
      %3707 = vmatpush1.bf16.msra.mxu0 0
      %3708 = vmatprep.subr.bf16.mxu0 0
      %3709 = vmatpush1.bf16.msra.mxu0 0
      %3710 = vmatprep.subr.bf16.mxu0 0
      %3711 = vmatpush1.bf16.msra.mxu0 0
      %3712 = vmatprep.subr.bf16.mxu0 0
      %3713 = vmatpush1.bf16.msra.mxu0 0
      %3714 = vmatprep.subr.bf16.mxu0 0
      %3715 = vmatpush1.bf16.msra.mxu0 0
      %3716 = vmatprep.subr.bf16.mxu0 0
      %3717 = vmatpush1.bf16.msra.mxu0 0
      %3718 = vmatprep.subr.bf16.mxu0 0
      %3719 = vmatpush1.bf16.msra.mxu0 0
      %3720 = vmatprep.subr.bf16.mxu0 0
      %3721 = vmatpush1.bf16.msra.mxu0 0
      %3722 = vmatprep.subr.bf16.mxu0 0
      %3723 = vmatpush1.bf16.msra.mxu0 0
      %3724 = vmatprep.subr.bf16.mxu0 0
      %3725 = vmatpush1.bf16.msra.mxu0 0
      %3726 = vmatprep.mubr.bf16.mxu0 0
      %3727 = vmatmul.mubr.bf16.gmra.mrb[0].mxu0 %v3683
      %v3728 = vpop.f32.mrb[0].mxu0
      %v3729 = vadd.f32 0.0, %v3728
      %v3730 = vpop.f32.mrb[0].mxu0
      %v3731 = vadd.f32 0.0, %v3730
      %v3732 = vpop.f32.mrb[0].mxu0
      %v3733 = vpop.f32.mrb[0].mxu0
      %3734 = vdwg.mxu0
      %3735 = vmatprep.subr.bf16.mxu0 0
      %3736 = vmatpush1.bf16.msra.mxu0 %v3692
      %3737 = vmatprep.subr.bf16.mxu0 0
      %3738 = vmatpush1.bf16.msra.mxu0 0
      %3739 = vmatprep.subr.bf16.mxu0 0
      %3740 = vmatpush1.bf16.msra.mxu0 0
      %3741 = vmatprep.subr.bf16.mxu0 0
      %3742 = vmatpush1.bf16.msra.mxu0 0
      %3743 = vmatprep.subr.bf16.mxu0 0
      %3744 = vmatpush1.bf16.msra.mxu0 0
      %3745 = vmatprep.subr.bf16.mxu0 0
      %3746 = vmatpush1.bf16.msra.mxu0 0
      %3747 = vmatprep.subr.bf16.mxu0 0
      %3748 = vmatpush1.bf16.msra.mxu0 0
      %3749 = vmatprep.subr.bf16.mxu0 0
      %3750 = vmatpush1.bf16.msra.mxu0 0
      %3751 = vmatprep.subr.bf16.mxu0 0
      %3752 = vmatpush1.bf16.msra.mxu0 0
      %3753 = vmatprep.subr.bf16.mxu0 0
      %3754 = vmatpush1.bf16.msra.mxu0 0
      %3755 = vmatprep.subr.bf16.mxu0 0
      %3756 = vmatpush1.bf16.msra.mxu0 0
      %3757 = vmatprep.subr.bf16.mxu0 0
      %3758 = vmatpush1.bf16.msra.mxu0 0
      %3759 = vmatprep.subr.bf16.mxu0 0
      %3760 = vmatpush1.bf16.msra.mxu0 0
      %3761 = vmatprep.subr.bf16.mxu0 0
      %3762 = vmatpush1.bf16.msra.mxu0 0
      %3763 = vmatprep.subr.bf16.mxu0 0
      %3764 = vmatpush1.bf16.msra.mxu0 0
      %3765 = vmatprep.subr.bf16.mxu0 0
      %3766 = vmatpush1.bf16.msra.mxu0 0
      %3767 = vmatprep.mubr.bf16.mxu0 0
      %3768 = vmatmul.mubr.bf16.gmra.mrb[0].mxu0 %v3683
      %v3769 = vpop.f32.mrb[0].mxu0
      %v3770 = vadd.f32 0.0, %v3769
      %v3771 = vpop.f32.mrb[0].mxu0
      %v3772 = vpop.f32.mrb[0].mxu0
      %v3773 = vpop.f32.mrb[0].mxu0
      %3774 = vdwg.mxu0
      %v3775 = vadd.f32 %v3667, %v3729
      %v3776 = vadd.f32 %v3668, %v3731
      %v3777 = vadd.f32 %v3669, %v3770
      %v3778 = vld [vmem:[%s1623] sm:$0xf]
      %3779 = vrot.lane.b32.xlu0 %v3559, 17
      %v3780 = vpop.permute.xlu0 %3779
      %3781 = vrot.lane.b32.xlu0 %v3560, 17
      %v3782 = vpop.permute.xlu0 %3781
      %3783 = vrot.lane.b32.xlu0 %v3561, 17
      %v3784 = vpop.permute.xlu0 %3783
      %3785 = vrot.lane.b32.xlu0 %v3562, 17
      %v3786 = vpop.permute.xlu0 %3785
      %v3787 = vsel %vm603, %v3780, %v3782
      %v3788 = vsel %vm603, %v3782, %v3784
      %v3789 = vsel %vm603, %v3784, %v3786
      %v3791 = vsel %vm385, %v3778, 0
      %v3794 = vsel %vm389, %v3787, 0
      %v3797 = vsel %vm389, %v3788, 0
      %v3800 = vsel %vm389, %v3789, 0
      %3802 = vmatprep.subr.bf16.mxu0 %v3797
      %3803 = vmatpush1.bf16.msra.mxu0 %v3794
      %3804 = vmatprep.subr.bf16.mxu0 0
      %3805 = vmatpush1.bf16.msra.mxu0 0
      %3806 = vmatprep.subr.bf16.mxu0 0
      %3807 = vmatpush1.bf16.msra.mxu0 0
      %3808 = vmatprep.subr.bf16.mxu0 0
      %3809 = vmatpush1.bf16.msra.mxu0 0
      %3810 = vmatprep.subr.bf16.mxu0 0
      %3811 = vmatpush1.bf16.msra.mxu0 0
      %3812 = vmatprep.subr.bf16.mxu0 0
      %3813 = vmatpush1.bf16.msra.mxu0 0
      %3814 = vmatprep.subr.bf16.mxu0 0
      %3815 = vmatpush1.bf16.msra.mxu0 0
      %3816 = vmatprep.subr.bf16.mxu0 0
      %3817 = vmatpush1.bf16.msra.mxu0 0
      %3818 = vmatprep.subr.bf16.mxu0 0
      %3819 = vmatpush1.bf16.msra.mxu0 0
      %3820 = vmatprep.subr.bf16.mxu0 0
      %3821 = vmatpush1.bf16.msra.mxu0 0
      %3822 = vmatprep.subr.bf16.mxu0 0
      %3823 = vmatpush1.bf16.msra.mxu0 0
      %3824 = vmatprep.subr.bf16.mxu0 0
      %3825 = vmatpush1.bf16.msra.mxu0 0
      %3826 = vmatprep.subr.bf16.mxu0 0
      %3827 = vmatpush1.bf16.msra.mxu0 0
      %3828 = vmatprep.subr.bf16.mxu0 0
      %3829 = vmatpush1.bf16.msra.mxu0 0
      %3830 = vmatprep.subr.bf16.mxu0 0
      %3831 = vmatpush1.bf16.msra.mxu0 0
      %3832 = vmatprep.subr.bf16.mxu0 0
      %3833 = vmatpush1.bf16.msra.mxu0 0
      %3834 = vmatprep.mubr.bf16.mxu0 0
      %3835 = vmatmul.mubr.bf16.gmra.mrb[0].mxu0 %v3791
      %v3836 = vpop.f32.mrb[0].mxu0
      %v3837 = vadd.f32 0.0, %v3836
      %v3838 = vpop.f32.mrb[0].mxu0
      %v3839 = vadd.f32 0.0, %v3838
      %v3840 = vpop.f32.mrb[0].mxu0
      %v3841 = vpop.f32.mrb[0].mxu0
      %3842 = vdwg.mxu0
      %3843 = vmatprep.subr.bf16.mxu0 0
      %3844 = vmatpush1.bf16.msra.mxu0 %v3800
      %3845 = vmatprep.subr.bf16.mxu0 0
      %3846 = vmatpush1.bf16.msra.mxu0 0
      %3847 = vmatprep.subr.bf16.mxu0 0
      %3848 = vmatpush1.bf16.msra.mxu0 0
      %3849 = vmatprep.subr.bf16.mxu0 0
      %3850 = vmatpush1.bf16.msra.mxu0 0
      %3851 = vmatprep.subr.bf16.mxu0 0
      %3852 = vmatpush1.bf16.msra.mxu0 0
      %3853 = vmatprep.subr.bf16.mxu0 0
      %3854 = vmatpush1.bf16.msra.mxu0 0
      %3855 = vmatprep.subr.bf16.mxu0 0
      %3856 = vmatpush1.bf16.msra.mxu0 0
      %3857 = vmatprep.subr.bf16.mxu0 0
      %3858 = vmatpush1.bf16.msra.mxu0 0
      %3859 = vmatprep.subr.bf16.mxu0 0
      %3860 = vmatpush1.bf16.msra.mxu0 0
      %3861 = vmatprep.subr.bf16.mxu0 0
      %3862 = vmatpush1.bf16.msra.mxu0 0
      %3863 = vmatprep.subr.bf16.mxu0 0
      %3864 = vmatpush1.bf16.msra.mxu0 0
      %3865 = vmatprep.subr.bf16.mxu0 0
      %3866 = vmatpush1.bf16.msra.mxu0 0
      %3867 = vmatprep.subr.bf16.mxu0 0
      %3868 = vmatpush1.bf16.msra.mxu0 0
      %3869 = vmatprep.subr.bf16.mxu0 0
      %3870 = vmatpush1.bf16.msra.mxu0 0
      %3871 = vmatprep.subr.bf16.mxu0 0
      %3872 = vmatpush1.bf16.msra.mxu0 0
      %3873 = vmatprep.subr.bf16.mxu0 0
      %3874 = vmatpush1.bf16.msra.mxu0 0
      %3875 = vmatprep.mubr.bf16.mxu0 0
      %3876 = vmatmul.mubr.bf16.gmra.mrb[0].mxu0 %v3791
      %v3877 = vpop.f32.mrb[0].mxu0
      %v3878 = vadd.f32 0.0, %v3877
      %v3879 = vpop.f32.mrb[0].mxu0
      %v3880 = vpop.f32.mrb[0].mxu0
      %v3881 = vpop.f32.mrb[0].mxu0
      %3882 = vdwg.mxu0
      %v3883 = vadd.f32 %v3775, %v3837
      %v3884 = vadd.f32 %v3776, %v3839
      %v3885 = vadd.f32 %v3777, %v3878
      %v3886 = vld [vmem:[%s1732] sm:$0xf]
      %3887 = vrot.lane.b32.xlu0 %v3559, 1
      %v3888 = vpop.permute.xlu0 %3887
      %3889 = vrot.lane.b32.xlu0 %v3560, 1
      %v3890 = vpop.permute.xlu0 %3889
      %3891 = vrot.lane.b32.xlu0 %v3561, 1
      %v3892 = vpop.permute.xlu0 %3891
      %3893 = vrot.lane.b32.xlu0 %v3562, 1
      %v3894 = vpop.permute.xlu0 %3893
      %v3895 = vsel %vm713, %v3888, %v3890
      %v3896 = vsel %vm713, %v3890, %v3892
      %v3897 = vsel %vm713, %v3892, %v3894
      %v3899 = vsel %vm385, %v3886, 0
      %v3902 = vsel %vm389, %v3895, 0
      %v3905 = vsel %vm389, %v3896, 0
      %v3908 = vsel %vm389, %v3897, 0
      %3910 = vmatprep.subr.bf16.mxu0 %v3905
      %3911 = vmatpush1.bf16.msra.mxu0 %v3902
      %3912 = vmatprep.subr.bf16.mxu0 0
      %3913 = vmatpush1.bf16.msra.mxu0 0
      %3914 = vmatprep.subr.bf16.mxu0 0
      %3915 = vmatpush1.bf16.msra.mxu0 0
      %3916 = vmatprep.subr.bf16.mxu0 0
      %3917 = vmatpush1.bf16.msra.mxu0 0
      %3918 = vmatprep.subr.bf16.mxu0 0
      %3919 = vmatpush1.bf16.msra.mxu0 0
      %3920 = vmatprep.subr.bf16.mxu0 0
      %3921 = vmatpush1.bf16.msra.mxu0 0
      %3922 = vmatprep.subr.bf16.mxu0 0
      %3923 = vmatpush1.bf16.msra.mxu0 0
      %3924 = vmatprep.subr.bf16.mxu0 0
      %3925 = vmatpush1.bf16.msra.mxu0 0
      %3926 = vmatprep.subr.bf16.mxu0 0
      %3927 = vmatpush1.bf16.msra.mxu0 0
      %3928 = vmatprep.subr.bf16.mxu0 0
      %3929 = vmatpush1.bf16.msra.mxu0 0
      %3930 = vmatprep.subr.bf16.mxu0 0
      %3931 = vmatpush1.bf16.msra.mxu0 0
      %3932 = vmatprep.subr.bf16.mxu0 0
      %3933 = vmatpush1.bf16.msra.mxu0 0
      %3934 = vmatprep.subr.bf16.mxu0 0
      %3935 = vmatpush1.bf16.msra.mxu0 0
      %3936 = vmatprep.subr.bf16.mxu0 0
      %3937 = vmatpush1.bf16.msra.mxu0 0
      %3938 = vmatprep.subr.bf16.mxu0 0
      %3939 = vmatpush1.bf16.msra.mxu0 0
      %3940 = vmatprep.subr.bf16.mxu0 0
      %3941 = vmatpush1.bf16.msra.mxu0 0
      %3942 = vmatprep.mubr.bf16.mxu0 0
      %3943 = vmatmul.mubr.bf16.gmra.mrb[0].mxu0 %v3899
      %v3944 = vpop.f32.mrb[0].mxu0
      %v3945 = vadd.f32 0.0, %v3944
      %v3946 = vpop.f32.mrb[0].mxu0
      %v3947 = vadd.f32 0.0, %v3946
      %v3948 = vpop.f32.mrb[0].mxu0
      %v3949 = vpop.f32.mrb[0].mxu0
      %3950 = vdwg.mxu0
      %3951 = vmatprep.subr.bf16.mxu0 0
      %3952 = vmatpush1.bf16.msra.mxu0 %v3908
      %3953 = vmatprep.subr.bf16.mxu0 0
      %3954 = vmatpush1.bf16.msra.mxu0 0
      %3955 = vmatprep.subr.bf16.mxu0 0
      %3956 = vmatpush1.bf16.msra.mxu0 0
      %3957 = vmatprep.subr.bf16.mxu0 0
      %3958 = vmatpush1.bf16.msra.mxu0 0
      %3959 = vmatprep.subr.bf16.mxu0 0
      %3960 = vmatpush1.bf16.msra.mxu0 0
      %3961 = vmatprep.subr.bf16.mxu0 0
      %3962 = vmatpush1.bf16.msra.mxu0 0
      %3963 = vmatprep.subr.bf16.mxu0 0
      %3964 = vmatpush1.bf16.msra.mxu0 0
      %3965 = vmatprep.subr.bf16.mxu0 0
      %3966 = vmatpush1.bf16.msra.mxu0 0
      %3967 = vmatprep.subr.bf16.mxu0 0
      %3968 = vmatpush1.bf16.msra.mxu0 0
      %3969 = vmatprep.subr.bf16.mxu0 0
      %3970 = vmatpush1.bf16.msra.mxu0 0
      %3971 = vmatprep.subr.bf16.mxu0 0
      %3972 = vmatpush1.bf16.msra.mxu0 0
      %3973 = vmatprep.subr.bf16.mxu0 0
      %3974 = vmatpush1.bf16.msra.mxu0 0
      %3975 = vmatprep.subr.bf16.mxu0 0
      %3976 = vmatpush1.bf16.msra.mxu0 0
      %3977 = vmatprep.subr.bf16.mxu0 0
      %3978 = vmatpush1.bf16.msra.mxu0 0
      %3979 = vmatprep.subr.bf16.mxu0 0
      %3980 = vmatpush1.bf16.msra.mxu0 0
      %3981 = vmatprep.subr.bf16.mxu0 0
      %3982 = vmatpush1.bf16.msra.mxu0 0
      %3983 = vmatprep.mubr.bf16.mxu0 0
      %3984 = vmatmul.mubr.bf16.gmra.mrb[0].mxu0 %v3899
      %v3985 = vpop.f32.mrb[0].mxu0
      %v3986 = vadd.f32 0.0, %v3985
      %v3987 = vpop.f32.mrb[0].mxu0
      %v3988 = vpop.f32.mrb[0].mxu0
      %v3989 = vpop.f32.mrb[0].mxu0
      %3990 = vdwg.mxu0
      %v3991 = vadd.f32 %v3883, %v3945
      %v3992 = vadd.f32 %v3884, %v3947
      %v3993 = vadd.f32 %v3885, %v3986
      %v3994 = vld [vmem:[#allocation2 + $0x4] sm:$0xff]
      %v3995 = vld [vmem:[#allocation2 + $0xc] sm:$0xf]
      %v3996 = vld [vmem:[%s1843] sm:$0xf]
      %v3999 = vunpack.c.l.b16 %v3994
      %v4000 = vunpack.c.h.b16 %v3994
      %v4001 = vunpack.c.l.b16 %v3995
      %v4002 = vpack.c.b16 %v3999, %v3999
      %v4003 = vpack.c.b16 %v4000, %v4000
      %v4004 = vpack.c.b16 %v4001, %v4001
      %v4006 = vsel %vm385, %v3996, 0
      %v4009 = vsel %vm389, %v4002, 0
      %v4012 = vsel %vm389, %v4003, 0
      %v4015 = vsel %vm389, %v4004, 0
      %4017 = vmatprep.subr.bf16.mxu0 %v4012
      %4018 = vmatpush1.bf16.msra.mxu0 %v4009
      %4019 = vmatprep.subr.bf16.mxu0 0
      %4020 = vmatpush1.bf16.msra.mxu0 0
      %4021 = vmatprep.subr.bf16.mxu0 0
      %4022 = vmatpush1.bf16.msra.mxu0 0
      %4023 = vmatprep.subr.bf16.mxu0 0
      %4024 = vmatpush1.bf16.msra.mxu0 0
      %4025 = vmatprep.subr.bf16.mxu0 0
      %4026 = vmatpush1.bf16.msra.mxu0 0
      %4027 = vmatprep.subr.bf16.mxu0 0
      %4028 = vmatpush1.bf16.msra.mxu0 0
      %4029 = vmatprep.subr.bf16.mxu0 0
      %4030 = vmatpush1.bf16.msra.mxu0 0
      %4031 = vmatprep.subr.bf16.mxu0 0
      %4032 = vmatpush1.bf16.msra.mxu0 0
      %4033 = vmatprep.subr.bf16.mxu0 0
      %4034 = vmatpush1.bf16.msra.mxu0 0
      %4035 = vmatprep.subr.bf16.mxu0 0
      %4036 = vmatpush1.bf16.msra.mxu0 0
      %4037 = vmatprep.subr.bf16.mxu0 0
      %4038 = vmatpush1.bf16.msra.mxu0 0
      %4039 = vmatprep.subr.bf16.mxu0 0
      %4040 = vmatpush1.bf16.msra.mxu0 0
      %4041 = vmatprep.subr.bf16.mxu0 0
      %4042 = vmatpush1.bf16.msra.mxu0 0
      %4043 = vmatprep.subr.bf16.mxu0 0
      %4044 = vmatpush1.bf16.msra.mxu0 0
      %4045 = vmatprep.subr.bf16.mxu0 0
      %4046 = vmatpush1.bf16.msra.mxu0 0
      %4047 = vmatprep.subr.bf16.mxu0 0
      %4048 = vmatpush1.bf16.msra.mxu0 0
      %4049 = vmatprep.mubr.bf16.mxu0 0
      %4050 = vmatmul.mubr.bf16.gmra.mrb[0].mxu0 %v4006
      %v4051 = vpop.f32.mrb[0].mxu0
      %v4052 = vadd.f32 0.0, %v4051
      %v4053 = vpop.f32.mrb[0].mxu0
      %v4054 = vadd.f32 0.0, %v4053
      %v4055 = vpop.f32.mrb[0].mxu0
      %v4056 = vpop.f32.mrb[0].mxu0
      %4057 = vdwg.mxu0
      %4058 = vmatprep.subr.bf16.mxu0 0
      %4059 = vmatpush1.bf16.msra.mxu0 %v4015
      %4060 = vmatprep.subr.bf16.mxu0 0
      %4061 = vmatpush1.bf16.msra.mxu0 0
      %4062 = vmatprep.subr.bf16.mxu0 0
      %4063 = vmatpush1.bf16.msra.mxu0 0
      %4064 = vmatprep.subr.bf16.mxu0 0
      %4065 = vmatpush1.bf16.msra.mxu0 0
      %4066 = vmatprep.subr.bf16.mxu0 0
      %4067 = vmatpush1.bf16.msra.mxu0 0
      %4068 = vmatprep.subr.bf16.mxu0 0
      %4069 = vmatpush1.bf16.msra.mxu0 0
      %4070 = vmatprep.subr.bf16.mxu0 0
      %4071 = vmatpush1.bf16.msra.mxu0 0
      %4072 = vmatprep.subr.bf16.mxu0 0
      %4073 = vmatpush1.bf16.msra.mxu0 0
      %4074 = vmatprep.subr.bf16.mxu0 0
      %4075 = vmatpush1.bf16.msra.mxu0 0
      %4076 = vmatprep.subr.bf16.mxu0 0
      %4077 = vmatpush1.bf16.msra.mxu0 0
      %4078 = vmatprep.subr.bf16.mxu0 0
      %4079 = vmatpush1.bf16.msra.mxu0 0
      %4080 = vmatprep.subr.bf16.mxu0 0
      %4081 = vmatpush1.bf16.msra.mxu0 0
      %4082 = vmatprep.subr.bf16.mxu0 0
      %4083 = vmatpush1.bf16.msra.mxu0 0
      %4084 = vmatprep.subr.bf16.mxu0 0
      %4085 = vmatpush1.bf16.msra.mxu0 0
      %4086 = vmatprep.subr.bf16.mxu0 0
      %4087 = vmatpush1.bf16.msra.mxu0 0
      %4088 = vmatprep.subr.bf16.mxu0 0
      %4089 = vmatpush1.bf16.msra.mxu0 0
      %4090 = vmatprep.mubr.bf16.mxu0 0
      %4091 = vmatmul.mubr.bf16.gmra.mrb[0].mxu0 %v4006
      %v4092 = vpop.f32.mrb[0].mxu0
      %v4093 = vadd.f32 0.0, %v4092
      %v4094 = vpop.f32.mrb[0].mxu0
      %v4095 = vpop.f32.mrb[0].mxu0
      %v4096 = vpop.f32.mrb[0].mxu0
      %4097 = vdwg.mxu0
      %v4098 = vadd.f32 %v3991, %v4052
      %v4099 = vadd.f32 %v3992, %v4054
      %v4100 = vadd.f32 %v3993, %v4093
      %v4101 = vld [vmem:[#allocation2 + $0x4] sm:$0xff]
      %v4102 = vld [vmem:[#allocation2 + $0xc] sm:$0xff]
      %v4103 = vld [vmem:[%s1951] sm:$0xf]
      %v4106 = vunpack.c.l.b16 %v4101
      %v4107 = vunpack.c.h.b16 %v4101
      %v4108 = vunpack.c.l.b16 %v4102
      %v4109 = vunpack.c.h.b16 %v4102
      %v4110 = vpack.c.b16 %v4106, %v4106
      %v4111 = vpack.c.b16 %v4107, %v4107
      %v4112 = vpack.c.b16 %v4108, %v4108
      %v4113 = vpack.c.b16 %v4109, %v4109
      %4114 = vrot.lane.b32.xlu0 %v4110, 127
      %v4115 = vpop.permute.xlu0 %4114
      %4116 = vrot.lane.b32.xlu0 %v4111, 127
      %v4117 = vpop.permute.xlu0 %4116
      %4118 = vrot.lane.b32.xlu0 %v4112, 127
      %v4119 = vpop.permute.xlu0 %4118
      %4120 = vrot.lane.b32.xlu0 %v4113, 127
      %v4121 = vpop.permute.xlu0 %4120
      %v4122 = vsel %vm943, %v4115, %v4117
      %v4123 = vsel %vm943, %v4117, %v4119
      %v4124 = vsel %vm943, %v4119, %v4121
      %v4126 = vsel %vm385, %v4103, 0
      %v4129 = vsel %vm389, %v4122, 0
      %v4132 = vsel %vm389, %v4123, 0
      %v4135 = vsel %vm389, %v4124, 0
      %4137 = vmatprep.subr.bf16.mxu0 %v4132
      %4138 = vmatpush1.bf16.msra.mxu0 %v4129
      %4139 = vmatprep.subr.bf16.mxu0 0
      %4140 = vmatpush1.bf16.msra.mxu0 0
      %4141 = vmatprep.subr.bf16.mxu0 0
      %4142 = vmatpush1.bf16.msra.mxu0 0
      %4143 = vmatprep.subr.bf16.mxu0 0
      %4144 = vmatpush1.bf16.msra.mxu0 0
      %4145 = vmatprep.subr.bf16.mxu0 0
      %4146 = vmatpush1.bf16.msra.mxu0 0
      %4147 = vmatprep.subr.bf16.mxu0 0
      %4148 = vmatpush1.bf16.msra.mxu0 0
      %4149 = vmatprep.subr.bf16.mxu0 0
      %4150 = vmatpush1.bf16.msra.mxu0 0
      %4151 = vmatprep.subr.bf16.mxu0 0
      %4152 = vmatpush1.bf16.msra.mxu0 0
      %4153 = vmatprep.subr.bf16.mxu0 0
      %4154 = vmatpush1.bf16.msra.mxu0 0
      %4155 = vmatprep.subr.bf16.mxu0 0
      %4156 = vmatpush1.bf16.msra.mxu0 0
      %4157 = vmatprep.subr.bf16.mxu0 0
      %4158 = vmatpush1.bf16.msra.mxu0 0
      %4159 = vmatprep.subr.bf16.mxu0 0
      %4160 = vmatpush1.bf16.msra.mxu0 0
      %4161 = vmatprep.subr.bf16.mxu0 0
      %4162 = vmatpush1.bf16.msra.mxu0 0
      %4163 = vmatprep.subr.bf16.mxu0 0
      %4164 = vmatpush1.bf16.msra.mxu0 0
      %4165 = vmatprep.subr.bf16.mxu0 0
      %4166 = vmatpush1.bf16.msra.mxu0 0
      %4167 = vmatprep.subr.bf16.mxu0 0
      %4168 = vmatpush1.bf16.msra.mxu0 0
      %4169 = vmatprep.mubr.bf16.mxu0 0
      %4170 = vmatmul.mubr.bf16.gmra.mrb[0].mxu0 %v4126
      %v4171 = vpop.f32.mrb[0].mxu0
      %v4172 = vadd.f32 0.0, %v4171
      %v4173 = vpop.f32.mrb[0].mxu0
      %v4174 = vadd.f32 0.0, %v4173
      %v4175 = vpop.f32.mrb[0].mxu0
      %v4176 = vpop.f32.mrb[0].mxu0
      %4177 = vdwg.mxu0
      %4178 = vmatprep.subr.bf16.mxu0 0
      %4179 = vmatpush1.bf16.msra.mxu0 %v4135
      %4180 = vmatprep.subr.bf16.mxu0 0
      %4181 = vmatpush1.bf16.msra.mxu0 0
      %4182 = vmatprep.subr.bf16.mxu0 0
      %4183 = vmatpush1.bf16.msra.mxu0 0
      %4184 = vmatprep.subr.bf16.mxu0 0
      %4185 = vmatpush1.bf16.msra.mxu0 0
      %4186 = vmatprep.subr.bf16.mxu0 0
      %4187 = vmatpush1.bf16.msra.mxu0 0
      %4188 = vmatprep.subr.bf16.mxu0 0
      %4189 = vmatpush1.bf16.msra.mxu0 0
      %4190 = vmatprep.subr.bf16.mxu0 0
      %4191 = vmatpush1.bf16.msra.mxu0 0
      %4192 = vmatprep.subr.bf16.mxu0 0
      %4193 = vmatpush1.bf16.msra.mxu0 0
      %4194 = vmatprep.subr.bf16.mxu0 0
      %4195 = vmatpush1.bf16.msra.mxu0 0
      %4196 = vmatprep.subr.bf16.mxu0 0
      %4197 = vmatpush1.bf16.msra.mxu0 0
      %4198 = vmatprep.subr.bf16.mxu0 0
      %4199 = vmatpush1.bf16.msra.mxu0 0
      %4200 = vmatprep.subr.bf16.mxu0 0
      %4201 = vmatpush1.bf16.msra.mxu0 0
      %4202 = vmatprep.subr.bf16.mxu0 0
      %4203 = vmatpush1.bf16.msra.mxu0 0
      %4204 = vmatprep.subr.bf16.mxu0 0
      %4205 = vmatpush1.bf16.msra.mxu0 0
      %4206 = vmatprep.subr.bf16.mxu0 0
      %4207 = vmatpush1.bf16.msra.mxu0 0
      %4208 = vmatprep.subr.bf16.mxu0 0
      %4209 = vmatpush1.bf16.msra.mxu0 0
      %4210 = vmatprep.mubr.bf16.mxu0 0
      %4211 = vmatmul.mubr.bf16.gmra.mrb[0].mxu0 %v4126
      %v4212 = vpop.f32.mrb[0].mxu0
      %v4213 = vadd.f32 0.0, %v4212
      %v4214 = vpop.f32.mrb[0].mxu0
      %v4215 = vpop.f32.mrb[0].mxu0
      %v4216 = vpop.f32.mrb[0].mxu0
      %4217 = vdwg.mxu0
      %v4218 = vadd.f32 %v4098, %v4172
      %v4219 = vadd.f32 %v4099, %v4174
      %v4220 = vadd.f32 %v4100, %v4213
      %v4221 = vld [vmem:[%s2070] sm:$0xf]
      %4222 = vrot.lane.b32.xlu0 %v4110, 111
      %v4223 = vpop.permute.xlu0 %4222
      %4224 = vrot.lane.b32.xlu0 %v4111, 111
      %v4225 = vpop.permute.xlu0 %4224
      %4226 = vrot.lane.b32.xlu0 %v4112, 111
      %v4227 = vpop.permute.xlu0 %4226
      %4228 = vrot.lane.b32.xlu0 %v4113, 111
      %v4229 = vpop.permute.xlu0 %4228
      %v4230 = vsel %vm1053, %v4223, %v4225
      %v4231 = vsel %vm1053, %v4225, %v4227
      %v4232 = vsel %vm1053, %v4227, %v4229
      %v4234 = vsel %vm385, %v4221, 0
      %v4237 = vsel %vm389, %v4230, 0
      %v4240 = vsel %vm389, %v4231, 0
      %v4243 = vsel %vm389, %v4232, 0
      %4245 = vmatprep.subr.bf16.mxu0 %v4240
      %4246 = vmatpush1.bf16.msra.mxu0 %v4237
      %4247 = vmatprep.subr.bf16.mxu0 0
      %4248 = vmatpush1.bf16.msra.mxu0 0
      %4249 = vmatprep.subr.bf16.mxu0 0
      %4250 = vmatpush1.bf16.msra.mxu0 0
      %4251 = vmatprep.subr.bf16.mxu0 0
      %4252 = vmatpush1.bf16.msra.mxu0 0
      %4253 = vmatprep.subr.bf16.mxu0 0
      %4254 = vmatpush1.bf16.msra.mxu0 0
      %4255 = vmatprep.subr.bf16.mxu0 0
      %4256 = vmatpush1.bf16.msra.mxu0 0
      %4257 = vmatprep.subr.bf16.mxu0 0
      %4258 = vmatpush1.bf16.msra.mxu0 0
      %4259 = vmatprep.subr.bf16.mxu0 0
      %4260 = vmatpush1.bf16.msra.mxu0 0
      %4261 = vmatprep.subr.bf16.mxu0 0
      %4262 = vmatpush1.bf16.msra.mxu0 0
      %4263 = vmatprep.subr.bf16.mxu0 0
      %4264 = vmatpush1.bf16.msra.mxu0 0
      %4265 = vmatprep.subr.bf16.mxu0 0
      %4266 = vmatpush1.bf16.msra.mxu0 0
      %4267 = vmatprep.subr.bf16.mxu0 0
      %4268 = vmatpush1.bf16.msra.mxu0 0
      %4269 = vmatprep.subr.bf16.mxu0 0
      %4270 = vmatpush1.bf16.msra.mxu0 0
      %4271 = vmatprep.subr.bf16.mxu0 0
      %4272 = vmatpush1.bf16.msra.mxu0 0
      %4273 = vmatprep.subr.bf16.mxu0 0
      %4274 = vmatpush1.bf16.msra.mxu0 0
      %4275 = vmatprep.subr.bf16.mxu0 0
      %4276 = vmatpush1.bf16.msra.mxu0 0
      %4277 = vmatprep.mubr.bf16.mxu0 0
      %4278 = vmatmul.mubr.bf16.gmra.mrb[0].mxu0 %v4234
      %v4279 = vpop.f32.mrb[0].mxu0
      %v4280 = vadd.f32 0.0, %v4279
      %v4281 = vpop.f32.mrb[0].mxu0
      %v4282 = vadd.f32 0.0, %v4281
      %v4283 = vpop.f32.mrb[0].mxu0
      %v4284 = vpop.f32.mrb[0].mxu0
      %4285 = vdwg.mxu0
      %4286 = vmatprep.subr.bf16.mxu0 0
      %4287 = vmatpush1.bf16.msra.mxu0 %v4243
      %4288 = vmatprep.subr.bf16.mxu0 0
      %4289 = vmatpush1.bf16.msra.mxu0 0
      %4290 = vmatprep.subr.bf16.mxu0 0
      %4291 = vmatpush1.bf16.msra.mxu0 0
      %4292 = vmatprep.subr.bf16.mxu0 0
      %4293 = vmatpush1.bf16.msra.mxu0 0
      %4294 = vmatprep.subr.bf16.mxu0 0
      %4295 = vmatpush1.bf16.msra.mxu0 0
      %4296 = vmatprep.subr.bf16.mxu0 0
      %4297 = vmatpush1.bf16.msra.mxu0 0
      %4298 = vmatprep.subr.bf16.mxu0 0
      %4299 = vmatpush1.bf16.msra.mxu0 0
      %4300 = vmatprep.subr.bf16.mxu0 0
      %4301 = vmatpush1.bf16.msra.mxu0 0
      %4302 = vmatprep.subr.bf16.mxu0 0
      %4303 = vmatpush1.bf16.msra.mxu0 0
      %4304 = vmatprep.subr.bf16.mxu0 0
      %4305 = vmatpush1.bf16.msra.mxu0 0
      %4306 = vmatprep.subr.bf16.mxu0 0
      %4307 = vmatpush1.bf16.msra.mxu0 0
      %4308 = vmatprep.subr.bf16.mxu0 0
      %4309 = vmatpush1.bf16.msra.mxu0 0
      %4310 = vmatprep.subr.bf16.mxu0 0
      %4311 = vmatpush1.bf16.msra.mxu0 0
      %4312 = vmatprep.subr.bf16.mxu0 0
      %4313 = vmatpush1.bf16.msra.mxu0 0
      %4314 = vmatprep.subr.bf16.mxu0 0
      %4315 = vmatpush1.bf16.msra.mxu0 0
      %4316 = vmatprep.subr.bf16.mxu0 0
      %4317 = vmatpush1.bf16.msra.mxu0 0
      %4318 = vmatprep.mubr.bf16.mxu0 0
      %4319 = vmatmul.mubr.bf16.gmra.mrb[0].mxu0 %v4234
      %v4320 = vpop.f32.mrb[0].mxu0
      %v4321 = vadd.f32 0.0, %v4320
      %v4322 = vpop.f32.mrb[0].mxu0
      %v4323 = vpop.f32.mrb[0].mxu0
      %v4324 = vpop.f32.mrb[0].mxu0
      %4325 = vdwg.mxu0
      %v4326 = vadd.f32 %v4218, %v4280
      %v4327 = vadd.f32 %v4219, %v4282
      %v4328 = vadd.f32 %v4220, %v4321
      %v4329 = vld [vmem:[%s2179] sm:$0xf]
      %4330 = vrot.lane.b32.xlu0 %v4110, 110
      %v4331 = vpop.permute.xlu0 %4330
      %4332 = vrot.lane.b32.xlu0 %v4111, 110
      %v4333 = vpop.permute.xlu0 %4332
      %4334 = vrot.lane.b32.xlu0 %v4112, 110
      %v4335 = vpop.permute.xlu0 %4334
      %4336 = vrot.lane.b32.xlu0 %v4113, 110
      %v4337 = vpop.permute.xlu0 %4336
      %v4338 = vsel %vm1163, %v4331, %v4333
      %v4339 = vsel %vm1163, %v4333, %v4335
      %v4340 = vsel %vm1163, %v4335, %v4337
      %v4342 = vsel %vm385, %v4329, 0
      %v4345 = vsel %vm389, %v4338, 0
      %v4348 = vsel %vm389, %v4339, 0
      %v4351 = vsel %vm389, %v4340, 0
      %4353 = vmatprep.subr.bf16.mxu0 %v4348
      %4354 = vmatpush1.bf16.msra.mxu0 %v4345
      %4355 = vmatprep.subr.bf16.mxu0 0
      %4356 = vmatpush1.bf16.msra.mxu0 0
      %4357 = vmatprep.subr.bf16.mxu0 0
      %4358 = vmatpush1.bf16.msra.mxu0 0
      %4359 = vmatprep.subr.bf16.mxu0 0
      %4360 = vmatpush1.bf16.msra.mxu0 0
      %4361 = vmatprep.subr.bf16.mxu0 0
      %4362 = vmatpush1.bf16.msra.mxu0 0
      %4363 = vmatprep.subr.bf16.mxu0 0
      %4364 = vmatpush1.bf16.msra.mxu0 0
      %4365 = vmatprep.subr.bf16.mxu0 0
      %4366 = vmatpush1.bf16.msra.mxu0 0
      %4367 = vmatprep.subr.bf16.mxu0 0
      %4368 = vmatpush1.bf16.msra.mxu0 0
      %4369 = vmatprep.subr.bf16.mxu0 0
      %4370 = vmatpush1.bf16.msra.mxu0 0
      %4371 = vmatprep.subr.bf16.mxu0 0
      %4372 = vmatpush1.bf16.msra.mxu0 0
      %4373 = vmatprep.subr.bf16.mxu0 0
      %4374 = vmatpush1.bf16.msra.mxu0 0
      %4375 = vmatprep.subr.bf16.mxu0 0
      %4376 = vmatpush1.bf16.msra.mxu0 0
      %4377 = vmatprep.subr.bf16.mxu0 0
      %4378 = vmatpush1.bf16.msra.mxu0 0
      %4379 = vmatprep.subr.bf16.mxu0 0
      %4380 = vmatpush1.bf16.msra.mxu0 0
      %4381 = vmatprep.subr.bf16.mxu0 0
      %4382 = vmatpush1.bf16.msra.mxu0 0
      %4383 = vmatprep.subr.bf16.mxu0 0
      %4384 = vmatpush1.bf16.msra.mxu0 0
      %4385 = vmatprep.mubr.bf16.mxu0 0
      %4386 = vmatmul.mubr.bf16.gmra.mrb[0].mxu0 %v4342
      %v4387 = vpop.f32.mrb[0].mxu0
      %v4388 = vadd.f32 0.0, %v4387
      %v4389 = vpop.f32.mrb[0].mxu0
      %v4390 = vadd.f32 0.0, %v4389
      %v4391 = vpop.f32.mrb[0].mxu0
      %v4392 = vpop.f32.mrb[0].mxu0
      %4393 = vdwg.mxu0
      %4394 = vmatprep.subr.bf16.mxu0 0
      %4395 = vmatpush1.bf16.msra.mxu0 %v4351
      %4396 = vmatprep.subr.bf16.mxu0 0
      %4397 = vmatpush1.bf16.msra.mxu0 0
      %4398 = vmatprep.subr.bf16.mxu0 0
      %4399 = vmatpush1.bf16.msra.mxu0 0
      %4400 = vmatprep.subr.bf16.mxu0 0
      %4401 = vmatpush1.bf16.msra.mxu0 0
      %4402 = vmatprep.subr.bf16.mxu0 0
      %4403 = vmatpush1.bf16.msra.mxu0 0
      %4404 = vmatprep.subr.bf16.mxu0 0
      %4405 = vmatpush1.bf16.msra.mxu0 0
      %4406 = vmatprep.subr.bf16.mxu0 0
      %4407 = vmatpush1.bf16.msra.mxu0 0
      %4408 = vmatprep.subr.bf16.mxu0 0
      %4409 = vmatpush1.bf16.msra.mxu0 0
      %4410 = vmatprep.subr.bf16.mxu0 0
      %4411 = vmatpush1.bf16.msra.mxu0 0
      %4412 = vmatprep.subr.bf16.mxu0 0
      %4413 = vmatpush1.bf16.msra.mxu0 0
      %4414 = vmatprep.subr.bf16.mxu0 0
      %4415 = vmatpush1.bf16.msra.mxu0 0
      %4416 = vmatprep.subr.bf16.mxu0 0
      %4417 = vmatpush1.bf16.msra.mxu0 0
      %4418 = vmatprep.subr.bf16.mxu0 0
      %4419 = vmatpush1.bf16.msra.mxu0 0
      %4420 = vmatprep.subr.bf16.mxu0 0
      %4421 = vmatpush1.bf16.msra.mxu0 0
      %4422 = vmatprep.subr.bf16.mxu0 0
      %4423 = vmatpush1.bf16.msra.mxu0 0
      %4424 = vmatprep.subr.bf16.mxu0 0
      %4425 = vmatpush1.bf16.msra.mxu0 0
      %4426 = vmatprep.mubr.bf16.mxu0 0
      %4427 = vmatmul.mubr.bf16.gmra.mrb[0].mxu0 %v4342
      %v4428 = vpop.f32.mrb[0].mxu0
      %v4429 = vadd.f32 0.0, %v4428
      %v4430 = vpop.f32.mrb[0].mxu0
      %v4431 = vpop.f32.mrb[0].mxu0
      %v4432 = vpop.f32.mrb[0].mxu0
      %4433 = vdwg.mxu0
      %v4434 = vadd.f32 %v4326, %v4388
      %v4435 = vadd.f32 %v4327, %v4390
      %v4436 = vadd.f32 %v4328, %v4429
      %v4437 = vld [vmem:[%s2288] sm:$0xf]
      %4438 = vrot.lane.b32.xlu0 %v4110, 109
      %v4439 = vpop.permute.xlu0 %4438
      %4440 = vrot.lane.b32.xlu0 %v4111, 109
      %v4441 = vpop.permute.xlu0 %4440
      %4442 = vrot.lane.b32.xlu0 %v4112, 109
      %v4443 = vpop.permute.xlu0 %4442
      %4444 = vrot.lane.b32.xlu0 %v4113, 109
      %v4445 = vpop.permute.xlu0 %4444
      %v4446 = vsel %vm1273, %v4439, %v4441
      %v4447 = vsel %vm1273, %v4441, %v4443
      %v4448 = vsel %vm1273, %v4443, %v4445
      %v4450 = vsel %vm385, %v4437, 0
      %v4453 = vsel %vm389, %v4446, 0
      %v4456 = vsel %vm389, %v4447, 0
      %v4459 = vsel %vm389, %v4448, 0
      %4461 = vmatprep.subr.bf16.mxu0 %v4456
      %4462 = vmatpush1.bf16.msra.mxu0 %v4453
      %4463 = vmatprep.subr.bf16.mxu0 0
      %4464 = vmatpush1.bf16.msra.mxu0 0
      %4465 = vmatprep.subr.bf16.mxu0 0
      %4466 = vmatpush1.bf16.msra.mxu0 0
      %4467 = vmatprep.subr.bf16.mxu0 0
      %4468 = vmatpush1.bf16.msra.mxu0 0
      %4469 = vmatprep.subr.bf16.mxu0 0
      %4470 = vmatpush1.bf16.msra.mxu0 0
      %4471 = vmatprep.subr.bf16.mxu0 0
      %4472 = vmatpush1.bf16.msra.mxu0 0
      %4473 = vmatprep.subr.bf16.mxu0 0
      %4474 = vmatpush1.bf16.msra.mxu0 0
      %4475 = vmatprep.subr.bf16.mxu0 0
      %4476 = vmatpush1.bf16.msra.mxu0 0
      %4477 = vmatprep.subr.bf16.mxu0 0
      %4478 = vmatpush1.bf16.msra.mxu0 0
      %4479 = vmatprep.subr.bf16.mxu0 0
      %4480 = vmatpush1.bf16.msra.mxu0 0
      %4481 = vmatprep.subr.bf16.mxu0 0
      %4482 = vmatpush1.bf16.msra.mxu0 0
      %4483 = vmatprep.subr.bf16.mxu0 0
      %4484 = vmatpush1.bf16.msra.mxu0 0
      %4485 = vmatprep.subr.bf16.mxu0 0
      %4486 = vmatpush1.bf16.msra.mxu0 0
      %4487 = vmatprep.subr.bf16.mxu0 0
      %4488 = vmatpush1.bf16.msra.mxu0 0
      %4489 = vmatprep.subr.bf16.mxu0 0
      %4490 = vmatpush1.bf16.msra.mxu0 0
      %4491 = vmatprep.subr.bf16.mxu0 0
      %4492 = vmatpush1.bf16.msra.mxu0 0
      %4493 = vmatprep.mubr.bf16.mxu0 0
      %4494 = vmatmul.mubr.bf16.gmra.mrb[0].mxu0 %v4450
      %v4495 = vpop.f32.mrb[0].mxu0
      %v4496 = vadd.f32 0.0, %v4495
      %v4497 = vpop.f32.mrb[0].mxu0
      %v4498 = vadd.f32 0.0, %v4497
      %v4499 = vpop.f32.mrb[0].mxu0
      %v4500 = vpop.f32.mrb[0].mxu0
      %4501 = vdwg.mxu0
      %4502 = vmatprep.subr.bf16.mxu0 0
      %4503 = vmatpush1.bf16.msra.mxu0 %v4459
      %4504 = vmatprep.subr.bf16.mxu0 0
      %4505 = vmatpush1.bf16.msra.mxu0 0
      %4506 = vmatprep.subr.bf16.mxu0 0
      %4507 = vmatpush1.bf16.msra.mxu0 0
      %4508 = vmatprep.subr.bf16.mxu0 0
      %4509 = vmatpush1.bf16.msra.mxu0 0
      %4510 = vmatprep.subr.bf16.mxu0 0
      %4511 = vmatpush1.bf16.msra.mxu0 0
      %4512 = vmatprep.subr.bf16.mxu0 0
      %4513 = vmatpush1.bf16.msra.mxu0 0
      %4514 = vmatprep.subr.bf16.mxu0 0
      %4515 = vmatpush1.bf16.msra.mxu0 0
      %4516 = vmatprep.subr.bf16.mxu0 0
      %4517 = vmatpush1.bf16.msra.mxu0 0
      %4518 = vmatprep.subr.bf16.mxu0 0
      %4519 = vmatpush1.bf16.msra.mxu0 0
      %4520 = vmatprep.subr.bf16.mxu0 0
      %4521 = vmatpush1.bf16.msra.mxu0 0
      %4522 = vmatprep.subr.bf16.mxu0 0
      %4523 = vmatpush1.bf16.msra.mxu0 0
      %4524 = vmatprep.subr.bf16.mxu0 0
      %4525 = vmatpush1.bf16.msra.mxu0 0
      %4526 = vmatprep.subr.bf16.mxu0 0
      %4527 = vmatpush1.bf16.msra.mxu0 0
      %4528 = vmatprep.subr.bf16.mxu0 0
      %4529 = vmatpush1.bf16.msra.mxu0 0
      %4530 = vmatprep.subr.bf16.mxu0 0
      %4531 = vmatpush1.bf16.msra.mxu0 0
      %4532 = vmatprep.subr.bf16.mxu0 0
      %4533 = vmatpush1.bf16.msra.mxu0 0
      %4534 = vmatprep.mubr.bf16.mxu0 0
      %4535 = vmatmul.mubr.bf16.gmra.mrb[0].mxu0 %v4450
      %v4536 = vpop.f32.mrb[0].mxu0
      %v4537 = vadd.f32 0.0, %v4536
      %v4538 = vpop.f32.mrb[0].mxu0
      %v4539 = vpop.f32.mrb[0].mxu0
      %v4540 = vpop.f32.mrb[0].mxu0
      %4541 = vdwg.mxu0
      %v4542 = vadd.f32 %v4434, %v4496
      %v4543 = vadd.f32 %v4435, %v4498
      %v4544 = vadd.f32 %v4436, %v4537
      %v4545 = vadd.f32 %v4542, %v2516
      %v4546 = vadd.f32 %v4543, %v2517
      %v4547 = vadd.f32 %v4544, %v2518
      %v4548 = vmax.f32 %v4545, 0.0
      %v4549 = vmax.f32 %v4546, 0.0
      %v4550 = vmax.f32 %v4547, 0.0
      %v4551 = vmul.f32 %v4548, %v315
      %v4552 = vmul.f32 %v4549, %v319
      %v4553 = vmul.f32 %v4550, %v323
      %v4554 = vpack.c.bf16 %v4551, %v4551
      %v4555 = vpack.c.bf16 %v4552, %v4552
      %v4556 = vpack.c.bf16 %v4553, %v4553
      %4557 = vst [vmem:[#allocation3 + $0x18] sm:$0xf] %v4554
      %4558 = vst [vmem:[#allocation3 + $0x20] sm:$0xf] %v4555
      %4559 = vst [vmem:[#allocation3 + $0x28] sm:$0xf] %v4556
      %s4560 = scalar_lea.vmem %s6, 4
      %v4561 = vld [vmem:[%s4560] sm:$0xf]
      %v4562 = vld [vmem:[#allocation3] sm:$0xff]
      %v4563 = vld [vmem:[#allocation3 + $0x8] sm:$0xff]
      %v4564 = vld [vmem:[#allocation3 + $0x10] sm:$0xff]
      %v4565 = vld [vmem:[#allocation3 + $0x18] sm:$0xf]
      %v4566 = vld [vmem:[#allocation3 + $0x20] sm:$0xf]
      %v4567 = vld [vmem:[#allocation3 + $0x28] sm:$0xf]
      %s4568 = scalar_lea.vmem %s7, 8
      %v4569 = vld [vmem:[%s4568] sm:$0xff]
      %4571 = vset.pattern.permute.xlu0 0
      %4572 = vperm.xlu0 %4571, %v4569
      %v4573 = vpop.permute.xlu0 %4572
      %vm4575 = vcmask 195584
      %v4577 = vsel %vm4575, %v4561, 0
      %v4580 = vsel %vm389, %v4565, 0
      %v4583 = vsel %vm389, %v4566, 0
      %v4586 = vsel %vm389, %v4567, 0
      %4588 = vmatprep.subr.bf16.mxu0 %v4563
      %4589 = vmatpush1.bf16.msra.mxu0 %v4562
      %4590 = vmatprep.subr.bf16.mxu0 %v4583
      %4591 = vmatpush1.bf16.msra.mxu0 %v4580
      %4592 = vmatprep.subr.bf16.mxu0 0
      %4593 = vmatpush1.bf16.msra.mxu0 0
      %4594 = vmatprep.subr.bf16.mxu0 0
      %4595 = vmatpush1.bf16.msra.mxu0 0
      %4596 = vmatprep.subr.bf16.mxu0 0
      %4597 = vmatpush1.bf16.msra.mxu0 0
      %4598 = vmatprep.subr.bf16.mxu0 0
      %4599 = vmatpush1.bf16.msra.mxu0 0
      %4600 = vmatprep.subr.bf16.mxu0 0
      %4601 = vmatpush1.bf16.msra.mxu0 0
      %4602 = vmatprep.subr.bf16.mxu0 0
      %4603 = vmatpush1.bf16.msra.mxu0 0
      %4604 = vmatprep.subr.bf16.mxu0 0
      %4605 = vmatpush1.bf16.msra.mxu0 0
      %4606 = vmatprep.subr.bf16.mxu0 0
      %4607 = vmatpush1.bf16.msra.mxu0 0
      %4608 = vmatprep.subr.bf16.mxu0 0
      %4609 = vmatpush1.bf16.msra.mxu0 0
      %4610 = vmatprep.subr.bf16.mxu0 0
      %4611 = vmatpush1.bf16.msra.mxu0 0
      %4612 = vmatprep.subr.bf16.mxu0 0
      %4613 = vmatpush1.bf16.msra.mxu0 0
      %4614 = vmatprep.subr.bf16.mxu0 0
      %4615 = vmatpush1.bf16.msra.mxu0 0
      %4616 = vmatprep.subr.bf16.mxu0 0
      %4617 = vmatpush1.bf16.msra.mxu0 0
      %4618 = vmatprep.subr.bf16.mxu0 0
      %4619 = vmatpush1.bf16.msra.mxu0 0
      %4620 = vmatprep.mubr.bf16.mxu0 0
      %4621 = vmatmul.mubr.bf16.gmra.mrb[0].mxu0 %v4577
      %v4622 = vpop.f32.mrb[0].mxu0
      %v4623 = vadd.f32 %v4573, %v4622
      %v4624 = vpop.f32.mrb[0].mxu0
      %v4625 = vadd.f32 %v4573, %v4624
      %v4626 = vpop.f32.mrb[0].mxu0
      %v4627 = vpop.f32.mrb[0].mxu0
      %4628 = vdwg.mxu0
      %4629 = vmatprep.subr.bf16.mxu0 0
      %4630 = vmatpush1.bf16.msra.mxu0 %v4564
      %4631 = vmatprep.subr.bf16.mxu0 0
      %4632 = vmatpush1.bf16.msra.mxu0 %v4586
      %4633 = vmatprep.subr.bf16.mxu0 0
      %4634 = vmatpush1.bf16.msra.mxu0 0
      %4635 = vmatprep.subr.bf16.mxu0 0
      %4636 = vmatpush1.bf16.msra.mxu0 0
      %4637 = vmatprep.subr.bf16.mxu0 0
      %4638 = vmatpush1.bf16.msra.mxu0 0
      %4639 = vmatprep.subr.bf16.mxu0 0
      %4640 = vmatpush1.bf16.msra.mxu0 0
      %4641 = vmatprep.subr.bf16.mxu0 0
      %4642 = vmatpush1.bf16.msra.mxu0 0
      %4643 = vmatprep.subr.bf16.mxu0 0
      %4644 = vmatpush1.bf16.msra.mxu0 0
      %4645 = vmatprep.subr.bf16.mxu0 0
      %4646 = vmatpush1.bf16.msra.mxu0 0
      %4647 = vmatprep.subr.bf16.mxu0 0
      %4648 = vmatpush1.bf16.msra.mxu0 0
      %4649 = vmatprep.subr.bf16.mxu0 0
      %4650 = vmatpush1.bf16.msra.mxu0 0
      %4651 = vmatprep.subr.bf16.mxu0 0
      %4652 = vmatpush1.bf16.msra.mxu0 0
      %4653 = vmatprep.subr.bf16.mxu0 0
      %4654 = vmatpush1.bf16.msra.mxu0 0
      %4655 = vmatprep.subr.bf16.mxu0 0
      %4656 = vmatpush1.bf16.msra.mxu0 0
      %4657 = vmatprep.subr.bf16.mxu0 0
      %4658 = vmatpush1.bf16.msra.mxu0 0
      %4659 = vmatprep.subr.bf16.mxu0 0
      %4660 = vmatpush1.bf16.msra.mxu0 0
      %4661 = vmatprep.mubr.bf16.mxu0 0
      %4662 = vmatmul.mubr.bf16.gmra.mrb[0].mxu0 %v4577
      %v4663 = vpop.f32.mrb[0].mxu0
      %v4664 = vadd.f32 %v4573, %v4663
      %v4665 = vpop.f32.mrb[0].mxu0
      %v4666 = vpop.f32.mrb[0].mxu0
      %v4667 = vpop.f32.mrb[0].mxu0
      %4668 = vdwg.mxu0
      %v4669 = vmul.f32 %v4623, %v315
      %v4670 = vmul.f32 %v4625, %v319
      %v4671 = vmul.f32 %v4664, %v323
      %v4672 = vpack.c.bf16 %v4669, %v4669
      %v4673 = vpack.c.bf16 %v4670, %v4670
      %v4674 = vpack.c.bf16 %v4671, %v4671
      %v4678 = vunpack.c.l.b16 %v4672
      %v4679 = vunpack.c.l.b16 %v4673
      %v4680 = vunpack.c.l.b16 %v4674
      %v4681 = vpack.c.b16 %v4679, %v4678
      %v4682 = vpack.c.b16 %v4680, %v4680
      %4685 = vst [vmem:[#allocation2 + $0x4] sm:$0xff] %v4681
      %4686 = vst [vmem:[#allocation2 + $0xc] sm:$0xf] %v4682
      %v4687 = vld [vmem:[#allocation2] sm:$0xff]
      %v4688 = vld [vmem:[#allocation2 + $0x8] sm:$0xff]
      %v4689 = vld [vmem:[%s2] sm:$0xf]
      %v4692 = vunpack.c.l.b16 %v4687
      %v4693 = vunpack.c.h.b16 %v4687
      %v4694 = vunpack.c.l.b16 %v4688
      %v4695 = vunpack.c.h.b16 %v4688
      %v4696 = vpack.c.b16 %v4692, %v4692
      %v4697 = vpack.c.b16 %v4693, %v4693
      %v4698 = vpack.c.b16 %v4694, %v4694
      %v4699 = vpack.c.b16 %v4695, %v4695
      %4700 = vrot.lane.b32.xlu0 %v4696, 19
      %v4701 = vpop.permute.xlu0 %4700
      %4702 = vrot.lane.b32.xlu0 %v4697, 19
      %v4703 = vpop.permute.xlu0 %4702
      %4704 = vrot.lane.b32.xlu0 %v4698, 19
      %v4705 = vpop.permute.xlu0 %4704
      %4706 = vrot.lane.b32.xlu0 %v4699, 19
      %v4707 = vpop.permute.xlu0 %4706
      %v4708 = vsel %vm381, %v4701, %v4703
      %v4709 = vsel %vm381, %v4703, %v4705
      %v4710 = vsel %vm381, %v4705, %v4707
      %v4712 = vsel %vm385, %v4689, 0
      %v4715 = vsel %vm389, %v4708, 0
      %v4718 = vsel %vm389, %v4709, 0
      %v4721 = vsel %vm389, %v4710, 0
      %4723 = vmatprep.subr.bf16.mxu0 %v4718
      %4724 = vmatpush1.bf16.msra.mxu0 %v4715
      %4725 = vmatprep.subr.bf16.mxu0 0
      %4726 = vmatpush1.bf16.msra.mxu0 0
      %4727 = vmatprep.subr.bf16.mxu0 0
      %4728 = vmatpush1.bf16.msra.mxu0 0
      %4729 = vmatprep.subr.bf16.mxu0 0
      %4730 = vmatpush1.bf16.msra.mxu0 0
      %4731 = vmatprep.subr.bf16.mxu0 0
      %4732 = vmatpush1.bf16.msra.mxu0 0
      %4733 = vmatprep.subr.bf16.mxu0 0
      %4734 = vmatpush1.bf16.msra.mxu0 0
      %4735 = vmatprep.subr.bf16.mxu0 0
      %4736 = vmatpush1.bf16.msra.mxu0 0
      %4737 = vmatprep.subr.bf16.mxu0 0
      %4738 = vmatpush1.bf16.msra.mxu0 0
      %4739 = vmatprep.subr.bf16.mxu0 0
      %4740 = vmatpush1.bf16.msra.mxu0 0
      %4741 = vmatprep.subr.bf16.mxu0 0
      %4742 = vmatpush1.bf16.msra.mxu0 0
      %4743 = vmatprep.subr.bf16.mxu0 0
      %4744 = vmatpush1.bf16.msra.mxu0 0
      %4745 = vmatprep.subr.bf16.mxu0 0
      %4746 = vmatpush1.bf16.msra.mxu0 0
      %4747 = vmatprep.subr.bf16.mxu0 0
      %4748 = vmatpush1.bf16.msra.mxu0 0
      %4749 = vmatprep.subr.bf16.mxu0 0
      %4750 = vmatpush1.bf16.msra.mxu0 0
      %4751 = vmatprep.subr.bf16.mxu0 0
      %4752 = vmatpush1.bf16.msra.mxu0 0
      %4753 = vmatprep.subr.bf16.mxu0 0
      %4754 = vmatpush1.bf16.msra.mxu0 0
      %4755 = vmatprep.mubr.bf16.mxu0 0
      %4756 = vmatmul.mubr.bf16.gmra.mrb[0].mxu0 %v4712
      %v4757 = vpop.f32.mrb[0].mxu0
      %v4758 = vadd.f32 0.0, %v4757
      %v4759 = vpop.f32.mrb[0].mxu0
      %v4760 = vadd.f32 0.0, %v4759
      %v4761 = vpop.f32.mrb[0].mxu0
      %v4762 = vpop.f32.mrb[0].mxu0
      %4763 = vdwg.mxu0
      %4764 = vmatprep.subr.bf16.mxu0 0
      %4765 = vmatpush1.bf16.msra.mxu0 %v4721
      %4766 = vmatprep.subr.bf16.mxu0 0
      %4767 = vmatpush1.bf16.msra.mxu0 0
      %4768 = vmatprep.subr.bf16.mxu0 0
      %4769 = vmatpush1.bf16.msra.mxu0 0
      %4770 = vmatprep.subr.bf16.mxu0 0
      %4771 = vmatpush1.bf16.msra.mxu0 0
      %4772 = vmatprep.subr.bf16.mxu0 0
      %4773 = vmatpush1.bf16.msra.mxu0 0
      %4774 = vmatprep.subr.bf16.mxu0 0
      %4775 = vmatpush1.bf16.msra.mxu0 0
      %4776 = vmatprep.subr.bf16.mxu0 0
      %4777 = vmatpush1.bf16.msra.mxu0 0
      %4778 = vmatprep.subr.bf16.mxu0 0
      %4779 = vmatpush1.bf16.msra.mxu0 0
      %4780 = vmatprep.subr.bf16.mxu0 0
      %4781 = vmatpush1.bf16.msra.mxu0 0
      %4782 = vmatprep.subr.bf16.mxu0 0
      %4783 = vmatpush1.bf16.msra.mxu0 0
      %4784 = vmatprep.subr.bf16.mxu0 0
      %4785 = vmatpush1.bf16.msra.mxu0 0
      %4786 = vmatprep.subr.bf16.mxu0 0
      %4787 = vmatpush1.bf16.msra.mxu0 0
      %4788 = vmatprep.subr.bf16.mxu0 0
      %4789 = vmatpush1.bf16.msra.mxu0 0
      %4790 = vmatprep.subr.bf16.mxu0 0
      %4791 = vmatpush1.bf16.msra.mxu0 0
      %4792 = vmatprep.subr.bf16.mxu0 0
      %4793 = vmatpush1.bf16.msra.mxu0 0
      %4794 = vmatprep.subr.bf16.mxu0 0
      %4795 = vmatpush1.bf16.msra.mxu0 0
      %4796 = vmatprep.mubr.bf16.mxu0 0
      %4797 = vmatmul.mubr.bf16.gmra.mrb[0].mxu0 %v4712
      %v4798 = vpop.f32.mrb[0].mxu0
      %v4799 = vadd.f32 0.0, %v4798
      %v4800 = vpop.f32.mrb[0].mxu0
      %v4801 = vpop.f32.mrb[0].mxu0
      %v4802 = vpop.f32.mrb[0].mxu0
      %4803 = vdwg.mxu0
      %v4804 = vadd.f32 %v331, %v4758
      %v4805 = vadd.f32 %v331, %v4760
      %v4806 = vadd.f32 %v331, %v4799
      %v4807 = vld [vmem:[%s483] sm:$0xf]
      %4808 = vrot.lane.b32.xlu0 %v4696, 18
      %v4809 = vpop.permute.xlu0 %4808
      %4810 = vrot.lane.b32.xlu0 %v4697, 18
      %v4811 = vpop.permute.xlu0 %4810
      %4812 = vrot.lane.b32.xlu0 %v4698, 18
      %v4813 = vpop.permute.xlu0 %4812
      %4814 = vrot.lane.b32.xlu0 %v4699, 18
      %v4815 = vpop.permute.xlu0 %4814
      %v4816 = vsel %vm493, %v4809, %v4811
      %v4817 = vsel %vm493, %v4811, %v4813
      %v4818 = vsel %vm493, %v4813, %v4815
      %v4820 = vsel %vm385, %v4807, 0
      %v4823 = vsel %vm389, %v4816, 0
      %v4826 = vsel %vm389, %v4817, 0
      %v4829 = vsel %vm389, %v4818, 0
      %4831 = vmatprep.subr.bf16.mxu0 %v4826
      %4832 = vmatpush1.bf16.msra.mxu0 %v4823
      %4833 = vmatprep.subr.bf16.mxu0 0
      %4834 = vmatpush1.bf16.msra.mxu0 0
      %4835 = vmatprep.subr.bf16.mxu0 0
      %4836 = vmatpush1.bf16.msra.mxu0 0
      %4837 = vmatprep.subr.bf16.mxu0 0
      %4838 = vmatpush1.bf16.msra.mxu0 0
      %4839 = vmatprep.subr.bf16.mxu0 0
      %4840 = vmatpush1.bf16.msra.mxu0 0
      %4841 = vmatprep.subr.bf16.mxu0 0
      %4842 = vmatpush1.bf16.msra.mxu0 0
      %4843 = vmatprep.subr.bf16.mxu0 0
      %4844 = vmatpush1.bf16.msra.mxu0 0
      %4845 = vmatprep.subr.bf16.mxu0 0
      %4846 = vmatpush1.bf16.msra.mxu0 0
      %4847 = vmatprep.subr.bf16.mxu0 0
      %4848 = vmatpush1.bf16.msra.mxu0 0
      %4849 = vmatprep.subr.bf16.mxu0 0
      %4850 = vmatpush1.bf16.msra.mxu0 0
      %4851 = vmatprep.subr.bf16.mxu0 0
      %4852 = vmatpush1.bf16.msra.mxu0 0
      %4853 = vmatprep.subr.bf16.mxu0 0
      %4854 = vmatpush1.bf16.msra.mxu0 0
      %4855 = vmatprep.subr.bf16.mxu0 0
      %4856 = vmatpush1.bf16.msra.mxu0 0
      %4857 = vmatprep.subr.bf16.mxu0 0
      %4858 = vmatpush1.bf16.msra.mxu0 0
      %4859 = vmatprep.subr.bf16.mxu0 0
      %4860 = vmatpush1.bf16.msra.mxu0 0
      %4861 = vmatprep.subr.bf16.mxu0 0
      %4862 = vmatpush1.bf16.msra.mxu0 0
      %4863 = vmatprep.mubr.bf16.mxu0 0
      %4864 = vmatmul.mubr.bf16.gmra.mrb[0].mxu0 %v4820
      %v4865 = vpop.f32.mrb[0].mxu0
      %v4866 = vadd.f32 0.0, %v4865
      %v4867 = vpop.f32.mrb[0].mxu0
      %v4868 = vadd.f32 0.0, %v4867
      %v4869 = vpop.f32.mrb[0].mxu0
      %v4870 = vpop.f32.mrb[0].mxu0
      %4871 = vdwg.mxu0
      %4872 = vmatprep.subr.bf16.mxu0 0
      %4873 = vmatpush1.bf16.msra.mxu0 %v4829
      %4874 = vmatprep.subr.bf16.mxu0 0
      %4875 = vmatpush1.bf16.msra.mxu0 0
      %4876 = vmatprep.subr.bf16.mxu0 0
      %4877 = vmatpush1.bf16.msra.mxu0 0
      %4878 = vmatprep.subr.bf16.mxu0 0
      %4879 = vmatpush1.bf16.msra.mxu0 0
      %4880 = vmatprep.subr.bf16.mxu0 0
      %4881 = vmatpush1.bf16.msra.mxu0 0
      %4882 = vmatprep.subr.bf16.mxu0 0
      %4883 = vmatpush1.bf16.msra.mxu0 0
      %4884 = vmatprep.subr.bf16.mxu0 0
      %4885 = vmatpush1.bf16.msra.mxu0 0
      %4886 = vmatprep.subr.bf16.mxu0 0
      %4887 = vmatpush1.bf16.msra.mxu0 0
      %4888 = vmatprep.subr.bf16.mxu0 0
      %4889 = vmatpush1.bf16.msra.mxu0 0
      %4890 = vmatprep.subr.bf16.mxu0 0
      %4891 = vmatpush1.bf16.msra.mxu0 0
      %4892 = vmatprep.subr.bf16.mxu0 0
      %4893 = vmatpush1.bf16.msra.mxu0 0
      %4894 = vmatprep.subr.bf16.mxu0 0
      %4895 = vmatpush1.bf16.msra.mxu0 0
      %4896 = vmatprep.subr.bf16.mxu0 0
      %4897 = vmatpush1.bf16.msra.mxu0 0
      %4898 = vmatprep.subr.bf16.mxu0 0
      %4899 = vmatpush1.bf16.msra.mxu0 0
      %4900 = vmatprep.subr.bf16.mxu0 0
      %4901 = vmatpush1.bf16.msra.mxu0 0
      %4902 = vmatprep.subr.bf16.mxu0 0
      %4903 = vmatpush1.bf16.msra.mxu0 0
      %4904 = vmatprep.mubr.bf16.mxu0 0
      %4905 = vmatmul.mubr.bf16.gmra.mrb[0].mxu0 %v4820
      %v4906 = vpop.f32.mrb[0].mxu0
      %v4907 = vadd.f32 0.0, %v4906
      %v4908 = vpop.f32.mrb[0].mxu0
      %v4909 = vpop.f32.mrb[0].mxu0
      %v4910 = vpop.f32.mrb[0].mxu0
      %4911 = vdwg.mxu0
      %v4912 = vadd.f32 %v4804, %v4866
      %v4913 = vadd.f32 %v4805, %v4868
      %v4914 = vadd.f32 %v4806, %v4907
      %v4915 = vld [vmem:[%s593] sm:$0xf]
      %4916 = vrot.lane.b32.xlu0 %v4696, 17
      %v4917 = vpop.permute.xlu0 %4916
      %4918 = vrot.lane.b32.xlu0 %v4697, 17
      %v4919 = vpop.permute.xlu0 %4918
      %4920 = vrot.lane.b32.xlu0 %v4698, 17
      %v4921 = vpop.permute.xlu0 %4920
      %4922 = vrot.lane.b32.xlu0 %v4699, 17
      %v4923 = vpop.permute.xlu0 %4922
      %v4924 = vsel %vm603, %v4917, %v4919
      %v4925 = vsel %vm603, %v4919, %v4921
      %v4926 = vsel %vm603, %v4921, %v4923
      %v4928 = vsel %vm385, %v4915, 0
      %v4931 = vsel %vm389, %v4924, 0
      %v4934 = vsel %vm389, %v4925, 0
      %v4937 = vsel %vm389, %v4926, 0
      %4939 = vmatprep.subr.bf16.mxu0 %v4934
      %4940 = vmatpush1.bf16.msra.mxu0 %v4931
      %4941 = vmatprep.subr.bf16.mxu0 0
      %4942 = vmatpush1.bf16.msra.mxu0 0
      %4943 = vmatprep.subr.bf16.mxu0 0
      %4944 = vmatpush1.bf16.msra.mxu0 0
      %4945 = vmatprep.subr.bf16.mxu0 0
      %4946 = vmatpush1.bf16.msra.mxu0 0
      %4947 = vmatprep.subr.bf16.mxu0 0
      %4948 = vmatpush1.bf16.msra.mxu0 0
      %4949 = vmatprep.subr.bf16.mxu0 0
      %4950 = vmatpush1.bf16.msra.mxu0 0
      %4951 = vmatprep.subr.bf16.mxu0 0
      %4952 = vmatpush1.bf16.msra.mxu0 0
      %4953 = vmatprep.subr.bf16.mxu0 0
      %4954 = vmatpush1.bf16.msra.mxu0 0
      %4955 = vmatprep.subr.bf16.mxu0 0
      %4956 = vmatpush1.bf16.msra.mxu0 0
      %4957 = vmatprep.subr.bf16.mxu0 0
      %4958 = vmatpush1.bf16.msra.mxu0 0
      %4959 = vmatprep.subr.bf16.mxu0 0
      %4960 = vmatpush1.bf16.msra.mxu0 0
      %4961 = vmatprep.subr.bf16.mxu0 0
      %4962 = vmatpush1.bf16.msra.mxu0 0
      %4963 = vmatprep.subr.bf16.mxu0 0
      %4964 = vmatpush1.bf16.msra.mxu0 0
      %4965 = vmatprep.subr.bf16.mxu0 0
      %4966 = vmatpush1.bf16.msra.mxu0 0
      %4967 = vmatprep.subr.bf16.mxu0 0
      %4968 = vmatpush1.bf16.msra.mxu0 0
      %4969 = vmatprep.subr.bf16.mxu0 0
      %4970 = vmatpush1.bf16.msra.mxu0 0
      %4971 = vmatprep.mubr.bf16.mxu0 0
      %4972 = vmatmul.mubr.bf16.gmra.mrb[0].mxu0 %v4928
      %v4973 = vpop.f32.mrb[0].mxu0
      %v4974 = vadd.f32 0.0, %v4973
      %v4975 = vpop.f32.mrb[0].mxu0
      %v4976 = vadd.f32 0.0, %v4975
      %v4977 = vpop.f32.mrb[0].mxu0
      %v4978 = vpop.f32.mrb[0].mxu0
      %4979 = vdwg.mxu0
      %4980 = vmatprep.subr.bf16.mxu0 0
      %4981 = vmatpush1.bf16.msra.mxu0 %v4937
      %4982 = vmatprep.subr.bf16.mxu0 0
      %4983 = vmatpush1.bf16.msra.mxu0 0
      %4984 = vmatprep.subr.bf16.mxu0 0
      %4985 = vmatpush1.bf16.msra.mxu0 0
      %4986 = vmatprep.subr.bf16.mxu0 0
      %4987 = vmatpush1.bf16.msra.mxu0 0
      %4988 = vmatprep.subr.bf16.mxu0 0
      %4989 = vmatpush1.bf16.msra.mxu0 0
      %4990 = vmatprep.subr.bf16.mxu0 0
      %4991 = vmatpush1.bf16.msra.mxu0 0
      %4992 = vmatprep.subr.bf16.mxu0 0
      %4993 = vmatpush1.bf16.msra.mxu0 0
      %4994 = vmatprep.subr.bf16.mxu0 0
      %4995 = vmatpush1.bf16.msra.mxu0 0
      %4996 = vmatprep.subr.bf16.mxu0 0
      %4997 = vmatpush1.bf16.msra.mxu0 0
      %4998 = vmatprep.subr.bf16.mxu0 0
      %4999 = vmatpush1.bf16.msra.mxu0 0
      %5000 = vmatprep.subr.bf16.mxu0 0
      %5001 = vmatpush1.bf16.msra.mxu0 0
      %5002 = vmatprep.subr.bf16.mxu0 0
      %5003 = vmatpush1.bf16.msra.mxu0 0
      %5004 = vmatprep.subr.bf16.mxu0 0
      %5005 = vmatpush1.bf16.msra.mxu0 0
      %5006 = vmatprep.subr.bf16.mxu0 0
      %5007 = vmatpush1.bf16.msra.mxu0 0
      %5008 = vmatprep.subr.bf16.mxu0 0
      %5009 = vmatpush1.bf16.msra.mxu0 0
      %5010 = vmatprep.subr.bf16.mxu0 0
      %5011 = vmatpush1.bf16.msra.mxu0 0
      %5012 = vmatprep.mubr.bf16.mxu0 0
      %5013 = vmatmul.mubr.bf16.gmra.mrb[0].mxu0 %v4928
      %v5014 = vpop.f32.mrb[0].mxu0
      %v5015 = vadd.f32 0.0, %v5014
      %v5016 = vpop.f32.mrb[0].mxu0
      %v5017 = vpop.f32.mrb[0].mxu0
      %v5018 = vpop.f32.mrb[0].mxu0
      %5019 = vdwg.mxu0
      %v5020 = vadd.f32 %v4912, %v4974
      %v5021 = vadd.f32 %v4913, %v4976
      %v5022 = vadd.f32 %v4914, %v5015
      %v5023 = vld [vmem:[%s703] sm:$0xf]
      %5024 = vrot.lane.b32.xlu0 %v4696, 1
      %v5025 = vpop.permute.xlu0 %5024
      %5026 = vrot.lane.b32.xlu0 %v4697, 1
      %v5027 = vpop.permute.xlu0 %5026
      %5028 = vrot.lane.b32.xlu0 %v4698, 1
      %v5029 = vpop.permute.xlu0 %5028
      %5030 = vrot.lane.b32.xlu0 %v4699, 1
      %v5031 = vpop.permute.xlu0 %5030
      %v5032 = vsel %vm713, %v5025, %v5027
      %v5033 = vsel %vm713, %v5027, %v5029
      %v5034 = vsel %vm713, %v5029, %v5031
      %v5036 = vsel %vm385, %v5023, 0
      %v5039 = vsel %vm389, %v5032, 0
      %v5042 = vsel %vm389, %v5033, 0
      %v5045 = vsel %vm389, %v5034, 0
      %5047 = vmatprep.subr.bf16.mxu0 %v5042
      %5048 = vmatpush1.bf16.msra.mxu0 %v5039
      %5049 = vmatprep.subr.bf16.mxu0 0
      %5050 = vmatpush1.bf16.msra.mxu0 0
      %5051 = vmatprep.subr.bf16.mxu0 0
      %5052 = vmatpush1.bf16.msra.mxu0 0
      %5053 = vmatprep.subr.bf16.mxu0 0
      %5054 = vmatpush1.bf16.msra.mxu0 0
      %5055 = vmatprep.subr.bf16.mxu0 0
      %5056 = vmatpush1.bf16.msra.mxu0 0
      %5057 = vmatprep.subr.bf16.mxu0 0
      %5058 = vmatpush1.bf16.msra.mxu0 0
      %5059 = vmatprep.subr.bf16.mxu0 0
      %5060 = vmatpush1.bf16.msra.mxu0 0
      %5061 = vmatprep.subr.bf16.mxu0 0
      %5062 = vmatpush1.bf16.msra.mxu0 0
      %5063 = vmatprep.subr.bf16.mxu0 0
      %5064 = vmatpush1.bf16.msra.mxu0 0
      %5065 = vmatprep.subr.bf16.mxu0 0
      %5066 = vmatpush1.bf16.msra.mxu0 0
      %5067 = vmatprep.subr.bf16.mxu0 0
      %5068 = vmatpush1.bf16.msra.mxu0 0
      %5069 = vmatprep.subr.bf16.mxu0 0
      %5070 = vmatpush1.bf16.msra.mxu0 0
      %5071 = vmatprep.subr.bf16.mxu0 0
      %5072 = vmatpush1.bf16.msra.mxu0 0
      %5073 = vmatprep.subr.bf16.mxu0 0
      %5074 = vmatpush1.bf16.msra.mxu0 0
      %5075 = vmatprep.subr.bf16.mxu0 0
      %5076 = vmatpush1.bf16.msra.mxu0 0
      %5077 = vmatprep.subr.bf16.mxu0 0
      %5078 = vmatpush1.bf16.msra.mxu0 0
      %5079 = vmatprep.mubr.bf16.mxu0 0
      %5080 = vmatmul.mubr.bf16.gmra.mrb[0].mxu0 %v5036
      %v5081 = vpop.f32.mrb[0].mxu0
      %v5082 = vadd.f32 0.0, %v5081
      %v5083 = vpop.f32.mrb[0].mxu0
      %v5084 = vadd.f32 0.0, %v5083
      %v5085 = vpop.f32.mrb[0].mxu0
      %v5086 = vpop.f32.mrb[0].mxu0
      %5087 = vdwg.mxu0
      %5088 = vmatprep.subr.bf16.mxu0 0
      %5089 = vmatpush1.bf16.msra.mxu0 %v5045
      %5090 = vmatprep.subr.bf16.mxu0 0
      %5091 = vmatpush1.bf16.msra.mxu0 0
      %5092 = vmatprep.subr.bf16.mxu0 0
      %5093 = vmatpush1.bf16.msra.mxu0 0
      %5094 = vmatprep.subr.bf16.mxu0 0
      %5095 = vmatpush1.bf16.msra.mxu0 0
      %5096 = vmatprep.subr.bf16.mxu0 0
      %5097 = vmatpush1.bf16.msra.mxu0 0
      %5098 = vmatprep.subr.bf16.mxu0 0
      %5099 = vmatpush1.bf16.msra.mxu0 0
      %5100 = vmatprep.subr.bf16.mxu0 0
      %5101 = vmatpush1.bf16.msra.mxu0 0
      %5102 = vmatprep.subr.bf16.mxu0 0
      %5103 = vmatpush1.bf16.msra.mxu0 0
      %5104 = vmatprep.subr.bf16.mxu0 0
      %5105 = vmatpush1.bf16.msra.mxu0 0
      %5106 = vmatprep.subr.bf16.mxu0 0
      %5107 = vmatpush1.bf16.msra.mxu0 0
      %5108 = vmatprep.subr.bf16.mxu0 0
      %5109 = vmatpush1.bf16.msra.mxu0 0
      %5110 = vmatprep.subr.bf16.mxu0 0
      %5111 = vmatpush1.bf16.msra.mxu0 0
      %5112 = vmatprep.subr.bf16.mxu0 0
      %5113 = vmatpush1.bf16.msra.mxu0 0
      %5114 = vmatprep.subr.bf16.mxu0 0
      %5115 = vmatpush1.bf16.msra.mxu0 0
      %5116 = vmatprep.subr.bf16.mxu0 0
      %5117 = vmatpush1.bf16.msra.mxu0 0
      %5118 = vmatprep.subr.bf16.mxu0 0
      %5119 = vmatpush1.bf16.msra.mxu0 0
      %5120 = vmatprep.mubr.bf16.mxu0 0
      %5121 = vmatmul.mubr.bf16.gmra.mrb[0].mxu0 %v5036
      %v5122 = vpop.f32.mrb[0].mxu0
      %v5123 = vadd.f32 0.0, %v5122
      %v5124 = vpop.f32.mrb[0].mxu0
      %v5125 = vpop.f32.mrb[0].mxu0
      %v5126 = vpop.f32.mrb[0].mxu0
      %5127 = vdwg.mxu0
      %v5128 = vadd.f32 %v5020, %v5082
      %v5129 = vadd.f32 %v5021, %v5084
      %v5130 = vadd.f32 %v5022, %v5123
      %v5131 = vld [vmem:[#allocation2 + $0x4] sm:$0xff]
      %v5132 = vld [vmem:[#allocation2 + $0xc] sm:$0xf]
      %v5133 = vld [vmem:[%s815] sm:$0xf]
      %v5136 = vunpack.c.l.b16 %v5131
      %v5137 = vunpack.c.h.b16 %v5131
      %v5138 = vunpack.c.l.b16 %v5132
      %v5139 = vpack.c.b16 %v5136, %v5136
      %v5140 = vpack.c.b16 %v5137, %v5137
      %v5141 = vpack.c.b16 %v5138, %v5138
      %v5143 = vsel %vm385, %v5133, 0
      %v5146 = vsel %vm389, %v5139, 0
      %v5149 = vsel %vm389, %v5140, 0
      %v5152 = vsel %vm389, %v5141, 0
      %5154 = vmatprep.subr.bf16.mxu0 %v5149
      %5155 = vmatpush1.bf16.msra.mxu0 %v5146
      %5156 = vmatprep.subr.bf16.mxu0 0
      %5157 = vmatpush1.bf16.msra.mxu0 0
      %5158 = vmatprep.subr.bf16.mxu0 0
      %5159 = vmatpush1.bf16.msra.mxu0 0
      %5160 = vmatprep.subr.bf16.mxu0 0
      %5161 = vmatpush1.bf16.msra.mxu0 0
      %5162 = vmatprep.subr.bf16.mxu0 0
      %5163 = vmatpush1.bf16.msra.mxu0 0
      %5164 = vmatprep.subr.bf16.mxu0 0
      %5165 = vmatpush1.bf16.msra.mxu0 0
      %5166 = vmatprep.subr.bf16.mxu0 0
      %5167 = vmatpush1.bf16.msra.mxu0 0
      %5168 = vmatprep.subr.bf16.mxu0 0
      %5169 = vmatpush1.bf16.msra.mxu0 0
      %5170 = vmatprep.subr.bf16.mxu0 0
      %5171 = vmatpush1.bf16.msra.mxu0 0
      %5172 = vmatprep.subr.bf16.mxu0 0
      %5173 = vmatpush1.bf16.msra.mxu0 0
      %5174 = vmatprep.subr.bf16.mxu0 0
      %5175 = vmatpush1.bf16.msra.mxu0 0
      %5176 = vmatprep.subr.bf16.mxu0 0
      %5177 = vmatpush1.bf16.msra.mxu0 0
      %5178 = vmatprep.subr.bf16.mxu0 0
      %5179 = vmatpush1.bf16.msra.mxu0 0
      %5180 = vmatprep.subr.bf16.mxu0 0
      %5181 = vmatpush1.bf16.msra.mxu0 0
      %5182 = vmatprep.subr.bf16.mxu0 0
      %5183 = vmatpush1.bf16.msra.mxu0 0
      %5184 = vmatprep.subr.bf16.mxu0 0
      %5185 = vmatpush1.bf16.msra.mxu0 0
      %5186 = vmatprep.mubr.bf16.mxu0 0
      %5187 = vmatmul.mubr.bf16.gmra.mrb[0].mxu0 %v5143
      %v5188 = vpop.f32.mrb[0].mxu0
      %v5189 = vadd.f32 0.0, %v5188
      %v5190 = vpop.f32.mrb[0].mxu0
      %v5191 = vadd.f32 0.0, %v5190
      %v5192 = vpop.f32.mrb[0].mxu0
      %v5193 = vpop.f32.mrb[0].mxu0
      %5194 = vdwg.mxu0
      %5195 = vmatprep.subr.bf16.mxu0 0
      %5196 = vmatpush1.bf16.msra.mxu0 %v5152
      %5197 = vmatprep.subr.bf16.mxu0 0
      %5198 = vmatpush1.bf16.msra.mxu0 0
      %5199 = vmatprep.subr.bf16.mxu0 0
      %5200 = vmatpush1.bf16.msra.mxu0 0
      %5201 = vmatprep.subr.bf16.mxu0 0
      %5202 = vmatpush1.bf16.msra.mxu0 0
      %5203 = vmatprep.subr.bf16.mxu0 0
      %5204 = vmatpush1.bf16.msra.mxu0 0
      %5205 = vmatprep.subr.bf16.mxu0 0
      %5206 = vmatpush1.bf16.msra.mxu0 0
      %5207 = vmatprep.subr.bf16.mxu0 0
      %5208 = vmatpush1.bf16.msra.mxu0 0
      %5209 = vmatprep.subr.bf16.mxu0 0
      %5210 = vmatpush1.bf16.msra.mxu0 0
      %5211 = vmatprep.subr.bf16.mxu0 0
      %5212 = vmatpush1.bf16.msra.mxu0 0
      %5213 = vmatprep.subr.bf16.mxu0 0
      %5214 = vmatpush1.bf16.msra.mxu0 0
      %5215 = vmatprep.subr.bf16.mxu0 0
      %5216 = vmatpush1.bf16.msra.mxu0 0
      %5217 = vmatprep.subr.bf16.mxu0 0
      %5218 = vmatpush1.bf16.msra.mxu0 0
      %5219 = vmatprep.subr.bf16.mxu0 0
      %5220 = vmatpush1.bf16.msra.mxu0 0
      %5221 = vmatprep.subr.bf16.mxu0 0
      %5222 = vmatpush1.bf16.msra.mxu0 0
      %5223 = vmatprep.subr.bf16.mxu0 0
      %5224 = vmatpush1.bf16.msra.mxu0 0
      %5225 = vmatprep.subr.bf16.mxu0 0
      %5226 = vmatpush1.bf16.msra.mxu0 0
      %5227 = vmatprep.mubr.bf16.mxu0 0
      %5228 = vmatmul.mubr.bf16.gmra.mrb[0].mxu0 %v5143
      %v5229 = vpop.f32.mrb[0].mxu0
      %v5230 = vadd.f32 0.0, %v5229
      %v5231 = vpop.f32.mrb[0].mxu0
      %v5232 = vpop.f32.mrb[0].mxu0
      %v5233 = vpop.f32.mrb[0].mxu0
      %5234 = vdwg.mxu0
      %v5235 = vadd.f32 %v5128, %v5189
      %v5236 = vadd.f32 %v5129, %v5191
      %v5237 = vadd.f32 %v5130, %v5230
      %v5238 = vld [vmem:[#allocation2 + $0x4] sm:$0xff]
      %v5239 = vld [vmem:[#allocation2 + $0xc] sm:$0xff]
      %v5240 = vld [vmem:[%s923] sm:$0xf]
      %v5243 = vunpack.c.l.b16 %v5238
      %v5244 = vunpack.c.h.b16 %v5238
      %v5245 = vunpack.c.l.b16 %v5239
      %v5246 = vunpack.c.h.b16 %v5239
      %v5247 = vpack.c.b16 %v5243, %v5243
      %v5248 = vpack.c.b16 %v5244, %v5244
      %v5249 = vpack.c.b16 %v5245, %v5245
      %v5250 = vpack.c.b16 %v5246, %v5246
      %5251 = vrot.lane.b32.xlu0 %v5247, 127
      %v5252 = vpop.permute.xlu0 %5251
      %5253 = vrot.lane.b32.xlu0 %v5248, 127
      %v5254 = vpop.permute.xlu0 %5253
      %5255 = vrot.lane.b32.xlu0 %v5249, 127
      %v5256 = vpop.permute.xlu0 %5255
      %5257 = vrot.lane.b32.xlu0 %v5250, 127
      %v5258 = vpop.permute.xlu0 %5257
      %v5259 = vsel %vm943, %v5252, %v5254
      %v5260 = vsel %vm943, %v5254, %v5256
      %v5261 = vsel %vm943, %v5256, %v5258
      %v5263 = vsel %vm385, %v5240, 0
      %v5266 = vsel %vm389, %v5259, 0
      %v5269 = vsel %vm389, %v5260, 0
      %v5272 = vsel %vm389, %v5261, 0
      %5274 = vmatprep.subr.bf16.mxu0 %v5269
      %5275 = vmatpush1.bf16.msra.mxu0 %v5266
      %5276 = vmatprep.subr.bf16.mxu0 0
      %5277 = vmatpush1.bf16.msra.mxu0 0
      %5278 = vmatprep.subr.bf16.mxu0 0
      %5279 = vmatpush1.bf16.msra.mxu0 0
      %5280 = vmatprep.subr.bf16.mxu0 0
      %5281 = vmatpush1.bf16.msra.mxu0 0
      %5282 = vmatprep.subr.bf16.mxu0 0
      %5283 = vmatpush1.bf16.msra.mxu0 0
      %5284 = vmatprep.subr.bf16.mxu0 0
      %5285 = vmatpush1.bf16.msra.mxu0 0
      %5286 = vmatprep.subr.bf16.mxu0 0
      %5287 = vmatpush1.bf16.msra.mxu0 0
      %5288 = vmatprep.subr.bf16.mxu0 0
      %5289 = vmatpush1.bf16.msra.mxu0 0
      %5290 = vmatprep.subr.bf16.mxu0 0
      %5291 = vmatpush1.bf16.msra.mxu0 0
      %5292 = vmatprep.subr.bf16.mxu0 0
      %5293 = vmatpush1.bf16.msra.mxu0 0
      %5294 = vmatprep.subr.bf16.mxu0 0
      %5295 = vmatpush1.bf16.msra.mxu0 0
      %5296 = vmatprep.subr.bf16.mxu0 0
      %5297 = vmatpush1.bf16.msra.mxu0 0
      %5298 = vmatprep.subr.bf16.mxu0 0
      %5299 = vmatpush1.bf16.msra.mxu0 0
      %5300 = vmatprep.subr.bf16.mxu0 0
      %5301 = vmatpush1.bf16.msra.mxu0 0
      %5302 = vmatprep.subr.bf16.mxu0 0
      %5303 = vmatpush1.bf16.msra.mxu0 0
      %5304 = vmatprep.subr.bf16.mxu0 0
      %5305 = vmatpush1.bf16.msra.mxu0 0
      %5306 = vmatprep.mubr.bf16.mxu0 0
      %5307 = vmatmul.mubr.bf16.gmra.mrb[0].mxu0 %v5263
      %v5308 = vpop.f32.mrb[0].mxu0
      %v5309 = vadd.f32 0.0, %v5308
      %v5310 = vpop.f32.mrb[0].mxu0
      %v5311 = vadd.f32 0.0, %v5310
      %v5312 = vpop.f32.mrb[0].mxu0
      %v5313 = vpop.f32.mrb[0].mxu0
      %5314 = vdwg.mxu0
      %5315 = vmatprep.subr.bf16.mxu0 0
      %5316 = vmatpush1.bf16.msra.mxu0 %v5272
      %5317 = vmatprep.subr.bf16.mxu0 0
      %5318 = vmatpush1.bf16.msra.mxu0 0
      %5319 = vmatprep.subr.bf16.mxu0 0
      %5320 = vmatpush1.bf16.msra.mxu0 0
      %5321 = vmatprep.subr.bf16.mxu0 0
      %5322 = vmatpush1.bf16.msra.mxu0 0
      %5323 = vmatprep.subr.bf16.mxu0 0
      %5324 = vmatpush1.bf16.msra.mxu0 0
      %5325 = vmatprep.subr.bf16.mxu0 0
      %5326 = vmatpush1.bf16.msra.mxu0 0
      %5327 = vmatprep.subr.bf16.mxu0 0
      %5328 = vmatpush1.bf16.msra.mxu0 0
      %5329 = vmatprep.subr.bf16.mxu0 0
      %5330 = vmatpush1.bf16.msra.mxu0 0
      %5331 = vmatprep.subr.bf16.mxu0 0
      %5332 = vmatpush1.bf16.msra.mxu0 0
      %5333 = vmatprep.subr.bf16.mxu0 0
      %5334 = vmatpush1.bf16.msra.mxu0 0
      %5335 = vmatprep.subr.bf16.mxu0 0
      %5336 = vmatpush1.bf16.msra.mxu0 0
      %5337 = vmatprep.subr.bf16.mxu0 0
      %5338 = vmatpush1.bf16.msra.mxu0 0
      %5339 = vmatprep.subr.bf16.mxu0 0
      %5340 = vmatpush1.bf16.msra.mxu0 0
      %5341 = vmatprep.subr.bf16.mxu0 0
      %5342 = vmatpush1.bf16.msra.mxu0 0
      %5343 = vmatprep.subr.bf16.mxu0 0
      %5344 = vmatpush1.bf16.msra.mxu0 0
      %5345 = vmatprep.subr.bf16.mxu0 0
      %5346 = vmatpush1.bf16.msra.mxu0 0
      %5347 = vmatprep.mubr.bf16.mxu0 0
      %5348 = vmatmul.mubr.bf16.gmra.mrb[0].mxu0 %v5263
      %v5349 = vpop.f32.mrb[0].mxu0
      %v5350 = vadd.f32 0.0, %v5349
      %v5351 = vpop.f32.mrb[0].mxu0
      %v5352 = vpop.f32.mrb[0].mxu0
      %v5353 = vpop.f32.mrb[0].mxu0
      %5354 = vdwg.mxu0
      %v5355 = vadd.f32 %v5235, %v5309
      %v5356 = vadd.f32 %v5236, %v5311
      %v5357 = vadd.f32 %v5237, %v5350
      %v5358 = vld [vmem:[%s1043] sm:$0xf]
      %5359 = vrot.lane.b32.xlu0 %v5247, 111
      %v5360 = vpop.permute.xlu0 %5359
      %5361 = vrot.lane.b32.xlu0 %v5248, 111
      %v5362 = vpop.permute.xlu0 %5361
      %5363 = vrot.lane.b32.xlu0 %v5249, 111
      %v5364 = vpop.permute.xlu0 %5363
      %5365 = vrot.lane.b32.xlu0 %v5250, 111
      %v5366 = vpop.permute.xlu0 %5365
      %v5367 = vsel %vm1053, %v5360, %v5362
      %v5368 = vsel %vm1053, %v5362, %v5364
      %v5369 = vsel %vm1053, %v5364, %v5366
      %v5371 = vsel %vm385, %v5358, 0
      %v5374 = vsel %vm389, %v5367, 0
      %v5377 = vsel %vm389, %v5368, 0
      %v5380 = vsel %vm389, %v5369, 0
      %5382 = vmatprep.subr.bf16.mxu0 %v5377
      %5383 = vmatpush1.bf16.msra.mxu0 %v5374
      %5384 = vmatprep.subr.bf16.mxu0 0
      %5385 = vmatpush1.bf16.msra.mxu0 0
      %5386 = vmatprep.subr.bf16.mxu0 0
      %5387 = vmatpush1.bf16.msra.mxu0 0
      %5388 = vmatprep.subr.bf16.mxu0 0
      %5389 = vmatpush1.bf16.msra.mxu0 0
      %5390 = vmatprep.subr.bf16.mxu0 0
      %5391 = vmatpush1.bf16.msra.mxu0 0
      %5392 = vmatprep.subr.bf16.mxu0 0
      %5393 = vmatpush1.bf16.msra.mxu0 0
      %5394 = vmatprep.subr.bf16.mxu0 0
      %5395 = vmatpush1.bf16.msra.mxu0 0
      %5396 = vmatprep.subr.bf16.mxu0 0
      %5397 = vmatpush1.bf16.msra.mxu0 0
      %5398 = vmatprep.subr.bf16.mxu0 0
      %5399 = vmatpush1.bf16.msra.mxu0 0
      %5400 = vmatprep.subr.bf16.mxu0 0
      %5401 = vmatpush1.bf16.msra.mxu0 0
      %5402 = vmatprep.subr.bf16.mxu0 0
      %5403 = vmatpush1.bf16.msra.mxu0 0
      %5404 = vmatprep.subr.bf16.mxu0 0
      %5405 = vmatpush1.bf16.msra.mxu0 0
      %5406 = vmatprep.subr.bf16.mxu0 0
      %5407 = vmatpush1.bf16.msra.mxu0 0
      %5408 = vmatprep.subr.bf16.mxu0 0
      %5409 = vmatpush1.bf16.msra.mxu0 0
      %5410 = vmatprep.subr.bf16.mxu0 0
      %5411 = vmatpush1.bf16.msra.mxu0 0
      %5412 = vmatprep.subr.bf16.mxu0 0
      %5413 = vmatpush1.bf16.msra.mxu0 0
      %5414 = vmatprep.mubr.bf16.mxu0 0
      %5415 = vmatmul.mubr.bf16.gmra.mrb[0].mxu0 %v5371
      %v5416 = vpop.f32.mrb[0].mxu0
      %v5417 = vadd.f32 0.0, %v5416
      %v5418 = vpop.f32.mrb[0].mxu0
      %v5419 = vadd.f32 0.0, %v5418
      %v5420 = vpop.f32.mrb[0].mxu0
      %v5421 = vpop.f32.mrb[0].mxu0
      %5422 = vdwg.mxu0
      %5423 = vmatprep.subr.bf16.mxu0 0
      %5424 = vmatpush1.bf16.msra.mxu0 %v5380
      %5425 = vmatprep.subr.bf16.mxu0 0
      %5426 = vmatpush1.bf16.msra.mxu0 0
      %5427 = vmatprep.subr.bf16.mxu0 0
      %5428 = vmatpush1.bf16.msra.mxu0 0
      %5429 = vmatprep.subr.bf16.mxu0 0
      %5430 = vmatpush1.bf16.msra.mxu0 0
      %5431 = vmatprep.subr.bf16.mxu0 0
      %5432 = vmatpush1.bf16.msra.mxu0 0
      %5433 = vmatprep.subr.bf16.mxu0 0
      %5434 = vmatpush1.bf16.msra.mxu0 0
      %5435 = vmatprep.subr.bf16.mxu0 0
      %5436 = vmatpush1.bf16.msra.mxu0 0
      %5437 = vmatprep.subr.bf16.mxu0 0
      %5438 = vmatpush1.bf16.msra.mxu0 0
      %5439 = vmatprep.subr.bf16.mxu0 0
      %5440 = vmatpush1.bf16.msra.mxu0 0
      %5441 = vmatprep.subr.bf16.mxu0 0
      %5442 = vmatpush1.bf16.msra.mxu0 0
      %5443 = vmatprep.subr.bf16.mxu0 0
      %5444 = vmatpush1.bf16.msra.mxu0 0
      %5445 = vmatprep.subr.bf16.mxu0 0
      %5446 = vmatpush1.bf16.msra.mxu0 0
      %5447 = vmatprep.subr.bf16.mxu0 0
      %5448 = vmatpush1.bf16.msra.mxu0 0
      %5449 = vmatprep.subr.bf16.mxu0 0
      %5450 = vmatpush1.bf16.msra.mxu0 0
      %5451 = vmatprep.subr.bf16.mxu0 0
      %5452 = vmatpush1.bf16.msra.mxu0 0
      %5453 = vmatprep.subr.bf16.mxu0 0
      %5454 = vmatpush1.bf16.msra.mxu0 0
      %5455 = vmatprep.mubr.bf16.mxu0 0
      %5456 = vmatmul.mubr.bf16.gmra.mrb[0].mxu0 %v5371
      %v5457 = vpop.f32.mrb[0].mxu0
      %v5458 = vadd.f32 0.0, %v5457
      %v5459 = vpop.f32.mrb[0].mxu0
      %v5460 = vpop.f32.mrb[0].mxu0
      %v5461 = vpop.f32.mrb[0].mxu0
      %5462 = vdwg.mxu0
      %v5463 = vadd.f32 %v5355, %v5417
      %v5464 = vadd.f32 %v5356, %v5419
      %v5465 = vadd.f32 %v5357, %v5458
      %v5466 = vld [vmem:[%s1153] sm:$0xf]
      %5467 = vrot.lane.b32.xlu0 %v5247, 110
      %v5468 = vpop.permute.xlu0 %5467
      %5469 = vrot.lane.b32.xlu0 %v5248, 110
      %v5470 = vpop.permute.xlu0 %5469
      %5471 = vrot.lane.b32.xlu0 %v5249, 110
      %v5472 = vpop.permute.xlu0 %5471
      %5473 = vrot.lane.b32.xlu0 %v5250, 110
      %v5474 = vpop.permute.xlu0 %5473
      %v5475 = vsel %vm1163, %v5468, %v5470
      %v5476 = vsel %vm1163, %v5470, %v5472
      %v5477 = vsel %vm1163, %v5472, %v5474
      %v5479 = vsel %vm385, %v5466, 0
      %v5482 = vsel %vm389, %v5475, 0
      %v5485 = vsel %vm389, %v5476, 0
      %v5488 = vsel %vm389, %v5477, 0
      %5490 = vmatprep.subr.bf16.mxu0 %v5485
      %5491 = vmatpush1.bf16.msra.mxu0 %v5482
      %5492 = vmatprep.subr.bf16.mxu0 0
      %5493 = vmatpush1.bf16.msra.mxu0 0
      %5494 = vmatprep.subr.bf16.mxu0 0
      %5495 = vmatpush1.bf16.msra.mxu0 0
      %5496 = vmatprep.subr.bf16.mxu0 0
      %5497 = vmatpush1.bf16.msra.mxu0 0
      %5498 = vmatprep.subr.bf16.mxu0 0
      %5499 = vmatpush1.bf16.msra.mxu0 0
      %5500 = vmatprep.subr.bf16.mxu0 0
      %5501 = vmatpush1.bf16.msra.mxu0 0
      %5502 = vmatprep.subr.bf16.mxu0 0
      %5503 = vmatpush1.bf16.msra.mxu0 0
      %5504 = vmatprep.subr.bf16.mxu0 0
      %5505 = vmatpush1.bf16.msra.mxu0 0
      %5506 = vmatprep.subr.bf16.mxu0 0
      %5507 = vmatpush1.bf16.msra.mxu0 0
      %5508 = vmatprep.subr.bf16.mxu0 0
      %5509 = vmatpush1.bf16.msra.mxu0 0
      %5510 = vmatprep.subr.bf16.mxu0 0
      %5511 = vmatpush1.bf16.msra.mxu0 0
      %5512 = vmatprep.subr.bf16.mxu0 0
      %5513 = vmatpush1.bf16.msra.mxu0 0
      %5514 = vmatprep.subr.bf16.mxu0 0
      %5515 = vmatpush1.bf16.msra.mxu0 0
      %5516 = vmatprep.subr.bf16.mxu0 0
      %5517 = vmatpush1.bf16.msra.mxu0 0
      %5518 = vmatprep.subr.bf16.mxu0 0
      %5519 = vmatpush1.bf16.msra.mxu0 0
      %5520 = vmatprep.subr.bf16.mxu0 0
      %5521 = vmatpush1.bf16.msra.mxu0 0
      %5522 = vmatprep.mubr.bf16.mxu0 0
      %5523 = vmatmul.mubr.bf16.gmra.mrb[0].mxu0 %v5479
      %v5524 = vpop.f32.mrb[0].mxu0
      %v5525 = vadd.f32 0.0, %v5524
      %v5526 = vpop.f32.mrb[0].mxu0
      %v5527 = vadd.f32 0.0, %v5526
      %v5528 = vpop.f32.mrb[0].mxu0
      %v5529 = vpop.f32.mrb[0].mxu0
      %5530 = vdwg.mxu0
      %5531 = vmatprep.subr.bf16.mxu0 0
      %5532 = vmatpush1.bf16.msra.mxu0 %v5488
      %5533 = vmatprep.subr.bf16.mxu0 0
      %5534 = vmatpush1.bf16.msra.mxu0 0
      %5535 = vmatprep.subr.bf16.mxu0 0
      %5536 = vmatpush1.bf16.msra.mxu0 0
      %5537 = vmatprep.subr.bf16.mxu0 0
      %5538 = vmatpush1.bf16.msra.mxu0 0
      %5539 = vmatprep.subr.bf16.mxu0 0
      %5540 = vmatpush1.bf16.msra.mxu0 0
      %5541 = vmatprep.subr.bf16.mxu0 0
      %5542 = vmatpush1.bf16.msra.mxu0 0
      %5543 = vmatprep.subr.bf16.mxu0 0
      %5544 = vmatpush1.bf16.msra.mxu0 0
      %5545 = vmatprep.subr.bf16.mxu0 0
      %5546 = vmatpush1.bf16.msra.mxu0 0
      %5547 = vmatprep.subr.bf16.mxu0 0
      %5548 = vmatpush1.bf16.msra.mxu0 0
      %5549 = vmatprep.subr.bf16.mxu0 0
      %5550 = vmatpush1.bf16.msra.mxu0 0
      %5551 = vmatprep.subr.bf16.mxu0 0
      %5552 = vmatpush1.bf16.msra.mxu0 0
      %5553 = vmatprep.subr.bf16.mxu0 0
      %5554 = vmatpush1.bf16.msra.mxu0 0
      %5555 = vmatprep.subr.bf16.mxu0 0
      %5556 = vmatpush1.bf16.msra.mxu0 0
      %5557 = vmatprep.subr.bf16.mxu0 0
      %5558 = vmatpush1.bf16.msra.mxu0 0
      %5559 = vmatprep.subr.bf16.mxu0 0
      %5560 = vmatpush1.bf16.msra.mxu0 0
      %5561 = vmatprep.subr.bf16.mxu0 0
      %5562 = vmatpush1.bf16.msra.mxu0 0
      %5563 = vmatprep.mubr.bf16.mxu0 0
      %5564 = vmatmul.mubr.bf16.gmra.mrb[0].mxu0 %v5479
      %v5565 = vpop.f32.mrb[0].mxu0
      %v5566 = vadd.f32 0.0, %v5565
      %v5567 = vpop.f32.mrb[0].mxu0
      %v5568 = vpop.f32.mrb[0].mxu0
      %v5569 = vpop.f32.mrb[0].mxu0
      %5570 = vdwg.mxu0
      %v5571 = vadd.f32 %v5463, %v5525
      %v5572 = vadd.f32 %v5464, %v5527
      %v5573 = vadd.f32 %v5465, %v5566
      %v5574 = vld [vmem:[%s1263] sm:$0xf]
      %5575 = vrot.lane.b32.xlu0 %v5247, 109
      %v5576 = vpop.permute.xlu0 %5575
      %5577 = vrot.lane.b32.xlu0 %v5248, 109
      %v5578 = vpop.permute.xlu0 %5577
      %5579 = vrot.lane.b32.xlu0 %v5249, 109
      %v5580 = vpop.permute.xlu0 %5579
      %5581 = vrot.lane.b32.xlu0 %v5250, 109
      %v5582 = vpop.permute.xlu0 %5581
      %v5583 = vsel %vm1273, %v5576, %v5578
      %v5584 = vsel %vm1273, %v5578, %v5580
      %v5585 = vsel %vm1273, %v5580, %v5582
      %v5587 = vsel %vm385, %v5574, 0
      %v5590 = vsel %vm389, %v5583, 0
      %v5593 = vsel %vm389, %v5584, 0
      %v5596 = vsel %vm389, %v5585, 0
      %5598 = vmatprep.subr.bf16.mxu0 %v5593
      %5599 = vmatpush1.bf16.msra.mxu0 %v5590
      %5600 = vmatprep.subr.bf16.mxu0 0
      %5601 = vmatpush1.bf16.msra.mxu0 0
      %5602 = vmatprep.subr.bf16.mxu0 0
      %5603 = vmatpush1.bf16.msra.mxu0 0
      %5604 = vmatprep.subr.bf16.mxu0 0
      %5605 = vmatpush1.bf16.msra.mxu0 0
      %5606 = vmatprep.subr.bf16.mxu0 0
      %5607 = vmatpush1.bf16.msra.mxu0 0
      %5608 = vmatprep.subr.bf16.mxu0 0
      %5609 = vmatpush1.bf16.msra.mxu0 0
      %5610 = vmatprep.subr.bf16.mxu0 0
      %5611 = vmatpush1.bf16.msra.mxu0 0
      %5612 = vmatprep.subr.bf16.mxu0 0
      %5613 = vmatpush1.bf16.msra.mxu0 0
      %5614 = vmatprep.subr.bf16.mxu0 0
      %5615 = vmatpush1.bf16.msra.mxu0 0
      %5616 = vmatprep.subr.bf16.mxu0 0
      %5617 = vmatpush1.bf16.msra.mxu0 0
      %5618 = vmatprep.subr.bf16.mxu0 0
      %5619 = vmatpush1.bf16.msra.mxu0 0
      %5620 = vmatprep.subr.bf16.mxu0 0
      %5621 = vmatpush1.bf16.msra.mxu0 0
      %5622 = vmatprep.subr.bf16.mxu0 0
      %5623 = vmatpush1.bf16.msra.mxu0 0
      %5624 = vmatprep.subr.bf16.mxu0 0
      %5625 = vmatpush1.bf16.msra.mxu0 0
      %5626 = vmatprep.subr.bf16.mxu0 0
      %5627 = vmatpush1.bf16.msra.mxu0 0
      %5628 = vmatprep.subr.bf16.mxu0 0
      %5629 = vmatpush1.bf16.msra.mxu0 0
      %5630 = vmatprep.mubr.bf16.mxu0 0
      %5631 = vmatmul.mubr.bf16.gmra.mrb[0].mxu0 %v5587
      %v5632 = vpop.f32.mrb[0].mxu0
      %v5633 = vadd.f32 0.0, %v5632
      %v5634 = vpop.f32.mrb[0].mxu0
      %v5635 = vadd.f32 0.0, %v5634
      %v5636 = vpop.f32.mrb[0].mxu0
      %v5637 = vpop.f32.mrb[0].mxu0
      %5638 = vdwg.mxu0
      %5639 = vmatprep.subr.bf16.mxu0 0
      %5640 = vmatpush1.bf16.msra.mxu0 %v5596
      %5641 = vmatprep.subr.bf16.mxu0 0
      %5642 = vmatpush1.bf16.msra.mxu0 0
      %5643 = vmatprep.subr.bf16.mxu0 0
      %5644 = vmatpush1.bf16.msra.mxu0 0
      %5645 = vmatprep.subr.bf16.mxu0 0
      %5646 = vmatpush1.bf16.msra.mxu0 0
      %5647 = vmatprep.subr.bf16.mxu0 0
      %5648 = vmatpush1.bf16.msra.mxu0 0
      %5649 = vmatprep.subr.bf16.mxu0 0
      %5650 = vmatpush1.bf16.msra.mxu0 0
      %5651 = vmatprep.subr.bf16.mxu0 0
      %5652 = vmatpush1.bf16.msra.mxu0 0
      %5653 = vmatprep.subr.bf16.mxu0 0
      %5654 = vmatpush1.bf16.msra.mxu0 0
      %5655 = vmatprep.subr.bf16.mxu0 0
      %5656 = vmatpush1.bf16.msra.mxu0 0
      %5657 = vmatprep.subr.bf16.mxu0 0
      %5658 = vmatpush1.bf16.msra.mxu0 0
      %5659 = vmatprep.subr.bf16.mxu0 0
      %5660 = vmatpush1.bf16.msra.mxu0 0
      %5661 = vmatprep.subr.bf16.mxu0 0
      %5662 = vmatpush1.bf16.msra.mxu0 0
      %5663 = vmatprep.subr.bf16.mxu0 0
      %5664 = vmatpush1.bf16.msra.mxu0 0
      %5665 = vmatprep.subr.bf16.mxu0 0
      %5666 = vmatpush1.bf16.msra.mxu0 0
      %5667 = vmatprep.subr.bf16.mxu0 0
      %5668 = vmatpush1.bf16.msra.mxu0 0
      %5669 = vmatprep.subr.bf16.mxu0 0
      %5670 = vmatpush1.bf16.msra.mxu0 0
      %5671 = vmatprep.mubr.bf16.mxu0 0
      %5672 = vmatmul.mubr.bf16.gmra.mrb[0].mxu0 %v5587
      %v5673 = vpop.f32.mrb[0].mxu0
      %v5674 = vadd.f32 0.0, %v5673
      %v5675 = vpop.f32.mrb[0].mxu0
      %v5676 = vpop.f32.mrb[0].mxu0
      %v5677 = vpop.f32.mrb[0].mxu0
      %5678 = vdwg.mxu0
      %v5679 = vadd.f32 %v5571, %v5633
      %v5680 = vadd.f32 %v5572, %v5635
      %v5681 = vadd.f32 %v5573, %v5674
      %v5682 = vmax.f32 %v5679, 0.0
      %v5683 = vmax.f32 %v5680, 0.0
      %v5684 = vmax.f32 %v5681, 0.0
      %v5685 = vmul.f32 %v5682, %v315
      %v5686 = vmul.f32 %v5683, %v319
      %v5687 = vmul.f32 %v5684, %v323
      %v5688 = vpack.c.bf16 %v5685, %v5685
      %v5689 = vpack.c.bf16 %v5686, %v5686
      %v5690 = vpack.c.bf16 %v5687, %v5687
      %v5694 = vunpack.c.l.b16 %v5688
      %v5695 = vunpack.c.l.b16 %v5689
      %v5696 = vunpack.c.l.b16 %v5690
      %v5697 = vpack.c.b16 %v5695, %v5694
      %v5698 = vpack.c.b16 %v5696, %v5696
      %5701 = vst [vmem:[#allocation2 + $0x4] sm:$0xff] %v5697
      %5702 = vst [vmem:[#allocation2 + $0xc] sm:$0xf] %v5698
      %v5703 = vld [vmem:[#allocation2] sm:$0xff]
      %v5704 = vld [vmem:[#allocation2 + $0x8] sm:$0xff]
      %v5705 = vld [vmem:[%s4] sm:$0xf]
      %v5708 = vunpack.c.l.b16 %v5703
      %v5709 = vunpack.c.h.b16 %v5703
      %v5710 = vunpack.c.l.b16 %v5704
      %v5711 = vunpack.c.h.b16 %v5704
      %v5712 = vpack.c.b16 %v5708, %v5708
      %v5713 = vpack.c.b16 %v5709, %v5709
      %v5714 = vpack.c.b16 %v5710, %v5710
      %v5715 = vpack.c.b16 %v5711, %v5711
      %5716 = vrot.lane.b32.xlu0 %v5712, 19
      %v5717 = vpop.permute.xlu0 %5716
      %5718 = vrot.lane.b32.xlu0 %v5713, 19
      %v5719 = vpop.permute.xlu0 %5718
      %5720 = vrot.lane.b32.xlu0 %v5714, 19
      %v5721 = vpop.permute.xlu0 %5720
      %5722 = vrot.lane.b32.xlu0 %v5715, 19
      %v5723 = vpop.permute.xlu0 %5722
      %v5724 = vsel %vm381, %v5717, %v5719
      %v5725 = vsel %vm381, %v5719, %v5721
      %v5726 = vsel %vm381, %v5721, %v5723
      %v5728 = vsel %vm385, %v5705, 0
      %v5731 = vsel %vm389, %v5724, 0
      %v5734 = vsel %vm389, %v5725, 0
      %v5737 = vsel %vm389, %v5726, 0
      %5739 = vmatprep.subr.bf16.mxu0 %v5734
      %5740 = vmatpush1.bf16.msra.mxu0 %v5731
      %5741 = vmatprep.subr.bf16.mxu0 0
      %5742 = vmatpush1.bf16.msra.mxu0 0
      %5743 = vmatprep.subr.bf16.mxu0 0
      %5744 = vmatpush1.bf16.msra.mxu0 0
      %5745 = vmatprep.subr.bf16.mxu0 0
      %5746 = vmatpush1.bf16.msra.mxu0 0
      %5747 = vmatprep.subr.bf16.mxu0 0
      %5748 = vmatpush1.bf16.msra.mxu0 0
      %5749 = vmatprep.subr.bf16.mxu0 0
      %5750 = vmatpush1.bf16.msra.mxu0 0
      %5751 = vmatprep.subr.bf16.mxu0 0
      %5752 = vmatpush1.bf16.msra.mxu0 0
      %5753 = vmatprep.subr.bf16.mxu0 0
      %5754 = vmatpush1.bf16.msra.mxu0 0
      %5755 = vmatprep.subr.bf16.mxu0 0
      %5756 = vmatpush1.bf16.msra.mxu0 0
      %5757 = vmatprep.subr.bf16.mxu0 0
      %5758 = vmatpush1.bf16.msra.mxu0 0
      %5759 = vmatprep.subr.bf16.mxu0 0
      %5760 = vmatpush1.bf16.msra.mxu0 0
      %5761 = vmatprep.subr.bf16.mxu0 0
      %5762 = vmatpush1.bf16.msra.mxu0 0
      %5763 = vmatprep.subr.bf16.mxu0 0
      %5764 = vmatpush1.bf16.msra.mxu0 0
      %5765 = vmatprep.subr.bf16.mxu0 0
      %5766 = vmatpush1.bf16.msra.mxu0 0
      %5767 = vmatprep.subr.bf16.mxu0 0
      %5768 = vmatpush1.bf16.msra.mxu0 0
      %5769 = vmatprep.subr.bf16.mxu0 0
      %5770 = vmatpush1.bf16.msra.mxu0 0
      %5771 = vmatprep.mubr.bf16.mxu0 0
      %5772 = vmatmul.mubr.bf16.gmra.mrb[0].mxu0 %v5728
      %v5773 = vpop.f32.mrb[0].mxu0
      %v5774 = vadd.f32 0.0, %v5773
      %v5775 = vpop.f32.mrb[0].mxu0
      %v5776 = vadd.f32 0.0, %v5775
      %v5777 = vpop.f32.mrb[0].mxu0
      %v5778 = vpop.f32.mrb[0].mxu0
      %5779 = vdwg.mxu0
      %5780 = vmatprep.subr.bf16.mxu0 0
      %5781 = vmatpush1.bf16.msra.mxu0 %v5737
      %5782 = vmatprep.subr.bf16.mxu0 0
      %5783 = vmatpush1.bf16.msra.mxu0 0
      %5784 = vmatprep.subr.bf16.mxu0 0
      %5785 = vmatpush1.bf16.msra.mxu0 0
      %5786 = vmatprep.subr.bf16.mxu0 0
      %5787 = vmatpush1.bf16.msra.mxu0 0
      %5788 = vmatprep.subr.bf16.mxu0 0
      %5789 = vmatpush1.bf16.msra.mxu0 0
      %5790 = vmatprep.subr.bf16.mxu0 0
      %5791 = vmatpush1.bf16.msra.mxu0 0
      %5792 = vmatprep.subr.bf16.mxu0 0
      %5793 = vmatpush1.bf16.msra.mxu0 0
      %5794 = vmatprep.subr.bf16.mxu0 0
      %5795 = vmatpush1.bf16.msra.mxu0 0
      %5796 = vmatprep.subr.bf16.mxu0 0
      %5797 = vmatpush1.bf16.msra.mxu0 0
      %5798 = vmatprep.subr.bf16.mxu0 0
      %5799 = vmatpush1.bf16.msra.mxu0 0
      %5800 = vmatprep.subr.bf16.mxu0 0
      %5801 = vmatpush1.bf16.msra.mxu0 0
      %5802 = vmatprep.subr.bf16.mxu0 0
      %5803 = vmatpush1.bf16.msra.mxu0 0
      %5804 = vmatprep.subr.bf16.mxu0 0
      %5805 = vmatpush1.bf16.msra.mxu0 0
      %5806 = vmatprep.subr.bf16.mxu0 0
      %5807 = vmatpush1.bf16.msra.mxu0 0
      %5808 = vmatprep.subr.bf16.mxu0 0
      %5809 = vmatpush1.bf16.msra.mxu0 0
      %5810 = vmatprep.subr.bf16.mxu0 0
      %5811 = vmatpush1.bf16.msra.mxu0 0
      %5812 = vmatprep.mubr.bf16.mxu0 0
      %5813 = vmatmul.mubr.bf16.gmra.mrb[0].mxu0 %v5728
      %v5814 = vpop.f32.mrb[0].mxu0
      %v5815 = vadd.f32 0.0, %v5814
      %v5816 = vpop.f32.mrb[0].mxu0
      %v5817 = vpop.f32.mrb[0].mxu0
      %v5818 = vpop.f32.mrb[0].mxu0
      %5819 = vdwg.mxu0
      %v5820 = vadd.f32 %v337, %v5774
      %v5821 = vadd.f32 %v337, %v5776
      %v5822 = vadd.f32 %v337, %v5815
      %v5823 = vld [vmem:[%s1514] sm:$0xf]
      %5824 = vrot.lane.b32.xlu0 %v5712, 18
      %v5825 = vpop.permute.xlu0 %5824
      %5826 = vrot.lane.b32.xlu0 %v5713, 18
      %v5827 = vpop.permute.xlu0 %5826
      %5828 = vrot.lane.b32.xlu0 %v5714, 18
      %v5829 = vpop.permute.xlu0 %5828
      %5830 = vrot.lane.b32.xlu0 %v5715, 18
      %v5831 = vpop.permute.xlu0 %5830
      %v5832 = vsel %vm493, %v5825, %v5827
      %v5833 = vsel %vm493, %v5827, %v5829
      %v5834 = vsel %vm493, %v5829, %v5831
      %v5836 = vsel %vm385, %v5823, 0
      %v5839 = vsel %vm389, %v5832, 0
      %v5842 = vsel %vm389, %v5833, 0
      %v5845 = vsel %vm389, %v5834, 0
      %5847 = vmatprep.subr.bf16.mxu0 %v5842
      %5848 = vmatpush1.bf16.msra.mxu0 %v5839
      %5849 = vmatprep.subr.bf16.mxu0 0
      %5850 = vmatpush1.bf16.msra.mxu0 0
      %5851 = vmatprep.subr.bf16.mxu0 0
      %5852 = vmatpush1.bf16.msra.mxu0 0
      %5853 = vmatprep.subr.bf16.mxu0 0
      %5854 = vmatpush1.bf16.msra.mxu0 0
      %5855 = vmatprep.subr.bf16.mxu0 0
      %5856 = vmatpush1.bf16.msra.mxu0 0
      %5857 = vmatprep.subr.bf16.mxu0 0
      %5858 = vmatpush1.bf16.msra.mxu0 0
      %5859 = vmatprep.subr.bf16.mxu0 0
      %5860 = vmatpush1.bf16.msra.mxu0 0
      %5861 = vmatprep.subr.bf16.mxu0 0
      %5862 = vmatpush1.bf16.msra.mxu0 0
      %5863 = vmatprep.subr.bf16.mxu0 0
      %5864 = vmatpush1.bf16.msra.mxu0 0
      %5865 = vmatprep.subr.bf16.mxu0 0
      %5866 = vmatpush1.bf16.msra.mxu0 0
      %5867 = vmatprep.subr.bf16.mxu0 0
      %5868 = vmatpush1.bf16.msra.mxu0 0
      %5869 = vmatprep.subr.bf16.mxu0 0
      %5870 = vmatpush1.bf16.msra.mxu0 0
      %5871 = vmatprep.subr.bf16.mxu0 0
      %5872 = vmatpush1.bf16.msra.mxu0 0
      %5873 = vmatprep.subr.bf16.mxu0 0
      %5874 = vmatpush1.bf16.msra.mxu0 0
      %5875 = vmatprep.subr.bf16.mxu0 0
      %5876 = vmatpush1.bf16.msra.mxu0 0
      %5877 = vmatprep.subr.bf16.mxu0 0
      %5878 = vmatpush1.bf16.msra.mxu0 0
      %5879 = vmatprep.mubr.bf16.mxu0 0
      %5880 = vmatmul.mubr.bf16.gmra.mrb[0].mxu0 %v5836
      %v5881 = vpop.f32.mrb[0].mxu0
      %v5882 = vadd.f32 0.0, %v5881
      %v5883 = vpop.f32.mrb[0].mxu0
      %v5884 = vadd.f32 0.0, %v5883
      %v5885 = vpop.f32.mrb[0].mxu0
      %v5886 = vpop.f32.mrb[0].mxu0
      %5887 = vdwg.mxu0
      %5888 = vmatprep.subr.bf16.mxu0 0
      %5889 = vmatpush1.bf16.msra.mxu0 %v5845
      %5890 = vmatprep.subr.bf16.mxu0 0
      %5891 = vmatpush1.bf16.msra.mxu0 0
      %5892 = vmatprep.subr.bf16.mxu0 0
      %5893 = vmatpush1.bf16.msra.mxu0 0
      %5894 = vmatprep.subr.bf16.mxu0 0
      %5895 = vmatpush1.bf16.msra.mxu0 0
      %5896 = vmatprep.subr.bf16.mxu0 0
      %5897 = vmatpush1.bf16.msra.mxu0 0
      %5898 = vmatprep.subr.bf16.mxu0 0
      %5899 = vmatpush1.bf16.msra.mxu0 0
      %5900 = vmatprep.subr.bf16.mxu0 0
      %5901 = vmatpush1.bf16.msra.mxu0 0
      %5902 = vmatprep.subr.bf16.mxu0 0
      %5903 = vmatpush1.bf16.msra.mxu0 0
      %5904 = vmatprep.subr.bf16.mxu0 0
      %5905 = vmatpush1.bf16.msra.mxu0 0
      %5906 = vmatprep.subr.bf16.mxu0 0
      %5907 = vmatpush1.bf16.msra.mxu0 0
      %5908 = vmatprep.subr.bf16.mxu0 0
      %5909 = vmatpush1.bf16.msra.mxu0 0
      %5910 = vmatprep.subr.bf16.mxu0 0
      %5911 = vmatpush1.bf16.msra.mxu0 0
      %5912 = vmatprep.subr.bf16.mxu0 0
      %5913 = vmatpush1.bf16.msra.mxu0 0
      %5914 = vmatprep.subr.bf16.mxu0 0
      %5915 = vmatpush1.bf16.msra.mxu0 0
      %5916 = vmatprep.subr.bf16.mxu0 0
      %5917 = vmatpush1.bf16.msra.mxu0 0
      %5918 = vmatprep.subr.bf16.mxu0 0
      %5919 = vmatpush1.bf16.msra.mxu0 0
      %5920 = vmatprep.mubr.bf16.mxu0 0
      %5921 = vmatmul.mubr.bf16.gmra.mrb[0].mxu0 %v5836
      %v5922 = vpop.f32.mrb[0].mxu0
      %v5923 = vadd.f32 0.0, %v5922
      %v5924 = vpop.f32.mrb[0].mxu0
      %v5925 = vpop.f32.mrb[0].mxu0
      %v5926 = vpop.f32.mrb[0].mxu0
      %5927 = vdwg.mxu0
      %v5928 = vadd.f32 %v5820, %v5882
      %v5929 = vadd.f32 %v5821, %v5884
      %v5930 = vadd.f32 %v5822, %v5923
      %v5931 = vld [vmem:[%s1623] sm:$0xf]
      %5932 = vrot.lane.b32.xlu0 %v5712, 17
      %v5933 = vpop.permute.xlu0 %5932
      %5934 = vrot.lane.b32.xlu0 %v5713, 17
      %v5935 = vpop.permute.xlu0 %5934
      %5936 = vrot.lane.b32.xlu0 %v5714, 17
      %v5937 = vpop.permute.xlu0 %5936
      %5938 = vrot.lane.b32.xlu0 %v5715, 17
      %v5939 = vpop.permute.xlu0 %5938
      %v5940 = vsel %vm603, %v5933, %v5935
      %v5941 = vsel %vm603, %v5935, %v5937
      %v5942 = vsel %vm603, %v5937, %v5939
      %v5944 = vsel %vm385, %v5931, 0
      %v5947 = vsel %vm389, %v5940, 0
      %v5950 = vsel %vm389, %v5941, 0
      %v5953 = vsel %vm389, %v5942, 0
      %5955 = vmatprep.subr.bf16.mxu0 %v5950
      %5956 = vmatpush1.bf16.msra.mxu0 %v5947
      %5957 = vmatprep.subr.bf16.mxu0 0
      %5958 = vmatpush1.bf16.msra.mxu0 0
      %5959 = vmatprep.subr.bf16.mxu0 0
      %5960 = vmatpush1.bf16.msra.mxu0 0
      %5961 = vmatprep.subr.bf16.mxu0 0
      %5962 = vmatpush1.bf16.msra.mxu0 0
      %5963 = vmatprep.subr.bf16.mxu0 0
      %5964 = vmatpush1.bf16.msra.mxu0 0
      %5965 = vmatprep.subr.bf16.mxu0 0
      %5966 = vmatpush1.bf16.msra.mxu0 0
      %5967 = vmatprep.subr.bf16.mxu0 0
      %5968 = vmatpush1.bf16.msra.mxu0 0
      %5969 = vmatprep.subr.bf16.mxu0 0
      %5970 = vmatpush1.bf16.msra.mxu0 0
      %5971 = vmatprep.subr.bf16.mxu0 0
      %5972 = vmatpush1.bf16.msra.mxu0 0
      %5973 = vmatprep.subr.bf16.mxu0 0
      %5974 = vmatpush1.bf16.msra.mxu0 0
      %5975 = vmatprep.subr.bf16.mxu0 0
      %5976 = vmatpush1.bf16.msra.mxu0 0
      %5977 = vmatprep.subr.bf16.mxu0 0
      %5978 = vmatpush1.bf16.msra.mxu0 0
      %5979 = vmatprep.subr.bf16.mxu0 0
      %5980 = vmatpush1.bf16.msra.mxu0 0
      %5981 = vmatprep.subr.bf16.mxu0 0
      %5982 = vmatpush1.bf16.msra.mxu0 0
      %5983 = vmatprep.subr.bf16.mxu0 0
      %5984 = vmatpush1.bf16.msra.mxu0 0
      %5985 = vmatprep.subr.bf16.mxu0 0
      %5986 = vmatpush1.bf16.msra.mxu0 0
      %5987 = vmatprep.mubr.bf16.mxu0 0
      %5988 = vmatmul.mubr.bf16.gmra.mrb[0].mxu0 %v5944
      %v5989 = vpop.f32.mrb[0].mxu0
      %v5990 = vadd.f32 0.0, %v5989
      %v5991 = vpop.f32.mrb[0].mxu0
      %v5992 = vadd.f32 0.0, %v5991
      %v5993 = vpop.f32.mrb[0].mxu0
      %v5994 = vpop.f32.mrb[0].mxu0
      %5995 = vdwg.mxu0
      %5996 = vmatprep.subr.bf16.mxu0 0
      %5997 = vmatpush1.bf16.msra.mxu0 %v5953
      %5998 = vmatprep.subr.bf16.mxu0 0
      %5999 = vmatpush1.bf16.msra.mxu0 0
      %6000 = vmatprep.subr.bf16.mxu0 0
      %6001 = vmatpush1.bf16.msra.mxu0 0
      %6002 = vmatprep.subr.bf16.mxu0 0
      %6003 = vmatpush1.bf16.msra.mxu0 0
      %6004 = vmatprep.subr.bf16.mxu0 0
      %6005 = vmatpush1.bf16.msra.mxu0 0
      %6006 = vmatprep.subr.bf16.mxu0 0
      %6007 = vmatpush1.bf16.msra.mxu0 0
      %6008 = vmatprep.subr.bf16.mxu0 0
      %6009 = vmatpush1.bf16.msra.mxu0 0
      %6010 = vmatprep.subr.bf16.mxu0 0
      %6011 = vmatpush1.bf16.msra.mxu0 0
      %6012 = vmatprep.subr.bf16.mxu0 0
      %6013 = vmatpush1.bf16.msra.mxu0 0
      %6014 = vmatprep.subr.bf16.mxu0 0
      %6015 = vmatpush1.bf16.msra.mxu0 0
      %6016 = vmatprep.subr.bf16.mxu0 0
      %6017 = vmatpush1.bf16.msra.mxu0 0
      %6018 = vmatprep.subr.bf16.mxu0 0
      %6019 = vmatpush1.bf16.msra.mxu0 0
      %6020 = vmatprep.subr.bf16.mxu0 0
      %6021 = vmatpush1.bf16.msra.mxu0 0
      %6022 = vmatprep.subr.bf16.mxu0 0
      %6023 = vmatpush1.bf16.msra.mxu0 0
      %6024 = vmatprep.subr.bf16.mxu0 0
      %6025 = vmatpush1.bf16.msra.mxu0 0
      %6026 = vmatprep.subr.bf16.mxu0 0
      %6027 = vmatpush1.bf16.msra.mxu0 0
      %6028 = vmatprep.mubr.bf16.mxu0 0
      %6029 = vmatmul.mubr.bf16.gmra.mrb[0].mxu0 %v5944
      %v6030 = vpop.f32.mrb[0].mxu0
      %v6031 = vadd.f32 0.0, %v6030
      %v6032 = vpop.f32.mrb[0].mxu0
      %v6033 = vpop.f32.mrb[0].mxu0
      %v6034 = vpop.f32.mrb[0].mxu0
      %6035 = vdwg.mxu0
      %v6036 = vadd.f32 %v5928, %v5990
      %v6037 = vadd.f32 %v5929, %v5992
      %v6038 = vadd.f32 %v5930, %v6031
      %v6039 = vld [vmem:[%s1732] sm:$0xf]
      %6040 = vrot.lane.b32.xlu0 %v5712, 1
      %v6041 = vpop.permute.xlu0 %6040
      %6042 = vrot.lane.b32.xlu0 %v5713, 1
      %v6043 = vpop.permute.xlu0 %6042
      %6044 = vrot.lane.b32.xlu0 %v5714, 1
      %v6045 = vpop.permute.xlu0 %6044
      %6046 = vrot.lane.b32.xlu0 %v5715, 1
      %v6047 = vpop.permute.xlu0 %6046
      %v6048 = vsel %vm713, %v6041, %v6043
      %v6049 = vsel %vm713, %v6043, %v6045
      %v6050 = vsel %vm713, %v6045, %v6047
      %v6052 = vsel %vm385, %v6039, 0
      %v6055 = vsel %vm389, %v6048, 0
      %v6058 = vsel %vm389, %v6049, 0
      %v6061 = vsel %vm389, %v6050, 0
      %6063 = vmatprep.subr.bf16.mxu0 %v6058
      %6064 = vmatpush1.bf16.msra.mxu0 %v6055
      %6065 = vmatprep.subr.bf16.mxu0 0
      %6066 = vmatpush1.bf16.msra.mxu0 0
      %6067 = vmatprep.subr.bf16.mxu0 0
      %6068 = vmatpush1.bf16.msra.mxu0 0
      %6069 = vmatprep.subr.bf16.mxu0 0
      %6070 = vmatpush1.bf16.msra.mxu0 0
      %6071 = vmatprep.subr.bf16.mxu0 0
      %6072 = vmatpush1.bf16.msra.mxu0 0
      %6073 = vmatprep.subr.bf16.mxu0 0
      %6074 = vmatpush1.bf16.msra.mxu0 0
      %6075 = vmatprep.subr.bf16.mxu0 0
      %6076 = vmatpush1.bf16.msra.mxu0 0
      %6077 = vmatprep.subr.bf16.mxu0 0
      %6078 = vmatpush1.bf16.msra.mxu0 0
      %6079 = vmatprep.subr.bf16.mxu0 0
      %6080 = vmatpush1.bf16.msra.mxu0 0
      %6081 = vmatprep.subr.bf16.mxu0 0
      %6082 = vmatpush1.bf16.msra.mxu0 0
      %6083 = vmatprep.subr.bf16.mxu0 0
      %6084 = vmatpush1.bf16.msra.mxu0 0
      %6085 = vmatprep.subr.bf16.mxu0 0
      %6086 = vmatpush1.bf16.msra.mxu0 0
      %6087 = vmatprep.subr.bf16.mxu0 0
      %6088 = vmatpush1.bf16.msra.mxu0 0
      %6089 = vmatprep.subr.bf16.mxu0 0
      %6090 = vmatpush1.bf16.msra.mxu0 0
      %6091 = vmatprep.subr.bf16.mxu0 0
      %6092 = vmatpush1.bf16.msra.mxu0 0
      %6093 = vmatprep.subr.bf16.mxu0 0
      %6094 = vmatpush1.bf16.msra.mxu0 0
      %6095 = vmatprep.mubr.bf16.mxu0 0
      %6096 = vmatmul.mubr.bf16.gmra.mrb[0].mxu0 %v6052
      %v6097 = vpop.f32.mrb[0].mxu0
      %v6098 = vadd.f32 0.0, %v6097
      %v6099 = vpop.f32.mrb[0].mxu0
      %v6100 = vadd.f32 0.0, %v6099
      %v6101 = vpop.f32.mrb[0].mxu0
      %v6102 = vpop.f32.mrb[0].mxu0
      %6103 = vdwg.mxu0
      %6104 = vmatprep.subr.bf16.mxu0 0
      %6105 = vmatpush1.bf16.msra.mxu0 %v6061
      %6106 = vmatprep.subr.bf16.mxu0 0
      %6107 = vmatpush1.bf16.msra.mxu0 0
      %6108 = vmatprep.subr.bf16.mxu0 0
      %6109 = vmatpush1.bf16.msra.mxu0 0
      %6110 = vmatprep.subr.bf16.mxu0 0
      %6111 = vmatpush1.bf16.msra.mxu0 0
      %6112 = vmatprep.subr.bf16.mxu0 0
      %6113 = vmatpush1.bf16.msra.mxu0 0
      %6114 = vmatprep.subr.bf16.mxu0 0
      %6115 = vmatpush1.bf16.msra.mxu0 0
      %6116 = vmatprep.subr.bf16.mxu0 0
      %6117 = vmatpush1.bf16.msra.mxu0 0
      %6118 = vmatprep.subr.bf16.mxu0 0
      %6119 = vmatpush1.bf16.msra.mxu0 0
      %6120 = vmatprep.subr.bf16.mxu0 0
      %6121 = vmatpush1.bf16.msra.mxu0 0
      %6122 = vmatprep.subr.bf16.mxu0 0
      %6123 = vmatpush1.bf16.msra.mxu0 0
      %6124 = vmatprep.subr.bf16.mxu0 0
      %6125 = vmatpush1.bf16.msra.mxu0 0
      %6126 = vmatprep.subr.bf16.mxu0 0
      %6127 = vmatpush1.bf16.msra.mxu0 0
      %6128 = vmatprep.subr.bf16.mxu0 0
      %6129 = vmatpush1.bf16.msra.mxu0 0
      %6130 = vmatprep.subr.bf16.mxu0 0
      %6131 = vmatpush1.bf16.msra.mxu0 0
      %6132 = vmatprep.subr.bf16.mxu0 0
      %6133 = vmatpush1.bf16.msra.mxu0 0
      %6134 = vmatprep.subr.bf16.mxu0 0
      %6135 = vmatpush1.bf16.msra.mxu0 0
      %6136 = vmatprep.mubr.bf16.mxu0 0
      %6137 = vmatmul.mubr.bf16.gmra.mrb[0].mxu0 %v6052
      %v6138 = vpop.f32.mrb[0].mxu0
      %v6139 = vadd.f32 0.0, %v6138
      %v6140 = vpop.f32.mrb[0].mxu0
      %v6141 = vpop.f32.mrb[0].mxu0
      %v6142 = vpop.f32.mrb[0].mxu0
      %6143 = vdwg.mxu0
      %v6144 = vadd.f32 %v6036, %v6098
      %v6145 = vadd.f32 %v6037, %v6100
      %v6146 = vadd.f32 %v6038, %v6139
      %v6147 = vld [vmem:[#allocation2 + $0x4] sm:$0xff]
      %v6148 = vld [vmem:[#allocation2 + $0xc] sm:$0xf]
      %v6149 = vld [vmem:[%s1843] sm:$0xf]
      %v6152 = vunpack.c.l.b16 %v6147
      %v6153 = vunpack.c.h.b16 %v6147
      %v6154 = vunpack.c.l.b16 %v6148
      %v6155 = vpack.c.b16 %v6152, %v6152
      %v6156 = vpack.c.b16 %v6153, %v6153
      %v6157 = vpack.c.b16 %v6154, %v6154
      %v6159 = vsel %vm385, %v6149, 0
      %v6162 = vsel %vm389, %v6155, 0
      %v6165 = vsel %vm389, %v6156, 0
      %v6168 = vsel %vm389, %v6157, 0
      %6170 = vmatprep.subr.bf16.mxu0 %v6165
      %6171 = vmatpush1.bf16.msra.mxu0 %v6162
      %6172 = vmatprep.subr.bf16.mxu0 0
      %6173 = vmatpush1.bf16.msra.mxu0 0
      %6174 = vmatprep.subr.bf16.mxu0 0
      %6175 = vmatpush1.bf16.msra.mxu0 0
      %6176 = vmatprep.subr.bf16.mxu0 0
      %6177 = vmatpush1.bf16.msra.mxu0 0
      %6178 = vmatprep.subr.bf16.mxu0 0
      %6179 = vmatpush1.bf16.msra.mxu0 0
      %6180 = vmatprep.subr.bf16.mxu0 0
      %6181 = vmatpush1.bf16.msra.mxu0 0
      %6182 = vmatprep.subr.bf16.mxu0 0
      %6183 = vmatpush1.bf16.msra.mxu0 0
      %6184 = vmatprep.subr.bf16.mxu0 0
      %6185 = vmatpush1.bf16.msra.mxu0 0
      %6186 = vmatprep.subr.bf16.mxu0 0
      %6187 = vmatpush1.bf16.msra.mxu0 0
      %6188 = vmatprep.subr.bf16.mxu0 0
      %6189 = vmatpush1.bf16.msra.mxu0 0
      %6190 = vmatprep.subr.bf16.mxu0 0
      %6191 = vmatpush1.bf16.msra.mxu0 0
      %6192 = vmatprep.subr.bf16.mxu0 0
      %6193 = vmatpush1.bf16.msra.mxu0 0
      %6194 = vmatprep.subr.bf16.mxu0 0
      %6195 = vmatpush1.bf16.msra.mxu0 0
      %6196 = vmatprep.subr.bf16.mxu0 0
      %6197 = vmatpush1.bf16.msra.mxu0 0
      %6198 = vmatprep.subr.bf16.mxu0 0
      %6199 = vmatpush1.bf16.msra.mxu0 0
      %6200 = vmatprep.subr.bf16.mxu0 0
      %6201 = vmatpush1.bf16.msra.mxu0 0
      %6202 = vmatprep.mubr.bf16.mxu0 0
      %6203 = vmatmul.mubr.bf16.gmra.mrb[0].mxu0 %v6159
      %v6204 = vpop.f32.mrb[0].mxu0
      %v6205 = vadd.f32 0.0, %v6204
      %v6206 = vpop.f32.mrb[0].mxu0
      %v6207 = vadd.f32 0.0, %v6206
      %v6208 = vpop.f32.mrb[0].mxu0
      %v6209 = vpop.f32.mrb[0].mxu0
      %6210 = vdwg.mxu0
      %6211 = vmatprep.subr.bf16.mxu0 0
      %6212 = vmatpush1.bf16.msra.mxu0 %v6168
      %6213 = vmatprep.subr.bf16.mxu0 0
      %6214 = vmatpush1.bf16.msra.mxu0 0
      %6215 = vmatprep.subr.bf16.mxu0 0
      %6216 = vmatpush1.bf16.msra.mxu0 0
      %6217 = vmatprep.subr.bf16.mxu0 0
      %6218 = vmatpush1.bf16.msra.mxu0 0
      %6219 = vmatprep.subr.bf16.mxu0 0
      %6220 = vmatpush1.bf16.msra.mxu0 0
      %6221 = vmatprep.subr.bf16.mxu0 0
      %6222 = vmatpush1.bf16.msra.mxu0 0
      %6223 = vmatprep.subr.bf16.mxu0 0
      %6224 = vmatpush1.bf16.msra.mxu0 0
      %6225 = vmatprep.subr.bf16.mxu0 0
      %6226 = vmatpush1.bf16.msra.mxu0 0
      %6227 = vmatprep.subr.bf16.mxu0 0
      %6228 = vmatpush1.bf16.msra.mxu0 0
      %6229 = vmatprep.subr.bf16.mxu0 0
      %6230 = vmatpush1.bf16.msra.mxu0 0
      %6231 = vmatprep.subr.bf16.mxu0 0
      %6232 = vmatpush1.bf16.msra.mxu0 0
      %6233 = vmatprep.subr.bf16.mxu0 0
      %6234 = vmatpush1.bf16.msra.mxu0 0
      %6235 = vmatprep.subr.bf16.mxu0 0
      %6236 = vmatpush1.bf16.msra.mxu0 0
      %6237 = vmatprep.subr.bf16.mxu0 0
      %6238 = vmatpush1.bf16.msra.mxu0 0
      %6239 = vmatprep.subr.bf16.mxu0 0
      %6240 = vmatpush1.bf16.msra.mxu0 0
      %6241 = vmatprep.subr.bf16.mxu0 0
      %6242 = vmatpush1.bf16.msra.mxu0 0
      %6243 = vmatprep.mubr.bf16.mxu0 0
      %6244 = vmatmul.mubr.bf16.gmra.mrb[0].mxu0 %v6159
      %v6245 = vpop.f32.mrb[0].mxu0
      %v6246 = vadd.f32 0.0, %v6245
      %v6247 = vpop.f32.mrb[0].mxu0
      %v6248 = vpop.f32.mrb[0].mxu0
      %v6249 = vpop.f32.mrb[0].mxu0
      %6250 = vdwg.mxu0
      %v6251 = vadd.f32 %v6144, %v6205
      %v6252 = vadd.f32 %v6145, %v6207
      %v6253 = vadd.f32 %v6146, %v6246
      %v6254 = vld [vmem:[#allocation2 + $0x4] sm:$0xff]
      %v6255 = vld [vmem:[#allocation2 + $0xc] sm:$0xff]
      %v6256 = vld [vmem:[%s1951] sm:$0xf]
      %v6259 = vunpack.c.l.b16 %v6254
      %v6260 = vunpack.c.h.b16 %v6254
      %v6261 = vunpack.c.l.b16 %v6255
      %v6262 = vunpack.c.h.b16 %v6255
      %v6263 = vpack.c.b16 %v6259, %v6259
      %v6264 = vpack.c.b16 %v6260, %v6260
      %v6265 = vpack.c.b16 %v6261, %v6261
      %v6266 = vpack.c.b16 %v6262, %v6262
      %6267 = vrot.lane.b32.xlu0 %v6263, 127
      %v6268 = vpop.permute.xlu0 %6267
      %6269 = vrot.lane.b32.xlu0 %v6264, 127
      %v6270 = vpop.permute.xlu0 %6269
      %6271 = vrot.lane.b32.xlu0 %v6265, 127
      %v6272 = vpop.permute.xlu0 %6271
      %6273 = vrot.lane.b32.xlu0 %v6266, 127
      %v6274 = vpop.permute.xlu0 %6273
      %v6275 = vsel %vm943, %v6268, %v6270
      %v6276 = vsel %vm943, %v6270, %v6272
      %v6277 = vsel %vm943, %v6272, %v6274
      %v6279 = vsel %vm385, %v6256, 0
      %v6282 = vsel %vm389, %v6275, 0
      %v6285 = vsel %vm389, %v6276, 0
      %v6288 = vsel %vm389, %v6277, 0
      %6290 = vmatprep.subr.bf16.mxu0 %v6285
      %6291 = vmatpush1.bf16.msra.mxu0 %v6282
      %6292 = vmatprep.subr.bf16.mxu0 0
      %6293 = vmatpush1.bf16.msra.mxu0 0
      %6294 = vmatprep.subr.bf16.mxu0 0
      %6295 = vmatpush1.bf16.msra.mxu0 0
      %6296 = vmatprep.subr.bf16.mxu0 0
      %6297 = vmatpush1.bf16.msra.mxu0 0
      %6298 = vmatprep.subr.bf16.mxu0 0
      %6299 = vmatpush1.bf16.msra.mxu0 0
      %6300 = vmatprep.subr.bf16.mxu0 0
      %6301 = vmatpush1.bf16.msra.mxu0 0
      %6302 = vmatprep.subr.bf16.mxu0 0
      %6303 = vmatpush1.bf16.msra.mxu0 0
      %6304 = vmatprep.subr.bf16.mxu0 0
      %6305 = vmatpush1.bf16.msra.mxu0 0
      %6306 = vmatprep.subr.bf16.mxu0 0
      %6307 = vmatpush1.bf16.msra.mxu0 0
      %6308 = vmatprep.subr.bf16.mxu0 0
      %6309 = vmatpush1.bf16.msra.mxu0 0
      %6310 = vmatprep.subr.bf16.mxu0 0
      %6311 = vmatpush1.bf16.msra.mxu0 0
      %6312 = vmatprep.subr.bf16.mxu0 0
      %6313 = vmatpush1.bf16.msra.mxu0 0
      %6314 = vmatprep.subr.bf16.mxu0 0
      %6315 = vmatpush1.bf16.msra.mxu0 0
      %6316 = vmatprep.subr.bf16.mxu0 0
      %6317 = vmatpush1.bf16.msra.mxu0 0
      %6318 = vmatprep.subr.bf16.mxu0 0
      %6319 = vmatpush1.bf16.msra.mxu0 0
      %6320 = vmatprep.subr.bf16.mxu0 0
      %6321 = vmatpush1.bf16.msra.mxu0 0
      %6322 = vmatprep.mubr.bf16.mxu0 0
      %6323 = vmatmul.mubr.bf16.gmra.mrb[0].mxu0 %v6279
      %v6324 = vpop.f32.mrb[0].mxu0
      %v6325 = vadd.f32 0.0, %v6324
      %v6326 = vpop.f32.mrb[0].mxu0
      %v6327 = vadd.f32 0.0, %v6326
      %v6328 = vpop.f32.mrb[0].mxu0
      %v6329 = vpop.f32.mrb[0].mxu0
      %6330 = vdwg.mxu0
      %6331 = vmatprep.subr.bf16.mxu0 0
      %6332 = vmatpush1.bf16.msra.mxu0 %v6288
      %6333 = vmatprep.subr.bf16.mxu0 0
      %6334 = vmatpush1.bf16.msra.mxu0 0
      %6335 = vmatprep.subr.bf16.mxu0 0
      %6336 = vmatpush1.bf16.msra.mxu0 0
      %6337 = vmatprep.subr.bf16.mxu0 0
      %6338 = vmatpush1.bf16.msra.mxu0 0
      %6339 = vmatprep.subr.bf16.mxu0 0
      %6340 = vmatpush1.bf16.msra.mxu0 0
      %6341 = vmatprep.subr.bf16.mxu0 0
      %6342 = vmatpush1.bf16.msra.mxu0 0
      %6343 = vmatprep.subr.bf16.mxu0 0
      %6344 = vmatpush1.bf16.msra.mxu0 0
      %6345 = vmatprep.subr.bf16.mxu0 0
      %6346 = vmatpush1.bf16.msra.mxu0 0
      %6347 = vmatprep.subr.bf16.mxu0 0
      %6348 = vmatpush1.bf16.msra.mxu0 0
      %6349 = vmatprep.subr.bf16.mxu0 0
      %6350 = vmatpush1.bf16.msra.mxu0 0
      %6351 = vmatprep.subr.bf16.mxu0 0
      %6352 = vmatpush1.bf16.msra.mxu0 0
      %6353 = vmatprep.subr.bf16.mxu0 0
      %6354 = vmatpush1.bf16.msra.mxu0 0
      %6355 = vmatprep.subr.bf16.mxu0 0
      %6356 = vmatpush1.bf16.msra.mxu0 0
      %6357 = vmatprep.subr.bf16.mxu0 0
      %6358 = vmatpush1.bf16.msra.mxu0 0
      %6359 = vmatprep.subr.bf16.mxu0 0
      %6360 = vmatpush1.bf16.msra.mxu0 0
      %6361 = vmatprep.subr.bf16.mxu0 0
      %6362 = vmatpush1.bf16.msra.mxu0 0
      %6363 = vmatprep.mubr.bf16.mxu0 0
      %6364 = vmatmul.mubr.bf16.gmra.mrb[0].mxu0 %v6279
      %v6365 = vpop.f32.mrb[0].mxu0
      %v6366 = vadd.f32 0.0, %v6365
      %v6367 = vpop.f32.mrb[0].mxu0
      %v6368 = vpop.f32.mrb[0].mxu0
      %v6369 = vpop.f32.mrb[0].mxu0
      %6370 = vdwg.mxu0
      %v6371 = vadd.f32 %v6251, %v6325
      %v6372 = vadd.f32 %v6252, %v6327
      %v6373 = vadd.f32 %v6253, %v6366
      %v6374 = vld [vmem:[%s2070] sm:$0xf]
      %6375 = vrot.lane.b32.xlu0 %v6263, 111
      %v6376 = vpop.permute.xlu0 %6375
      %6377 = vrot.lane.b32.xlu0 %v6264, 111
      %v6378 = vpop.permute.xlu0 %6377
      %6379 = vrot.lane.b32.xlu0 %v6265, 111
      %v6380 = vpop.permute.xlu0 %6379
      %6381 = vrot.lane.b32.xlu0 %v6266, 111
      %v6382 = vpop.permute.xlu0 %6381
      %v6383 = vsel %vm1053, %v6376, %v6378
      %v6384 = vsel %vm1053, %v6378, %v6380
      %v6385 = vsel %vm1053, %v6380, %v6382
      %v6387 = vsel %vm385, %v6374, 0
      %v6390 = vsel %vm389, %v6383, 0
      %v6393 = vsel %vm389, %v6384, 0
      %v6396 = vsel %vm389, %v6385, 0
      %6398 = vmatprep.subr.bf16.mxu0 %v6393
      %6399 = vmatpush1.bf16.msra.mxu0 %v6390
      %6400 = vmatprep.subr.bf16.mxu0 0
      %6401 = vmatpush1.bf16.msra.mxu0 0
      %6402 = vmatprep.subr.bf16.mxu0 0
      %6403 = vmatpush1.bf16.msra.mxu0 0
      %6404 = vmatprep.subr.bf16.mxu0 0
      %6405 = vmatpush1.bf16.msra.mxu0 0
      %6406 = vmatprep.subr.bf16.mxu0 0
      %6407 = vmatpush1.bf16.msra.mxu0 0
      %6408 = vmatprep.subr.bf16.mxu0 0
      %6409 = vmatpush1.bf16.msra.mxu0 0
      %6410 = vmatprep.subr.bf16.mxu0 0
      %6411 = vmatpush1.bf16.msra.mxu0 0
      %6412 = vmatprep.subr.bf16.mxu0 0
      %6413 = vmatpush1.bf16.msra.mxu0 0
      %6414 = vmatprep.subr.bf16.mxu0 0
      %6415 = vmatpush1.bf16.msra.mxu0 0
      %6416 = vmatprep.subr.bf16.mxu0 0
      %6417 = vmatpush1.bf16.msra.mxu0 0
      %6418 = vmatprep.subr.bf16.mxu0 0
      %6419 = vmatpush1.bf16.msra.mxu0 0
      %6420 = vmatprep.subr.bf16.mxu0 0
      %6421 = vmatpush1.bf16.msra.mxu0 0
      %6422 = vmatprep.subr.bf16.mxu0 0
      %6423 = vmatpush1.bf16.msra.mxu0 0
      %6424 = vmatprep.subr.bf16.mxu0 0
      %6425 = vmatpush1.bf16.msra.mxu0 0
      %6426 = vmatprep.subr.bf16.mxu0 0
      %6427 = vmatpush1.bf16.msra.mxu0 0
      %6428 = vmatprep.subr.bf16.mxu0 0
      %6429 = vmatpush1.bf16.msra.mxu0 0
      %6430 = vmatprep.mubr.bf16.mxu0 0
      %6431 = vmatmul.mubr.bf16.gmra.mrb[0].mxu0 %v6387
      %v6432 = vpop.f32.mrb[0].mxu0
      %v6433 = vadd.f32 0.0, %v6432
      %v6434 = vpop.f32.mrb[0].mxu0
      %v6435 = vadd.f32 0.0, %v6434
      %v6436 = vpop.f32.mrb[0].mxu0
      %v6437 = vpop.f32.mrb[0].mxu0
      %6438 = vdwg.mxu0
      %6439 = vmatprep.subr.bf16.mxu0 0
      %6440 = vmatpush1.bf16.msra.mxu0 %v6396
      %6441 = vmatprep.subr.bf16.mxu0 0
      %6442 = vmatpush1.bf16.msra.mxu0 0
      %6443 = vmatprep.subr.bf16.mxu0 0
      %6444 = vmatpush1.bf16.msra.mxu0 0
      %6445 = vmatprep.subr.bf16.mxu0 0
      %6446 = vmatpush1.bf16.msra.mxu0 0
      %6447 = vmatprep.subr.bf16.mxu0 0
      %6448 = vmatpush1.bf16.msra.mxu0 0
      %6449 = vmatprep.subr.bf16.mxu0 0
      %6450 = vmatpush1.bf16.msra.mxu0 0
      %6451 = vmatprep.subr.bf16.mxu0 0
      %6452 = vmatpush1.bf16.msra.mxu0 0
      %6453 = vmatprep.subr.bf16.mxu0 0
      %6454 = vmatpush1.bf16.msra.mxu0 0
      %6455 = vmatprep.subr.bf16.mxu0 0
      %6456 = vmatpush1.bf16.msra.mxu0 0
      %6457 = vmatprep.subr.bf16.mxu0 0
      %6458 = vmatpush1.bf16.msra.mxu0 0
      %6459 = vmatprep.subr.bf16.mxu0 0
      %6460 = vmatpush1.bf16.msra.mxu0 0
      %6461 = vmatprep.subr.bf16.mxu0 0
      %6462 = vmatpush1.bf16.msra.mxu0 0
      %6463 = vmatprep.subr.bf16.mxu0 0
      %6464 = vmatpush1.bf16.msra.mxu0 0
      %6465 = vmatprep.subr.bf16.mxu0 0
      %6466 = vmatpush1.bf16.msra.mxu0 0
      %6467 = vmatprep.subr.bf16.mxu0 0
      %6468 = vmatpush1.bf16.msra.mxu0 0
      %6469 = vmatprep.subr.bf16.mxu0 0
      %6470 = vmatpush1.bf16.msra.mxu0 0
      %6471 = vmatprep.mubr.bf16.mxu0 0
      %6472 = vmatmul.mubr.bf16.gmra.mrb[0].mxu0 %v6387
      %v6473 = vpop.f32.mrb[0].mxu0
      %v6474 = vadd.f32 0.0, %v6473
      %v6475 = vpop.f32.mrb[0].mxu0
      %v6476 = vpop.f32.mrb[0].mxu0
      %v6477 = vpop.f32.mrb[0].mxu0
      %6478 = vdwg.mxu0
      %v6479 = vadd.f32 %v6371, %v6433
      %v6480 = vadd.f32 %v6372, %v6435
      %v6481 = vadd.f32 %v6373, %v6474
      %v6482 = vld [vmem:[%s2179] sm:$0xf]
      %6483 = vrot.lane.b32.xlu0 %v6263, 110
      %v6484 = vpop.permute.xlu0 %6483
      %6485 = vrot.lane.b32.xlu0 %v6264, 110
      %v6486 = vpop.permute.xlu0 %6485
      %6487 = vrot.lane.b32.xlu0 %v6265, 110
      %v6488 = vpop.permute.xlu0 %6487
      %6489 = vrot.lane.b32.xlu0 %v6266, 110
      %v6490 = vpop.permute.xlu0 %6489
      %v6491 = vsel %vm1163, %v6484, %v6486
      %v6492 = vsel %vm1163, %v6486, %v6488
      %v6493 = vsel %vm1163, %v6488, %v6490
      %v6495 = vsel %vm385, %v6482, 0
      %v6498 = vsel %vm389, %v6491, 0
      %v6501 = vsel %vm389, %v6492, 0
      %v6504 = vsel %vm389, %v6493, 0
      %6506 = vmatprep.subr.bf16.mxu0 %v6501
      %6507 = vmatpush1.bf16.msra.mxu0 %v6498
      %6508 = vmatprep.subr.bf16.mxu0 0
      %6509 = vmatpush1.bf16.msra.mxu0 0
      %6510 = vmatprep.subr.bf16.mxu0 0
      %6511 = vmatpush1.bf16.msra.mxu0 0
      %6512 = vmatprep.subr.bf16.mxu0 0
      %6513 = vmatpush1.bf16.msra.mxu0 0
      %6514 = vmatprep.subr.bf16.mxu0 0
      %6515 = vmatpush1.bf16.msra.mxu0 0
      %6516 = vmatprep.subr.bf16.mxu0 0
      %6517 = vmatpush1.bf16.msra.mxu0 0
      %6518 = vmatprep.subr.bf16.mxu0 0
      %6519 = vmatpush1.bf16.msra.mxu0 0
      %6520 = vmatprep.subr.bf16.mxu0 0
      %6521 = vmatpush1.bf16.msra.mxu0 0
      %6522 = vmatprep.subr.bf16.mxu0 0
      %6523 = vmatpush1.bf16.msra.mxu0 0
      %6524 = vmatprep.subr.bf16.mxu0 0
      %6525 = vmatpush1.bf16.msra.mxu0 0
      %6526 = vmatprep.subr.bf16.mxu0 0
      %6527 = vmatpush1.bf16.msra.mxu0 0
      %6528 = vmatprep.subr.bf16.mxu0 0
      %6529 = vmatpush1.bf16.msra.mxu0 0
      %6530 = vmatprep.subr.bf16.mxu0 0
      %6531 = vmatpush1.bf16.msra.mxu0 0
      %6532 = vmatprep.subr.bf16.mxu0 0
      %6533 = vmatpush1.bf16.msra.mxu0 0
      %6534 = vmatprep.subr.bf16.mxu0 0
      %6535 = vmatpush1.bf16.msra.mxu0 0
      %6536 = vmatprep.subr.bf16.mxu0 0
      %6537 = vmatpush1.bf16.msra.mxu0 0
      %6538 = vmatprep.mubr.bf16.mxu0 0
      %6539 = vmatmul.mubr.bf16.gmra.mrb[0].mxu0 %v6495
      %v6540 = vpop.f32.mrb[0].mxu0
      %v6541 = vadd.f32 0.0, %v6540
      %v6542 = vpop.f32.mrb[0].mxu0
      %v6543 = vadd.f32 0.0, %v6542
      %v6544 = vpop.f32.mrb[0].mxu0
      %v6545 = vpop.f32.mrb[0].mxu0
      %6546 = vdwg.mxu0
      %6547 = vmatprep.subr.bf16.mxu0 0
      %6548 = vmatpush1.bf16.msra.mxu0 %v6504
      %6549 = vmatprep.subr.bf16.mxu0 0
      %6550 = vmatpush1.bf16.msra.mxu0 0
      %6551 = vmatprep.subr.bf16.mxu0 0
      %6552 = vmatpush1.bf16.msra.mxu0 0
      %6553 = vmatprep.subr.bf16.mxu0 0
      %6554 = vmatpush1.bf16.msra.mxu0 0
      %6555 = vmatprep.subr.bf16.mxu0 0
      %6556 = vmatpush1.bf16.msra.mxu0 0
      %6557 = vmatprep.subr.bf16.mxu0 0
      %6558 = vmatpush1.bf16.msra.mxu0 0
      %6559 = vmatprep.subr.bf16.mxu0 0
      %6560 = vmatpush1.bf16.msra.mxu0 0
      %6561 = vmatprep.subr.bf16.mxu0 0
      %6562 = vmatpush1.bf16.msra.mxu0 0
      %6563 = vmatprep.subr.bf16.mxu0 0
      %6564 = vmatpush1.bf16.msra.mxu0 0
      %6565 = vmatprep.subr.bf16.mxu0 0
      %6566 = vmatpush1.bf16.msra.mxu0 0
      %6567 = vmatprep.subr.bf16.mxu0 0
      %6568 = vmatpush1.bf16.msra.mxu0 0
      %6569 = vmatprep.subr.bf16.mxu0 0
      %6570 = vmatpush1.bf16.msra.mxu0 0
      %6571 = vmatprep.subr.bf16.mxu0 0
      %6572 = vmatpush1.bf16.msra.mxu0 0
      %6573 = vmatprep.subr.bf16.mxu0 0
      %6574 = vmatpush1.bf16.msra.mxu0 0
      %6575 = vmatprep.subr.bf16.mxu0 0
      %6576 = vmatpush1.bf16.msra.mxu0 0
      %6577 = vmatprep.subr.bf16.mxu0 0
      %6578 = vmatpush1.bf16.msra.mxu0 0
      %6579 = vmatprep.mubr.bf16.mxu0 0
      %6580 = vmatmul.mubr.bf16.gmra.mrb[0].mxu0 %v6495
      %v6581 = vpop.f32.mrb[0].mxu0
      %v6582 = vadd.f32 0.0, %v6581
      %v6583 = vpop.f32.mrb[0].mxu0
      %v6584 = vpop.f32.mrb[0].mxu0
      %v6585 = vpop.f32.mrb[0].mxu0
      %6586 = vdwg.mxu0
      %v6587 = vadd.f32 %v6479, %v6541
      %v6588 = vadd.f32 %v6480, %v6543
      %v6589 = vadd.f32 %v6481, %v6582
      %v6590 = vld [vmem:[%s2288] sm:$0xf]
      %6591 = vrot.lane.b32.xlu0 %v6263, 109
      %v6592 = vpop.permute.xlu0 %6591
      %6593 = vrot.lane.b32.xlu0 %v6264, 109
      %v6594 = vpop.permute.xlu0 %6593
      %6595 = vrot.lane.b32.xlu0 %v6265, 109
      %v6596 = vpop.permute.xlu0 %6595
      %6597 = vrot.lane.b32.xlu0 %v6266, 109
      %v6598 = vpop.permute.xlu0 %6597
      %v6599 = vsel %vm1273, %v6592, %v6594
      %v6600 = vsel %vm1273, %v6594, %v6596
      %v6601 = vsel %vm1273, %v6596, %v6598
      %v6603 = vsel %vm385, %v6590, 0
      %v6606 = vsel %vm389, %v6599, 0
      %v6609 = vsel %vm389, %v6600, 0
      %v6612 = vsel %vm389, %v6601, 0
      %6614 = vmatprep.subr.bf16.mxu0 %v6609
      %6615 = vmatpush1.bf16.msra.mxu0 %v6606
      %6616 = vmatprep.subr.bf16.mxu0 0
      %6617 = vmatpush1.bf16.msra.mxu0 0
      %6618 = vmatprep.subr.bf16.mxu0 0
      %6619 = vmatpush1.bf16.msra.mxu0 0
      %6620 = vmatprep.subr.bf16.mxu0 0
      %6621 = vmatpush1.bf16.msra.mxu0 0
      %6622 = vmatprep.subr.bf16.mxu0 0
      %6623 = vmatpush1.bf16.msra.mxu0 0
      %6624 = vmatprep.subr.bf16.mxu0 0
      %6625 = vmatpush1.bf16.msra.mxu0 0
      %6626 = vmatprep.subr.bf16.mxu0 0
      %6627 = vmatpush1.bf16.msra.mxu0 0
      %6628 = vmatprep.subr.bf16.mxu0 0
      %6629 = vmatpush1.bf16.msra.mxu0 0
      %6630 = vmatprep.subr.bf16.mxu0 0
      %6631 = vmatpush1.bf16.msra.mxu0 0
      %6632 = vmatprep.subr.bf16.mxu0 0
      %6633 = vmatpush1.bf16.msra.mxu0 0
      %6634 = vmatprep.subr.bf16.mxu0 0
      %6635 = vmatpush1.bf16.msra.mxu0 0
      %6636 = vmatprep.subr.bf16.mxu0 0
      %6637 = vmatpush1.bf16.msra.mxu0 0
      %6638 = vmatprep.subr.bf16.mxu0 0
      %6639 = vmatpush1.bf16.msra.mxu0 0
      %6640 = vmatprep.subr.bf16.mxu0 0
      %6641 = vmatpush1.bf16.msra.mxu0 0
      %6642 = vmatprep.subr.bf16.mxu0 0
      %6643 = vmatpush1.bf16.msra.mxu0 0
      %6644 = vmatprep.subr.bf16.mxu0 0
      %6645 = vmatpush1.bf16.msra.mxu0 0
      %6646 = vmatprep.mubr.bf16.mxu0 0
      %6647 = vmatmul.mubr.bf16.gmra.mrb[0].mxu0 %v6603
      %v6648 = vpop.f32.mrb[0].mxu0
      %v6649 = vadd.f32 0.0, %v6648
      %v6650 = vpop.f32.mrb[0].mxu0
      %v6651 = vadd.f32 0.0, %v6650
      %v6652 = vpop.f32.mrb[0].mxu0
      %v6653 = vpop.f32.mrb[0].mxu0
      %6654 = vdwg.mxu0
      %6655 = vmatprep.subr.bf16.mxu0 0
      %6656 = vmatpush1.bf16.msra.mxu0 %v6612
      %6657 = vmatprep.subr.bf16.mxu0 0
      %6658 = vmatpush1.bf16.msra.mxu0 0
      %6659 = vmatprep.subr.bf16.mxu0 0
      %6660 = vmatpush1.bf16.msra.mxu0 0
      %6661 = vmatprep.subr.bf16.mxu0 0
      %6662 = vmatpush1.bf16.msra.mxu0 0
      %6663 = vmatprep.subr.bf16.mxu0 0
      %6664 = vmatpush1.bf16.msra.mxu0 0
      %6665 = vmatprep.subr.bf16.mxu0 0
      %6666 = vmatpush1.bf16.msra.mxu0 0
      %6667 = vmatprep.subr.bf16.mxu0 0
      %6668 = vmatpush1.bf16.msra.mxu0 0
      %6669 = vmatprep.subr.bf16.mxu0 0
      %6670 = vmatpush1.bf16.msra.mxu0 0
      %6671 = vmatprep.subr.bf16.mxu0 0
      %6672 = vmatpush1.bf16.msra.mxu0 0
      %6673 = vmatprep.subr.bf16.mxu0 0
      %6674 = vmatpush1.bf16.msra.mxu0 0
      %6675 = vmatprep.subr.bf16.mxu0 0
      %6676 = vmatpush1.bf16.msra.mxu0 0
      %6677 = vmatprep.subr.bf16.mxu0 0
      %6678 = vmatpush1.bf16.msra.mxu0 0
      %6679 = vmatprep.subr.bf16.mxu0 0
      %6680 = vmatpush1.bf16.msra.mxu0 0
      %6681 = vmatprep.subr.bf16.mxu0 0
      %6682 = vmatpush1.bf16.msra.mxu0 0
      %6683 = vmatprep.subr.bf16.mxu0 0
      %6684 = vmatpush1.bf16.msra.mxu0 0
      %6685 = vmatprep.subr.bf16.mxu0 0
      %6686 = vmatpush1.bf16.msra.mxu0 0
      %6687 = vmatprep.mubr.bf16.mxu0 0
      %6688 = vmatmul.mubr.bf16.gmra.mrb[0].mxu0 %v6603
      %v6689 = vpop.f32.mrb[0].mxu0
      %v6690 = vadd.f32 0.0, %v6689
      %v6691 = vpop.f32.mrb[0].mxu0
      %v6692 = vpop.f32.mrb[0].mxu0
      %v6693 = vpop.f32.mrb[0].mxu0
      %6694 = vdwg.mxu0
      %v6695 = vadd.f32 %v6587, %v6649
      %v6696 = vadd.f32 %v6588, %v6651
      %v6697 = vadd.f32 %v6589, %v6690
      %v6698 = vadd.f32 %v6695, %v4669
      %v6699 = vadd.f32 %v6696, %v4670
      %v6700 = vadd.f32 %v6697, %v4671
      %v6701 = vmax.f32 %v6698, 0.0
      %v6702 = vmax.f32 %v6699, 0.0
      %v6703 = vmax.f32 %v6700, 0.0
      %v6704 = vmul.f32 %v6701, %v315
      %v6705 = vmul.f32 %v6702, %v319
      %v6706 = vmul.f32 %v6703, %v323
      %v6707 = vpack.c.bf16 %v6704, %v6704
      %v6708 = vpack.c.bf16 %v6705, %v6705
      %v6709 = vpack.c.bf16 %v6706, %v6706
      %v6713 = vrot.slane %v6707, 4
      %v6714 = vrot.slane %v6708, 4
      %v6715 = vrot.slane %v6709, 4
      %6719 = vst [vmem:[#allocation3 + $0x18] sm:$0xf0] %v6713
      %6720 = vst [vmem:[#allocation3 + $0x20] sm:$0xf0] %v6714
      %6721 = vst [vmem:[#allocation3 + $0x28] sm:$0xf0] %v6715
      %s6722 = scalar_lea.vmem %s6, 8
      %v6723 = vld [vmem:[%s6722] sm:$0xf]
      %v6724 = vld [vmem:[#allocation3] sm:$0xff]
      %v6725 = vld [vmem:[#allocation3 + $0x8] sm:$0xff]
      %v6726 = vld [vmem:[#allocation3 + $0x10] sm:$0xff]
      %v6727 = vld [vmem:[#allocation3 + $0x18] sm:$0xff]
      %v6728 = vld [vmem:[#allocation3 + $0x20] sm:$0xff]
      %v6729 = vld [vmem:[#allocation3 + $0x28] sm:$0xff]
      %s6730 = scalar_lea.vmem %s7, 16
      %v6731 = vld [vmem:[%s6730] sm:$0xff]
      %6733 = vset.pattern.permute.xlu0 0
      %6734 = vperm.xlu0 %6733, %v6731
      %v6735 = vpop.permute.xlu0 %6734
      %vm6737 = vcmask 261120
      %v6739 = vsel %vm6737, %v6723, 0
      %6741 = vmatprep.subr.bf16.mxu0 %v6725
      %6742 = vmatpush1.bf16.msra.mxu0 %v6724
      %6743 = vmatprep.subr.bf16.mxu0 %v6728
      %6744 = vmatpush1.bf16.msra.mxu0 %v6727
      %6745 = vmatprep.subr.bf16.mxu0 0
      %6746 = vmatpush1.bf16.msra.mxu0 0
      %6747 = vmatprep.subr.bf16.mxu0 0
      %6748 = vmatpush1.bf16.msra.mxu0 0
      %6749 = vmatprep.subr.bf16.mxu0 0
      %6750 = vmatpush1.bf16.msra.mxu0 0
      %6751 = vmatprep.subr.bf16.mxu0 0
      %6752 = vmatpush1.bf16.msra.mxu0 0
      %6753 = vmatprep.subr.bf16.mxu0 0
      %6754 = vmatpush1.bf16.msra.mxu0 0
      %6755 = vmatprep.subr.bf16.mxu0 0
      %6756 = vmatpush1.bf16.msra.mxu0 0
      %6757 = vmatprep.subr.bf16.mxu0 0
      %6758 = vmatpush1.bf16.msra.mxu0 0
      %6759 = vmatprep.subr.bf16.mxu0 0
      %6760 = vmatpush1.bf16.msra.mxu0 0
      %6761 = vmatprep.subr.bf16.mxu0 0
      %6762 = vmatpush1.bf16.msra.mxu0 0
      %6763 = vmatprep.subr.bf16.mxu0 0
      %6764 = vmatpush1.bf16.msra.mxu0 0
      %6765 = vmatprep.subr.bf16.mxu0 0
      %6766 = vmatpush1.bf16.msra.mxu0 0
      %6767 = vmatprep.subr.bf16.mxu0 0
      %6768 = vmatpush1.bf16.msra.mxu0 0
      %6769 = vmatprep.subr.bf16.mxu0 0
      %6770 = vmatpush1.bf16.msra.mxu0 0
      %6771 = vmatprep.subr.bf16.mxu0 0
      %6772 = vmatpush1.bf16.msra.mxu0 0
      %6773 = vmatprep.mubr.bf16.mxu0 0
      %6774 = vmatmul.mubr.bf16.gmra.mrb[0].mxu0 %v6739
      %v6775 = vpop.f32.mrb[0].mxu0
      %v6776 = vadd.f32 %v6735, %v6775
      %v6777 = vpop.f32.mrb[0].mxu0
      %v6778 = vadd.f32 %v6735, %v6777
      %v6779 = vpop.f32.mrb[0].mxu0
      %v6780 = vpop.f32.mrb[0].mxu0
      %6781 = vdwg.mxu0
      %6782 = vmatprep.subr.bf16.mxu0 0
      %6783 = vmatpush1.bf16.msra.mxu0 %v6726
      %6784 = vmatprep.subr.bf16.mxu0 0
      %6785 = vmatpush1.bf16.msra.mxu0 %v6729
      %6786 = vmatprep.subr.bf16.mxu0 0
      %6787 = vmatpush1.bf16.msra.mxu0 0
      %6788 = vmatprep.subr.bf16.mxu0 0
      %6789 = vmatpush1.bf16.msra.mxu0 0
      %6790 = vmatprep.subr.bf16.mxu0 0
      %6791 = vmatpush1.bf16.msra.mxu0 0
      %6792 = vmatprep.subr.bf16.mxu0 0
      %6793 = vmatpush1.bf16.msra.mxu0 0
      %6794 = vmatprep.subr.bf16.mxu0 0
      %6795 = vmatpush1.bf16.msra.mxu0 0
      %6796 = vmatprep.subr.bf16.mxu0 0
      %6797 = vmatpush1.bf16.msra.mxu0 0
      %6798 = vmatprep.subr.bf16.mxu0 0
      %6799 = vmatpush1.bf16.msra.mxu0 0
      %6800 = vmatprep.subr.bf16.mxu0 0
      %6801 = vmatpush1.bf16.msra.mxu0 0
      %6802 = vmatprep.subr.bf16.mxu0 0
      %6803 = vmatpush1.bf16.msra.mxu0 0
      %6804 = vmatprep.subr.bf16.mxu0 0
      %6805 = vmatpush1.bf16.msra.mxu0 0
      %6806 = vmatprep.subr.bf16.mxu0 0
      %6807 = vmatpush1.bf16.msra.mxu0 0
      %6808 = vmatprep.subr.bf16.mxu0 0
      %6809 = vmatpush1.bf16.msra.mxu0 0
      %6810 = vmatprep.subr.bf16.mxu0 0
      %6811 = vmatpush1.bf16.msra.mxu0 0
      %6812 = vmatprep.subr.bf16.mxu0 0
      %6813 = vmatpush1.bf16.msra.mxu0 0
      %6814 = vmatprep.mubr.bf16.mxu0 0
      %6815 = vmatmul.mubr.bf16.gmra.mrb[0].mxu0 %v6739
      %v6816 = vpop.f32.mrb[0].mxu0
      %v6817 = vadd.f32 %v6735, %v6816
      %v6818 = vpop.f32.mrb[0].mxu0
      %v6819 = vpop.f32.mrb[0].mxu0
      %v6820 = vpop.f32.mrb[0].mxu0
      %6821 = vdwg.mxu0
      %v6822 = vmul.f32 %v6776, %v315
      %v6823 = vmul.f32 %v6778, %v319
      %v6824 = vmul.f32 %v6817, %v323
      %6825 = vst [vmem:[%s305] sm:$0xff] %v6822
      %6826 = vst [vmem:[%s305 + $0x8] sm:$0xff] %v6823
      %6827 = vst [vmem:[%s305 + $0x10] sm:$0xff] %v6824
      %p6828 = scmp.lt.s32.totalorder %s19, 1
      %s6829 = scalar_select %p6828, %s19, 1
      %s6830 = smul.addr %s6829, 3
      %s6831 = smul.addr %s6830, 8
      %s6832 = scalar_lea.vmem %s8, %s6831
      // Predicated region
      $region53: #{recursive_block_pallas.1} parent=51 // pred_check
        %p6833 = pneg %p210
      $region54: #{recursive_block_pallas.1} parent=51 // pred_check_branch
        %6835 = sbr.rel (%p6833) target = $region56
      $region55: #{recursive_block_pallas.1} parent=51 // pred_region
        _
      $region56: #{recursive_block_pallas.1} parent=51 // pred_fallthru
        _
    $region52: #{recursive_block_pallas.1} parent=5 // pred_fallthru
      _
    %p6836 = scmp.le.s32.totalorder 2, %s14
    // Predicated region
    $region57: #{recursive_block_pallas.1} parent=5 // pred_check
      %p6837 = pneg %p6836
    $region58: #{recursive_block_pallas.1} parent=5 // pred_check_branch
      %6839 = sbr.rel (%p6837) target = $region60
    $region59: #{recursive_block_pallas.1} parent=5 // pred_region
      %s6840 = ssub.s32 %s14, 2
      // Predicated region
      $region61: #{recursive_block_pallas.1} parent=59 // pred_check
        %p6841 = pneg %p216
      $region62: #{recursive_block_pallas.1} parent=59 // pred_check_branch
        %6843 = sbr.rel (%p6841) target = $region64
      $region63: #{recursive_block_pallas.1} parent=59 // pred_region
        %p6844 = scmp.lt.s32.totalorder %s20, 1
        %s6845 = scalar_select %p6844, %s20, 1
        %s6846 = smul.addr %s6845, 3
        %s6847 = smul.addr %s6846, 8
        %s6848 = scalar_lea.vmem %s8, %s6847
      $region64: #{recursive_block_pallas.1} parent=59 // pred_fallthru
        _
    $region60: #{recursive_block_pallas.1} parent=5 // pred_fallthru
      _
  $region6: #{recursive_block_pallas.1} parent=0 // loop_footer
    %s18 = sadd.s32 1, %s14
  $region7: #{recursive_block_pallas.1} parent=0 // loop_footer_branch
    %13 = sbr.rel target = $region3
  $region8: #{recursive_block_pallas.1} parent=0 // loop_exit
    _

</llo_original>
